<compile_context>
chip_gen: v7x
topology: tpu7x:2x2x1
jax: 0.10.0
libtpu: 0.0.40
codegen_flags: <defaults>
</compile_context>

<pallas_src>
import functools

import jax
import jax.numpy as jnp
import numpy as np
from jax.experimental import pallas as pl
from jax.experimental.pallas import tpu as pltpu


def _transformer_block_kernel(
    x_ref, k1_ref, v1_ref, k2_ref, v2_ref,
    ln1_w, ln1_b, wq1, wo1, bo1,
    ln2_w, ln2_b, wq2, wo2, bo2,
    ln3_w, ln3_b, w1, b1, w2, b2,
    o_ref,
    *, num_heads: int, n_valid: int, m_valid: int, approx_recip: bool,
):
    cdt = x_ref.dtype                      # MXU input dtype (bf16 or f32)
    x_t = x_ref[...]                       # (tn, D) query / residual tile

    def layernorm(v, w_ref, b_ref):
        vf = v.astype(jnp.float32)
        mean = jnp.mean(vf, axis=-1, keepdims=True)
        c = vf - mean
        var = jnp.mean(c * c, axis=-1, keepdims=True)
        return c * jax.lax.rsqrt(var + 1e-5) * w_ref[0] + b_ref[0]

    def recip(t):
        return pl.reciprocal(t, approx=approx_recip)

    def attention(q_in, k_ref, v_ref, wq_r, wo_r, bo_r, kv_valid):
        kv_total = k_ref.shape[-1]
        q_c = q_in.astype(cdt)
        # Mask keyed on *actual* key validity (not just "did this wrapper pad").
        if kv_valid < kv_total:
            key_ids = jax.lax.broadcasted_iota(jnp.int32, (1, kv_total), 1)
            bias = jnp.where(key_ids < kv_valid, 0.0, -1e30).astype(jnp.float32)
        else:
            bias = None

        heads = []
        for h in range(num_heads):         # unrolled; leading-axis head indexing only
            # Per-head query projection; 1/sqrt(dh) already folded into wq.
            qh = jnp.dot(q_c, wq_r[h],
                         preferred_element_type=jnp.float32).astype(cdt)   # (tn, dh)
            # Scores: (tn, dh) @ (dh, kv) -> lane-dense (tn, kv), no transpose needed.
            s = jnp.dot(qh, k_ref[h], preferred_element_type=jnp.float32)
            if bias is not None:
                s = s + bias
            s = s - jnp.max(s, axis=-1, keepdims=True)
            p = jnp.exp(s)
            p = p * recip(jnp.sum(p, axis=-1, keepdims=True))
            heads.append(jnp.dot(p.astype(cdt), v_ref[h],
                                 preferred_element_type=jnp.float32).astype(cdt))
        # Fused output projection: one inner-wide contraction instead of H small ones.
        o_cat = jnp.concatenate(heads, axis=-1)                     # (tn, inner)
        out = jnp.dot(o_cat, wo_r[...], preferred_element_type=jnp.float32)
        return out + bo_r[0]

    x = x_t.astype(jnp.float32)

    # ---- 1) self attention (K/V pre-projected once per batch in the wrapper) ----
    n1 = layernorm(x_t, ln1_w, ln1_b)
    x = x + attention(n1, k1_ref, v1_ref, wq1, wo1, bo1, n_valid)

    # ---- 2) cross attention (K/V from cond, pre-projected once per batch) ----
    n2 = layernorm(x, ln2_w, ln2_b)
    x = x + attention(n2, k2_ref, v2_ref, wq2, wo2, bo2, m_valid)

    # ---- 3) MLP: Linear(D,4D) -> GELU -> Linear(4D,D) ----
    n3 = layernorm(x, ln3_w, ln3_b)
    h = jnp.dot(n3.astype(cdt), w1[...], preferred_element_type=jnp.float32) + b1[0]
    h = jax.nn.gelu(h)   # TODO(synk): exact-erf GELU to match PyTorch nn.GELU default
    x = x + jnp.dot(h.astype(cdt), w2[...], preferred_element_type=jnp.float32) + b2[0]

    o_ref[...] = x.astype(o_ref.dtype)


def _round_up(a, m):
    return (a + m - 1) // m * m


def _vmem_budget_bytes():
    # ~80% of physical VMEM: ~52 MiB on v7x (64 MiB phys), ~105 MiB on v5e/v6e (128 MiB).
    try:
        cap = pltpu.get_tpu_info().vmem_capacity_bytes
        return max(int(cap * 0.80), 32 * 1024 * 1024)
    except Exception:
        return 64 * 1024 * 1024


def transformer_block(x, cond, params, *, num_heads, dims_head, tile_n=512):
    B, N, D = x.shape
    _, M, _ = cond.shape
    cdt = x.dtype
    H, dh = num_heads, dims_head
    f32 = jnp.float32

    # tile_n default 512 amortizes per-step overhead; sweep per generation if needed.
    tn = _round_up(min(tile_n, _round_up(N, 8)), 8)
    n_pad = _round_up(N, tn)
    m_pad = _round_up(M, 128)          # lane-dense cross-attn score matrix

    x_p = x if n_pad == N else jnp.pad(x, ((0, 0), (0, n_pad - N), (0, 0)))
    c_p = cond if m_pad == M else jnp.pad(cond, ((0, 0), (0, m_pad - M), (0, 0)))

    def head_major(w):                  # (D, H*dh) -> (H, D, dh)
        return jnp.transpose(w.reshape(D, H, dh), (1, 0, 2))

    scale = 1.0 / float(np.sqrt(dh))
    wq1 = (head_major(params["wq1"].astype(f32)) * scale).astype(cdt)   # scale folded in
    wq2 = (head_major(params["wq2"].astype(f32)) * scale).astype(cdt)

    def ln_full(v, w, b):
        vf = v.astype(f32)
        mean = jnp.mean(vf, axis=-1, keepdims=True)
        c = vf - mean
        var = jnp.mean(c * c, axis=-1, keepdims=True)
        return c * jax.lax.rsqrt(var + 1e-5) * w[0] + b[0]

    def kv_project(src, wk, wv):
        # Once per batch in plain XLA, head-major:
        #   K -> (B, H, dh, KV)   (lane-dense in-kernel score matmul, no transpose)
        #   V -> (B, H, KV, dh)
        wk3 = head_major(wk.astype(f32)).astype(cdt)
        wv3 = head_major(wv.astype(f32)).astype(cdt)
        s_c = src.astype(cdt)
        k = jnp.einsum("bnd,hde->bhen", s_c, wk3,
                       preferred_element_type=f32).astype(cdt)
        v = jnp.einsum("bnd,hde->bhne", s_c, wv3,
                       preferred_element_type=f32).astype(cdt)
        return k, v

    k1, v1 = kv_project(ln_full(x_p, params["ln1_w"], params["ln1_b"]),
                        params["wk1"], params["wv1"])
    k2, v2 = kv_project(c_p, params["wk2"], params["wv2"])

    as_c = lambda k: params[k].astype(cdt)            # matmul weights in compute dtype
    as_f = lambda k: params[k].astype(f32)            # norm / bias params stay f32
    ordered = [
        as_f("ln1_w"), as_f("ln1_b"), wq1, as_c("wo1"), as_f("bo1"),
        as_f("ln2_w"), as_f("ln2_b"), wq2, as_c("wo2"), as_f("bo2"),
        as_f("ln3_w"), as_f("ln3_b"), as_c("w1"), as_f("b1"), as_c("w2"), as_f("b2"),
    ]

    kernel = functools.partial(
        _transformer_block_kernel,
        num_heads=H, n_valid=N, m_valid=M,
        approx_recip=(cdt == jnp.bfloat16),
    )

    def build(weight_mode):
        def w_spec(a):
            zeros = (0,) * a.ndim
            imap = lambda b, i, _z=zeros: _z
            if weight_mode is None:
                return pl.BlockSpec(a.shape, imap)
            return pl.BlockSpec(a.shape, imap, pipeline_mode=weight_mode)

        return pl.pallas_call(
            kernel,
            out_shape=jax.ShapeDtypeStruct((B, n_pad, D), cdt),
            grid_spec=pltpu.PrefetchScalarGridSpec(
                num_scalar_prefetch=0,
                grid=(B, n_pad // tn),
                in_specs=[
                    pl.BlockSpec((None, tn, D), lambda b, i: (b, i, 0)),            # q/residual tile
                    pl.BlockSpec((None, H, dh, n_pad), lambda b, i: (b, 0, 0, 0)),  # self-attn K
                    pl.BlockSpec((None, H, n_pad, dh), lambda b, i: (b, 0, 0, 0)),  # self-attn V
                    pl.BlockSpec((None, H, dh, m_pad), lambda b, i: (b, 0, 0, 0)),  # cross-attn K
                    pl.BlockSpec((None, H, m_pad, dh), lambda b, i: (b, 0, 0, 0)),  # cross-attn V
                ] + [w_spec(a) for a in ordered],
                out_specs=pl.BlockSpec((None, tn, D), lambda b, i: (b, i, 0)),
            ),
            compiler_params=pltpu.CompilerParams(
                dimension_semantics=("parallel", "parallel"),
                vmem_limit_bytes=_vmem_budget_bytes(),
            ),
        )

    args = (x_p, k1, v1, k2, v2, *ordered)
    try:
        # Weights never change across the grid -> single-buffer them (halves weight VMEM).
        out = build(pl.Buffered(1))(*args)
        out = jax.block_until_ready(out)
    except Exception:
        # Fallback for JAX versions where pipeline_mode on pallas_call specs is unsupported.
        out = build(None)(*args)

    return out[:, :N, :]


def _reference(x, cond, p, num_heads, dims_head):
    def ln(v, w, b):
        mean = jnp.mean(v, axis=-1, keepdims=True)
        var = jnp.mean((v - mean) ** 2, axis=-1, keepdims=True)
        return (v - mean) * jax.lax.rsqrt(var + 1e-5) * w[0] + b[0]

    def attn(q_in, kv_in, wq, wk, wv, wo, bo):
        B, Nq, _ = q_in.shape
        Nk = kv_in.shape[1]
        q = (q_in @ wq).reshape(B, Nq, num_heads, dims_head)
        k = (kv_in @ wk).reshape(B, Nk, num_heads, dims_head)
        v = (kv_in @ wv).reshape(B, Nk, num_heads, dims_head)
        s = jnp.einsum("bqhd,bkhd->bhqk", q, k) / jnp.sqrt(jnp.float32(dims_head))
        a = jax.nn.softmax(s, axis=-1)
        o = jnp.einsum("bhqk,bkhd->bqhd", a, v).reshape(B, Nq, -1)
        return o @ wo + bo[0]

    n1 = ln(x, p["ln1_w"], p["ln1_b"])
    x = attn(n1, n1, p["wq1"], p["wk1"], p["wv1"], p["wo1"], p["bo1"]) + x
    n2 = ln(x, p["ln2_w"], p["ln2_b"])
    x = attn(n2, cond, p["wq2"], p["wk2"], p["wv2"], p["wo2"], p["bo2"]) + x
    n3 = ln(x, p["ln3_w"], p["ln3_b"])
    h = jax.nn.gelu(n3 @ p["w1"] + p["b1"][0])
    return h @ p["w2"] + p["b2"][0] + x


if __name__ == "__main__":
    B, N, M = 2, 16, 8            # batch, image tokens (4x4 spatial), cond tokens
    D, H, DH = 32, 2, 16          # dims_model, num_heads, dims_head
    INNER, HID = H * DH, 4 * D

    key = jax.random.PRNGKey(0)
    ks = jax.random.split(key, 12)
    f32 = jnp.float32

    def w(k, shape, scl=0.02):
        return (scl * jax.random.normal(k, shape)).astype(f32)

    params = {
        "ln1_w": jnp.ones((1, D), f32), "ln1_b": jnp.zeros((1, D), f32),
        "wq1": w(ks[0], (D, INNER)), "wk1": w(ks[1], (D, INNER)),
        "wv1": w(ks[2], (D, INNER)), "wo1": w(ks[3], (INNER, D)),
        "bo1": jnp.zeros((1, D), f32),
        "ln2_w": jnp.ones((1, D), f32), "ln2_b": jnp.zeros((1, D), f32),
        "wq2": w(ks[4], (D, INNER)), "wk2": w(ks[5], (D, INNER)),
        "wv2": w(ks[6], (D, INNER)), "wo2": w(ks[7], (INNER, D)),
        "bo2": jnp.zeros((1, D), f32),
        "ln3_w": jnp.ones((1, D), f32), "ln3_b": jnp.zeros((1, D), f32),
        "w1": w(ks[8], (D, HID)), "b1": jnp.zeros((1, HID), f32),
        "w2": w(ks[9], (HID, D)), "b2": jnp.zeros((1, D), f32),
    }

    x = jax.random.normal(ks[10], (B, N, D), dtype=f32)
    cond = jax.random.normal(ks[11], (B, M, D), dtype=f32)

    # f32 validation path (tile_n=8 -> two token tiles per batch element, grid=(2, 2)).
    out = transformer_block(x, cond, params, num_heads=H, dims_head=DH, tile_n=8)
    out = jax.block_until_ready(out)
    ref = _reference(x, cond, params, H, DH)
    np.testing.assert_allclose(np.asarray(out), np.asarray(ref), rtol=2e-4, atol=2e-4)

    # bf16 path: bf16 MXU inputs, f32 accumulation, approx softmax reciprocal.
    out_bf = transformer_block(x.astype(jnp.bfloat16), cond.astype(jnp.bfloat16),
                               params, num_heads=H, dims_head=DH, tile_n=8)
    out_bf = jax.block_until_ready(out_bf)
    assert out_bf.dtype == jnp.bfloat16
    np.testing.assert_allclose(np.asarray(out_bf.astype(f32)), np.asarray(ref),
                               rtol=1e-1, atol=1e-1)

    print("KERNEL_OK")
</pallas_src>

<mosaic_0001>
module attributes {stable_mosaic.version = 11 : i64} {
  func.func @_transformer_block_kernel(%arg0: i32, %arg1: i32, %arg2: memref<1x8x32xf32, #tpu.memory_space<vmem>>, %arg3: memref<1x2x16x16xf32, #tpu.memory_space<vmem>>, %arg4: memref<1x2x16x16xf32, #tpu.memory_space<vmem>>, %arg5: memref<1x2x16x128xf32, #tpu.memory_space<vmem>>, %arg6: memref<1x2x128x16xf32, #tpu.memory_space<vmem>>, %arg7: memref<1x32xf32, #tpu.memory_space<vmem>>, %arg8: memref<1x32xf32, #tpu.memory_space<vmem>>, %arg9: memref<2x32x16xf32, #tpu.memory_space<vmem>>, %arg10: memref<32x32xf32, #tpu.memory_space<vmem>>, %arg11: memref<1x32xf32, #tpu.memory_space<vmem>>, %arg12: memref<1x32xf32, #tpu.memory_space<vmem>>, %arg13: memref<1x32xf32, #tpu.memory_space<vmem>>, %arg14: memref<2x32x16xf32, #tpu.memory_space<vmem>>, %arg15: memref<32x32xf32, #tpu.memory_space<vmem>>, %arg16: memref<1x32xf32, #tpu.memory_space<vmem>>, %arg17: memref<1x32xf32, #tpu.memory_space<vmem>>, %arg18: memref<1x32xf32, #tpu.memory_space<vmem>>, %arg19: memref<32x128xf32, #tpu.memory_space<vmem>>, %arg20: memref<1x128xf32, #tpu.memory_space<vmem>>, %arg21: memref<128x32xf32, #tpu.memory_space<vmem>>, %arg22: memref<1x32xf32, #tpu.memory_space<vmem>>, %arg23: memref<1x8x32xf32, #tpu.memory_space<vmem>>) attributes {dimension_semantics = [#tpu.dimension_semantics<parallel>, #tpu.dimension_semantics<parallel>], iteration_bounds = array<i64: 2, 2>, scalar_prefetch = 0 : i64, scratch_operands = 0 : i64, tpu.core_type = #tpu.core_type<tc>, window_params = [{transform_indices = @transform_0, window_bounds = array<i64: 1, 8, 32>}, {transform_indices = @transform_1, window_bounds = array<i64: 1, 2, 16, 16>}, {transform_indices = @transform_2, window_bounds = array<i64: 1, 2, 16, 16>}, {transform_indices = @transform_3, window_bounds = array<i64: 1, 2, 16, 128>}, {transform_indices = @transform_4, window_bounds = array<i64: 1, 2, 128, 16>}, {pipeline_mode = #tpu.pipeline_mode<synchronous>, transform_indices = @transform_5, window_bounds = array<i64: 1, 32>}, {pipeline_mode = #tpu.pipeline_mode<synchronous>, transform_indices = @transform_6, window_bounds = array<i64: 1, 32>}, {pipeline_mode = #tpu.pipeline_mode<synchronous>, transform_indices = @transform_7, window_bounds = array<i64: 2, 32, 16>}, {pipeline_mode = #tpu.pipeline_mode<synchronous>, transform_indices = @transform_8, window_bounds = array<i64: 32, 32>}, {pipeline_mode = #tpu.pipeline_mode<synchronous>, transform_indices = @transform_9, window_bounds = array<i64: 1, 32>}, {pipeline_mode = #tpu.pipeline_mode<synchronous>, transform_indices = @transform_10, window_bounds = array<i64: 1, 32>}, {pipeline_mode = #tpu.pipeline_mode<synchronous>, transform_indices = @transform_11, window_bounds = array<i64: 1, 32>}, {pipeline_mode = #tpu.pipeline_mode<synchronous>, transform_indices = @transform_12, window_bounds = array<i64: 2, 32, 16>}, {pipeline_mode = #tpu.pipeline_mode<synchronous>, transform_indices = @transform_13, window_bounds = array<i64: 32, 32>}, {pipeline_mode = #tpu.pipeline_mode<synchronous>, transform_indices = @transform_14, window_bounds = array<i64: 1, 32>}, {pipeline_mode = #tpu.pipeline_mode<synchronous>, transform_indices = @transform_15, window_bounds = array<i64: 1, 32>}, {pipeline_mode = #tpu.pipeline_mode<synchronous>, transform_indices = @transform_16, window_bounds = array<i64: 1, 32>}, {pipeline_mode = #tpu.pipeline_mode<synchronous>, transform_indices = @transform_17, window_bounds = array<i64: 32, 128>}, {pipeline_mode = #tpu.pipeline_mode<synchronous>, transform_indices = @transform_18, window_bounds = array<i64: 1, 128>}, {pipeline_mode = #tpu.pipeline_mode<synchronous>, transform_indices = @transform_19, window_bounds = array<i64: 128, 32>}, {pipeline_mode = #tpu.pipeline_mode<synchronous>, transform_indices = @transform_20, window_bounds = array<i64: 1, 32>}, {transform_indices = @transform_21, window_bounds = array<i64: 1, 8, 32>}]} {
    %c0 = arith.constant 0 : index
    %c0_0 = arith.constant 0 : index
    %c0_1 = arith.constant 0 : index
    %0 = vector.load %arg2[%c0, %c0_0, %c0_1] : memref<1x8x32xf32, #tpu.memory_space<vmem>>, vector<1x8x32xf32>
    %1 = vector.shape_cast %0 : vector<1x8x32xf32> to vector<8x32xf32>
    %cst = arith.constant dense<0.000000e+00> : vector<8xf32>
    %2 = vector.multi_reduction <add>, %1, %cst [1] : vector<8x32xf32> to vector<8xf32>
    %3 = vector.shape_cast %2 : vector<8xf32> to vector<8x1xf32>
    %cst_2 = arith.constant 3.200000e+01 : f32
    %4 = vector.broadcast %cst_2 : f32 to vector<8x1xf32>
    %5 = arith.divf %3, %4 : vector<8x1xf32>
    %6 = vector.broadcast %5 : vector<8x1xf32> to vector<8x32xf32>
    %7 = arith.subf %1, %6 : vector<8x32xf32>
    %8 = arith.mulf %7, %7 : vector<8x32xf32>
    %cst_3 = arith.constant dense<0.000000e+00> : vector<8xf32>
    %9 = vector.multi_reduction <add>, %8, %cst_3 [1] : vector<8x32xf32> to vector<8xf32>
    %10 = vector.shape_cast %9 : vector<8xf32> to vector<8x1xf32>
    %cst_4 = arith.constant 3.200000e+01 : f32
    %11 = vector.broadcast %cst_4 : f32 to vector<8x1xf32>
    %12 = arith.divf %10, %11 : vector<8x1xf32>
    %cst_5 = arith.constant 9.99999974E-6 : f32
    %13 = vector.broadcast %cst_5 : f32 to vector<8x1xf32>
    %14 = arith.addf %12, %13 : vector<8x1xf32>
    %15 = math.rsqrt %14 : vector<8x1xf32>
    %16 = vector.broadcast %15 : vector<8x1xf32> to vector<8x32xf32>
    %17 = arith.mulf %7, %16 : vector<8x32xf32>
    %c0_6 = arith.constant 0 : index
    %c0_7 = arith.constant 0 : index
    %18 = vector.load %arg7[%c0_6, %c0_7] : memref<1x32xf32, #tpu.memory_space<vmem>>, vector<1x32xf32>
    %19 = vector.shape_cast %18 : vector<1x32xf32> to vector<32xf32>
    %20 = vector.shape_cast %19 : vector<32xf32> to vector<1x32xf32>
    %21 = vector.broadcast %20 : vector<1x32xf32> to vector<8x32xf32>
    %22 = arith.mulf %17, %21 : vector<8x32xf32>
    %c0_8 = arith.constant 0 : index
    %c0_9 = arith.constant 0 : index
    %23 = vector.load %arg8[%c0_8, %c0_9] : memref<1x32xf32, #tpu.memory_space<vmem>>, vector<1x32xf32>
    %24 = vector.shape_cast %23 : vector<1x32xf32> to vector<32xf32>
    %25 = vector.shape_cast %24 : vector<32xf32> to vector<1x32xf32>
    %26 = vector.broadcast %25 : vector<1x32xf32> to vector<8x32xf32>
    %27 = arith.addf %22, %26 : vector<8x32xf32>
    %c0_10 = arith.constant 0 : index
    %c0_11 = arith.constant 0 : index
    %c0_12 = arith.constant 0 : index
    %28 = vector.load %arg9[%c0_10, %c0_11, %c0_12] : memref<2x32x16xf32, #tpu.memory_space<vmem>>, vector<1x32x16xf32>
    %29 = vector.shape_cast %28 : vector<1x32x16xf32> to vector<32x16xf32>
    %cst_13 = arith.constant dense<0.000000e+00> : vector<8x16xf32>
    %30 = tpu.matmul %27, %29, %cst_13 {dimension_numbers = #tpu.dot_dimension_numbers<[1], [0], [0], [1], [0, 0, 1, 1], [], []>} : vector<8x32xf32>, vector<32x16xf32>, vector<8x16xf32> -> vector<8x16xf32>
    %c0_14 = arith.constant 0 : index
    %c0_15 = arith.constant 0 : index
    %c0_16 = arith.constant 0 : index
    %c0_17 = arith.constant 0 : index
    %31 = vector.load %arg3[%c0_14, %c0_15, %c0_16, %c0_17] : memref<1x2x16x16xf32, #tpu.memory_space<vmem>>, vector<1x1x16x16xf32>
    %32 = vector.shape_cast %31 : vector<1x1x16x16xf32> to vector<16x16xf32>
    %cst_18 = arith.constant dense<0.000000e+00> : vector<8x16xf32>
    %33 = tpu.matmul %30, %32, %cst_18 {dimension_numbers = #tpu.dot_dimension_numbers<[1], [0], [0], [1], [0, 0, 1, 1], [], []>} : vector<8x16xf32>, vector<16x16xf32>, vector<8x16xf32> -> vector<8x16xf32>
    %cst_19 = arith.constant dense<0xFF800000> : vector<8xf32>
    %34 = vector.multi_reduction <maximumf>, %33, %cst_19 [1] : vector<8x16xf32> to vector<8xf32>
    %35 = vector.shape_cast %34 : vector<8xf32> to vector<8x1xf32>
    %36 = vector.broadcast %35 : vector<8x1xf32> to vector<8x16xf32>
    %37 = arith.subf %33, %36 : vector<8x16xf32>
    %38 = math.exp %37 : vector<8x16xf32>
    %cst_20 = arith.constant dense<0.000000e+00> : vector<8xf32>
    %39 = vector.multi_reduction <add>, %38, %cst_20 [1] : vector<8x16xf32> to vector<8xf32>
    %40 = vector.shape_cast %39 : vector<8xf32> to vector<8x1xf32>
    %41 = tpu.reciprocal %40 : vector<8x1xf32> -> vector<8x1xf32>
    %42 = vector.broadcast %41 : vector<8x1xf32> to vector<8x16xf32>
    %43 = arith.mulf %38, %42 : vector<8x16xf32>
    %c0_21 = arith.constant 0 : index
    %c0_22 = arith.constant 0 : index
    %c0_23 = arith.constant 0 : index
    %c0_24 = arith.constant 0 : index
    %44 = vector.load %arg4[%c0_21, %c0_22, %c0_23, %c0_24] : memref<1x2x16x16xf32, #tpu.memory_space<vmem>>, vector<1x1x16x16xf32>
    %45 = vector.shape_cast %44 : vector<1x1x16x16xf32> to vector<16x16xf32>
    %cst_25 = arith.constant dense<0.000000e+00> : vector<8x16xf32>
    %46 = tpu.matmul %43, %45, %cst_25 {dimension_numbers = #tpu.dot_dimension_numbers<[1], [0], [0], [1], [0, 0, 1, 1], [], []>} : vector<8x16xf32>, vector<16x16xf32>, vector<8x16xf32> -> vector<8x16xf32>
    %c1 = arith.constant 1 : index
    %c0_26 = arith.constant 0 : index
    %c0_27 = arith.constant 0 : index
    %47 = vector.load %arg9[%c1, %c0_26, %c0_27] : memref<2x32x16xf32, #tpu.memory_space<vmem>>, vector<1x32x16xf32>
    %48 = vector.shape_cast %47 : vector<1x32x16xf32> to vector<32x16xf32>
    %cst_28 = arith.constant dense<0.000000e+00> : vector<8x16xf32>
    %49 = tpu.matmul %27, %48, %cst_28 {dimension_numbers = #tpu.dot_dimension_numbers<[1], [0], [0], [1], [0, 0, 1, 1], [], []>} : vector<8x32xf32>, vector<32x16xf32>, vector<8x16xf32> -> vector<8x16xf32>
    %c0_29 = arith.constant 0 : index
    %c1_30 = arith.constant 1 : index
    %c0_31 = arith.constant 0 : index
    %c0_32 = arith.constant 0 : index
    %50 = vector.load %arg3[%c0_29, %c1_30, %c0_31, %c0_32] : memref<1x2x16x16xf32, #tpu.memory_space<vmem>>, vector<1x1x16x16xf32>
    %51 = vector.shape_cast %50 : vector<1x1x16x16xf32> to vector<16x16xf32>
    %cst_33 = arith.constant dense<0.000000e+00> : vector<8x16xf32>
    %52 = tpu.matmul %49, %51, %cst_33 {dimension_numbers = #tpu.dot_dimension_numbers<[1], [0], [0], [1], [0, 0, 1, 1], [], []>} : vector<8x16xf32>, vector<16x16xf32>, vector<8x16xf32> -> vector<8x16xf32>
    %cst_34 = arith.constant dense<0xFF800000> : vector<8xf32>
    %53 = vector.multi_reduction <maximumf>, %52, %cst_34 [1] : vector<8x16xf32> to vector<8xf32>
    %54 = vector.shape_cast %53 : vector<8xf32> to vector<8x1xf32>
    %55 = vector.broadcast %54 : vector<8x1xf32> to vector<8x16xf32>
    %56 = arith.subf %52, %55 : vector<8x16xf32>
    %57 = math.exp %56 : vector<8x16xf32>
    %cst_35 = arith.constant dense<0.000000e+00> : vector<8xf32>
    %58 = vector.multi_reduction <add>, %57, %cst_35 [1] : vector<8x16xf32> to vector<8xf32>
    %59 = vector.shape_cast %58 : vector<8xf32> to vector<8x1xf32>
    %60 = tpu.reciprocal %59 : vector<8x1xf32> -> vector<8x1xf32>
    %61 = vector.broadcast %60 : vector<8x1xf32> to vector<8x16xf32>
    %62 = arith.mulf %57, %61 : vector<8x16xf32>
    %c0_36 = arith.constant 0 : index
    %c1_37 = arith.constant 1 : index
    %c0_38 = arith.constant 0 : index
    %c0_39 = arith.constant 0 : index
    %63 = vector.load %arg4[%c0_36, %c1_37, %c0_38, %c0_39] : memref<1x2x16x16xf32, #tpu.memory_space<vmem>>, vector<1x1x16x16xf32>
    %64 = vector.shape_cast %63 : vector<1x1x16x16xf32> to vector<16x16xf32>
    %cst_40 = arith.constant dense<0.000000e+00> : vector<8x16xf32>
    %65 = tpu.matmul %62, %64, %cst_40 {dimension_numbers = #tpu.dot_dimension_numbers<[1], [0], [0], [1], [0, 0, 1, 1], [], []>} : vector<8x16xf32>, vector<16x16xf32>, vector<8x16xf32> -> vector<8x16xf32>
    %66 = tpu.concatenate %46, %65 in 1 : vector<8x16xf32>, vector<8x16xf32> -> vector<8x32xf32>
    %c0_41 = arith.constant 0 : index
    %c0_42 = arith.constant 0 : index
    %67 = vector.load %arg10[%c0_41, %c0_42] : memref<32x32xf32, #tpu.memory_space<vmem>>, vector<32x32xf32>
    %cst_43 = arith.constant dense<0.000000e+00> : vector<8x32xf32>
    %68 = tpu.matmul %66, %67, %cst_43 {dimension_numbers = #tpu.dot_dimension_numbers<[1], [0], [0], [1], [0, 0, 1, 1], [], []>} : vector<8x32xf32>, vector<32x32xf32>, vector<8x32xf32> -> vector<8x32xf32>
    %c0_44 = arith.constant 0 : index
    %c0_45 = arith.constant 0 : index
    %69 = vector.load %arg11[%c0_44, %c0_45] : memref<1x32xf32, #tpu.memory_space<vmem>>, vector<1x32xf32>
    %70 = vector.shape_cast %69 : vector<1x32xf32> to vector<32xf32>
    %71 = vector.shape_cast %70 : vector<32xf32> to vector<1x32xf32>
    %72 = vector.broadcast %71 : vector<1x32xf32> to vector<8x32xf32>
    %73 = arith.addf %68, %72 : vector<8x32xf32>
    %74 = arith.addf %1, %73 : vector<8x32xf32>
    %cst_46 = arith.constant dense<0.000000e+00> : vector<8xf32>
    %75 = vector.multi_reduction <add>, %74, %cst_46 [1] : vector<8x32xf32> to vector<8xf32>
    %76 = vector.shape_cast %75 : vector<8xf32> to vector<8x1xf32>
    %cst_47 = arith.constant 3.200000e+01 : f32
    %77 = vector.broadcast %cst_47 : f32 to vector<8x1xf32>
    %78 = arith.divf %76, %77 : vector<8x1xf32>
    %79 = vector.broadcast %78 : vector<8x1xf32> to vector<8x32xf32>
    %80 = arith.subf %74, %79 : vector<8x32xf32>
    %81 = arith.mulf %80, %80 : vector<8x32xf32>
    %cst_48 = arith.constant dense<0.000000e+00> : vector<8xf32>
    %82 = vector.multi_reduction <add>, %81, %cst_48 [1] : vector<8x32xf32> to vector<8xf32>
    %83 = vector.shape_cast %82 : vector<8xf32> to vector<8x1xf32>
    %cst_49 = arith.constant 3.200000e+01 : f32
    %84 = vector.broadcast %cst_49 : f32 to vector<8x1xf32>
    %85 = arith.divf %83, %84 : vector<8x1xf32>
    %cst_50 = arith.constant 9.99999974E-6 : f32
    %86 = vector.broadcast %cst_50 : f32 to vector<8x1xf32>
    %87 = arith.addf %85, %86 : vector<8x1xf32>
    %88 = math.rsqrt %87 : vector<8x1xf32>
    %89 = vector.broadcast %88 : vector<8x1xf32> to vector<8x32xf32>
    %90 = arith.mulf %80, %89 : vector<8x32xf32>
    %c0_51 = arith.constant 0 : index
    %c0_52 = arith.constant 0 : index
    %91 = vector.load %arg12[%c0_51, %c0_52] : memref<1x32xf32, #tpu.memory_space<vmem>>, vector<1x32xf32>
    %92 = vector.shape_cast %91 : vector<1x32xf32> to vector<32xf32>
    %93 = vector.shape_cast %92 : vector<32xf32> to vector<1x32xf32>
    %94 = vector.broadcast %93 : vector<1x32xf32> to vector<8x32xf32>
    %95 = arith.mulf %90, %94 : vector<8x32xf32>
    %c0_53 = arith.constant 0 : index
    %c0_54 = arith.constant 0 : index
    %96 = vector.load %arg13[%c0_53, %c0_54] : memref<1x32xf32, #tpu.memory_space<vmem>>, vector<1x32xf32>
    %97 = vector.shape_cast %96 : vector<1x32xf32> to vector<32xf32>
    %98 = vector.shape_cast %97 : vector<32xf32> to vector<1x32xf32>
    %99 = vector.broadcast %98 : vector<1x32xf32> to vector<8x32xf32>
    %100 = arith.addf %95, %99 : vector<8x32xf32>
    %101 = tpu.iota {dimensions = array<i32: 1>} : vector<1x128xi32>
    %c8_i32 = arith.constant 8 : i32
    %102 = vector.broadcast %c8_i32 : i32 to vector<1x128xi32>
    %103 = arith.cmpi slt, %101, %102 : vector<1x128xi32>
    %cst_55 = arith.constant 0.000000e+00 : f32
    %cst_56 = arith.constant -1.000000e+30 : f32
    %104 = vector.broadcast %cst_55 : f32 to vector<1x128xf32>
    %105 = vector.broadcast %cst_56 : f32 to vector<1x128xf32>
    %106 = arith.select %103, %104, %105 : vector<1x128xi1>, vector<1x128xf32>
    %c0_57 = arith.constant 0 : index
    %c0_58 = arith.constant 0 : index
    %c0_59 = arith.constant 0 : index
    %107 = vector.load %arg14[%c0_57, %c0_58, %c0_59] : memref<2x32x16xf32, #tpu.memory_space<vmem>>, vector<1x32x16xf32>
    %108 = vector.shape_cast %107 : vector<1x32x16xf32> to vector<32x16xf32>
    %cst_60 = arith.constant dense<0.000000e+00> : vector<8x16xf32>
    %109 = tpu.matmul %100, %108, %cst_60 {dimension_numbers = #tpu.dot_dimension_numbers<[1], [0], [0], [1], [0, 0, 1, 1], [], []>} : vector<8x32xf32>, vector<32x16xf32>, vector<8x16xf32> -> vector<8x16xf32>
    %c0_61 = arith.constant 0 : index
    %c0_62 = arith.constant 0 : index
    %c0_63 = arith.constant 0 : index
    %c0_64 = arith.constant 0 : index
    %110 = vector.load %arg5[%c0_61, %c0_62, %c0_63, %c0_64] : memref<1x2x16x128xf32, #tpu.memory_space<vmem>>, vector<1x1x16x128xf32>
    %111 = vector.shape_cast %110 : vector<1x1x16x128xf32> to vector<16x128xf32>
    %cst_65 = arith.constant dense<0.000000e+00> : vector<8x128xf32>
    %112 = tpu.matmul %109, %111, %cst_65 {dimension_numbers = #tpu.dot_dimension_numbers<[1], [0], [0], [1], [0, 0, 1, 1], [], []>} : vector<8x16xf32>, vector<16x128xf32>, vector<8x128xf32> -> vector<8x128xf32>
    %113 = vector.broadcast %106 : vector<1x128xf32> to vector<8x128xf32>
    %114 = arith.addf %112, %113 : vector<8x128xf32>
    %cst_66 = arith.constant dense<0xFF800000> : vector<8xf32>
    %115 = vector.multi_reduction <maximumf>, %114, %cst_66 [1] : vector<8x128xf32> to vector<8xf32>
    %116 = vector.shape_cast %115 : vector<8xf32> to vector<8x1xf32>
    %117 = vector.broadcast %116 : vector<8x1xf32> to vector<8x128xf32>
    %118 = arith.subf %114, %117 : vector<8x128xf32>
    %119 = math.exp %118 : vector<8x128xf32>
    %cst_67 = arith.constant dense<0.000000e+00> : vector<8xf32>
    %120 = vector.multi_reduction <add>, %119, %cst_67 [1] : vector<8x128xf32> to vector<8xf32>
    %121 = vector.shape_cast %120 : vector<8xf32> to vector<8x1xf32>
    %122 = tpu.reciprocal %121 : vector<8x1xf32> -> vector<8x1xf32>
    %123 = vector.broadcast %122 : vector<8x1xf32> to vector<8x128xf32>
    %124 = arith.mulf %119, %123 : vector<8x128xf32>
    %c0_68 = arith.constant 0 : index
    %c0_69 = arith.constant 0 : index
    %c0_70 = arith.constant 0 : index
    %c0_71 = arith.constant 0 : index
    %125 = vector.load %arg6[%c0_68, %c0_69, %c0_70, %c0_71] : memref<1x2x128x16xf32, #tpu.memory_space<vmem>>, vector<1x1x128x16xf32>
    %126 = vector.shape_cast %125 : vector<1x1x128x16xf32> to vector<128x16xf32>
    %cst_72 = arith.constant dense<0.000000e+00> : vector<8x16xf32>
    %127 = tpu.matmul %124, %126, %cst_72 {dimension_numbers = #tpu.dot_dimension_numbers<[1], [0], [0], [1], [0, 0, 1, 1], [], []>} : vector<8x128xf32>, vector<128x16xf32>, vector<8x16xf32> -> vector<8x16xf32>
    %c1_73 = arith.constant 1 : index
    %c0_74 = arith.constant 0 : index
    %c0_75 = arith.constant 0 : index
    %128 = vector.load %arg14[%c1_73, %c0_74, %c0_75] : memref<2x32x16xf32, #tpu.memory_space<vmem>>, vector<1x32x16xf32>
    %129 = vector.shape_cast %128 : vector<1x32x16xf32> to vector<32x16xf32>
    %cst_76 = arith.constant dense<0.000000e+00> : vector<8x16xf32>
    %130 = tpu.matmul %100, %129, %cst_76 {dimension_numbers = #tpu.dot_dimension_numbers<[1], [0], [0], [1], [0, 0, 1, 1], [], []>} : vector<8x32xf32>, vector<32x16xf32>, vector<8x16xf32> -> vector<8x16xf32>
    %c0_77 = arith.constant 0 : index
    %c1_78 = arith.constant 1 : index
    %c0_79 = arith.constant 0 : index
    %c0_80 = arith.constant 0 : index
    %131 = vector.load %arg5[%c0_77, %c1_78, %c0_79, %c0_80] : memref<1x2x16x128xf32, #tpu.memory_space<vmem>>, vector<1x1x16x128xf32>
    %132 = vector.shape_cast %131 : vector<1x1x16x128xf32> to vector<16x128xf32>
    %cst_81 = arith.constant dense<0.000000e+00> : vector<8x128xf32>
    %133 = tpu.matmul %130, %132, %cst_81 {dimension_numbers = #tpu.dot_dimension_numbers<[1], [0], [0], [1], [0, 0, 1, 1], [], []>} : vector<8x16xf32>, vector<16x128xf32>, vector<8x128xf32> -> vector<8x128xf32>
    %134 = vector.broadcast %106 : vector<1x128xf32> to vector<8x128xf32>
    %135 = arith.addf %133, %134 : vector<8x128xf32>
    %cst_82 = arith.constant dense<0xFF800000> : vector<8xf32>
    %136 = vector.multi_reduction <maximumf>, %135, %cst_82 [1] : vector<8x128xf32> to vector<8xf32>
    %137 = vector.shape_cast %136 : vector<8xf32> to vector<8x1xf32>
    %138 = vector.broadcast %137 : vector<8x1xf32> to vector<8x128xf32>
    %139 = arith.subf %135, %138 : vector<8x128xf32>
    %140 = math.exp %139 : vector<8x128xf32>
    %cst_83 = arith.constant dense<0.000000e+00> : vector<8xf32>
    %141 = vector.multi_reduction <add>, %140, %cst_83 [1] : vector<8x128xf32> to vector<8xf32>
    %142 = vector.shape_cast %141 : vector<8xf32> to vector<8x1xf32>
    %143 = tpu.reciprocal %142 : vector<8x1xf32> -> vector<8x1xf32>
    %144 = vector.broadcast %143 : vector<8x1xf32> to vector<8x128xf32>
    %145 = arith.mulf %140, %144 : vector<8x128xf32>
    %c0_84 = arith.constant 0 : index
    %c1_85 = arith.constant 1 : index
    %c0_86 = arith.constant 0 : index
    %c0_87 = arith.constant 0 : index
    %146 = vector.load %arg6[%c0_84, %c1_85, %c0_86, %c0_87] : memref<1x2x128x16xf32, #tpu.memory_space<vmem>>, vector<1x1x128x16xf32>
    %147 = vector.shape_cast %146 : vector<1x1x128x16xf32> to vector<128x16xf32>
    %cst_88 = arith.constant dense<0.000000e+00> : vector<8x16xf32>
    %148 = tpu.matmul %145, %147, %cst_88 {dimension_numbers = #tpu.dot_dimension_numbers<[1], [0], [0], [1], [0, 0, 1, 1], [], []>} : vector<8x128xf32>, vector<128x16xf32>, vector<8x16xf32> -> vector<8x16xf32>
    %149 = tpu.concatenate %127, %148 in 1 : vector<8x16xf32>, vector<8x16xf32> -> vector<8x32xf32>
    %c0_89 = arith.constant 0 : index
    %c0_90 = arith.constant 0 : index
    %150 = vector.load %arg15[%c0_89, %c0_90] : memref<32x32xf32, #tpu.memory_space<vmem>>, vector<32x32xf32>
    %cst_91 = arith.constant dense<0.000000e+00> : vector<8x32xf32>
    %151 = tpu.matmul %149, %150, %cst_91 {dimension_numbers = #tpu.dot_dimension_numbers<[1], [0], [0], [1], [0, 0, 1, 1], [], []>} : vector<8x32xf32>, vector<32x32xf32>, vector<8x32xf32> -> vector<8x32xf32>
    %c0_92 = arith.constant 0 : index
    %c0_93 = arith.constant 0 : index
    %152 = vector.load %arg16[%c0_92, %c0_93] : memref<1x32xf32, #tpu.memory_space<vmem>>, vector<1x32xf32>
    %153 = vector.shape_cast %152 : vector<1x32xf32> to vector<32xf32>
    %154 = vector.shape_cast %153 : vector<32xf32> to vector<1x32xf32>
    %155 = vector.broadcast %154 : vector<1x32xf32> to vector<8x32xf32>
    %156 = arith.addf %151, %155 : vector<8x32xf32>
    %157 = arith.addf %74, %156 : vector<8x32xf32>
    %cst_94 = arith.constant dense<0.000000e+00> : vector<8xf32>
    %158 = vector.multi_reduction <add>, %157, %cst_94 [1] : vector<8x32xf32> to vector<8xf32>
    %159 = vector.shape_cast %158 : vector<8xf32> to vector<8x1xf32>
    %cst_95 = arith.constant 3.200000e+01 : f32
    %160 = vector.broadcast %cst_95 : f32 to vector<8x1xf32>
    %161 = arith.divf %159, %160 : vector<8x1xf32>
    %162 = vector.broadcast %161 : vector<8x1xf32> to vector<8x32xf32>
    %163 = arith.subf %157, %162 : vector<8x32xf32>
    %164 = arith.mulf %163, %163 : vector<8x32xf32>
    %cst_96 = arith.constant dense<0.000000e+00> : vector<8xf32>
    %165 = vector.multi_reduction <add>, %164, %cst_96 [1] : vector<8x32xf32> to vector<8xf32>
    %166 = vector.shape_cast %165 : vector<8xf32> to vector<8x1xf32>
    %cst_97 = arith.constant 3.200000e+01 : f32
    %167 = vector.broadcast %cst_97 : f32 to vector<8x1xf32>
    %168 = arith.divf %166, %167 : vector<8x1xf32>
    %cst_98 = arith.constant 9.99999974E-6 : f32
    %169 = vector.broadcast %cst_98 : f32 to vector<8x1xf32>
    %170 = arith.addf %168, %169 : vector<8x1xf32>
    %171 = math.rsqrt %170 : vector<8x1xf32>
    %172 = vector.broadcast %171 : vector<8x1xf32> to vector<8x32xf32>
    %173 = arith.mulf %163, %172 : vector<8x32xf32>
    %c0_99 = arith.constant 0 : index
    %c0_100 = arith.constant 0 : index
    %174 = vector.load %arg17[%c0_99, %c0_100] : memref<1x32xf32, #tpu.memory_space<vmem>>, vector<1x32xf32>
    %175 = vector.shape_cast %174 : vector<1x32xf32> to vector<32xf32>
    %176 = vector.shape_cast %175 : vector<32xf32> to vector<1x32xf32>
    %177 = vector.broadcast %176 : vector<1x32xf32> to vector<8x32xf32>
    %178 = arith.mulf %173, %177 : vector<8x32xf32>
    %c0_101 = arith.constant 0 : index
    %c0_102 = arith.constant 0 : index
    %179 = vector.load %arg18[%c0_101, %c0_102] : memref<1x32xf32, #tpu.memory_space<vmem>>, vector<1x32xf32>
    %180 = vector.shape_cast %179 : vector<1x32xf32> to vector<32xf32>
    %181 = vector.shape_cast %180 : vector<32xf32> to vector<1x32xf32>
    %182 = vector.broadcast %181 : vector<1x32xf32> to vector<8x32xf32>
    %183 = arith.addf %178, %182 : vector<8x32xf32>
    %c0_103 = arith.constant 0 : index
    %c0_104 = arith.constant 0 : index
    %184 = vector.load %arg19[%c0_103, %c0_104] : memref<32x128xf32, #tpu.memory_space<vmem>>, vector<32x128xf32>
    %cst_105 = arith.constant dense<0.000000e+00> : vector<8x128xf32>
    %185 = tpu.matmul %183, %184, %cst_105 {dimension_numbers = #tpu.dot_dimension_numbers<[1], [0], [0], [1], [0, 0, 1, 1], [], []>} : vector<8x32xf32>, vector<32x128xf32>, vector<8x128xf32> -> vector<8x128xf32>
    %c0_106 = arith.constant 0 : index
    %c0_107 = arith.constant 0 : index
    %186 = vector.load %arg20[%c0_106, %c0_107] : memref<1x128xf32, #tpu.memory_space<vmem>>, vector<1x128xf32>
    %187 = vector.shape_cast %186 : vector<1x128xf32> to vector<128xf32>
    %188 = vector.shape_cast %187 : vector<128xf32> to vector<1x128xf32>
    %189 = vector.broadcast %188 : vector<1x128xf32> to vector<8x128xf32>
    %190 = arith.addf %185, %189 : vector<8x128xf32>
    %191 = arith.mulf %190, %190 : vector<8x128xf32>
    %192 = arith.mulf %190, %191 : vector<8x128xf32>
    %cst_108 = arith.constant 4.471500e-02 : f32
    %193 = vector.broadcast %cst_108 : f32 to vector<8x128xf32>
    %194 = arith.mulf %193, %192 : vector<8x128xf32>
    %195 = arith.addf %190, %194 : vector<8x128xf32>
    %cst_109 = arith.constant 0.797884583 : f32
    %196 = vector.broadcast %cst_109 : f32 to vector<8x128xf32>
    %197 = arith.mulf %196, %195 : vector<8x128xf32>
    %198 = math.tanh %197 : vector<8x128xf32>
    %cst_110 = arith.constant 1.000000e+00 : f32
    %199 = vector.broadcast %cst_110 : f32 to vector<8x128xf32>
    %200 = arith.addf %199, %198 : vector<8x128xf32>
    %cst_111 = arith.constant 5.000000e-01 : f32
    %201 = vector.broadcast %cst_111 : f32 to vector<8x128xf32>
    %202 = arith.mulf %201, %200 : vector<8x128xf32>
    %203 = arith.mulf %190, %202 : vector<8x128xf32>
    %c0_112 = arith.constant 0 : index
    %c0_113 = arith.constant 0 : index
    %204 = vector.load %arg21[%c0_112, %c0_113] : memref<128x32xf32, #tpu.memory_space<vmem>>, vector<128x32xf32>
    %cst_114 = arith.constant dense<0.000000e+00> : vector<8x32xf32>
    %205 = tpu.matmul %203, %204, %cst_114 {dimension_numbers = #tpu.dot_dimension_numbers<[1], [0], [0], [1], [0, 0, 1, 1], [], []>} : vector<8x128xf32>, vector<128x32xf32>, vector<8x32xf32> -> vector<8x32xf32>
    %206 = arith.addf %157, %205 : vector<8x32xf32>
    %c0_115 = arith.constant 0 : index
    %c0_116 = arith.constant 0 : index
    %207 = vector.load %arg22[%c0_115, %c0_116] : memref<1x32xf32, #tpu.memory_space<vmem>>, vector<1x32xf32>
    %208 = vector.shape_cast %207 : vector<1x32xf32> to vector<32xf32>
    %209 = vector.shape_cast %208 : vector<32xf32> to vector<1x32xf32>
    %210 = vector.broadcast %209 : vector<1x32xf32> to vector<8x32xf32>
    %211 = arith.addf %206, %210 : vector<8x32xf32>
    %c0_117 = arith.constant 0 : index
    %c0_118 = arith.constant 0 : index
    %c0_119 = arith.constant 0 : index
    %212 = vector.load %arg23[%c0_117, %c0_118, %c0_119] : memref<1x8x32xf32, #tpu.memory_space<vmem>>, vector<1x8x32xf32>
    %213 = vector.shape_cast %212 : vector<1x8x32xf32> to vector<8x32xf32>
    %214 = vector.shape_cast %211 : vector<8x32xf32> to vector<1x8x32xf32>
    tpu.vector_store %arg23[%c0_117, %c0_118, %c0_119], %214 {strides = array<i32>} : memref<1x8x32xf32, #tpu.memory_space<vmem>>, vector<1x8x32xf32>,
    return
  }
  func.func @transform_0(%arg0: i32, %arg1: i32) -> (i32, i32, i32) {
    %c0_i32 = arith.constant 0 : i32
    %c0_i32_0 = arith.constant 0 : i32
    return %arg0, %arg1, %c0_i32 : i32, i32, i32
  }
  func.func @transform_1(%arg0: i32, %arg1: i32) -> (i32, i32, i32, i32) {
    %c0_i32 = arith.constant 0 : i32
    %c0_i32_0 = arith.constant 0 : i32
    %c0_i32_1 = arith.constant 0 : i32
    %c0_i32_2 = arith.constant 0 : i32
    return %arg0, %c0_i32, %c0_i32_0, %c0_i32_1 : i32, i32, i32, i32
  }
  func.func @transform_2(%arg0: i32, %arg1: i32) -> (i32, i32, i32, i32) {
    %c0_i32 = arith.constant 0 : i32
    %c0_i32_0 = arith.constant 0 : i32
    %c0_i32_1 = arith.constant 0 : i32
    %c0_i32_2 = arith.constant 0 : i32
    return %arg0, %c0_i32, %c0_i32_0, %c0_i32_1 : i32, i32, i32, i32
  }
  func.func @transform_3(%arg0: i32, %arg1: i32) -> (i32, i32, i32, i32) {
    %c0_i32 = arith.constant 0 : i32
    %c0_i32_0 = arith.constant 0 : i32
    %c0_i32_1 = arith.constant 0 : i32
    %c0_i32_2 = arith.constant 0 : i32
    return %arg0, %c0_i32, %c0_i32_0, %c0_i32_1 : i32, i32, i32, i32
  }
  func.func @transform_4(%arg0: i32, %arg1: i32) -> (i32, i32, i32, i32) {
    %c0_i32 = arith.constant 0 : i32
    %c0_i32_0 = arith.constant 0 : i32
    %c0_i32_1 = arith.constant 0 : i32
    %c0_i32_2 = arith.constant 0 : i32
    return %arg0, %c0_i32, %c0_i32_0, %c0_i32_1 : i32, i32, i32, i32
  }
  func.func @transform_5(%arg0: i32, %arg1: i32) -> (i32, i32) {
    %c0_i32 = arith.constant 0 : i32
    %c0_i32_0 = arith.constant 0 : i32
    %c0_i32_1 = arith.constant 0 : i32
    return %c0_i32, %c0_i32_0 : i32, i32
  }
  func.func @transform_6(%arg0: i32, %arg1: i32) -> (i32, i32) {
    %c0_i32 = arith.constant 0 : i32
    %c0_i32_0 = arith.constant 0 : i32
    %c0_i32_1 = arith.constant 0 : i32
    return %c0_i32, %c0_i32_0 : i32, i32
  }
  func.func @transform_7(%arg0: i32, %arg1: i32) -> (i32, i32, i32) {
    %c0_i32 = arith.constant 0 : i32
    %c0_i32_0 = arith.constant 0 : i32
    %c0_i32_1 = arith.constant 0 : i32
    %c0_i32_2 = arith.constant 0 : i32
    return %c0_i32, %c0_i32_0, %c0_i32_1 : i32, i32, i32
  }
  func.func @transform_8(%arg0: i32, %arg1: i32) -> (i32, i32) {
    %c0_i32 = arith.constant 0 : i32
    %c0_i32_0 = arith.constant 0 : i32
    %c0_i32_1 = arith.constant 0 : i32
    return %c0_i32, %c0_i32_0 : i32, i32
  }
  func.func @transform_9(%arg0: i32, %arg1: i32) -> (i32, i32) {
    %c0_i32 = arith.constant 0 : i32
    %c0_i32_0 = arith.constant 0 : i32
    %c0_i32_1 = arith.constant 0 : i32
    return %c0_i32, %c0_i32_0 : i32, i32
  }
  func.func @transform_10(%arg0: i32, %arg1: i32) -> (i32, i32) {
    %c0_i32 = arith.constant 0 : i32
    %c0_i32_0 = arith.constant 0 : i32
    %c0_i32_1 = arith.constant 0 : i32
    return %c0_i32, %c0_i32_0 : i32, i32
  }
  func.func @transform_11(%arg0: i32, %arg1: i32) -> (i32, i32) {
    %c0_i32 = arith.constant 0 : i32
    %c0_i32_0 = arith.constant 0 : i32
    %c0_i32_1 = arith.constant 0 : i32
    return %c0_i32, %c0_i32_0 : i32, i32
  }
  func.func @transform_12(%arg0: i32, %arg1: i32) -> (i32, i32, i32) {
    %c0_i32 = arith.constant 0 : i32
    %c0_i32_0 = arith.constant 0 : i32
    %c0_i32_1 = arith.constant 0 : i32
    %c0_i32_2 = arith.constant 0 : i32
    return %c0_i32, %c0_i32_0, %c0_i32_1 : i32, i32, i32
  }
  func.func @transform_13(%arg0: i32, %arg1: i32) -> (i32, i32) {
    %c0_i32 = arith.constant 0 : i32
    %c0_i32_0 = arith.constant 0 : i32
    %c0_i32_1 = arith.constant 0 : i32
    return %c0_i32, %c0_i32_0 : i32, i32
  }
  func.func @transform_14(%arg0: i32, %arg1: i32) -> (i32, i32) {
    %c0_i32 = arith.constant 0 : i32
    %c0_i32_0 = arith.constant 0 : i32
    %c0_i32_1 = arith.constant 0 : i32
    return %c0_i32, %c0_i32_0 : i32, i32
  }
  func.func @transform_15(%arg0: i32, %arg1: i32) -> (i32, i32) {
    %c0_i32 = arith.constant 0 : i32
    %c0_i32_0 = arith.constant 0 : i32
    %c0_i32_1 = arith.constant 0 : i32
    return %c0_i32, %c0_i32_0 : i32, i32
  }
  func.func @transform_16(%arg0: i32, %arg1: i32) -> (i32, i32) {
    %c0_i32 = arith.constant 0 : i32
    %c0_i32_0 = arith.constant 0 : i32
    %c0_i32_1 = arith.constant 0 : i32
    return %c0_i32, %c0_i32_0 : i32, i32
  }
  func.func @transform_17(%arg0: i32, %arg1: i32) -> (i32, i32) {
    %c0_i32 = arith.constant 0 : i32
    %c0_i32_0 = arith.constant 0 : i32
    %c0_i32_1 = arith.constant 0 : i32
    return %c0_i32, %c0_i32_0 : i32, i32
  }
  func.func @transform_18(%arg0: i32, %arg1: i32) -> (i32, i32) {
    %c0_i32 = arith.constant 0 : i32
    %c0_i32_0 = arith.constant 0 : i32
    %c0_i32_1 = arith.constant 0 : i32
    return %c0_i32, %c0_i32_0 : i32, i32
  }
  func.func @transform_19(%arg0: i32, %arg1: i32) -> (i32, i32) {
    %c0_i32 = arith.constant 0 : i32
    %c0_i32_0 = arith.constant 0 : i32
    %c0_i32_1 = arith.constant 0 : i32
    return %c0_i32, %c0_i32_0 : i32, i32
  }
  func.func @transform_20(%arg0: i32, %arg1: i32) -> (i32, i32) {
    %c0_i32 = arith.constant 0 : i32
    %c0_i32_0 = arith.constant 0 : i32
    %c0_i32_1 = arith.constant 0 : i32
    return %c0_i32, %c0_i32_0 : i32, i32
  }
  func.func @transform_21(%arg0: i32, %arg1: i32) -> (i32, i32, i32) {
    %c0_i32 = arith.constant 0 : i32
    %c0_i32_0 = arith.constant 0 : i32
    return %arg0, %arg1, %c0_i32 : i32, i32, i32
  }
}

module attributes {stable_mosaic.version = 11 : i64} {
  func.func @_transformer_block_kernel(%arg0: i32, %arg1: i32, %arg2: memref<1x8x32xf32, #tpu.memory_space<vmem>>, %arg3: memref<1x2x16x16xf32, #tpu.memory_space<vmem>>, %arg4: memref<1x2x16x16xf32, #tpu.memory_space<vmem>>, %arg5: memref<1x2x16x128xf32, #tpu.memory_space<vmem>>, %arg6: memref<1x2x128x16xf32, #tpu.memory_space<vmem>>, %arg7: memref<1x32xf32, #tpu.memory_space<vmem>>, %arg8: memref<1x32xf32, #tpu.memory_space<vmem>>, %arg9: memref<2x32x16xf32, #tpu.memory_space<vmem>>, %arg10: memref<32x32xf32, #tpu.memory_space<vmem>>, %arg11: memref<1x32xf32, #tpu.memory_space<vmem>>, %arg12: memref<1x32xf32, #tpu.memory_space<vmem>>, %arg13: memref<1x32xf32, #tpu.memory_space<vmem>>, %arg14: memref<2x32x16xf32, #tpu.memory_space<vmem>>, %arg15: memref<32x32xf32, #tpu.memory_space<vmem>>, %arg16: memref<1x32xf32, #tpu.memory_space<vmem>>, %arg17: memref<1x32xf32, #tpu.memory_space<vmem>>, %arg18: memref<1x32xf32, #tpu.memory_space<vmem>>, %arg19: memref<32x128xf32, #tpu.memory_space<vmem>>, %arg20: memref<1x128xf32, #tpu.memory_space<vmem>>, %arg21: memref<128x32xf32, #tpu.memory_space<vmem>>, %arg22: memref<1x32xf32, #tpu.memory_space<vmem>>, %arg23: memref<1x8x32xf32, #tpu.memory_space<vmem>>) attributes {dimension_semantics = [#tpu.dimension_semantics<parallel>, #tpu.dimension_semantics<parallel>], iteration_bounds = array<i64: 2, 2>, scalar_prefetch = 0 : i64, scratch_operands = 0 : i64, tpu.core_type = #tpu.core_type<tc>, window_params = [{transform_indices = @transform_0, window_bounds = array<i64: 1, 8, 32>}, {transform_indices = @transform_1, window_bounds = array<i64: 1, 2, 16, 16>}, {transform_indices = @transform_2, window_bounds = array<i64: 1, 2, 16, 16>}, {transform_indices = @transform_3, window_bounds = array<i64: 1, 2, 16, 128>}, {transform_indices = @transform_4, window_bounds = array<i64: 1, 2, 128, 16>}, {pipeline_mode = #tpu.pipeline_mode<synchronous>, transform_indices = @transform_5, window_bounds = array<i64: 1, 32>}, {pipeline_mode = #tpu.pipeline_mode<synchronous>, transform_indices = @transform_6, window_bounds = array<i64: 1, 32>}, {pipeline_mode = #tpu.pipeline_mode<synchronous>, transform_indices = @transform_7, window_bounds = array<i64: 2, 32, 16>}, {pipeline_mode = #tpu.pipeline_mode<synchronous>, transform_indices = @transform_8, window_bounds = array<i64: 32, 32>}, {pipeline_mode = #tpu.pipeline_mode<synchronous>, transform_indices = @transform_9, window_bounds = array<i64: 1, 32>}, {pipeline_mode = #tpu.pipeline_mode<synchronous>, transform_indices = @transform_10, window_bounds = array<i64: 1, 32>}, {pipeline_mode = #tpu.pipeline_mode<synchronous>, transform_indices = @transform_11, window_bounds = array<i64: 1, 32>}, {pipeline_mode = #tpu.pipeline_mode<synchronous>, transform_indices = @transform_12, window_bounds = array<i64: 2, 32, 16>}, {pipeline_mode = #tpu.pipeline_mode<synchronous>, transform_indices = @transform_13, window_bounds = array<i64: 32, 32>}, {pipeline_mode = #tpu.pipeline_mode<synchronous>, transform_indices = @transform_14, window_bounds = array<i64: 1, 32>}, {pipeline_mode = #tpu.pipeline_mode<synchronous>, transform_indices = @transform_15, window_bounds = array<i64: 1, 32>}, {pipeline_mode = #tpu.pipeline_mode<synchronous>, transform_indices = @transform_16, window_bounds = array<i64: 1, 32>}, {pipeline_mode = #tpu.pipeline_mode<synchronous>, transform_indices = @transform_17, window_bounds = array<i64: 32, 128>}, {pipeline_mode = #tpu.pipeline_mode<synchronous>, transform_indices = @transform_18, window_bounds = array<i64: 1, 128>}, {pipeline_mode = #tpu.pipeline_mode<synchronous>, transform_indices = @transform_19, window_bounds = array<i64: 128, 32>}, {pipeline_mode = #tpu.pipeline_mode<synchronous>, transform_indices = @transform_20, window_bounds = array<i64: 1, 32>}, {transform_indices = @transform_21, window_bounds = array<i64: 1, 8, 32>}]} {
    %c0 = arith.constant 0 : index
    %c0_0 = arith.constant 0 : index
    %c0_1 = arith.constant 0 : index
    %0 = vector.load %arg2[%c0, %c0_0, %c0_1] : memref<1x8x32xf32, #tpu.memory_space<vmem>>, vector<1x8x32xf32>
    %1 = vector.shape_cast %0 : vector<1x8x32xf32> to vector<8x32xf32>
    %cst = arith.constant dense<0.000000e+00> : vector<8xf32>
    %2 = vector.multi_reduction <add>, %1, %cst [1] : vector<8x32xf32> to vector<8xf32>
    %3 = vector.shape_cast %2 : vector<8xf32> to vector<8x1xf32>
    %cst_2 = arith.constant 3.200000e+01 : f32
    %4 = vector.broadcast %cst_2 : f32 to vector<8x1xf32>
    %5 = arith.divf %3, %4 : vector<8x1xf32>
    %6 = vector.broadcast %5 : vector<8x1xf32> to vector<8x32xf32>
    %7 = arith.subf %1, %6 : vector<8x32xf32>
    %8 = arith.mulf %7, %7 : vector<8x32xf32>
    %cst_3 = arith.constant dense<0.000000e+00> : vector<8xf32>
    %9 = vector.multi_reduction <add>, %8, %cst_3 [1] : vector<8x32xf32> to vector<8xf32>
    %10 = vector.shape_cast %9 : vector<8xf32> to vector<8x1xf32>
    %cst_4 = arith.constant 3.200000e+01 : f32
    %11 = vector.broadcast %cst_4 : f32 to vector<8x1xf32>
    %12 = arith.divf %10, %11 : vector<8x1xf32>
    %cst_5 = arith.constant 9.99999974E-6 : f32
    %13 = vector.broadcast %cst_5 : f32 to vector<8x1xf32>
    %14 = arith.addf %12, %13 : vector<8x1xf32>
    %15 = math.rsqrt %14 : vector<8x1xf32>
    %16 = vector.broadcast %15 : vector<8x1xf32> to vector<8x32xf32>
    %17 = arith.mulf %7, %16 : vector<8x32xf32>
    %c0_6 = arith.constant 0 : index
    %c0_7 = arith.constant 0 : index
    %18 = vector.load %arg7[%c0_6, %c0_7] : memref<1x32xf32, #tpu.memory_space<vmem>>, vector<1x32xf32>
    %19 = vector.shape_cast %18 : vector<1x32xf32> to vector<32xf32>
    %20 = vector.shape_cast %19 : vector<32xf32> to vector<1x32xf32>
    %21 = vector.broadcast %20 : vector<1x32xf32> to vector<8x32xf32>
    %22 = arith.mulf %17, %21 : vector<8x32xf32>
    %c0_8 = arith.constant 0 : index
    %c0_9 = arith.constant 0 : index
    %23 = vector.load %arg8[%c0_8, %c0_9] : memref<1x32xf32, #tpu.memory_space<vmem>>, vector<1x32xf32>
    %24 = vector.shape_cast %23 : vector<1x32xf32> to vector<32xf32>
    %25 = vector.shape_cast %24 : vector<32xf32> to vector<1x32xf32>
    %26 = vector.broadcast %25 : vector<1x32xf32> to vector<8x32xf32>
    %27 = arith.addf %22, %26 : vector<8x32xf32>
    %c0_10 = arith.constant 0 : index
    %c0_11 = arith.constant 0 : index
    %c0_12 = arith.constant 0 : index
    %28 = vector.load %arg9[%c0_10, %c0_11, %c0_12] : memref<2x32x16xf32, #tpu.memory_space<vmem>>, vector<1x32x16xf32>
    %29 = vector.shape_cast %28 : vector<1x32x16xf32> to vector<32x16xf32>
    %cst_13 = arith.constant dense<0.000000e+00> : vector<8x16xf32>
    %30 = tpu.matmul %27, %29, %cst_13 {dimension_numbers = #tpu.dot_dimension_numbers<[1], [0], [0], [1], [0, 0, 1, 1], [], []>} : vector<8x32xf32>, vector<32x16xf32>, vector<8x16xf32> -> vector<8x16xf32>
    %c0_14 = arith.constant 0 : index
    %c0_15 = arith.constant 0 : index
    %c0_16 = arith.constant 0 : index
    %c0_17 = arith.constant 0 : index
    %31 = vector.load %arg3[%c0_14, %c0_15, %c0_16, %c0_17] : memref<1x2x16x16xf32, #tpu.memory_space<vmem>>, vector<1x1x16x16xf32>
    %32 = vector.shape_cast %31 : vector<1x1x16x16xf32> to vector<16x16xf32>
    %cst_18 = arith.constant dense<0.000000e+00> : vector<8x16xf32>
    %33 = tpu.matmul %30, %32, %cst_18 {dimension_numbers = #tpu.dot_dimension_numbers<[1], [0], [0], [1], [0, 0, 1, 1], [], []>} : vector<8x16xf32>, vector<16x16xf32>, vector<8x16xf32> -> vector<8x16xf32>
    %cst_19 = arith.constant dense<0xFF800000> : vector<8xf32>
    %34 = vector.multi_reduction <maximumf>, %33, %cst_19 [1] : vector<8x16xf32> to vector<8xf32>
    %35 = vector.shape_cast %34 : vector<8xf32> to vector<8x1xf32>
    %36 = vector.broadcast %35 : vector<8x1xf32> to vector<8x16xf32>
    %37 = arith.subf %33, %36 : vector<8x16xf32>
    %38 = math.exp %37 : vector<8x16xf32>
    %cst_20 = arith.constant dense<0.000000e+00> : vector<8xf32>
    %39 = vector.multi_reduction <add>, %38, %cst_20 [1] : vector<8x16xf32> to vector<8xf32>
    %40 = vector.shape_cast %39 : vector<8xf32> to vector<8x1xf32>
    %41 = tpu.reciprocal %40 : vector<8x1xf32> -> vector<8x1xf32>
    %42 = vector.broadcast %41 : vector<8x1xf32> to vector<8x16xf32>
    %43 = arith.mulf %38, %42 : vector<8x16xf32>
    %c0_21 = arith.constant 0 : index
    %c0_22 = arith.constant 0 : index
    %c0_23 = arith.constant 0 : index
    %c0_24 = arith.constant 0 : index
    %44 = vector.load %arg4[%c0_21, %c0_22, %c0_23, %c0_24] : memref<1x2x16x16xf32, #tpu.memory_space<vmem>>, vector<1x1x16x16xf32>
    %45 = vector.shape_cast %44 : vector<1x1x16x16xf32> to vector<16x16xf32>
    %cst_25 = arith.constant dense<0.000000e+00> : vector<8x16xf32>
    %46 = tpu.matmul %43, %45, %cst_25 {dimension_numbers = #tpu.dot_dimension_numbers<[1], [0], [0], [1], [0, 0, 1, 1], [], []>} : vector<8x16xf32>, vector<16x16xf32>, vector<8x16xf32> -> vector<8x16xf32>
    %c1 = arith.constant 1 : index
    %c0_26 = arith.constant 0 : index
    %c0_27 = arith.constant 0 : index
    %47 = vector.load %arg9[%c1, %c0_26, %c0_27] : memref<2x32x16xf32, #tpu.memory_space<vmem>>, vector<1x32x16xf32>
    %48 = vector.shape_cast %47 : vector<1x32x16xf32> to vector<32x16xf32>
    %cst_28 = arith.constant dense<0.000000e+00> : vector<8x16xf32>
    %49 = tpu.matmul %27, %48, %cst_28 {dimension_numbers = #tpu.dot_dimension_numbers<[1], [0], [0], [1], [0, 0, 1, 1], [], []>} : vector<8x32xf32>, vector<32x16xf32>, vector<8x16xf32> -> vector<8x16xf32>
    %c0_29 = arith.constant 0 : index
    %c1_30 = arith.constant 1 : index
    %c0_31 = arith.constant 0 : index
    %c0_32 = arith.constant 0 : index
    %50 = vector.load %arg3[%c0_29, %c1_30, %c0_31, %c0_32] : memref<1x2x16x16xf32, #tpu.memory_space<vmem>>, vector<1x1x16x16xf32>
    %51 = vector.shape_cast %50 : vector<1x1x16x16xf32> to vector<16x16xf32>
    %cst_33 = arith.constant dense<0.000000e+00> : vector<8x16xf32>
    %52 = tpu.matmul %49, %51, %cst_33 {dimension_numbers = #tpu.dot_dimension_numbers<[1], [0], [0], [1], [0, 0, 1, 1], [], []>} : vector<8x16xf32>, vector<16x16xf32>, vector<8x16xf32> -> vector<8x16xf32>
    %cst_34 = arith.constant dense<0xFF800000> : vector<8xf32>
    %53 = vector.multi_reduction <maximumf>, %52, %cst_34 [1] : vector<8x16xf32> to vector<8xf32>
    %54 = vector.shape_cast %53 : vector<8xf32> to vector<8x1xf32>
    %55 = vector.broadcast %54 : vector<8x1xf32> to vector<8x16xf32>
    %56 = arith.subf %52, %55 : vector<8x16xf32>
    %57 = math.exp %56 : vector<8x16xf32>
    %cst_35 = arith.constant dense<0.000000e+00> : vector<8xf32>
    %58 = vector.multi_reduction <add>, %57, %cst_35 [1] : vector<8x16xf32> to vector<8xf32>
    %59 = vector.shape_cast %58 : vector<8xf32> to vector<8x1xf32>
    %60 = tpu.reciprocal %59 : vector<8x1xf32> -> vector<8x1xf32>
    %61 = vector.broadcast %60 : vector<8x1xf32> to vector<8x16xf32>
    %62 = arith.mulf %57, %61 : vector<8x16xf32>
    %c0_36 = arith.constant 0 : index
    %c1_37 = arith.constant 1 : index
    %c0_38 = arith.constant 0 : index
    %c0_39 = arith.constant 0 : index
    %63 = vector.load %arg4[%c0_36, %c1_37, %c0_38, %c0_39] : memref<1x2x16x16xf32, #tpu.memory_space<vmem>>, vector<1x1x16x16xf32>
    %64 = vector.shape_cast %63 : vector<1x1x16x16xf32> to vector<16x16xf32>
    %cst_40 = arith.constant dense<0.000000e+00> : vector<8x16xf32>
    %65 = tpu.matmul %62, %64, %cst_40 {dimension_numbers = #tpu.dot_dimension_numbers<[1], [0], [0], [1], [0, 0, 1, 1], [], []>} : vector<8x16xf32>, vector<16x16xf32>, vector<8x16xf32> -> vector<8x16xf32>
    %66 = tpu.concatenate %46, %65 in 1 : vector<8x16xf32>, vector<8x16xf32> -> vector<8x32xf32>
    %c0_41 = arith.constant 0 : index
    %c0_42 = arith.constant 0 : index
    %67 = vector.load %arg10[%c0_41, %c0_42] : memref<32x32xf32, #tpu.memory_space<vmem>>, vector<32x32xf32>
    %cst_43 = arith.constant dense<0.000000e+00> : vector<8x32xf32>
    %68 = tpu.matmul %66, %67, %cst_43 {dimension_numbers = #tpu.dot_dimension_numbers<[1], [0], [0], [1], [0, 0, 1, 1], [], []>} : vector<8x32xf32>, vector<32x32xf32>, vector<8x32xf32> -> vector<8x32xf32>
    %c0_44 = arith.constant 0 : index
    %c0_45 = arith.constant 0 : index
    %69 = vector.load %arg11[%c0_44, %c0_45] : memref<1x32xf32, #tpu.memory_space<vmem>>, vector<1x32xf32>
    %70 = vector.shape_cast %69 : vector<1x32xf32> to vector<32xf32>
    %71 = vector.shape_cast %70 : vector<32xf32> to vector<1x32xf32>
    %72 = vector.broadcast %71 : vector<1x32xf32> to vector<8x32xf32>
    %73 = arith.addf %68, %72 : vector<8x32xf32>
    %74 = arith.addf %1, %73 : vector<8x32xf32>
    %cst_46 = arith.constant dense<0.000000e+00> : vector<8xf32>
    %75 = vector.multi_reduction <add>, %74, %cst_46 [1] : vector<8x32xf32> to vector<8xf32>
    %76 = vector.shape_cast %75 : vector<8xf32> to vector<8x1xf32>
    %cst_47 = arith.constant 3.200000e+01 : f32
    %77 = vector.broadcast %cst_47 : f32 to vector<8x1xf32>
    %78 = arith.divf %76, %77 : vector<8x1xf32>
    %79 = vector.broadcast %78 : vector<8x1xf32> to vector<8x32xf32>
    %80 = arith.subf %74, %79 : vector<8x32xf32>
    %81 = arith.mulf %80, %80 : vector<8x32xf32>
    %cst_48 = arith.constant dense<0.000000e+00> : vector<8xf32>
    %82 = vector.multi_reduction <add>, %81, %cst_48 [1] : vector<8x32xf32> to vector<8xf32>
    %83 = vector.shape_cast %82 : vector<8xf32> to vector<8x1xf32>
    %cst_49 = arith.constant 3.200000e+01 : f32
    %84 = vector.broadcast %cst_49 : f32 to vector<8x1xf32>
    %85 = arith.divf %83, %84 : vector<8x1xf32>
    %cst_50 = arith.constant 9.99999974E-6 : f32
    %86 = vector.broadcast %cst_50 : f32 to vector<8x1xf32>
    %87 = arith.addf %85, %86 : vector<8x1xf32>
    %88 = math.rsqrt %87 : vector<8x1xf32>
    %89 = vector.broadcast %88 : vector<8x1xf32> to vector<8x32xf32>
    %90 = arith.mulf %80, %89 : vector<8x32xf32>
    %c0_51 = arith.constant 0 : index
    %c0_52 = arith.constant 0 : index
    %91 = vector.load %arg12[%c0_51, %c0_52] : memref<1x32xf32, #tpu.memory_space<vmem>>, vector<1x32xf32>
    %92 = vector.shape_cast %91 : vector<1x32xf32> to vector<32xf32>
    %93 = vector.shape_cast %92 : vector<32xf32> to vector<1x32xf32>
    %94 = vector.broadcast %93 : vector<1x32xf32> to vector<8x32xf32>
    %95 = arith.mulf %90, %94 : vector<8x32xf32>
    %c0_53 = arith.constant 0 : index
    %c0_54 = arith.constant 0 : index
    %96 = vector.load %arg13[%c0_53, %c0_54] : memref<1x32xf32, #tpu.memory_space<vmem>>, vector<1x32xf32>
    %97 = vector.shape_cast %96 : vector<1x32xf32> to vector<32xf32>
    %98 = vector.shape_cast %97 : vector<32xf32> to vector<1x32xf32>
    %99 = vector.broadcast %98 : vector<1x32xf32> to vector<8x32xf32>
    %100 = arith.addf %95, %99 : vector<8x32xf32>
    %101 = tpu.iota {dimensions = array<i32: 1>} : vector<1x128xi32>
    %c8_i32 = arith.constant 8 : i32
    %102 = vector.broadcast %c8_i32 : i32 to vector<1x128xi32>
    %103 = arith.cmpi slt, %101, %102 : vector<1x128xi32>
    %cst_55 = arith.constant 0.000000e+00 : f32
    %cst_56 = arith.constant -1.000000e+30 : f32
    %104 = vector.broadcast %cst_55 : f32 to vector<1x128xf32>
    %105 = vector.broadcast %cst_56 : f32 to vector<1x128xf32>
    %106 = arith.select %103, %104, %105 : vector<1x128xi1>, vector<1x128xf32>
    %c0_57 = arith.constant 0 : index
    %c0_58 = arith.constant 0 : index
    %c0_59 = arith.constant 0 : index
    %107 = vector.load %arg14[%c0_57, %c0_58, %c0_59] : memref<2x32x16xf32, #tpu.memory_space<vmem>>, vector<1x32x16xf32>
    %108 = vector.shape_cast %107 : vector<1x32x16xf32> to vector<32x16xf32>
    %cst_60 = arith.constant dense<0.000000e+00> : vector<8x16xf32>
    %109 = tpu.matmul %100, %108, %cst_60 {dimension_numbers = #tpu.dot_dimension_numbers<[1], [0], [0], [1], [0, 0, 1, 1], [], []>} : vector<8x32xf32>, vector<32x16xf32>, vector<8x16xf32> -> vector<8x16xf32>
    %c0_61 = arith.constant 0 : index
    %c0_62 = arith.constant 0 : index
    %c0_63 = arith.constant 0 : index
    %c0_64 = arith.constant 0 : index
    %110 = vector.load %arg5[%c0_61, %c0_62, %c0_63, %c0_64] : memref<1x2x16x128xf32, #tpu.memory_space<vmem>>, vector<1x1x16x128xf32>
    %111 = vector.shape_cast %110 : vector<1x1x16x128xf32> to vector<16x128xf32>
    %cst_65 = arith.constant dense<0.000000e+00> : vector<8x128xf32>
    %112 = tpu.matmul %109, %111, %cst_65 {dimension_numbers = #tpu.dot_dimension_numbers<[1], [0], [0], [1], [0, 0, 1, 1], [], []>} : vector<8x16xf32>, vector<16x128xf32>, vector<8x128xf32> -> vector<8x128xf32>
    %113 = vector.broadcast %106 : vector<1x128xf32> to vector<8x128xf32>
    %114 = arith.addf %112, %113 : vector<8x128xf32>
    %cst_66 = arith.constant dense<0xFF800000> : vector<8xf32>
    %115 = vector.multi_reduction <maximumf>, %114, %cst_66 [1] : vector<8x128xf32> to vector<8xf32>
    %116 = vector.shape_cast %115 : vector<8xf32> to vector<8x1xf32>
    %117 = vector.broadcast %116 : vector<8x1xf32> to vector<8x128xf32>
    %118 = arith.subf %114, %117 : vector<8x128xf32>
    %119 = math.exp %118 : vector<8x128xf32>
    %cst_67 = arith.constant dense<0.000000e+00> : vector<8xf32>
    %120 = vector.multi_reduction <add>, %119, %cst_67 [1] : vector<8x128xf32> to vector<8xf32>
    %121 = vector.shape_cast %120 : vector<8xf32> to vector<8x1xf32>
    %122 = tpu.reciprocal %121 : vector<8x1xf32> -> vector<8x1xf32>
    %123 = vector.broadcast %122 : vector<8x1xf32> to vector<8x128xf32>
    %124 = arith.mulf %119, %123 : vector<8x128xf32>
    %c0_68 = arith.constant 0 : index
    %c0_69 = arith.constant 0 : index
    %c0_70 = arith.constant 0 : index
    %c0_71 = arith.constant 0 : index
    %125 = vector.load %arg6[%c0_68, %c0_69, %c0_70, %c0_71] : memref<1x2x128x16xf32, #tpu.memory_space<vmem>>, vector<1x1x128x16xf32>
    %126 = vector.shape_cast %125 : vector<1x1x128x16xf32> to vector<128x16xf32>
    %cst_72 = arith.constant dense<0.000000e+00> : vector<8x16xf32>
    %127 = tpu.matmul %124, %126, %cst_72 {dimension_numbers = #tpu.dot_dimension_numbers<[1], [0], [0], [1], [0, 0, 1, 1], [], []>} : vector<8x128xf32>, vector<128x16xf32>, vector<8x16xf32> -> vector<8x16xf32>
    %c1_73 = arith.constant 1 : index
    %c0_74 = arith.constant 0 : index
    %c0_75 = arith.constant 0 : index
    %128 = vector.load %arg14[%c1_73, %c0_74, %c0_75] : memref<2x32x16xf32, #tpu.memory_space<vmem>>, vector<1x32x16xf32>
    %129 = vector.shape_cast %128 : vector<1x32x16xf32> to vector<32x16xf32>
    %cst_76 = arith.constant dense<0.000000e+00> : vector<8x16xf32>
    %130 = tpu.matmul %100, %129, %cst_76 {dimension_numbers = #tpu.dot_dimension_numbers<[1], [0], [0], [1], [0, 0, 1, 1], [], []>} : vector<8x32xf32>, vector<32x16xf32>, vector<8x16xf32> -> vector<8x16xf32>
    %c0_77 = arith.constant 0 : index
    %c1_78 = arith.constant 1 : index
    %c0_79 = arith.constant 0 : index
    %c0_80 = arith.constant 0 : index
    %131 = vector.load %arg5[%c0_77, %c1_78, %c0_79, %c0_80] : memref<1x2x16x128xf32, #tpu.memory_space<vmem>>, vector<1x1x16x128xf32>
    %132 = vector.shape_cast %131 : vector<1x1x16x128xf32> to vector<16x128xf32>
    %cst_81 = arith.constant dense<0.000000e+00> : vector<8x128xf32>
    %133 = tpu.matmul %130, %132, %cst_81 {dimension_numbers = #tpu.dot_dimension_numbers<[1], [0], [0], [1], [0, 0, 1, 1], [], []>} : vector<8x16xf32>, vector<16x128xf32>, vector<8x128xf32> -> vector<8x128xf32>
    %134 = vector.broadcast %106 : vector<1x128xf32> to vector<8x128xf32>
    %135 = arith.addf %133, %134 : vector<8x128xf32>
    %cst_82 = arith.constant dense<0xFF800000> : vector<8xf32>
    %136 = vector.multi_reduction <maximumf>, %135, %cst_82 [1] : vector<8x128xf32> to vector<8xf32>
    %137 = vector.shape_cast %136 : vector<8xf32> to vector<8x1xf32>
    %138 = vector.broadcast %137 : vector<8x1xf32> to vector<8x128xf32>
    %139 = arith.subf %135, %138 : vector<8x128xf32>
    %140 = math.exp %139 : vector<8x128xf32>
    %cst_83 = arith.constant dense<0.000000e+00> : vector<8xf32>
    %141 = vector.multi_reduction <add>, %140, %cst_83 [1] : vector<8x128xf32> to vector<8xf32>
    %142 = vector.shape_cast %141 : vector<8xf32> to vector<8x1xf32>
    %143 = tpu.reciprocal %142 : vector<8x1xf32> -> vector<8x1xf32>
    %144 = vector.broadcast %143 : vector<8x1xf32> to vector<8x128xf32>
    %145 = arith.mulf %140, %144 : vector<8x128xf32>
    %c0_84 = arith.constant 0 : index
    %c1_85 = arith.constant 1 : index
    %c0_86 = arith.constant 0 : index
    %c0_87 = arith.constant 0 : index
    %146 = vector.load %arg6[%c0_84, %c1_85, %c0_86, %c0_87] : memref<1x2x128x16xf32, #tpu.memory_space<vmem>>, vector<1x1x128x16xf32>
    %147 = vector.shape_cast %146 : vector<1x1x128x16xf32> to vector<128x16xf32>
    %cst_88 = arith.constant dense<0.000000e+00> : vector<8x16xf32>
    %148 = tpu.matmul %145, %147, %cst_88 {dimension_numbers = #tpu.dot_dimension_numbers<[1], [0], [0], [1], [0, 0, 1, 1], [], []>} : vector<8x128xf32>, vector<128x16xf32>, vector<8x16xf32> -> vector<8x16xf32>
    %149 = tpu.concatenate %127, %148 in 1 : vector<8x16xf32>, vector<8x16xf32> -> vector<8x32xf32>
    %c0_89 = arith.constant 0 : index
    %c0_90 = arith.constant 0 : index
    %150 = vector.load %arg15[%c0_89, %c0_90] : memref<32x32xf32, #tpu.memory_space<vmem>>, vector<32x32xf32>
    %cst_91 = arith.constant dense<0.000000e+00> : vector<8x32xf32>
    %151 = tpu.matmul %149, %150, %cst_91 {dimension_numbers = #tpu.dot_dimension_numbers<[1], [0], [0], [1], [0, 0, 1, 1], [], []>} : vector<8x32xf32>, vector<32x32xf32>, vector<8x32xf32> -> vector<8x32xf32>
    %c0_92 = arith.constant 0 : index
    %c0_93 = arith.constant 0 : index
    %152 = vector.load %arg16[%c0_92, %c0_93] : memref<1x32xf32, #tpu.memory_space<vmem>>, vector<1x32xf32>
    %153 = vector.shape_cast %152 : vector<1x32xf32> to vector<32xf32>
    %154 = vector.shape_cast %153 : vector<32xf32> to vector<1x32xf32>
    %155 = vector.broadcast %154 : vector<1x32xf32> to vector<8x32xf32>
    %156 = arith.addf %151, %155 : vector<8x32xf32>
    %157 = arith.addf %74, %156 : vector<8x32xf32>
    %cst_94 = arith.constant dense<0.000000e+00> : vector<8xf32>
    %158 = vector.multi_reduction <add>, %157, %cst_94 [1] : vector<8x32xf32> to vector<8xf32>
    %159 = vector.shape_cast %158 : vector<8xf32> to vector<8x1xf32>
    %cst_95 = arith.constant 3.200000e+01 : f32
    %160 = vector.broadcast %cst_95 : f32 to vector<8x1xf32>
    %161 = arith.divf %159, %160 : vector<8x1xf32>
    %162 = vector.broadcast %161 : vector<8x1xf32> to vector<8x32xf32>
    %163 = arith.subf %157, %162 : vector<8x32xf32>
    %164 = arith.mulf %163, %163 : vector<8x32xf32>
    %cst_96 = arith.constant dense<0.000000e+00> : vector<8xf32>
    %165 = vector.multi_reduction <add>, %164, %cst_96 [1] : vector<8x32xf32> to vector<8xf32>
    %166 = vector.shape_cast %165 : vector<8xf32> to vector<8x1xf32>
    %cst_97 = arith.constant 3.200000e+01 : f32
    %167 = vector.broadcast %cst_97 : f32 to vector<8x1xf32>
    %168 = arith.divf %166, %167 : vector<8x1xf32>
    %cst_98 = arith.constant 9.99999974E-6 : f32
    %169 = vector.broadcast %cst_98 : f32 to vector<8x1xf32>
    %170 = arith.addf %168, %169 : vector<8x1xf32>
    %171 = math.rsqrt %170 : vector<8x1xf32>
    %172 = vector.broadcast %171 : vector<8x1xf32> to vector<8x32xf32>
    %173 = arith.mulf %163, %172 : vector<8x32xf32>
    %c0_99 = arith.constant 0 : index
    %c0_100 = arith.constant 0 : index
    %174 = vector.load %arg17[%c0_99, %c0_100] : memref<1x32xf32, #tpu.memory_space<vmem>>, vector<1x32xf32>
    %175 = vector.shape_cast %174 : vector<1x32xf32> to vector<32xf32>
    %176 = vector.shape_cast %175 : vector<32xf32> to vector<1x32xf32>
    %177 = vector.broadcast %176 : vector<1x32xf32> to vector<8x32xf32>
    %178 = arith.mulf %173, %177 : vector<8x32xf32>
    %c0_101 = arith.constant 0 : index
    %c0_102 = arith.constant 0 : index
    %179 = vector.load %arg18[%c0_101, %c0_102] : memref<1x32xf32, #tpu.memory_space<vmem>>, vector<1x32xf32>
    %180 = vector.shape_cast %179 : vector<1x32xf32> to vector<32xf32>
    %181 = vector.shape_cast %180 : vector<32xf32> to vector<1x32xf32>
    %182 = vector.broadcast %181 : vector<1x32xf32> to vector<8x32xf32>
    %183 = arith.addf %178, %182 : vector<8x32xf32>
    %c0_103 = arith.constant 0 : index
    %c0_104 = arith.constant 0 : index
    %184 = vector.load %arg19[%c0_103, %c0_104] : memref<32x128xf32, #tpu.memory_space<vmem>>, vector<32x128xf32>
    %cst_105 = arith.constant dense<0.000000e+00> : vector<8x128xf32>
    %185 = tpu.matmul %183, %184, %cst_105 {dimension_numbers = #tpu.dot_dimension_numbers<[1], [0], [0], [1], [0, 0, 1, 1], [], []>} : vector<8x32xf32>, vector<32x128xf32>, vector<8x128xf32> -> vector<8x128xf32>
    %c0_106 = arith.constant 0 : index
    %c0_107 = arith.constant 0 : index
    %186 = vector.load %arg20[%c0_106, %c0_107] : memref<1x128xf32, #tpu.memory_space<vmem>>, vector<1x128xf32>
    %187 = vector.shape_cast %186 : vector<1x128xf32> to vector<128xf32>
    %188 = vector.shape_cast %187 : vector<128xf32> to vector<1x128xf32>
    %189 = vector.broadcast %188 : vector<1x128xf32> to vector<8x128xf32>
    %190 = arith.addf %185, %189 : vector<8x128xf32>
    %191 = arith.mulf %190, %190 : vector<8x128xf32>
    %192 = arith.mulf %190, %191 : vector<8x128xf32>
    %cst_108 = arith.constant 4.471500e-02 : f32
    %193 = vector.broadcast %cst_108 : f32 to vector<8x128xf32>
    %194 = arith.mulf %193, %192 : vector<8x128xf32>
    %195 = arith.addf %190, %194 : vector<8x128xf32>
    %cst_109 = arith.constant 0.797884583 : f32
    %196 = vector.broadcast %cst_109 : f32 to vector<8x128xf32>
    %197 = arith.mulf %196, %195 : vector<8x128xf32>
    %198 = math.tanh %197 : vector<8x128xf32>
    %cst_110 = arith.constant 1.000000e+00 : f32
    %199 = vector.broadcast %cst_110 : f32 to vector<8x128xf32>
    %200 = arith.addf %199, %198 : vector<8x128xf32>
    %cst_111 = arith.constant 5.000000e-01 : f32
    %201 = vector.broadcast %cst_111 : f32 to vector<8x128xf32>
    %202 = arith.mulf %201, %200 : vector<8x128xf32>
    %203 = arith.mulf %190, %202 : vector<8x128xf32>
    %c0_112 = arith.constant 0 : index
    %c0_113 = arith.constant 0 : index
    %204 = vector.load %arg21[%c0_112, %c0_113] : memref<128x32xf32, #tpu.memory_space<vmem>>, vector<128x32xf32>
    %cst_114 = arith.constant dense<0.000000e+00> : vector<8x32xf32>
    %205 = tpu.matmul %203, %204, %cst_114 {dimension_numbers = #tpu.dot_dimension_numbers<[1], [0], [0], [1], [0, 0, 1, 1], [], []>} : vector<8x128xf32>, vector<128x32xf32>, vector<8x32xf32> -> vector<8x32xf32>
    %206 = arith.addf %157, %205 : vector<8x32xf32>
    %c0_115 = arith.constant 0 : index
    %c0_116 = arith.constant 0 : index
    %207 = vector.load %arg22[%c0_115, %c0_116] : memref<1x32xf32, #tpu.memory_space<vmem>>, vector<1x32xf32>
    %208 = vector.shape_cast %207 : vector<1x32xf32> to vector<32xf32>
    %209 = vector.shape_cast %208 : vector<32xf32> to vector<1x32xf32>
    %210 = vector.broadcast %209 : vector<1x32xf32> to vector<8x32xf32>
    %211 = arith.addf %206, %210 : vector<8x32xf32>
    %c0_117 = arith.constant 0 : index
    %c0_118 = arith.constant 0 : index
    %c0_119 = arith.constant 0 : index
    %212 = vector.load %arg23[%c0_117, %c0_118, %c0_119] : memref<1x8x32xf32, #tpu.memory_space<vmem>>, vector<1x8x32xf32>
    %213 = vector.shape_cast %212 : vector<1x8x32xf32> to vector<8x32xf32>
    %214 = vector.shape_cast %211 : vector<8x32xf32> to vector<1x8x32xf32>
    tpu.vector_store %arg23[%c0_117, %c0_118, %c0_119], %214 {strides = array<i32>} : memref<1x8x32xf32, #tpu.memory_space<vmem>>, vector<1x8x32xf32>,
    return
  }
  func.func @transform_0(%arg0: i32, %arg1: i32) -> (i32, i32, i32) {
    %c0_i32 = arith.constant 0 : i32
    %c0_i32_0 = arith.constant 0 : i32
    return %arg0, %arg1, %c0_i32 : i32, i32, i32
  }
  func.func @transform_1(%arg0: i32, %arg1: i32) -> (i32, i32, i32, i32) {
    %c0_i32 = arith.constant 0 : i32
    %c0_i32_0 = arith.constant 0 : i32
    %c0_i32_1 = arith.constant 0 : i32
    %c0_i32_2 = arith.constant 0 : i32
    return %arg0, %c0_i32, %c0_i32_0, %c0_i32_1 : i32, i32, i32, i32
  }
  func.func @transform_2(%arg0: i32, %arg1: i32) -> (i32, i32, i32, i32) {
    %c0_i32 = arith.constant 0 : i32
    %c0_i32_0 = arith.constant 0 : i32
    %c0_i32_1 = arith.constant 0 : i32
    %c0_i32_2 = arith.constant 0 : i32
    return %arg0, %c0_i32, %c0_i32_0, %c0_i32_1 : i32, i32, i32, i32
  }
  func.func @transform_3(%arg0: i32, %arg1: i32) -> (i32, i32, i32, i32) {
    %c0_i32 = arith.constant 0 : i32
    %c0_i32_0 = arith.constant 0 : i32
    %c0_i32_1 = arith.constant 0 : i32
    %c0_i32_2 = arith.constant 0 : i32
    return %arg0, %c0_i32, %c0_i32_0, %c0_i32_1 : i32, i32, i32, i32
  }
  func.func @transform_4(%arg0: i32, %arg1: i32) -> (i32, i32, i32, i32) {
    %c0_i32 = arith.constant 0 : i32
    %c0_i32_0 = arith.constant 0 : i32
    %c0_i32_1 = arith.constant 0 : i32
    %c0_i32_2 = arith.constant 0 : i32
    return %arg0, %c0_i32, %c0_i32_0, %c0_i32_1 : i32, i32, i32, i32
  }
  func.func @transform_5(%arg0: i32, %arg1: i32) -> (i32, i32) {
    %c0_i32 = arith.constant 0 : i32
    %c0_i32_0 = arith.constant 0 : i32
    %c0_i32_1 = arith.constant 0 : i32
    return %c0_i32, %c0_i32_0 : i32, i32
  }
  func.func @transform_6(%arg0: i32, %arg1: i32) -> (i32, i32) {
    %c0_i32 = arith.constant 0 : i32
    %c0_i32_0 = arith.constant 0 : i32
    %c0_i32_1 = arith.constant 0 : i32
    return %c0_i32, %c0_i32_0 : i32, i32
  }
  func.func @transform_7(%arg0: i32, %arg1: i32) -> (i32, i32, i32) {
    %c0_i32 = arith.constant 0 : i32
    %c0_i32_0 = arith.constant 0 : i32
    %c0_i32_1 = arith.constant 0 : i32
    %c0_i32_2 = arith.constant 0 : i32
    return %c0_i32, %c0_i32_0, %c0_i32_1 : i32, i32, i32
  }
  func.func @transform_8(%arg0: i32, %arg1: i32) -> (i32, i32) {
    %c0_i32 = arith.constant 0 : i32
    %c0_i32_0 = arith.constant 0 : i32
    %c0_i32_1 = arith.constant 0 : i32
    return %c0_i32, %c0_i32_0 : i32, i32
  }
  func.func @transform_9(%arg0: i32, %arg1: i32) -> (i32, i32) {
    %c0_i32 = arith.constant 0 : i32
    %c0_i32_0 = arith.constant 0 : i32
    %c0_i32_1 = arith.constant 0 : i32
    return %c0_i32, %c0_i32_0 : i32, i32
  }
  func.func @transform_10(%arg0: i32, %arg1: i32) -> (i32, i32) {
    %c0_i32 = arith.constant 0 : i32
    %c0_i32_0 = arith.constant 0 : i32
    %c0_i32_1 = arith.constant 0 : i32
    return %c0_i32, %c0_i32_0 : i32, i32
  }
  func.func @transform_11(%arg0: i32, %arg1: i32) -> (i32, i32) {
    %c0_i32 = arith.constant 0 : i32
    %c0_i32_0 = arith.constant 0 : i32
    %c0_i32_1 = arith.constant 0 : i32
    return %c0_i32, %c0_i32_0 : i32, i32
  }
  func.func @transform_12(%arg0: i32, %arg1: i32) -> (i32, i32, i32) {
    %c0_i32 = arith.constant 0 : i32
    %c0_i32_0 = arith.constant 0 : i32
    %c0_i32_1 = arith.constant 0 : i32
    %c0_i32_2 = arith.constant 0 : i32
    return %c0_i32, %c0_i32_0, %c0_i32_1 : i32, i32, i32
  }
  func.func @transform_13(%arg0: i32, %arg1: i32) -> (i32, i32) {
    %c0_i32 = arith.constant 0 : i32
    %c0_i32_0 = arith.constant 0 : i32
    %c0_i32_1 = arith.constant 0 : i32
    return %c0_i32, %c0_i32_0 : i32, i32
  }
  func.func @transform_14(%arg0: i32, %arg1: i32) -> (i32, i32) {
    %c0_i32 = arith.constant 0 : i32
    %c0_i32_0 = arith.constant 0 : i32
    %c0_i32_1 = arith.constant 0 : i32
    return %c0_i32, %c0_i32_0 : i32, i32
  }
  func.func @transform_15(%arg0: i32, %arg1: i32) -> (i32, i32) {
    %c0_i32 = arith.constant 0 : i32
    %c0_i32_0 = arith.constant 0 : i32
    %c0_i32_1 = arith.constant 0 : i32
    return %c0_i32, %c0_i32_0 : i32, i32
  }
  func.func @transform_16(%arg0: i32, %arg1: i32) -> (i32, i32) {
    %c0_i32 = arith.constant 0 : i32
    %c0_i32_0 = arith.constant 0 : i32
    %c0_i32_1 = arith.constant 0 : i32
    return %c0_i32, %c0_i32_0 : i32, i32
  }
  func.func @transform_17(%arg0: i32, %arg1: i32) -> (i32, i32) {
    %c0_i32 = arith.constant 0 : i32
    %c0_i32_0 = arith.constant 0 : i32
    %c0_i32_1 = arith.constant 0 : i32
    return %c0_i32, %c0_i32_0 : i32, i32
  }
  func.func @transform_18(%arg0: i32, %arg1: i32) -> (i32, i32) {
    %c0_i32 = arith.constant 0 : i32
    %c0_i32_0 = arith.constant 0 : i32
    %c0_i32_1 = arith.constant 0 : i32
    return %c0_i32, %c0_i32_0 : i32, i32
  }
  func.func @transform_19(%arg0: i32, %arg1: i32) -> (i32, i32) {
    %c0_i32 = arith.constant 0 : i32
    %c0_i32_0 = arith.constant 0 : i32
    %c0_i32_1 = arith.constant 0 : i32
    return %c0_i32, %c0_i32_0 : i32, i32
  }
  func.func @transform_20(%arg0: i32, %arg1: i32) -> (i32, i32) {
    %c0_i32 = arith.constant 0 : i32
    %c0_i32_0 = arith.constant 0 : i32
    %c0_i32_1 = arith.constant 0 : i32
    return %c0_i32, %c0_i32_0 : i32, i32
  }
  func.func @transform_21(%arg0: i32, %arg1: i32) -> (i32, i32, i32) {
    %c0_i32 = arith.constant 0 : i32
    %c0_i32_0 = arith.constant 0 : i32
    return %arg0, %arg1, %c0_i32 : i32, i32, i32
  }
}

</mosaic_0001>

<llo_original>
// kernel: tpu_custom_call.1
$region0: #{tpu_custom_call.1}
  #allocation0 [shape = 'u32[]', space=smem, size = 0x4, offset = 0x4, fixed_abs, tag = 'smem constant byte address 0x4 - core index']
  #allocation1 [shape = 'u32[144,128]{1,0:T(1,128)}', space=vmem, size = 0x12000, scoped, tag = 'internal scratch']
  %s0 = inlined_call_operand.hbm [shape: f32[2,16,32], index: 0, kind: input, shape index: {}]
  %s1 = inlined_call_operand.hbm [shape: f32[2,2,16,16], index: 1, kind: input, shape index: {}]
  %s2 = inlined_call_operand.hbm [shape: f32[2,2,16,16], index: 2, kind: input, shape index: {}]
  %s3 = inlined_call_operand.hbm [shape: f32[2,2,16,128], index: 3, kind: input, shape index: {}]
  %s4 = inlined_call_operand.hbm [shape: f32[2,2,128,16], index: 4, kind: input, shape index: {}]
  %s5 = inlined_call_operand.hbm [shape: f32[1,32], index: 5, kind: input, shape index: {}]
  %s6 = inlined_call_operand.hbm [shape: f32[1,32], index: 6, kind: input, shape index: {}]
  %s7 = inlined_call_operand.hbm [shape: f32[2,32,16], index: 7, kind: input, shape index: {}]
  %s8 = inlined_call_operand.hbm [shape: f32[32,32], index: 8, kind: input, shape index: {}]
  %s9 = inlined_call_operand.hbm [shape: f32[1,32], index: 9, kind: input, shape index: {}]
  %s10 = inlined_call_operand.hbm [shape: f32[1,32], index: 10, kind: input, shape index: {}]
  %s11 = inlined_call_operand.hbm [shape: f32[1,32], index: 11, kind: input, shape index: {}]
  %s12 = inlined_call_operand.hbm [shape: f32[2,32,16], index: 12, kind: input, shape index: {}]
  %s13 = inlined_call_operand.hbm [shape: f32[32,32], index: 13, kind: input, shape index: {}]
  %s14 = inlined_call_operand.hbm [shape: f32[1,32], index: 14, kind: input, shape index: {}]
  %s15 = inlined_call_operand.hbm [shape: f32[1,32], index: 15, kind: input, shape index: {}]
  %s16 = inlined_call_operand.hbm [shape: f32[1,32], index: 16, kind: input, shape index: {}]
  %s17 = inlined_call_operand.hbm [shape: f32[32,128], index: 17, kind: input, shape index: {}]
  %s18 = inlined_call_operand.hbm [shape: f32[1,128], index: 18, kind: input, shape index: {}]
  %s19 = inlined_call_operand.hbm [shape: f32[128,32], index: 19, kind: input, shape index: {}]
  %s20 = inlined_call_operand.hbm [shape: f32[1,32], index: 20, kind: input, shape index: {}]
  %s21 = inlined_call_operand.hbm [shape: f32[2,16,32], index: 21, kind: output, shape index: {}]
  %s22 = sld [smem:[#allocation0]]
  $region201: #{tpu_custom_call.1} parent=0
    _
  %s24 = ssub.s32 1, %s22
  %s25 = scalar_select 0, %s24, %s22
  $region1: #{tpu_custom_call.1} parent=0
    #allocation2 [shape = 'u8[8192]{0}', space=vmem, size = 0x2000, scoped, tag = 'input window, operand 0']
    #allocation3 [shape = 's32[2]{0}', space=sflag, size = 0x8, scoped, tag = 'scoped memory for tpu_custom_call.1']
    #allocation4 [shape = 's32[2]{0}', space=sflag, size = 0x8, scoped, tag = 'scoped memory for tpu_custom_call.1']
    #allocation5 [shape = 'u8[32768]{0}', space=vmem, size = 0x8000, scoped, tag = 'input window, operand 1']
    #allocation6 [shape = 's32[2]{0}', space=sflag, size = 0x8, scoped, tag = 'scoped memory for tpu_custom_call.1']
    #allocation7 [shape = 'u8[32768]{0}', space=vmem, size = 0x8000, scoped, tag = 'input window, operand 2']
    #allocation8 [shape = 'u8[32768]{0}', space=vmem, size = 0x8000, scoped, tag = 'input window, operand 3']
    #allocation9 [shape = 's32[2]{0}', space=sflag, size = 0x8, scoped, tag = 'scoped memory for tpu_custom_call.1']
    #allocation10 [shape = 'u8[262144]{0}', space=vmem, size = 0x40000, scoped, tag = 'input window, operand 4']
    #allocation11 [shape = 'u8[512]{0}', space=vmem, size = 0x400, scoped, tag = 'input window, operand 5, single buffered']
    #allocation12 [shape = 's32[1]{0}', space=sflag, size = 0x4, scoped, tag = 'scoped memory for tpu_custom_call.1']
    #allocation13 [shape = 'u8[512]{0}', space=vmem, size = 0x400, scoped, tag = 'input window, operand 6, single buffered']
    #allocation14 [shape = 'u8[32768]{0}', space=vmem, size = 0x8000, scoped, tag = 'input window, operand 7, single buffered']
    #allocation15 [shape = 's32[1]{0}', space=sflag, size = 0x4, scoped, tag = 'scoped memory for tpu_custom_call.1']
    #allocation16 [shape = 'u8[16384]{0}', space=vmem, size = 0x4000, scoped, tag = 'input window, operand 8, single buffered']
    #allocation17 [shape = 'u8[512]{0}', space=vmem, size = 0x400, scoped, tag = 'input window, operand 9, single buffered']
    #allocation18 [shape = 's32[1]{0}', space=sflag, size = 0x4, scoped, tag = 'scoped memory for tpu_custom_call.1']
    #allocation19 [shape = 'u8[512]{0}', space=vmem, size = 0x400, scoped, tag = 'input window, operand 10, single buffered']
    #allocation20 [shape = 'u8[512]{0}', space=vmem, size = 0x400, scoped, tag = 'input window, operand 11, single buffered']
    #allocation21 [shape = 's32[1]{0}', space=sflag, size = 0x4, scoped, tag = 'scoped memory for tpu_custom_call.1']
    #allocation22 [shape = 'u8[32768]{0}', space=vmem, size = 0x8000, scoped, tag = 'input window, operand 12, single buffered']
    #allocation23 [shape = 'u8[16384]{0}', space=vmem, size = 0x4000, scoped, tag = 'input window, operand 13, single buffered']
    #allocation24 [shape = 's32[1]{0}', space=sflag, size = 0x4, scoped, tag = 'scoped memory for tpu_custom_call.1']
    #allocation25 [shape = 'u8[512]{0}', space=vmem, size = 0x400, scoped, tag = 'input window, operand 14, single buffered']
    #allocation26 [shape = 'u8[512]{0}', space=vmem, size = 0x400, scoped, tag = 'input window, operand 15, single buffered']
    #allocation27 [shape = 's32[1]{0}', space=sflag, size = 0x4, scoped, tag = 'scoped memory for tpu_custom_call.1']
    #allocation28 [shape = 'u8[512]{0}', space=vmem, size = 0x400, scoped, tag = 'input window, operand 16, single buffered']
    #allocation29 [shape = 'u8[16384]{0}', space=vmem, size = 0x4000, scoped, tag = 'input window, operand 17, single buffered']
    #allocation30 [shape = 's32[1]{0}', space=sflag, size = 0x4, scoped, tag = 'scoped memory for tpu_custom_call.1']
    #allocation31 [shape = 'u8[512]{0}', space=vmem, size = 0x400, scoped, tag = 'input window, operand 18, single buffered']
    #allocation32 [shape = 'u8[65536]{0}', space=vmem, size = 0x10000, scoped, tag = 'input window, operand 19, single buffered']
    #allocation33 [shape = 's32[1]{0}', space=sflag, size = 0x4, scoped, tag = 'scoped memory for tpu_custom_call.1']
    #allocation34 [shape = 'u8[512]{0}', space=vmem, size = 0x400, scoped, tag = 'input window, operand 20, single buffered']
    #allocation35 [shape = 'u8[8192]{0}', space=vmem, size = 0x2000, scoped, tag = 'output window, operand 0']
    %26 = vsyncpa [#allocation3], 0
    %s27 = scalar_lea.sflag [#allocation3], 1
    %28 = vsyncpa %s27, 0
    %29 = vsyncpa [#allocation6], 0
    %s30 = scalar_lea.sflag [#allocation6], 1
    %31 = vsyncpa %s30, 0
    %32 = vsyncpa [#allocation9], 0
    %s33 = scalar_lea.sflag [#allocation9], 1
    %34 = vsyncpa %s33, 0
    %35 = vsyncpa [#allocation12], 0
    %36 = vsyncpa [#allocation15], 0
    %37 = vsyncpa [#allocation18], 0
    %38 = vsyncpa [#allocation21], 0
    %39 = vsyncpa [#allocation24], 0
    %40 = vsyncpa [#allocation27], 0
    %41 = vsyncpa [#allocation30], 0
    %42 = vsyncpa [#allocation33], 0
    %43 = vsyncpa [#allocation4], 0
    %s44 = scalar_lea.sflag [#allocation4], 1
    %45 = vsyncpa %s44, 0
    loop: start=0, step=1, limit=6
    $region2: #{tpu_custom_call.1} parent=1 // loop_pre_header
      _
    $region3: #{tpu_custom_call.1} parent=1 // loop_header
      %s47 = sphi 0, %s51
      %p48 = scmp.ge.s32.totalorder %s47, 6
      %s54 = sphi 0, %s66
      %s55 = sphi 0, %s62
      %s56 = sphi 0, %s54
      %s57 = sphi 0, %s55
      %s58 = sphi 0, %s56
      %s59 = sphi 0, %s57
      %s71 = sphi 0, %s73
      %s74 = sphi 0, %s71
      %s75 = sphi 0, %s74
      %s91 = sphi 0, %s75
      %s97 = sphi 0, %s99
      %s100 = sphi 0, %s97
      %s101 = sphi 0, %s100
      %s117 = sphi 0, %s101
      %s123 = sphi 0, %s125
      %s126 = sphi 0, %s123
      %s127 = sphi 0, %s126
      %s143 = sphi 0, %s127
      %s149 = sphi 0, %s151
      %s152 = sphi 0, %s149
      %s153 = sphi 0, %s152
      %s169 = sphi 0, %s153
      %s175 = sphi 0, %s177
      %s178 = sphi 0, %s175
      %s179 = sphi 0, %s178
      %s195 = sphi 0, %s179
      %s199 = sphi 0, %s199
      %s201 = sphi 0, %s199
      %s202 = sphi 0, %s201
      %s216 = sphi 0, %s202
      %s220 = sphi 0, %s220
      %s222 = sphi 0, %s220
      %s223 = sphi 0, %s222
      %s237 = sphi 0, %s223
      %s241 = sphi 0, %s241
      %s243 = sphi 0, %s241
      %s244 = sphi 0, %s243
      %s258 = sphi 0, %s244
      %s262 = sphi 0, %s262
      %s264 = sphi 0, %s262
      %s265 = sphi 0, %s264
      %s279 = sphi 0, %s265
      %s283 = sphi 0, %s283
      %s285 = sphi 0, %s283
      %s286 = sphi 0, %s285
      %s300 = sphi 0, %s286
      %s304 = sphi 0, %s304
      %s306 = sphi 0, %s304
      %s307 = sphi 0, %s306
      %s321 = sphi 0, %s307
      %s325 = sphi 0, %s325
      %s327 = sphi 0, %s325
      %s328 = sphi 0, %s327
      %s342 = sphi 0, %s328
      %s346 = sphi 0, %s346
      %s348 = sphi 0, %s346
      %s349 = sphi 0, %s348
      %s363 = sphi 0, %s349
      %s367 = sphi 0, %s367
      %s369 = sphi 0, %s367
      %s370 = sphi 0, %s369
      %s384 = sphi 0, %s370
      %s388 = sphi 0, %s388
      %s390 = sphi 0, %s388
      %s391 = sphi 0, %s390
      %s405 = sphi 0, %s391
      %s409 = sphi 0, %s409
      %s411 = sphi 0, %s409
      %s412 = sphi 0, %s411
      %s426 = sphi 0, %s412
      %s430 = sphi 0, %s430
      %s432 = sphi 0, %s430
      %s433 = sphi 0, %s432
      %s447 = sphi 0, %s433
      %s451 = sphi 0, %s451
      %s453 = sphi 0, %s451
      %s454 = sphi 0, %s453
      %s468 = sphi 0, %s454
      %s472 = sphi 0, %s472
      %s474 = sphi 0, %s472
      %s475 = sphi 0, %s474
      %s489 = sphi 0, %s475
      %s493 = sphi 0, %s493
      %s495 = sphi 0, %s493
      %s496 = sphi 0, %s495
      %s510 = sphi 0, %s496
      %s514 = sphi 0, %s514
      %s516 = sphi 0, %s514
      %s517 = sphi 0, %s516
      %s531 = sphi 0, %s517
      %s539 = sphi 0, %s541
      %s542 = sphi 0, %s539
      %s543 = sphi 0, %s542
      %s559 = sphi 0, %s543
    $region4: #{tpu_custom_call.1} parent=1 // loop_header_branch
      %50 = sbr.rel (%p48) target = $region8
    $region5: #{tpu_custom_call.1} parent=1 // loop_body
      %s52 = ssub.s32 %s47, 1
      %s53 = ssub.s32 %s47, 2
      %s60 = sadd.s32 1, %s55
      %p61 = scmp.ge.s32.totalorder %s60, 2
      %s62 = scalar_select %p61, 0, %s60
      %s63 = sadd.s32 1, %s54
      %s64 = scalar_select %p61, %s63, %s54
      %p65 = scmp.ge.s32.totalorder %s64, 2
      %s66 = scalar_select %p65, 0, %s64
      %s67 = ssub.s32 %s54, %s66
      %s68 = ssub.s32 %s55, %s62
      %s69 = sor.u32 %s67, %s68
      %p70 = scmp.eq.s32.totalorder %s69, 0
      %s72 = sadd.s32 %s71, 1
      %s73 = scalar_select %p70, %s71, %s72
      %p76 = pneg %p70
      %p77 = scmp.eq.s32.totalorder %s47, 3
      %p78 = por %p76, %p77
      %p79 = scmp.ne.s32.totalorder %s71, %s74
      %p80 = scmp.eq.s32.totalorder %s47, 0
      %p81 = por %p79, %p80
      %p82 = scmp.ne.s32.totalorder %s71, %s74
      %p83 = scmp.eq.s32.totalorder %s52, 3
      %p84 = por %p82, %p83
      %p85 = scmp.ne.s32.totalorder %s74, %s75
      %p86 = scmp.eq.s32.totalorder %s52, 0
      %p87 = por %p85, %p86
      %p88 = scmp.ne.s32.totalorder %s74, %s75
      %p89 = scmp.eq.s32.totalorder %s53, 3
      %p90 = por %p88, %p89
      %p92 = scmp.ne.s32.totalorder %s75, %s91
      %p93 = scmp.eq.s32.totalorder %s53, 0
      %p94 = por %p92, %p93
      %s95 = ssub.s32 %s54, %s66
      %p96 = scmp.eq.s32.totalorder %s95, 0
      %s98 = sadd.s32 %s97, 1
      %s99 = scalar_select %p96, %s97, %s98
      %p102 = pneg %p96
      %p103 = scmp.eq.s32.totalorder %s47, 3
      %p104 = por %p102, %p103
      %p105 = scmp.ne.s32.totalorder %s97, %s100
      %p106 = scmp.eq.s32.totalorder %s47, 0
      %p107 = por %p105, %p106
      %p108 = scmp.ne.s32.totalorder %s97, %s100
      %p109 = scmp.eq.s32.totalorder %s52, 3
      %p110 = por %p108, %p109
      %p111 = scmp.ne.s32.totalorder %s100, %s101
      %p112 = scmp.eq.s32.totalorder %s52, 0
      %p113 = por %p111, %p112
      %p114 = scmp.ne.s32.totalorder %s100, %s101
      %p115 = scmp.eq.s32.totalorder %s53, 3
      %p116 = por %p114, %p115
      %p118 = scmp.ne.s32.totalorder %s101, %s117
      %p119 = scmp.eq.s32.totalorder %s53, 0
      %p120 = por %p118, %p119
      %s121 = ssub.s32 %s54, %s66
      %p122 = scmp.eq.s32.totalorder %s121, 0
      %s124 = sadd.s32 %s123, 1
      %s125 = scalar_select %p122, %s123, %s124
      %p128 = pneg %p122
      %p129 = scmp.eq.s32.totalorder %s47, 3
      %p130 = por %p128, %p129
      %p131 = scmp.ne.s32.totalorder %s123, %s126
      %p132 = scmp.eq.s32.totalorder %s47, 0
      %p133 = por %p131, %p132
      %p134 = scmp.ne.s32.totalorder %s123, %s126
      %p135 = scmp.eq.s32.totalorder %s52, 3
      %p136 = por %p134, %p135
      %p137 = scmp.ne.s32.totalorder %s126, %s127
      %p138 = scmp.eq.s32.totalorder %s52, 0
      %p139 = por %p137, %p138
      %p140 = scmp.ne.s32.totalorder %s126, %s127
      %p141 = scmp.eq.s32.totalorder %s53, 3
      %p142 = por %p140, %p141
      %p144 = scmp.ne.s32.totalorder %s127, %s143
      %p145 = scmp.eq.s32.totalorder %s53, 0
      %p146 = por %p144, %p145
      %s147 = ssub.s32 %s54, %s66
      %p148 = scmp.eq.s32.totalorder %s147, 0
      %s150 = sadd.s32 %s149, 1
      %s151 = scalar_select %p148, %s149, %s150
      %p154 = pneg %p148
      %p155 = scmp.eq.s32.totalorder %s47, 3
      %p156 = por %p154, %p155
      %p157 = scmp.ne.s32.totalorder %s149, %s152
      %p158 = scmp.eq.s32.totalorder %s47, 0
      %p159 = por %p157, %p158
      %p160 = scmp.ne.s32.totalorder %s149, %s152
      %p161 = scmp.eq.s32.totalorder %s52, 3
      %p162 = por %p160, %p161
      %p163 = scmp.ne.s32.totalorder %s152, %s153
      %p164 = scmp.eq.s32.totalorder %s52, 0
      %p165 = por %p163, %p164
      %p166 = scmp.ne.s32.totalorder %s152, %s153
      %p167 = scmp.eq.s32.totalorder %s53, 3
      %p168 = por %p166, %p167
      %p170 = scmp.ne.s32.totalorder %s153, %s169
      %p171 = scmp.eq.s32.totalorder %s53, 0
      %p172 = por %p170, %p171
      %s173 = ssub.s32 %s54, %s66
      %p174 = scmp.eq.s32.totalorder %s173, 0
      %s176 = sadd.s32 %s175, 1
      %s177 = scalar_select %p174, %s175, %s176
      %p180 = pneg %p174
      %p181 = scmp.eq.s32.totalorder %s47, 3
      %p182 = por %p180, %p181
      %p183 = scmp.ne.s32.totalorder %s175, %s178
      %p184 = scmp.eq.s32.totalorder %s47, 0
      %p185 = por %p183, %p184
      %p186 = scmp.ne.s32.totalorder %s175, %s178
      %p187 = scmp.eq.s32.totalorder %s52, 3
      %p188 = por %p186, %p187
      %p189 = scmp.ne.s32.totalorder %s178, %s179
      %p190 = scmp.eq.s32.totalorder %s52, 0
      %p191 = por %p189, %p190
      %p192 = scmp.ne.s32.totalorder %s178, %s179
      %p193 = scmp.eq.s32.totalorder %s53, 3
      %p194 = por %p192, %p193
      %p196 = scmp.ne.s32.totalorder %s179, %s195
      %p197 = scmp.eq.s32.totalorder %s53, 0
      %p198 = por %p196, %p197
      %s200 = sadd.s32 %s199, 1
      %p203 = scmp.eq.s32.totalorder %s47, 3
      %p204 = scmp.ne.s32.totalorder %s199, %s201
      %p205 = scmp.eq.s32.totalorder %s47, 0
      %p206 = por %p204, %p205
      %p207 = scmp.ne.s32.totalorder %s199, %s201
      %p208 = scmp.eq.s32.totalorder %s52, 3
      %p209 = por %p207, %p208
      %p210 = scmp.ne.s32.totalorder %s201, %s202
      %p211 = scmp.eq.s32.totalorder %s52, 0
      %p212 = por %p210, %p211
      %p213 = scmp.ne.s32.totalorder %s201, %s202
      %p214 = scmp.eq.s32.totalorder %s53, 3
      %p215 = por %p213, %p214
      %p217 = scmp.ne.s32.totalorder %s202, %s216
      %p218 = scmp.eq.s32.totalorder %s53, 0
      %p219 = por %p217, %p218
      %s221 = sadd.s32 %s220, 1
      %p224 = scmp.eq.s32.totalorder %s47, 3
      %p225 = scmp.ne.s32.totalorder %s220, %s222
      %p226 = scmp.eq.s32.totalorder %s47, 0
      %p227 = por %p225, %p226
      %p228 = scmp.ne.s32.totalorder %s220, %s222
      %p229 = scmp.eq.s32.totalorder %s52, 3
      %p230 = por %p228, %p229
      %p231 = scmp.ne.s32.totalorder %s222, %s223
      %p232 = scmp.eq.s32.totalorder %s52, 0
      %p233 = por %p231, %p232
      %p234 = scmp.ne.s32.totalorder %s222, %s223
      %p235 = scmp.eq.s32.totalorder %s53, 3
      %p236 = por %p234, %p235
      %p238 = scmp.ne.s32.totalorder %s223, %s237
      %p239 = scmp.eq.s32.totalorder %s53, 0
      %p240 = por %p238, %p239
      %s242 = sadd.s32 %s241, 1
      %p245 = scmp.eq.s32.totalorder %s47, 3
      %p246 = scmp.ne.s32.totalorder %s241, %s243
      %p247 = scmp.eq.s32.totalorder %s47, 0
      %p248 = por %p246, %p247
      %p249 = scmp.ne.s32.totalorder %s241, %s243
      %p250 = scmp.eq.s32.totalorder %s52, 3
      %p251 = por %p249, %p250
      %p252 = scmp.ne.s32.totalorder %s243, %s244
      %p253 = scmp.eq.s32.totalorder %s52, 0
      %p254 = por %p252, %p253
      %p255 = scmp.ne.s32.totalorder %s243, %s244
      %p256 = scmp.eq.s32.totalorder %s53, 3
      %p257 = por %p255, %p256
      %p259 = scmp.ne.s32.totalorder %s244, %s258
      %p260 = scmp.eq.s32.totalorder %s53, 0
      %p261 = por %p259, %p260
      %s263 = sadd.s32 %s262, 1
      %p266 = scmp.eq.s32.totalorder %s47, 3
      %p267 = scmp.ne.s32.totalorder %s262, %s264
      %p268 = scmp.eq.s32.totalorder %s47, 0
      %p269 = por %p267, %p268
      %p270 = scmp.ne.s32.totalorder %s262, %s264
      %p271 = scmp.eq.s32.totalorder %s52, 3
      %p272 = por %p270, %p271
      %p273 = scmp.ne.s32.totalorder %s264, %s265
      %p274 = scmp.eq.s32.totalorder %s52, 0
      %p275 = por %p273, %p274
      %p276 = scmp.ne.s32.totalorder %s264, %s265
      %p277 = scmp.eq.s32.totalorder %s53, 3
      %p278 = por %p276, %p277
      %p280 = scmp.ne.s32.totalorder %s265, %s279
      %p281 = scmp.eq.s32.totalorder %s53, 0
      %p282 = por %p280, %p281
      %s284 = sadd.s32 %s283, 1
      %p287 = scmp.eq.s32.totalorder %s47, 3
      %p288 = scmp.ne.s32.totalorder %s283, %s285
      %p289 = scmp.eq.s32.totalorder %s47, 0
      %p290 = por %p288, %p289
      %p291 = scmp.ne.s32.totalorder %s283, %s285
      %p292 = scmp.eq.s32.totalorder %s52, 3
      %p293 = por %p291, %p292
      %p294 = scmp.ne.s32.totalorder %s285, %s286
      %p295 = scmp.eq.s32.totalorder %s52, 0
      %p296 = por %p294, %p295
      %p297 = scmp.ne.s32.totalorder %s285, %s286
      %p298 = scmp.eq.s32.totalorder %s53, 3
      %p299 = por %p297, %p298
      %p301 = scmp.ne.s32.totalorder %s286, %s300
      %p302 = scmp.eq.s32.totalorder %s53, 0
      %p303 = por %p301, %p302
      %s305 = sadd.s32 %s304, 1
      %p308 = scmp.eq.s32.totalorder %s47, 3
      %p309 = scmp.ne.s32.totalorder %s304, %s306
      %p310 = scmp.eq.s32.totalorder %s47, 0
      %p311 = por %p309, %p310
      %p312 = scmp.ne.s32.totalorder %s304, %s306
      %p313 = scmp.eq.s32.totalorder %s52, 3
      %p314 = por %p312, %p313
      %p315 = scmp.ne.s32.totalorder %s306, %s307
      %p316 = scmp.eq.s32.totalorder %s52, 0
      %p317 = por %p315, %p316
      %p318 = scmp.ne.s32.totalorder %s306, %s307
      %p319 = scmp.eq.s32.totalorder %s53, 3
      %p320 = por %p318, %p319
      %p322 = scmp.ne.s32.totalorder %s307, %s321
      %p323 = scmp.eq.s32.totalorder %s53, 0
      %p324 = por %p322, %p323
      %s326 = sadd.s32 %s325, 1
      %p329 = scmp.eq.s32.totalorder %s47, 3
      %p330 = scmp.ne.s32.totalorder %s325, %s327
      %p331 = scmp.eq.s32.totalorder %s47, 0
      %p332 = por %p330, %p331
      %p333 = scmp.ne.s32.totalorder %s325, %s327
      %p334 = scmp.eq.s32.totalorder %s52, 3
      %p335 = por %p333, %p334
      %p336 = scmp.ne.s32.totalorder %s327, %s328
      %p337 = scmp.eq.s32.totalorder %s52, 0
      %p338 = por %p336, %p337
      %p339 = scmp.ne.s32.totalorder %s327, %s328
      %p340 = scmp.eq.s32.totalorder %s53, 3
      %p341 = por %p339, %p340
      %p343 = scmp.ne.s32.totalorder %s328, %s342
      %p344 = scmp.eq.s32.totalorder %s53, 0
      %p345 = por %p343, %p344
      %s347 = sadd.s32 %s346, 1
      %p350 = scmp.eq.s32.totalorder %s47, 3
      %p351 = scmp.ne.s32.totalorder %s346, %s348
      %p352 = scmp.eq.s32.totalorder %s47, 0
      %p353 = por %p351, %p352
      %p354 = scmp.ne.s32.totalorder %s346, %s348
      %p355 = scmp.eq.s32.totalorder %s52, 3
      %p356 = por %p354, %p355
      %p357 = scmp.ne.s32.totalorder %s348, %s349
      %p358 = scmp.eq.s32.totalorder %s52, 0
      %p359 = por %p357, %p358
      %p360 = scmp.ne.s32.totalorder %s348, %s349
      %p361 = scmp.eq.s32.totalorder %s53, 3
      %p362 = por %p360, %p361
      %p364 = scmp.ne.s32.totalorder %s349, %s363
      %p365 = scmp.eq.s32.totalorder %s53, 0
      %p366 = por %p364, %p365
      %s368 = sadd.s32 %s367, 1
      %p371 = scmp.eq.s32.totalorder %s47, 3
      %p372 = scmp.ne.s32.totalorder %s367, %s369
      %p373 = scmp.eq.s32.totalorder %s47, 0
      %p374 = por %p372, %p373
      %p375 = scmp.ne.s32.totalorder %s367, %s369
      %p376 = scmp.eq.s32.totalorder %s52, 3
      %p377 = por %p375, %p376
      %p378 = scmp.ne.s32.totalorder %s369, %s370
      %p379 = scmp.eq.s32.totalorder %s52, 0
      %p380 = por %p378, %p379
      %p381 = scmp.ne.s32.totalorder %s369, %s370
      %p382 = scmp.eq.s32.totalorder %s53, 3
      %p383 = por %p381, %p382
      %p385 = scmp.ne.s32.totalorder %s370, %s384
      %p386 = scmp.eq.s32.totalorder %s53, 0
      %p387 = por %p385, %p386
      %s389 = sadd.s32 %s388, 1
      %p392 = scmp.eq.s32.totalorder %s47, 3
      %p393 = scmp.ne.s32.totalorder %s388, %s390
      %p394 = scmp.eq.s32.totalorder %s47, 0
      %p395 = por %p393, %p394
      %p396 = scmp.ne.s32.totalorder %s388, %s390
      %p397 = scmp.eq.s32.totalorder %s52, 3
      %p398 = por %p396, %p397
      %p399 = scmp.ne.s32.totalorder %s390, %s391
      %p400 = scmp.eq.s32.totalorder %s52, 0
      %p401 = por %p399, %p400
      %p402 = scmp.ne.s32.totalorder %s390, %s391
      %p403 = scmp.eq.s32.totalorder %s53, 3
      %p404 = por %p402, %p403
      %p406 = scmp.ne.s32.totalorder %s391, %s405
      %p407 = scmp.eq.s32.totalorder %s53, 0
      %p408 = por %p406, %p407
      %s410 = sadd.s32 %s409, 1
      %p413 = scmp.eq.s32.totalorder %s47, 3
      %p414 = scmp.ne.s32.totalorder %s409, %s411
      %p415 = scmp.eq.s32.totalorder %s47, 0
      %p416 = por %p414, %p415
      %p417 = scmp.ne.s32.totalorder %s409, %s411
      %p418 = scmp.eq.s32.totalorder %s52, 3
      %p419 = por %p417, %p418
      %p420 = scmp.ne.s32.totalorder %s411, %s412
      %p421 = scmp.eq.s32.totalorder %s52, 0
      %p422 = por %p420, %p421
      %p423 = scmp.ne.s32.totalorder %s411, %s412
      %p424 = scmp.eq.s32.totalorder %s53, 3
      %p425 = por %p423, %p424
      %p427 = scmp.ne.s32.totalorder %s412, %s426
      %p428 = scmp.eq.s32.totalorder %s53, 0
      %p429 = por %p427, %p428
      %s431 = sadd.s32 %s430, 1
      %p434 = scmp.eq.s32.totalorder %s47, 3
      %p435 = scmp.ne.s32.totalorder %s430, %s432
      %p436 = scmp.eq.s32.totalorder %s47, 0
      %p437 = por %p435, %p436
      %p438 = scmp.ne.s32.totalorder %s430, %s432
      %p439 = scmp.eq.s32.totalorder %s52, 3
      %p440 = por %p438, %p439
      %p441 = scmp.ne.s32.totalorder %s432, %s433
      %p442 = scmp.eq.s32.totalorder %s52, 0
      %p443 = por %p441, %p442
      %p444 = scmp.ne.s32.totalorder %s432, %s433
      %p445 = scmp.eq.s32.totalorder %s53, 3
      %p446 = por %p444, %p445
      %p448 = scmp.ne.s32.totalorder %s433, %s447
      %p449 = scmp.eq.s32.totalorder %s53, 0
      %p450 = por %p448, %p449
      %s452 = sadd.s32 %s451, 1
      %p455 = scmp.eq.s32.totalorder %s47, 3
      %p456 = scmp.ne.s32.totalorder %s451, %s453
      %p457 = scmp.eq.s32.totalorder %s47, 0
      %p458 = por %p456, %p457
      %p459 = scmp.ne.s32.totalorder %s451, %s453
      %p460 = scmp.eq.s32.totalorder %s52, 3
      %p461 = por %p459, %p460
      %p462 = scmp.ne.s32.totalorder %s453, %s454
      %p463 = scmp.eq.s32.totalorder %s52, 0
      %p464 = por %p462, %p463
      %p465 = scmp.ne.s32.totalorder %s453, %s454
      %p466 = scmp.eq.s32.totalorder %s53, 3
      %p467 = por %p465, %p466
      %p469 = scmp.ne.s32.totalorder %s454, %s468
      %p470 = scmp.eq.s32.totalorder %s53, 0
      %p471 = por %p469, %p470
      %s473 = sadd.s32 %s472, 1
      %p476 = scmp.eq.s32.totalorder %s47, 3
      %p477 = scmp.ne.s32.totalorder %s472, %s474
      %p478 = scmp.eq.s32.totalorder %s47, 0
      %p479 = por %p477, %p478
      %p480 = scmp.ne.s32.totalorder %s472, %s474
      %p481 = scmp.eq.s32.totalorder %s52, 3
      %p482 = por %p480, %p481
      %p483 = scmp.ne.s32.totalorder %s474, %s475
      %p484 = scmp.eq.s32.totalorder %s52, 0
      %p485 = por %p483, %p484
      %p486 = scmp.ne.s32.totalorder %s474, %s475
      %p487 = scmp.eq.s32.totalorder %s53, 3
      %p488 = por %p486, %p487
      %p490 = scmp.ne.s32.totalorder %s475, %s489
      %p491 = scmp.eq.s32.totalorder %s53, 0
      %p492 = por %p490, %p491
      %s494 = sadd.s32 %s493, 1
      %p497 = scmp.eq.s32.totalorder %s47, 3
      %p498 = scmp.ne.s32.totalorder %s493, %s495
      %p499 = scmp.eq.s32.totalorder %s47, 0
      %p500 = por %p498, %p499
      %p501 = scmp.ne.s32.totalorder %s493, %s495
      %p502 = scmp.eq.s32.totalorder %s52, 3
      %p503 = por %p501, %p502
      %p504 = scmp.ne.s32.totalorder %s495, %s496
      %p505 = scmp.eq.s32.totalorder %s52, 0
      %p506 = por %p504, %p505
      %p507 = scmp.ne.s32.totalorder %s495, %s496
      %p508 = scmp.eq.s32.totalorder %s53, 3
      %p509 = por %p507, %p508
      %p511 = scmp.ne.s32.totalorder %s496, %s510
      %p512 = scmp.eq.s32.totalorder %s53, 0
      %p513 = por %p511, %p512
      %s515 = sadd.s32 %s514, 1
      %p518 = scmp.eq.s32.totalorder %s47, 3
      %p519 = scmp.ne.s32.totalorder %s514, %s516
      %p520 = scmp.eq.s32.totalorder %s47, 0
      %p521 = por %p519, %p520
      %p522 = scmp.ne.s32.totalorder %s514, %s516
      %p523 = scmp.eq.s32.totalorder %s52, 3
      %p524 = por %p522, %p523
      %p525 = scmp.ne.s32.totalorder %s516, %s517
      %p526 = scmp.eq.s32.totalorder %s52, 0
      %p527 = por %p525, %p526
      %p528 = scmp.ne.s32.totalorder %s516, %s517
      %p529 = scmp.eq.s32.totalorder %s53, 3
      %p530 = por %p528, %p529
      %p532 = scmp.ne.s32.totalorder %s517, %s531
      %p533 = scmp.eq.s32.totalorder %s53, 0
      %p534 = por %p532, %p533
      %s535 = ssub.s32 %s54, %s66
      %s536 = ssub.s32 %s55, %s62
      %s537 = sor.u32 %s535, %s536
      %p538 = scmp.eq.s32.totalorder %s537, 0
      %s540 = sadd.s32 %s539, 1
      %s541 = scalar_select %p538, %s539, %s540
      %p544 = pneg %p538
      %p545 = scmp.eq.s32.totalorder %s47, 3
      %p546 = por %p544, %p545
      %p547 = scmp.ne.s32.totalorder %s539, %s542
      %p548 = scmp.eq.s32.totalorder %s47, 0
      %p549 = por %p547, %p548
      %p550 = scmp.ne.s32.totalorder %s539, %s542
      %p551 = scmp.eq.s32.totalorder %s52, 3
      %p552 = por %p550, %p551
      %p553 = scmp.ne.s32.totalorder %s542, %s543
      %p554 = scmp.eq.s32.totalorder %s52, 0
      %p555 = por %p553, %p554
      %p556 = scmp.ne.s32.totalorder %s542, %s543
      %p557 = scmp.eq.s32.totalorder %s53, 3
      %p558 = por %p556, %p557
      %p560 = scmp.ne.s32.totalorder %s543, %s559
      %p561 = scmp.eq.s32.totalorder %s53, 0
      %p562 = por %p560, %p561
      %p563 = scmp.le.s32.totalorder 1, %s47
      %p564 = scmp.lt.s32.totalorder %s47, 5
      %p565 = pnand %p563, %p564
      %p566 = pneg %p565
      // Predicated region
      $region9: #{tpu_custom_call.1} parent=5 // pred_check
        _
      $region10: #{tpu_custom_call.1} parent=5 // pred_check_branch
        %568 = sbr.rel (%p565) target = $region12
      $region11: #{tpu_custom_call.1} parent=5 // pred_region
        %s569 = ssub.s32 %s47, 1
        // Predicated region
        $region13: #{tpu_custom_call.1} parent=11 // pred_check
          %p570 = pneg %p212
        $region14: #{tpu_custom_call.1} parent=11 // pred_check_branch
          %572 = sbr.rel (%p570) target = $region16
        $region15: #{tpu_custom_call.1} parent=11 // pred_region
          %s574 = ssub.s32 16, 16
          %575 = vsyncadd [#allocation12], %s574
          %s577 = sshll.u32 [#allocation11], 4
          %s578 = int_to_ptr.vmem [resolvable:$true] %s577
          %580 = dma.hbm_to_vmem [thread:$0]  %s5, 16, %s578, [#allocation12]
        $region16: #{tpu_custom_call.1} parent=11 // pred_fallthru
          _
        // Predicated region
        $region17: #{tpu_custom_call.1} parent=11 // pred_check
          %p581 = pneg %p233
        $region18: #{tpu_custom_call.1} parent=11 // pred_check_branch
          %583 = sbr.rel (%p581) target = $region20
        $region19: #{tpu_custom_call.1} parent=11 // pred_region
          %s585 = ssub.s32 16, 16
          %586 = vsyncadd [#allocation12], %s585
          %s588 = sshll.u32 [#allocation13], 4
          %s589 = int_to_ptr.vmem [resolvable:$true] %s588
          %591 = dma.hbm_to_vmem [thread:$0]  %s6, 16, %s589, [#allocation12]
        $region20: #{tpu_custom_call.1} parent=11 // pred_fallthru
          _
        // Predicated region
        $region21: #{tpu_custom_call.1} parent=11 // pred_check
          %p592 = pneg %p254
        $region22: #{tpu_custom_call.1} parent=11 // pred_check_branch
          %594 = sbr.rel (%p592) target = $region24
        $region23: #{tpu_custom_call.1} parent=11 // pred_region
          %s596 = ssub.s32 1024, 1024
          %597 = vsyncadd [#allocation15], %s596
          %s598 = sshll.u32 [#allocation14], 4
          %s599 = int_to_ptr.vmem [resolvable:$true] %s598
          %604 = dma.hbm_to_vmem [thread:$0]  %s7, 1024, %s599, [#allocation15], 128, 128, 8
        $region24: #{tpu_custom_call.1} parent=11 // pred_fallthru
          _
        // Predicated region
        $region25: #{tpu_custom_call.1} parent=11 // pred_check
          %p605 = pneg %p275
        $region26: #{tpu_custom_call.1} parent=11 // pred_check_branch
          %607 = sbr.rel (%p605) target = $region28
        $region27: #{tpu_custom_call.1} parent=11 // pred_region
          %s609 = ssub.s32 512, 512
          %610 = vsyncadd [#allocation15], %s609
          %s611 = sshll.u32 [#allocation16], 4
          %s612 = int_to_ptr.vmem [resolvable:$true] %s611
          %617 = dma.hbm_to_vmem [thread:$0]  %s8, 512, %s612, [#allocation15], 128, 128, 8
        $region28: #{tpu_custom_call.1} parent=11 // pred_fallthru
          _
        // Predicated region
        $region29: #{tpu_custom_call.1} parent=11 // pred_check
          %p618 = pneg %p296
        $region30: #{tpu_custom_call.1} parent=11 // pred_check_branch
          %620 = sbr.rel (%p618) target = $region32
        $region31: #{tpu_custom_call.1} parent=11 // pred_region
          %s622 = ssub.s32 16, 16
          %623 = vsyncadd [#allocation18], %s622
          %s625 = sshll.u32 [#allocation17], 4
          %s626 = int_to_ptr.vmem [resolvable:$true] %s625
          %628 = dma.hbm_to_vmem [thread:$0]  %s9, 16, %s626, [#allocation18]
        $region32: #{tpu_custom_call.1} parent=11 // pred_fallthru
          _
        // Predicated region
        $region33: #{tpu_custom_call.1} parent=11 // pred_check
          %p629 = pneg %p317
        $region34: #{tpu_custom_call.1} parent=11 // pred_check_branch
          %631 = sbr.rel (%p629) target = $region36
        $region35: #{tpu_custom_call.1} parent=11 // pred_region
          %s633 = ssub.s32 16, 16
          %634 = vsyncadd [#allocation18], %s633
          %s636 = sshll.u32 [#allocation19], 4
          %s637 = int_to_ptr.vmem [resolvable:$true] %s636
          %639 = dma.hbm_to_vmem [thread:$0]  %s10, 16, %s637, [#allocation18]
        $region36: #{tpu_custom_call.1} parent=11 // pred_fallthru
          _
        // Predicated region
        $region37: #{tpu_custom_call.1} parent=11 // pred_check
          %p640 = pneg %p338
        $region38: #{tpu_custom_call.1} parent=11 // pred_check_branch
          %642 = sbr.rel (%p640) target = $region40
        $region39: #{tpu_custom_call.1} parent=11 // pred_region
          %s644 = ssub.s32 16, 16
          %645 = vsyncadd [#allocation21], %s644
          %s647 = sshll.u32 [#allocation20], 4
          %s648 = int_to_ptr.vmem [resolvable:$true] %s647
          %650 = dma.hbm_to_vmem [thread:$0]  %s11, 16, %s648, [#allocation21]
        $region40: #{tpu_custom_call.1} parent=11 // pred_fallthru
          _
        // Predicated region
        $region41: #{tpu_custom_call.1} parent=11 // pred_check
          %p651 = pneg %p359
        $region42: #{tpu_custom_call.1} parent=11 // pred_check_branch
          %653 = sbr.rel (%p651) target = $region44
        $region43: #{tpu_custom_call.1} parent=11 // pred_region
          %s655 = ssub.s32 1024, 1024
          %656 = vsyncadd [#allocation21], %s655
          %s657 = sshll.u32 [#allocation22], 4
          %s658 = int_to_ptr.vmem [resolvable:$true] %s657
          %663 = dma.hbm_to_vmem [thread:$0]  %s12, 1024, %s658, [#allocation21], 128, 128, 8
        $region44: #{tpu_custom_call.1} parent=11 // pred_fallthru
          _
        // Predicated region
        $region45: #{tpu_custom_call.1} parent=11 // pred_check
          %p664 = pneg %p380
        $region46: #{tpu_custom_call.1} parent=11 // pred_check_branch
          %666 = sbr.rel (%p664) target = $region48
        $region47: #{tpu_custom_call.1} parent=11 // pred_region
          %s668 = ssub.s32 512, 512
          %669 = vsyncadd [#allocation24], %s668
          %s670 = sshll.u32 [#allocation23], 4
          %s671 = int_to_ptr.vmem [resolvable:$true] %s670
          %676 = dma.hbm_to_vmem [thread:$0]  %s13, 512, %s671, [#allocation24], 128, 128, 8
        $region48: #{tpu_custom_call.1} parent=11 // pred_fallthru
          _
        // Predicated region
        $region49: #{tpu_custom_call.1} parent=11 // pred_check
          %p677 = pneg %p401
        $region50: #{tpu_custom_call.1} parent=11 // pred_check_branch
          %679 = sbr.rel (%p677) target = $region52
        $region51: #{tpu_custom_call.1} parent=11 // pred_region
          %s681 = ssub.s32 16, 16
          %682 = vsyncadd [#allocation24], %s681
          %s684 = sshll.u32 [#allocation25], 4
          %s685 = int_to_ptr.vmem [resolvable:$true] %s684
          %687 = dma.hbm_to_vmem [thread:$0]  %s14, 16, %s685, [#allocation24]
        $region52: #{tpu_custom_call.1} parent=11 // pred_fallthru
          _
        // Predicated region
        $region53: #{tpu_custom_call.1} parent=11 // pred_check
          %p688 = pneg %p422
        $region54: #{tpu_custom_call.1} parent=11 // pred_check_branch
          %690 = sbr.rel (%p688) target = $region56
        $region55: #{tpu_custom_call.1} parent=11 // pred_region
          %s692 = ssub.s32 16, 16
          %693 = vsyncadd [#allocation27], %s692
          %s695 = sshll.u32 [#allocation26], 4
          %s696 = int_to_ptr.vmem [resolvable:$true] %s695
          %698 = dma.hbm_to_vmem [thread:$0]  %s15, 16, %s696, [#allocation27]
        $region56: #{tpu_custom_call.1} parent=11 // pred_fallthru
          _
        // Predicated region
        $region57: #{tpu_custom_call.1} parent=11 // pred_check
          %p699 = pneg %p443
        $region58: #{tpu_custom_call.1} parent=11 // pred_check_branch
          %701 = sbr.rel (%p699) target = $region60
        $region59: #{tpu_custom_call.1} parent=11 // pred_region
          %s703 = ssub.s32 16, 16
          %704 = vsyncadd [#allocation27], %s703
          %s706 = sshll.u32 [#allocation28], 4
          %s707 = int_to_ptr.vmem [resolvable:$true] %s706
          %709 = dma.hbm_to_vmem [thread:$0]  %s16, 16, %s707, [#allocation27]
        $region60: #{tpu_custom_call.1} parent=11 // pred_fallthru
          _
        // Predicated region
        $region61: #{tpu_custom_call.1} parent=11 // pred_check
          %p710 = pneg %p464
        $region62: #{tpu_custom_call.1} parent=11 // pred_check_branch
          %712 = sbr.rel (%p710) target = $region64
        $region63: #{tpu_custom_call.1} parent=11 // pred_region
          %s714 = ssub.s32 512, 512
          %715 = vsyncadd [#allocation30], %s714
          %s716 = sshll.u32 [#allocation29], 4
          %s717 = int_to_ptr.vmem [resolvable:$true] %s716
          %722 = dma.hbm_to_vmem [thread:$0]  %s17, 512, %s717, [#allocation30], 128, 128, 8
        $region64: #{tpu_custom_call.1} parent=11 // pred_fallthru
          _
        // Predicated region
        $region65: #{tpu_custom_call.1} parent=11 // pred_check
          %p723 = pneg %p485
        $region66: #{tpu_custom_call.1} parent=11 // pred_check_branch
          %725 = sbr.rel (%p723) target = $region68
        $region67: #{tpu_custom_call.1} parent=11 // pred_region
          %s727 = ssub.s32 16, 16
          %728 = vsyncadd [#allocation30], %s727
          %s730 = sshll.u32 [#allocation31], 4
          %s731 = int_to_ptr.vmem [resolvable:$true] %s730
          %733 = dma.hbm_to_vmem [thread:$0]  %s18, 16, %s731, [#allocation30]
        $region68: #{tpu_custom_call.1} parent=11 // pred_fallthru
          _
        // Predicated region
        $region69: #{tpu_custom_call.1} parent=11 // pred_check
          %p734 = pneg %p506
        $region70: #{tpu_custom_call.1} parent=11 // pred_check_branch
          %736 = sbr.rel (%p734) target = $region72
        $region71: #{tpu_custom_call.1} parent=11 // pred_region
          %s738 = ssub.s32 2048, 2048
          %739 = vsyncadd [#allocation33], %s738
          %s740 = sshll.u32 [#allocation32], 4
          %s741 = int_to_ptr.vmem [resolvable:$true] %s740
          %746 = dma.hbm_to_vmem [thread:$0]  %s19, 2048, %s741, [#allocation33], 128, 128, 8
        $region72: #{tpu_custom_call.1} parent=11 // pred_fallthru
          _
        // Predicated region
        $region73: #{tpu_custom_call.1} parent=11 // pred_check
          %p747 = pneg %p527
        $region74: #{tpu_custom_call.1} parent=11 // pred_check_branch
          %749 = sbr.rel (%p747) target = $region76
        $region75: #{tpu_custom_call.1} parent=11 // pred_region
          %s751 = ssub.s32 16, 16
          %752 = vsyncadd [#allocation33], %s751
          %s754 = sshll.u32 [#allocation34], 4
          %s755 = int_to_ptr.vmem [resolvable:$true] %s754
          %757 = dma.hbm_to_vmem [thread:$0]  %s20, 16, %s755, [#allocation33]
        $region76: #{tpu_custom_call.1} parent=11 // pred_fallthru
          _
      $region12: #{tpu_custom_call.1} parent=5 // pred_fallthru
        _
      %p758 = scmp.lt.s32.totalorder %s47, 4
      // Predicated region
      $region77: #{tpu_custom_call.1} parent=5 // pred_check
        %p759 = pneg %p758
      $region78: #{tpu_custom_call.1} parent=5 // pred_check_branch
        %761 = sbr.rel (%p759) target = $region80
      $region79: #{tpu_custom_call.1} parent=5 // pred_region
        // Predicated region
        $region81: #{tpu_custom_call.1} parent=79 // pred_check
          %p762 = pneg %p81
        $region82: #{tpu_custom_call.1} parent=79 // pred_check_branch
          %764 = sbr.rel (%p762) target = $region84
        $region83: #{tpu_custom_call.1} parent=79 // pred_region
          %s765 = sand.u32 %s71, 1
          %s766 = scalar_lea.sflag [#allocation3], %s765
          %s767 = sand.u32 %s71, 1
          %s768 = smul.addr %s767, 8
          %s769 = scalar_lea.vmem [#allocation2], %s768
          %s771 = ssub.s32 128, 128
          %772 = vsyncadd %s766, %s771
          %s773 = smul.addr %s54, 2
          %s774 = sadd.s32 %s55, %s773
          %s775 = smul.addr %s774, 128
          %s776 = scalar_lea.hbm %s0, %s775
          %s778 = sshll.u32 %s769, 4
          %s779 = int_to_ptr.vmem [resolvable:$true] %s778
          %781 = dma.hbm_to_vmem [thread:$0]  %s776, 128, %s779, %s766
        $region84: #{tpu_custom_call.1} parent=79 // pred_fallthru
          _
        // Predicated region
        $region85: #{tpu_custom_call.1} parent=79 // pred_check
          %p782 = pneg %p107
        $region86: #{tpu_custom_call.1} parent=79 // pred_check_branch
          %784 = sbr.rel (%p782) target = $region88
        $region87: #{tpu_custom_call.1} parent=79 // pred_region
          %s785 = sand.u32 %s47, 1
          %s786 = scalar_lea.sflag [#allocation6], %s785
          %s787 = sand.u32 %s97, 1
          %s788 = smul.addr %s787, 32
          %s789 = scalar_lea.vmem [#allocation5], %s788
          %s791 = ssub.s32 512, 512
          %792 = vsyncadd %s786, %s791
          %s793 = smul.addr %s54, 4
          %s794 = smul.addr %s793, 128
          %s795 = scalar_lea.hbm %s1, %s794
          %s796 = sshll.u32 %s789, 4
          %s797 = int_to_ptr.vmem [resolvable:$true] %s796
          %802 = dma.hbm_to_vmem [thread:$0]  %s795, 512, %s797, %s786, 128, 128, 8
        $region88: #{tpu_custom_call.1} parent=79 // pred_fallthru
          _
        // Predicated region
        $region89: #{tpu_custom_call.1} parent=79 // pred_check
          %p803 = pneg %p133
        $region90: #{tpu_custom_call.1} parent=79 // pred_check_branch
          %805 = sbr.rel (%p803) target = $region92
        $region91: #{tpu_custom_call.1} parent=79 // pred_region
          %s806 = sand.u32 %s47, 1
          %s807 = scalar_lea.sflag [#allocation6], %s806
          %s808 = sand.u32 %s123, 1
          %s809 = smul.addr %s808, 32
          %s810 = scalar_lea.vmem [#allocation7], %s809
          %s812 = ssub.s32 512, 512
          %813 = vsyncadd %s807, %s812
          %s814 = smul.addr %s54, 4
          %s815 = smul.addr %s814, 128
          %s816 = scalar_lea.hbm %s2, %s815
          %s817 = sshll.u32 %s810, 4
          %s818 = int_to_ptr.vmem [resolvable:$true] %s817
          %823 = dma.hbm_to_vmem [thread:$0]  %s816, 512, %s818, %s807, 128, 128, 8
        $region92: #{tpu_custom_call.1} parent=79 // pred_fallthru
          _
        // Predicated region
        $region93: #{tpu_custom_call.1} parent=79 // pred_check
          %p824 = pneg %p159
        $region94: #{tpu_custom_call.1} parent=79 // pred_check_branch
          %826 = sbr.rel (%p824) target = $region96
        $region95: #{tpu_custom_call.1} parent=79 // pred_region
          %s827 = sand.u32 %s47, 1
          %s828 = scalar_lea.sflag [#allocation9], %s827
          %s829 = sand.u32 %s149, 1
          %s830 = smul.addr %s829, 32
          %s831 = scalar_lea.vmem [#allocation8], %s830
          %s833 = ssub.s32 512, 512
          %834 = vsyncadd %s828, %s833
          %s835 = smul.addr %s54, 4
          %s836 = smul.addr %s835, 128
          %s837 = scalar_lea.hbm %s3, %s836
          %s838 = sshll.u32 %s831, 4
          %s839 = int_to_ptr.vmem [resolvable:$true] %s838
          %844 = dma.hbm_to_vmem [thread:$0]  %s837, 512, %s839, %s828, 128, 128, 8
        $region96: #{tpu_custom_call.1} parent=79 // pred_fallthru
          _
        // Predicated region
        $region97: #{tpu_custom_call.1} parent=79 // pred_check
          %p845 = pneg %p185
        $region98: #{tpu_custom_call.1} parent=79 // pred_check_branch
          %847 = sbr.rel (%p845) target = $region100
        $region99: #{tpu_custom_call.1} parent=79 // pred_region
          %s848 = sand.u32 %s47, 1
          %s849 = scalar_lea.sflag [#allocation9], %s848
          %s850 = sand.u32 %s175, 1
          %s851 = smul.addr %s850, 256
          %s852 = scalar_lea.vmem [#allocation10], %s851
          %s854 = ssub.s32 4096, 4096
          %855 = vsyncadd %s849, %s854
          %s856 = smul.addr %s54, 32
          %s857 = smul.addr %s856, 128
          %s858 = scalar_lea.hbm %s4, %s857
          %s859 = sshll.u32 %s852, 4
          %s860 = int_to_ptr.vmem [resolvable:$true] %s859
          %865 = dma.hbm_to_vmem [thread:$0]  %s858, 4096, %s860, %s849, 128, 128, 8
        $region100: #{tpu_custom_call.1} parent=79 // pred_fallthru
          _
      $region80: #{tpu_custom_call.1} parent=5 // pred_fallthru
        _
      %p866 = scmp.le.s32.totalorder 1, %s47
      %p867 = scmp.lt.s32.totalorder %s47, 5
      %p868 = pnand %p866, %p867
      %p869 = pneg %p868
      // Predicated region
      $region101: #{tpu_custom_call.1} parent=5 // pred_check
        _
      $region102: #{tpu_custom_call.1} parent=5 // pred_check_branch
        %871 = sbr.rel (%p868) target = $region104
      $region103: #{tpu_custom_call.1} parent=5 // pred_region
        %s872 = ssub.s32 %s47, 1
        %s873 = sand.u32 %s74, 1
        %s874 = scalar_lea.sflag [#allocation3], %s873
        %s875 = sand.u32 %s74, 1
        %s876 = smul.addr %s875, 8
        %s877 = scalar_lea.vmem [#allocation2], %s876
        // Predicated region
        $region105: #{tpu_custom_call.1} parent=103 // pred_check
          %p878 = pneg %p87
        $region106: #{tpu_custom_call.1} parent=103 // pred_check_branch
          %880 = sbr.rel (%p878) target = $region108
        $region107: #{tpu_custom_call.1} parent=103 // pred_region
          %881 = dma.done %s874, 128
        $region108: #{tpu_custom_call.1} parent=103 // pred_fallthru
          _
        %s882 = sand.u32 %s52, 1
        %s883 = scalar_lea.sflag [#allocation6], %s882
        %s884 = sand.u32 %s100, 1
        %s885 = smul.addr %s884, 32
        %s886 = scalar_lea.vmem [#allocation5], %s885
        // Predicated region
        $region109: #{tpu_custom_call.1} parent=103 // pred_check
          %p887 = pneg %p113
        $region110: #{tpu_custom_call.1} parent=103 // pred_check_branch
          %889 = sbr.rel (%p887) target = $region112
        $region111: #{tpu_custom_call.1} parent=103 // pred_region
          %890 = dma.done %s883, 512
        $region112: #{tpu_custom_call.1} parent=103 // pred_fallthru
          _
        %s891 = sand.u32 %s52, 1
        %s892 = scalar_lea.sflag [#allocation6], %s891
        %s893 = sand.u32 %s126, 1
        %s894 = smul.addr %s893, 32
        %s895 = scalar_lea.vmem [#allocation7], %s894
        // Predicated region
        $region113: #{tpu_custom_call.1} parent=103 // pred_check
          %p896 = pneg %p139
        $region114: #{tpu_custom_call.1} parent=103 // pred_check_branch
          %898 = sbr.rel (%p896) target = $region116
        $region115: #{tpu_custom_call.1} parent=103 // pred_region
          %899 = dma.done %s892, 512
        $region116: #{tpu_custom_call.1} parent=103 // pred_fallthru
          _
        %s900 = sand.u32 %s52, 1
        %s901 = scalar_lea.sflag [#allocation9], %s900
        %s902 = sand.u32 %s152, 1
        %s903 = smul.addr %s902, 32
        %s904 = scalar_lea.vmem [#allocation8], %s903
        // Predicated region
        $region117: #{tpu_custom_call.1} parent=103 // pred_check
          %p905 = pneg %p165
        $region118: #{tpu_custom_call.1} parent=103 // pred_check_branch
          %907 = sbr.rel (%p905) target = $region120
        $region119: #{tpu_custom_call.1} parent=103 // pred_region
          %908 = dma.done %s901, 512
        $region120: #{tpu_custom_call.1} parent=103 // pred_fallthru
          _
        %s909 = sand.u32 %s52, 1
        %s910 = scalar_lea.sflag [#allocation9], %s909
        %s911 = sand.u32 %s178, 1
        %s912 = smul.addr %s911, 256
        %s913 = scalar_lea.vmem [#allocation10], %s912
        // Predicated region
        $region121: #{tpu_custom_call.1} parent=103 // pred_check
          %p914 = pneg %p191
        $region122: #{tpu_custom_call.1} parent=103 // pred_check_branch
          %916 = sbr.rel (%p914) target = $region124
        $region123: #{tpu_custom_call.1} parent=103 // pred_region
          %917 = dma.done %s910, 4096
        $region124: #{tpu_custom_call.1} parent=103 // pred_fallthru
          _
        // Predicated region
        $region125: #{tpu_custom_call.1} parent=103 // pred_check
          %p918 = pneg %p212
        $region126: #{tpu_custom_call.1} parent=103 // pred_check_branch
          %920 = sbr.rel (%p918) target = $region128
        $region127: #{tpu_custom_call.1} parent=103 // pred_region
          %921 = dma.done [#allocation12], 16
        $region128: #{tpu_custom_call.1} parent=103 // pred_fallthru
          _
        // Predicated region
        $region129: #{tpu_custom_call.1} parent=103 // pred_check
          %p922 = pneg %p233
        $region130: #{tpu_custom_call.1} parent=103 // pred_check_branch
          %924 = sbr.rel (%p922) target = $region132
        $region131: #{tpu_custom_call.1} parent=103 // pred_region
          %925 = dma.done [#allocation12], 16
        $region132: #{tpu_custom_call.1} parent=103 // pred_fallthru
          _
        // Predicated region
        $region133: #{tpu_custom_call.1} parent=103 // pred_check
          %p926 = pneg %p254
        $region134: #{tpu_custom_call.1} parent=103 // pred_check_branch
          %928 = sbr.rel (%p926) target = $region136
        $region135: #{tpu_custom_call.1} parent=103 // pred_region
          %929 = dma.done [#allocation15], 1024
        $region136: #{tpu_custom_call.1} parent=103 // pred_fallthru
          _
        // Predicated region
        $region137: #{tpu_custom_call.1} parent=103 // pred_check
          %p930 = pneg %p275
        $region138: #{tpu_custom_call.1} parent=103 // pred_check_branch
          %932 = sbr.rel (%p930) target = $region140
        $region139: #{tpu_custom_call.1} parent=103 // pred_region
          %933 = dma.done [#allocation15], 512
        $region140: #{tpu_custom_call.1} parent=103 // pred_fallthru
          _
        // Predicated region
        $region141: #{tpu_custom_call.1} parent=103 // pred_check
          %p934 = pneg %p296
        $region142: #{tpu_custom_call.1} parent=103 // pred_check_branch
          %936 = sbr.rel (%p934) target = $region144
        $region143: #{tpu_custom_call.1} parent=103 // pred_region
          %937 = dma.done [#allocation18], 16
        $region144: #{tpu_custom_call.1} parent=103 // pred_fallthru
          _
        // Predicated region
        $region145: #{tpu_custom_call.1} parent=103 // pred_check
          %p938 = pneg %p317
        $region146: #{tpu_custom_call.1} parent=103 // pred_check_branch
          %940 = sbr.rel (%p938) target = $region148
        $region147: #{tpu_custom_call.1} parent=103 // pred_region
          %941 = dma.done [#allocation18], 16
        $region148: #{tpu_custom_call.1} parent=103 // pred_fallthru
          _
        // Predicated region
        $region149: #{tpu_custom_call.1} parent=103 // pred_check
          %p942 = pneg %p338
        $region150: #{tpu_custom_call.1} parent=103 // pred_check_branch
          %944 = sbr.rel (%p942) target = $region152
        $region151: #{tpu_custom_call.1} parent=103 // pred_region
          %945 = dma.done [#allocation21], 16
        $region152: #{tpu_custom_call.1} parent=103 // pred_fallthru
          _
        // Predicated region
        $region153: #{tpu_custom_call.1} parent=103 // pred_check
          %p946 = pneg %p359
        $region154: #{tpu_custom_call.1} parent=103 // pred_check_branch
          %948 = sbr.rel (%p946) target = $region156
        $region155: #{tpu_custom_call.1} parent=103 // pred_region
          %949 = dma.done [#allocation21], 1024
        $region156: #{tpu_custom_call.1} parent=103 // pred_fallthru
          _
        // Predicated region
        $region157: #{tpu_custom_call.1} parent=103 // pred_check
          %p950 = pneg %p380
        $region158: #{tpu_custom_call.1} parent=103 // pred_check_branch
          %952 = sbr.rel (%p950) target = $region160
        $region159: #{tpu_custom_call.1} parent=103 // pred_region
          %953 = dma.done [#allocation24], 512
        $region160: #{tpu_custom_call.1} parent=103 // pred_fallthru
          _
        // Predicated region
        $region161: #{tpu_custom_call.1} parent=103 // pred_check
          %p954 = pneg %p401
        $region162: #{tpu_custom_call.1} parent=103 // pred_check_branch
          %956 = sbr.rel (%p954) target = $region164
        $region163: #{tpu_custom_call.1} parent=103 // pred_region
          %957 = dma.done [#allocation24], 16
        $region164: #{tpu_custom_call.1} parent=103 // pred_fallthru
          _
        // Predicated region
        $region165: #{tpu_custom_call.1} parent=103 // pred_check
          %p958 = pneg %p422
        $region166: #{tpu_custom_call.1} parent=103 // pred_check_branch
          %960 = sbr.rel (%p958) target = $region168
        $region167: #{tpu_custom_call.1} parent=103 // pred_region
          %961 = dma.done [#allocation27], 16
        $region168: #{tpu_custom_call.1} parent=103 // pred_fallthru
          _
        // Predicated region
        $region169: #{tpu_custom_call.1} parent=103 // pred_check
          %p962 = pneg %p443
        $region170: #{tpu_custom_call.1} parent=103 // pred_check_branch
          %964 = sbr.rel (%p962) target = $region172
        $region171: #{tpu_custom_call.1} parent=103 // pred_region
          %965 = dma.done [#allocation27], 16
        $region172: #{tpu_custom_call.1} parent=103 // pred_fallthru
          _
        // Predicated region
        $region173: #{tpu_custom_call.1} parent=103 // pred_check
          %p966 = pneg %p464
        $region174: #{tpu_custom_call.1} parent=103 // pred_check_branch
          %968 = sbr.rel (%p966) target = $region176
        $region175: #{tpu_custom_call.1} parent=103 // pred_region
          %969 = dma.done [#allocation30], 512
        $region176: #{tpu_custom_call.1} parent=103 // pred_fallthru
          _
        // Predicated region
        $region177: #{tpu_custom_call.1} parent=103 // pred_check
          %p970 = pneg %p485
        $region178: #{tpu_custom_call.1} parent=103 // pred_check_branch
          %972 = sbr.rel (%p970) target = $region180
        $region179: #{tpu_custom_call.1} parent=103 // pred_region
          %973 = dma.done [#allocation30], 16
        $region180: #{tpu_custom_call.1} parent=103 // pred_fallthru
          _
        // Predicated region
        $region181: #{tpu_custom_call.1} parent=103 // pred_check
          %p974 = pneg %p506
        $region182: #{tpu_custom_call.1} parent=103 // pred_check_branch
          %976 = sbr.rel (%p974) target = $region184
        $region183: #{tpu_custom_call.1} parent=103 // pred_region
          %977 = dma.done [#allocation33], 2048
        $region184: #{tpu_custom_call.1} parent=103 // pred_fallthru
          _
        // Predicated region
        $region185: #{tpu_custom_call.1} parent=103 // pred_check
          %p978 = pneg %p527
        $region186: #{tpu_custom_call.1} parent=103 // pred_check_branch
          %980 = sbr.rel (%p978) target = $region188
        $region187: #{tpu_custom_call.1} parent=103 // pred_region
          %981 = dma.done [#allocation33], 16
        $region188: #{tpu_custom_call.1} parent=103 // pred_fallthru
          _
        %s982 = sand.u32 %s74, 1
        %s983 = scalar_lea.sflag [#allocation3], %s982
        %s984 = sand.u32 %s74, 1
        %s985 = smul.addr %s984, 8
        %s986 = scalar_lea.vmem [#allocation2], %s985
        %p987 = pneg %p87
        %p988 = pneg %p84
        %s989 = sand.u32 %s52, 1
        %s990 = scalar_lea.sflag [#allocation6], %s989
        %s991 = sand.u32 %s100, 1
        %s992 = smul.addr %s991, 32
        %s993 = scalar_lea.vmem [#allocation5], %s992
        %p994 = pneg %p113
        %p995 = pneg %p110
        %s996 = sand.u32 %s52, 1
        %s997 = scalar_lea.sflag [#allocation6], %s996
        %s998 = sand.u32 %s126, 1
        %s999 = smul.addr %s998, 32
        %s1000 = scalar_lea.vmem [#allocation7], %s999
        %p1001 = pneg %p139
        %p1002 = pneg %p136
        %s1003 = sand.u32 %s52, 1
        %s1004 = scalar_lea.sflag [#allocation9], %s1003
        %s1005 = sand.u32 %s152, 1
        %s1006 = smul.addr %s1005, 32
        %s1007 = scalar_lea.vmem [#allocation8], %s1006
        %p1008 = pneg %p165
        %p1009 = pneg %p162
        %s1010 = sand.u32 %s52, 1
        %s1011 = scalar_lea.sflag [#allocation9], %s1010
        %s1012 = sand.u32 %s178, 1
        %s1013 = smul.addr %s1012, 256
        %s1014 = scalar_lea.vmem [#allocation10], %s1013
        %p1015 = pneg %p191
        %p1016 = pneg %p188
        %p1017 = pneg %p212
        %p1018 = pneg %p209
        %p1019 = pneg %p233
        %p1020 = pneg %p230
        %p1021 = pneg %p254
        %p1022 = pneg %p251
        %p1023 = pneg %p275
        %p1024 = pneg %p272
        %p1025 = pneg %p296
        %p1026 = pneg %p293
        %p1027 = pneg %p317
        %p1028 = pneg %p314
        %p1029 = pneg %p338
        %p1030 = pneg %p335
        %p1031 = pneg %p359
        %p1032 = pneg %p356
        %p1033 = pneg %p380
        %p1034 = pneg %p377
        %p1035 = pneg %p401
        %p1036 = pneg %p398
        %p1037 = pneg %p422
        %p1038 = pneg %p419
        %p1039 = pneg %p443
        %p1040 = pneg %p440
        %p1041 = pneg %p464
        %p1042 = pneg %p461
        %p1043 = pneg %p485
        %p1044 = pneg %p482
        %p1045 = pneg %p506
        %p1046 = pneg %p503
        %p1047 = pneg %p527
        %p1048 = pneg %p524
        %p1049 = pneg %p555
        %p1050 = pneg %p552
        %s1051 = sand.u32 %s542, 1
        %s1052 = scalar_lea.sflag [#allocation4], %s1051
        %s1053 = sand.u32 %s542, 1
        %s1054 = smul.addr %s1053, 8
        %s1055 = scalar_lea.vmem [#allocation35], %s1054
        %v1056 = vld [vmem:[%s877] sm:$0xff]
        %vm1057 = vcmask 261120
        %v1058 = vsel %vm1057, %v1056, 0.0
        %1059 = vadd.xlane.f32.xlu0 %v1058
        %v1060 = vpop.xlane.xlu0 %1059
        %v1061 = vrcp.pop 32.0
        %v1062 = vmul.f32 %v1060, %v1061
        %v1063 = vsub.f32 %v1056, %v1062
        %v1064 = vmul.f32 %v1063, %v1063
        %v1065 = vsel %vm1057, %v1064, 0.0
        %1066 = vadd.xlane.f32.xlu0 %v1065
        %v1067 = vpop.xlane.xlu0 %1066
        %v1068 = vmul.f32 %v1067, %v1061
        %v1069 = vadd.f32 %v1068, 1e-05
        %v1070 = vrsqrt.pop %v1069
        %v1071 = vmul.f32 %v1063, %v1070
        %v1072 = vld [vmem:[#allocation11] sm:$0x1]
        %v1074 = vlaneseq
        %v1075 = vshrl.u32 %v1074, 7
        %v1076 = vsub.s32 0, %v1075
        %v1077 = vrot.slane %v1072, %v1076
        %v1079 = vmul.f32 %v1071, %v1077
        %v1080 = vld [vmem:[#allocation13] sm:$0x1]
        %v1082 = vlaneseq
        %v1083 = vshrl.u32 %v1082, 7
        %v1084 = vsub.s32 0, %v1083
        %v1085 = vrot.slane %v1080, %v1084
        %v1087 = vadd.f32 %v1079, %v1085
        %v1088 = vld [vmem:[#allocation14] sm:$0xff]
        %v1089 = vld [vmem:[#allocation14 + $0x8] sm:$0xff]
        %v1090 = vld [vmem:[#allocation14 + $0x10] sm:$0xff]
        %v1091 = vld [vmem:[#allocation14 + $0x18] sm:$0xff]
        %v1093 = vsel %vm1057, %v1087, 0
        %1095 = vmatprep.subr.mxu0 0.0
        %1096 = vmatpush1.msra.mxu0 %v1088
        %1097 = vmatprep.subr.mxu0 0.0
        %1098 = vmatpush1.msra.mxu0 %v1089
        %1099 = vmatprep.subr.mxu0 0.0
        %1100 = vmatpush1.msra.mxu0 %v1090
        %1101 = vmatprep.subr.mxu0 0.0
        %1102 = vmatpush1.msra.mxu0 %v1091
        %1103 = vmatprep.subr.mxu0 0.0
        %1104 = vmatpush1.msra.mxu0 0.0
        %1105 = vmatprep.subr.mxu0 0.0
        %1106 = vmatpush1.msra.mxu0 0.0
        %1107 = vmatprep.subr.mxu0 0.0
        %1108 = vmatpush1.msra.mxu0 0.0
        %1109 = vmatprep.subr.mxu0 0.0
        %1110 = vmatpush1.msra.mxu0 0.0
        %1111 = vmatprep.subr.mxu0 0.0
        %1112 = vmatpush1.msra.mxu0 0.0
        %1113 = vmatprep.subr.mxu0 0.0
        %1114 = vmatpush1.msra.mxu0 0.0
        %1115 = vmatprep.subr.mxu0 0.0
        %1116 = vmatpush1.msra.mxu0 0.0
        %1117 = vmatprep.subr.mxu0 0.0
        %1118 = vmatpush1.msra.mxu0 0.0
        %1119 = vmatprep.subr.mxu0 0.0
        %1120 = vmatpush1.msra.mxu0 0.0
        %1121 = vmatprep.subr.mxu0 0.0
        %1122 = vmatpush1.msra.mxu0 0.0
        %1123 = vmatprep.subr.mxu0 0.0
        %1124 = vmatpush1.msra.mxu0 0.0
        %1125 = vmatprep.subr.mxu0 0.0
        %1126 = vmatpush1.msra.mxu0 0.0
        %1127 = vmatprep.subr.mxu0 0.0
        %1128 = vmatpush1.msra.mxu0 0.0
        %1129 = vmatprep.subr.mxu0 0.0
        %1130 = vmatpush1.msra.mxu0 0.0
        %1131 = vmatprep.subr.mxu0 0.0
        %1132 = vmatpush1.msra.mxu0 0.0
        %1133 = vmatprep.subr.mxu0 0.0
        %1134 = vmatpush1.msra.mxu0 0.0
        %1135 = vmatprep.subr.mxu0 0.0
        %1136 = vmatpush1.msra.mxu0 0.0
        %1137 = vmatprep.subr.mxu0 0.0
        %1138 = vmatpush1.msra.mxu0 0.0
        %1139 = vmatprep.subr.mxu0 0.0
        %1140 = vmatpush1.msra.mxu0 0.0
        %1141 = vmatprep.subr.mxu0 0.0
        %1142 = vmatpush1.msra.mxu0 0.0
        %1143 = vmatprep.subr.mxu0 0.0
        %1144 = vmatpush1.msra.mxu0 0.0
        %1145 = vmatprep.subr.mxu0 0.0
        %1146 = vmatpush1.msra.mxu0 0.0
        %1147 = vmatprep.subr.mxu0 0.0
        %1148 = vmatpush1.msra.mxu0 0.0
        %1149 = vmatprep.subr.mxu0 0.0
        %1150 = vmatpush1.msra.mxu0 0.0
        %1151 = vmatprep.subr.mxu0 0.0
        %1152 = vmatpush1.msra.mxu0 0.0
        %1153 = vmatprep.subr.mxu0 0.0
        %1154 = vmatpush1.msra.mxu0 0.0
        %1155 = vmatprep.subr.mxu0 0.0
        %1156 = vmatpush1.msra.mxu0 0.0
        %1157 = vmatprep.subr.mxu0 0.0
        %1158 = vmatpush1.msra.mxu0 0.0
        %1159 = vmatprep.mubr.f32.mxu0 0.0
        %1160 = vmatmul.mubr.f32.gmra.mrb[0].mxu0 %v1093
        %v1161 = vpop.f32.mrb[0].mxu0
        %v1162 = vadd.f32 0.0, %v1161
        %v1163 = vpop.f32.mrb[0].mxu0
        %1164 = vdwg.mxu0
        %v1165 = vld [vmem:[%s886] sm:$0xff]
        %v1166 = vld [vmem:[%s886 + $0x8] sm:$0xff]
        %vm1167 = vcmask 130048
        %v1169 = vsel %vm1167, %v1162, 0
        %1171 = vmatprep.subr.mxu0 0.0
        %1172 = vmatpush1.msra.mxu0 %v1165
        %1173 = vmatprep.subr.mxu0 0.0
        %1174 = vmatpush1.msra.mxu0 %v1166
        %1175 = vmatprep.subr.mxu0 0.0
        %1176 = vmatpush1.msra.mxu0 0.0
        %1177 = vmatprep.subr.mxu0 0.0
        %1178 = vmatpush1.msra.mxu0 0.0
        %1179 = vmatprep.subr.mxu0 0.0
        %1180 = vmatpush1.msra.mxu0 0.0
        %1181 = vmatprep.subr.mxu0 0.0
        %1182 = vmatpush1.msra.mxu0 0.0
        %1183 = vmatprep.subr.mxu0 0.0
        %1184 = vmatpush1.msra.mxu0 0.0
        %1185 = vmatprep.subr.mxu0 0.0
        %1186 = vmatpush1.msra.mxu0 0.0
        %1187 = vmatprep.subr.mxu0 0.0
        %1188 = vmatpush1.msra.mxu0 0.0
        %1189 = vmatprep.subr.mxu0 0.0
        %1190 = vmatpush1.msra.mxu0 0.0
        %1191 = vmatprep.subr.mxu0 0.0
        %1192 = vmatpush1.msra.mxu0 0.0
        %1193 = vmatprep.subr.mxu0 0.0
        %1194 = vmatpush1.msra.mxu0 0.0
        %1195 = vmatprep.subr.mxu0 0.0
        %1196 = vmatpush1.msra.mxu0 0.0
        %1197 = vmatprep.subr.mxu0 0.0
        %1198 = vmatpush1.msra.mxu0 0.0
        %1199 = vmatprep.subr.mxu0 0.0
        %1200 = vmatpush1.msra.mxu0 0.0
        %1201 = vmatprep.subr.mxu0 0.0
        %1202 = vmatpush1.msra.mxu0 0.0
        %1203 = vmatprep.subr.mxu0 0.0
        %1204 = vmatpush1.msra.mxu0 0.0
        %1205 = vmatprep.subr.mxu0 0.0
        %1206 = vmatpush1.msra.mxu0 0.0
        %1207 = vmatprep.subr.mxu0 0.0
        %1208 = vmatpush1.msra.mxu0 0.0
        %1209 = vmatprep.subr.mxu0 0.0
        %1210 = vmatpush1.msra.mxu0 0.0
        %1211 = vmatprep.subr.mxu0 0.0
        %1212 = vmatpush1.msra.mxu0 0.0
        %1213 = vmatprep.subr.mxu0 0.0
        %1214 = vmatpush1.msra.mxu0 0.0
        %1215 = vmatprep.subr.mxu0 0.0
        %1216 = vmatpush1.msra.mxu0 0.0
        %1217 = vmatprep.subr.mxu0 0.0
        %1218 = vmatpush1.msra.mxu0 0.0
        %1219 = vmatprep.subr.mxu0 0.0
        %1220 = vmatpush1.msra.mxu0 0.0
        %1221 = vmatprep.subr.mxu0 0.0
        %1222 = vmatpush1.msra.mxu0 0.0
        %1223 = vmatprep.subr.mxu0 0.0
        %1224 = vmatpush1.msra.mxu0 0.0
        %1225 = vmatprep.subr.mxu0 0.0
        %1226 = vmatpush1.msra.mxu0 0.0
        %1227 = vmatprep.subr.mxu0 0.0
        %1228 = vmatpush1.msra.mxu0 0.0
        %1229 = vmatprep.subr.mxu0 0.0
        %1230 = vmatpush1.msra.mxu0 0.0
        %1231 = vmatprep.subr.mxu0 0.0
        %1232 = vmatpush1.msra.mxu0 0.0
        %1233 = vmatprep.subr.mxu0 0.0
        %1234 = vmatpush1.msra.mxu0 0.0
        %1235 = vmatprep.mubr.f32.mxu0 0.0
        %1236 = vmatmul.mubr.f32.gmra.mrb[0].mxu0 %v1169
        %v1237 = vpop.f32.mrb[0].mxu0
        %v1238 = vadd.f32 0.0, %v1237
        %v1239 = vpop.f32.mrb[0].mxu0
        %1240 = vdwg.mxu0
        %v1241 = vsel %vm1167, %v1238, -inf
        %1242 = vmax.xlane.f32.xlu0 %v1241
        %v1243 = vpop.xlane.xlu0 %1242
        %v1244 = vsub.f32 %v1238, %v1243
        %v1245 = vmul.f32 %v1244, 1.442695
        %v1246 = vpow.pop %v1245
        %v1247 = vsel %vm1167, %v1246, 0.0
        %1248 = vadd.xlane.f32.xlu0 %v1247
        %v1249 = vpop.xlane.xlu0 %1248
        %v1250 = vrcp.pop %v1249
        %v1251 = vmul.f32 %v1246, %v1250
        %v1252 = vld [vmem:[%s895] sm:$0xff]
        %v1253 = vld [vmem:[%s895 + $0x8] sm:$0xff]
        %v1255 = vsel %vm1167, %v1251, 0
        %1257 = vmatprep.subr.mxu0 0.0
        %1258 = vmatpush1.msra.mxu0 %v1252
        %1259 = vmatprep.subr.mxu0 0.0
        %1260 = vmatpush1.msra.mxu0 %v1253
        %1261 = vmatprep.subr.mxu0 0.0
        %1262 = vmatpush1.msra.mxu0 0.0
        %1263 = vmatprep.subr.mxu0 0.0
        %1264 = vmatpush1.msra.mxu0 0.0
        %1265 = vmatprep.subr.mxu0 0.0
        %1266 = vmatpush1.msra.mxu0 0.0
        %1267 = vmatprep.subr.mxu0 0.0
        %1268 = vmatpush1.msra.mxu0 0.0
        %1269 = vmatprep.subr.mxu0 0.0
        %1270 = vmatpush1.msra.mxu0 0.0
        %1271 = vmatprep.subr.mxu0 0.0
        %1272 = vmatpush1.msra.mxu0 0.0
        %1273 = vmatprep.subr.mxu0 0.0
        %1274 = vmatpush1.msra.mxu0 0.0
        %1275 = vmatprep.subr.mxu0 0.0
        %1276 = vmatpush1.msra.mxu0 0.0
        %1277 = vmatprep.subr.mxu0 0.0
        %1278 = vmatpush1.msra.mxu0 0.0
        %1279 = vmatprep.subr.mxu0 0.0
        %1280 = vmatpush1.msra.mxu0 0.0
        %1281 = vmatprep.subr.mxu0 0.0
        %1282 = vmatpush1.msra.mxu0 0.0
        %1283 = vmatprep.subr.mxu0 0.0
        %1284 = vmatpush1.msra.mxu0 0.0
        %1285 = vmatprep.subr.mxu0 0.0
        %1286 = vmatpush1.msra.mxu0 0.0
        %1287 = vmatprep.subr.mxu0 0.0
        %1288 = vmatpush1.msra.mxu0 0.0
        %1289 = vmatprep.subr.mxu0 0.0
        %1290 = vmatpush1.msra.mxu0 0.0
        %1291 = vmatprep.subr.mxu0 0.0
        %1292 = vmatpush1.msra.mxu0 0.0
        %1293 = vmatprep.subr.mxu0 0.0
        %1294 = vmatpush1.msra.mxu0 0.0
        %1295 = vmatprep.subr.mxu0 0.0
        %1296 = vmatpush1.msra.mxu0 0.0
        %1297 = vmatprep.subr.mxu0 0.0
        %1298 = vmatpush1.msra.mxu0 0.0
        %1299 = vmatprep.subr.mxu0 0.0
        %1300 = vmatpush1.msra.mxu0 0.0
        %1301 = vmatprep.subr.mxu0 0.0
        %1302 = vmatpush1.msra.mxu0 0.0
        %1303 = vmatprep.subr.mxu0 0.0
        %1304 = vmatpush1.msra.mxu0 0.0
        %1305 = vmatprep.subr.mxu0 0.0
        %1306 = vmatpush1.msra.mxu0 0.0
        %1307 = vmatprep.subr.mxu0 0.0
        %1308 = vmatpush1.msra.mxu0 0.0
        %1309 = vmatprep.subr.mxu0 0.0
        %1310 = vmatpush1.msra.mxu0 0.0
        %1311 = vmatprep.subr.mxu0 0.0
        %1312 = vmatpush1.msra.mxu0 0.0
        %1313 = vmatprep.subr.mxu0 0.0
        %1314 = vmatpush1.msra.mxu0 0.0
        %1315 = vmatprep.subr.mxu0 0.0
        %1316 = vmatpush1.msra.mxu0 0.0
        %1317 = vmatprep.subr.mxu0 0.0
        %1318 = vmatpush1.msra.mxu0 0.0
        %1319 = vmatprep.subr.mxu0 0.0
        %1320 = vmatpush1.msra.mxu0 0.0
        %1321 = vmatprep.mubr.f32.mxu0 0.0
        %1322 = vmatmul.mubr.f32.gmra.mrb[0].mxu0 %v1255
        %v1323 = vpop.f32.mrb[0].mxu0
        %v1324 = vadd.f32 0.0, %v1323
        %v1325 = vpop.f32.mrb[0].mxu0
        %1326 = vdwg.mxu0
        %s1327 = scalar_lea.vmem [#allocation14], 32
        %v1328 = vld [vmem:[%s1327] sm:$0xff]
        %v1329 = vld [vmem:[%s1327 + $0x8] sm:$0xff]
        %v1330 = vld [vmem:[%s1327 + $0x10] sm:$0xff]
        %v1331 = vld [vmem:[%s1327 + $0x18] sm:$0xff]
        %1332 = vmatprep.subr.mxu0 0.0
        %1333 = vmatpush1.msra.mxu0 %v1328
        %1334 = vmatprep.subr.mxu0 0.0
        %1335 = vmatpush1.msra.mxu0 %v1329
        %1336 = vmatprep.subr.mxu0 0.0
        %1337 = vmatpush1.msra.mxu0 %v1330
        %1338 = vmatprep.subr.mxu0 0.0
        %1339 = vmatpush1.msra.mxu0 %v1331
        %1340 = vmatprep.subr.mxu0 0.0
        %1341 = vmatpush1.msra.mxu0 0.0
        %1342 = vmatprep.subr.mxu0 0.0
        %1343 = vmatpush1.msra.mxu0 0.0
        %1344 = vmatprep.subr.mxu0 0.0
        %1345 = vmatpush1.msra.mxu0 0.0
        %1346 = vmatprep.subr.mxu0 0.0
        %1347 = vmatpush1.msra.mxu0 0.0
        %1348 = vmatprep.subr.mxu0 0.0
        %1349 = vmatpush1.msra.mxu0 0.0
        %1350 = vmatprep.subr.mxu0 0.0
        %1351 = vmatpush1.msra.mxu0 0.0
        %1352 = vmatprep.subr.mxu0 0.0
        %1353 = vmatpush1.msra.mxu0 0.0
        %1354 = vmatprep.subr.mxu0 0.0
        %1355 = vmatpush1.msra.mxu0 0.0
        %1356 = vmatprep.subr.mxu0 0.0
        %1357 = vmatpush1.msra.mxu0 0.0
        %1358 = vmatprep.subr.mxu0 0.0
        %1359 = vmatpush1.msra.mxu0 0.0
        %1360 = vmatprep.subr.mxu0 0.0
        %1361 = vmatpush1.msra.mxu0 0.0
        %1362 = vmatprep.subr.mxu0 0.0
        %1363 = vmatpush1.msra.mxu0 0.0
        %1364 = vmatprep.subr.mxu0 0.0
        %1365 = vmatpush1.msra.mxu0 0.0
        %1366 = vmatprep.subr.mxu0 0.0
        %1367 = vmatpush1.msra.mxu0 0.0
        %1368 = vmatprep.subr.mxu0 0.0
        %1369 = vmatpush1.msra.mxu0 0.0
        %1370 = vmatprep.subr.mxu0 0.0
        %1371 = vmatpush1.msra.mxu0 0.0
        %1372 = vmatprep.subr.mxu0 0.0
        %1373 = vmatpush1.msra.mxu0 0.0
        %1374 = vmatprep.subr.mxu0 0.0
        %1375 = vmatpush1.msra.mxu0 0.0
        %1376 = vmatprep.subr.mxu0 0.0
        %1377 = vmatpush1.msra.mxu0 0.0
        %1378 = vmatprep.subr.mxu0 0.0
        %1379 = vmatpush1.msra.mxu0 0.0
        %1380 = vmatprep.subr.mxu0 0.0
        %1381 = vmatpush1.msra.mxu0 0.0
        %1382 = vmatprep.subr.mxu0 0.0
        %1383 = vmatpush1.msra.mxu0 0.0
        %1384 = vmatprep.subr.mxu0 0.0
        %1385 = vmatpush1.msra.mxu0 0.0
        %1386 = vmatprep.subr.mxu0 0.0
        %1387 = vmatpush1.msra.mxu0 0.0
        %1388 = vmatprep.subr.mxu0 0.0
        %1389 = vmatpush1.msra.mxu0 0.0
        %1390 = vmatprep.subr.mxu0 0.0
        %1391 = vmatpush1.msra.mxu0 0.0
        %1392 = vmatprep.subr.mxu0 0.0
        %1393 = vmatpush1.msra.mxu0 0.0
        %1394 = vmatprep.subr.mxu0 0.0
        %1395 = vmatpush1.msra.mxu0 0.0
        %1396 = vmatprep.mubr.f32.mxu0 0.0
        %1397 = vmatmul.mubr.f32.gmra.mrb[0].mxu0 %v1093
        %v1398 = vpop.f32.mrb[0].mxu0
        %v1399 = vadd.f32 0.0, %v1398
        %v1400 = vpop.f32.mrb[0].mxu0
        %1401 = vdwg.mxu0
        %s1402 = scalar_lea.vmem %s886, 16 [#allocation5]
        %v1403 = vld [vmem:[%s1402] sm:$0xff]
        %v1404 = vld [vmem:[%s1402 + $0x8] sm:$0xff]
        %v1406 = vsel %vm1167, %v1399, 0
        %1408 = vmatprep.subr.mxu0 0.0
        %1409 = vmatpush1.msra.mxu0 %v1403
        %1410 = vmatprep.subr.mxu0 0.0
        %1411 = vmatpush1.msra.mxu0 %v1404
        %1412 = vmatprep.subr.mxu0 0.0
        %1413 = vmatpush1.msra.mxu0 0.0
        %1414 = vmatprep.subr.mxu0 0.0
        %1415 = vmatpush1.msra.mxu0 0.0
        %1416 = vmatprep.subr.mxu0 0.0
        %1417 = vmatpush1.msra.mxu0 0.0
        %1418 = vmatprep.subr.mxu0 0.0
        %1419 = vmatpush1.msra.mxu0 0.0
        %1420 = vmatprep.subr.mxu0 0.0
        %1421 = vmatpush1.msra.mxu0 0.0
        %1422 = vmatprep.subr.mxu0 0.0
        %1423 = vmatpush1.msra.mxu0 0.0
        %1424 = vmatprep.subr.mxu0 0.0
        %1425 = vmatpush1.msra.mxu0 0.0
        %1426 = vmatprep.subr.mxu0 0.0
        %1427 = vmatpush1.msra.mxu0 0.0
        %1428 = vmatprep.subr.mxu0 0.0
        %1429 = vmatpush1.msra.mxu0 0.0
        %1430 = vmatprep.subr.mxu0 0.0
        %1431 = vmatpush1.msra.mxu0 0.0
        %1432 = vmatprep.subr.mxu0 0.0
        %1433 = vmatpush1.msra.mxu0 0.0
        %1434 = vmatprep.subr.mxu0 0.0
        %1435 = vmatpush1.msra.mxu0 0.0
        %1436 = vmatprep.subr.mxu0 0.0
        %1437 = vmatpush1.msra.mxu0 0.0
        %1438 = vmatprep.subr.mxu0 0.0
        %1439 = vmatpush1.msra.mxu0 0.0
        %1440 = vmatprep.subr.mxu0 0.0
        %1441 = vmatpush1.msra.mxu0 0.0
        %1442 = vmatprep.subr.mxu0 0.0
        %1443 = vmatpush1.msra.mxu0 0.0
        %1444 = vmatprep.subr.mxu0 0.0
        %1445 = vmatpush1.msra.mxu0 0.0
        %1446 = vmatprep.subr.mxu0 0.0
        %1447 = vmatpush1.msra.mxu0 0.0
        %1448 = vmatprep.subr.mxu0 0.0
        %1449 = vmatpush1.msra.mxu0 0.0
        %1450 = vmatprep.subr.mxu0 0.0
        %1451 = vmatpush1.msra.mxu0 0.0
        %1452 = vmatprep.subr.mxu0 0.0
        %1453 = vmatpush1.msra.mxu0 0.0
        %1454 = vmatprep.subr.mxu0 0.0
        %1455 = vmatpush1.msra.mxu0 0.0
        %1456 = vmatprep.subr.mxu0 0.0
        %1457 = vmatpush1.msra.mxu0 0.0
        %1458 = vmatprep.subr.mxu0 0.0
        %1459 = vmatpush1.msra.mxu0 0.0
        %1460 = vmatprep.subr.mxu0 0.0
        %1461 = vmatpush1.msra.mxu0 0.0
        %1462 = vmatprep.subr.mxu0 0.0
        %1463 = vmatpush1.msra.mxu0 0.0
        %1464 = vmatprep.subr.mxu0 0.0
        %1465 = vmatpush1.msra.mxu0 0.0
        %1466 = vmatprep.subr.mxu0 0.0
        %1467 = vmatpush1.msra.mxu0 0.0
        %1468 = vmatprep.subr.mxu0 0.0
        %1469 = vmatpush1.msra.mxu0 0.0
        %1470 = vmatprep.subr.mxu0 0.0
        %1471 = vmatpush1.msra.mxu0 0.0
        %1472 = vmatprep.mubr.f32.mxu0 0.0
        %1473 = vmatmul.mubr.f32.gmra.mrb[0].mxu0 %v1406
        %v1474 = vpop.f32.mrb[0].mxu0
        %v1475 = vadd.f32 0.0, %v1474
        %v1476 = vpop.f32.mrb[0].mxu0
        %1477 = vdwg.mxu0
        %v1478 = vsel %vm1167, %v1475, -inf
        %1479 = vmax.xlane.f32.xlu0 %v1478
        %v1480 = vpop.xlane.xlu0 %1479
        %v1481 = vsub.f32 %v1475, %v1480
        %v1482 = vmul.f32 %v1481, 1.442695
        %v1483 = vpow.pop %v1482
        %v1484 = vsel %vm1167, %v1483, 0.0
        %1485 = vadd.xlane.f32.xlu0 %v1484
        %v1486 = vpop.xlane.xlu0 %1485
        %v1487 = vrcp.pop %v1486
        %v1488 = vmul.f32 %v1483, %v1487
        %s1489 = scalar_lea.vmem %s895, 16 [#allocation7]
        %v1490 = vld [vmem:[%s1489] sm:$0xff]
        %v1491 = vld [vmem:[%s1489 + $0x8] sm:$0xff]
        %v1493 = vsel %vm1167, %v1488, 0
        %1495 = vmatprep.subr.mxu0 0.0
        %1496 = vmatpush1.msra.mxu0 %v1490
        %1497 = vmatprep.subr.mxu0 0.0
        %1498 = vmatpush1.msra.mxu0 %v1491
        %1499 = vmatprep.subr.mxu0 0.0
        %1500 = vmatpush1.msra.mxu0 0.0
        %1501 = vmatprep.subr.mxu0 0.0
        %1502 = vmatpush1.msra.mxu0 0.0
        %1503 = vmatprep.subr.mxu0 0.0
        %1504 = vmatpush1.msra.mxu0 0.0
        %1505 = vmatprep.subr.mxu0 0.0
        %1506 = vmatpush1.msra.mxu0 0.0
        %1507 = vmatprep.subr.mxu0 0.0
        %1508 = vmatpush1.msra.mxu0 0.0
        %1509 = vmatprep.subr.mxu0 0.0
        %1510 = vmatpush1.msra.mxu0 0.0
        %1511 = vmatprep.subr.mxu0 0.0
        %1512 = vmatpush1.msra.mxu0 0.0
        %1513 = vmatprep.subr.mxu0 0.0
        %1514 = vmatpush1.msra.mxu0 0.0
        %1515 = vmatprep.subr.mxu0 0.0
        %1516 = vmatpush1.msra.mxu0 0.0
        %1517 = vmatprep.subr.mxu0 0.0
        %1518 = vmatpush1.msra.mxu0 0.0
        %1519 = vmatprep.subr.mxu0 0.0
        %1520 = vmatpush1.msra.mxu0 0.0
        %1521 = vmatprep.subr.mxu0 0.0
        %1522 = vmatpush1.msra.mxu0 0.0
        %1523 = vmatprep.subr.mxu0 0.0
        %1524 = vmatpush1.msra.mxu0 0.0
        %1525 = vmatprep.subr.mxu0 0.0
        %1526 = vmatpush1.msra.mxu0 0.0
        %1527 = vmatprep.subr.mxu0 0.0
        %1528 = vmatpush1.msra.mxu0 0.0
        %1529 = vmatprep.subr.mxu0 0.0
        %1530 = vmatpush1.msra.mxu0 0.0
        %1531 = vmatprep.subr.mxu0 0.0
        %1532 = vmatpush1.msra.mxu0 0.0
        %1533 = vmatprep.subr.mxu0 0.0
        %1534 = vmatpush1.msra.mxu0 0.0
        %1535 = vmatprep.subr.mxu0 0.0
        %1536 = vmatpush1.msra.mxu0 0.0
        %1537 = vmatprep.subr.mxu0 0.0
        %1538 = vmatpush1.msra.mxu0 0.0
        %1539 = vmatprep.subr.mxu0 0.0
        %1540 = vmatpush1.msra.mxu0 0.0
        %1541 = vmatprep.subr.mxu0 0.0
        %1542 = vmatpush1.msra.mxu0 0.0
        %1543 = vmatprep.subr.mxu0 0.0
        %1544 = vmatpush1.msra.mxu0 0.0
        %1545 = vmatprep.subr.mxu0 0.0
        %1546 = vmatpush1.msra.mxu0 0.0
        %1547 = vmatprep.subr.mxu0 0.0
        %1548 = vmatpush1.msra.mxu0 0.0
        %1549 = vmatprep.subr.mxu0 0.0
        %1550 = vmatpush1.msra.mxu0 0.0
        %1551 = vmatprep.subr.mxu0 0.0
        %1552 = vmatpush1.msra.mxu0 0.0
        %1553 = vmatprep.subr.mxu0 0.0
        %1554 = vmatpush1.msra.mxu0 0.0
        %1555 = vmatprep.subr.mxu0 0.0
        %1556 = vmatpush1.msra.mxu0 0.0
        %1557 = vmatprep.subr.mxu0 0.0
        %1558 = vmatpush1.msra.mxu0 0.0
        %1559 = vmatprep.mubr.f32.mxu0 0.0
        %1560 = vmatmul.mubr.f32.gmra.mrb[0].mxu0 %v1493
        %v1561 = vpop.f32.mrb[0].mxu0
        %v1562 = vadd.f32 0.0, %v1561
        %v1563 = vpop.f32.mrb[0].mxu0
        %1564 = vdwg.mxu0
        %1566 = vrot.lane.b32.xlu0 %v1562, 16
        %v1567 = vpop.permute.xlu0 %1566
        %v1569 = vsel %vm1167, %v1324, %v1567
        %v1570 = vld [vmem:[#allocation16] sm:$0xff]
        %v1571 = vld [vmem:[#allocation16 + $0x8] sm:$0xff]
        %v1572 = vld [vmem:[#allocation16 + $0x10] sm:$0xff]
        %v1573 = vld [vmem:[#allocation16 + $0x18] sm:$0xff]
        %v1574 = vld [vmem:[#allocation17] sm:$0x1]
        %v1576 = vlaneseq
        %v1577 = vshrl.u32 %v1576, 7
        %v1578 = vsub.s32 0, %v1577
        %v1579 = vrot.slane %v1574, %v1578
        %v1582 = vsel %vm1057, %v1569, 0
        %1584 = vmatprep.subr.mxu0 0.0
        %1585 = vmatpush1.msra.mxu0 %v1570
        %1586 = vmatprep.subr.mxu0 0.0
        %1587 = vmatpush1.msra.mxu0 %v1571
        %1588 = vmatprep.subr.mxu0 0.0
        %1589 = vmatpush1.msra.mxu0 %v1572
        %1590 = vmatprep.subr.mxu0 0.0
        %1591 = vmatpush1.msra.mxu0 %v1573
        %1592 = vmatprep.subr.mxu0 0.0
        %1593 = vmatpush1.msra.mxu0 0.0
        %1594 = vmatprep.subr.mxu0 0.0
        %1595 = vmatpush1.msra.mxu0 0.0
        %1596 = vmatprep.subr.mxu0 0.0
        %1597 = vmatpush1.msra.mxu0 0.0
        %1598 = vmatprep.subr.mxu0 0.0
        %1599 = vmatpush1.msra.mxu0 0.0
        %1600 = vmatprep.subr.mxu0 0.0
        %1601 = vmatpush1.msra.mxu0 0.0
        %1602 = vmatprep.subr.mxu0 0.0
        %1603 = vmatpush1.msra.mxu0 0.0
        %1604 = vmatprep.subr.mxu0 0.0
        %1605 = vmatpush1.msra.mxu0 0.0
        %1606 = vmatprep.subr.mxu0 0.0
        %1607 = vmatpush1.msra.mxu0 0.0
        %1608 = vmatprep.subr.mxu0 0.0
        %1609 = vmatpush1.msra.mxu0 0.0
        %1610 = vmatprep.subr.mxu0 0.0
        %1611 = vmatpush1.msra.mxu0 0.0
        %1612 = vmatprep.subr.mxu0 0.0
        %1613 = vmatpush1.msra.mxu0 0.0
        %1614 = vmatprep.subr.mxu0 0.0
        %1615 = vmatpush1.msra.mxu0 0.0
        %1616 = vmatprep.subr.mxu0 0.0
        %1617 = vmatpush1.msra.mxu0 0.0
        %1618 = vmatprep.subr.mxu0 0.0
        %1619 = vmatpush1.msra.mxu0 0.0
        %1620 = vmatprep.subr.mxu0 0.0
        %1621 = vmatpush1.msra.mxu0 0.0
        %1622 = vmatprep.subr.mxu0 0.0
        %1623 = vmatpush1.msra.mxu0 0.0
        %1624 = vmatprep.subr.mxu0 0.0
        %1625 = vmatpush1.msra.mxu0 0.0
        %1626 = vmatprep.subr.mxu0 0.0
        %1627 = vmatpush1.msra.mxu0 0.0
        %1628 = vmatprep.subr.mxu0 0.0
        %1629 = vmatpush1.msra.mxu0 0.0
        %1630 = vmatprep.subr.mxu0 0.0
        %1631 = vmatpush1.msra.mxu0 0.0
        %1632 = vmatprep.subr.mxu0 0.0
        %1633 = vmatpush1.msra.mxu0 0.0
        %1634 = vmatprep.subr.mxu0 0.0
        %1635 = vmatpush1.msra.mxu0 0.0
        %1636 = vmatprep.subr.mxu0 0.0
        %1637 = vmatpush1.msra.mxu0 0.0
        %1638 = vmatprep.subr.mxu0 0.0
        %1639 = vmatpush1.msra.mxu0 0.0
        %1640 = vmatprep.subr.mxu0 0.0
        %1641 = vmatpush1.msra.mxu0 0.0
        %1642 = vmatprep.subr.mxu0 0.0
        %1643 = vmatpush1.msra.mxu0 0.0
        %1644 = vmatprep.subr.mxu0 0.0
        %1645 = vmatpush1.msra.mxu0 0.0
        %1646 = vmatprep.subr.mxu0 0.0
        %1647 = vmatpush1.msra.mxu0 0.0
        %1648 = vmatprep.mubr.f32.mxu0 0.0
        %1649 = vmatmul.mubr.f32.gmra.mrb[0].mxu0 %v1582
        %v1650 = vpop.f32.mrb[0].mxu0
        %v1651 = vadd.f32 %v1579, %v1650
        %v1652 = vpop.f32.mrb[0].mxu0
        %1653 = vdwg.mxu0
        %v1654 = vadd.f32 %v1056, %v1651
        %v1655 = vsel %vm1057, %v1654, 0.0
        %1656 = vadd.xlane.f32.xlu0 %v1655
        %v1657 = vpop.xlane.xlu0 %1656
        %v1658 = vmul.f32 %v1657, %v1061
        %v1659 = vsub.f32 %v1654, %v1658
        %v1660 = vmul.f32 %v1659, %v1659
        %v1661 = vsel %vm1057, %v1660, 0.0
        %1662 = vadd.xlane.f32.xlu0 %v1661
        %v1663 = vpop.xlane.xlu0 %1662
        %v1664 = vmul.f32 %v1663, %v1061
        %v1665 = vadd.f32 %v1664, 1e-05
        %v1666 = vrsqrt.pop %v1665
        %v1667 = vmul.f32 %v1659, %v1666
        %v1668 = vld [vmem:[#allocation19] sm:$0x1]
        %v1670 = vlaneseq
        %v1671 = vshrl.u32 %v1670, 7
        %v1672 = vsub.s32 0, %v1671
        %v1673 = vrot.slane %v1668, %v1672
        %v1675 = vmul.f32 %v1667, %v1673
        %v1676 = vld [vmem:[#allocation20] sm:$0x1]
        %v1678 = vlaneseq
        %v1679 = vshrl.u32 %v1678, 7
        %v1680 = vsub.s32 0, %v1679
        %v1681 = vrot.slane %v1676, %v1680
        %v1683 = vadd.f32 %v1675, %v1681
        %v1684 = vlaneseq
        %v1685 = vand.u32 %v1684, 127
        %vm1686 = vcmp.lt.s32.totalorder %v1685, 8
        %v1687 = vsel %vm1686, 0.0, -1e+30
        %v1688 = vld [vmem:[#allocation22] sm:$0xff]
        %v1689 = vld [vmem:[#allocation22 + $0x8] sm:$0xff]
        %v1690 = vld [vmem:[#allocation22 + $0x10] sm:$0xff]
        %v1691 = vld [vmem:[#allocation22 + $0x18] sm:$0xff]
        %v1693 = vsel %vm1057, %v1683, 0
        %1695 = vmatprep.subr.mxu0 0.0
        %1696 = vmatpush1.msra.mxu0 %v1688
        %1697 = vmatprep.subr.mxu0 0.0
        %1698 = vmatpush1.msra.mxu0 %v1689
        %1699 = vmatprep.subr.mxu0 0.0
        %1700 = vmatpush1.msra.mxu0 %v1690
        %1701 = vmatprep.subr.mxu0 0.0
        %1702 = vmatpush1.msra.mxu0 %v1691
        %1703 = vmatprep.subr.mxu0 0.0
        %1704 = vmatpush1.msra.mxu0 0.0
        %1705 = vmatprep.subr.mxu0 0.0
        %1706 = vmatpush1.msra.mxu0 0.0
        %1707 = vmatprep.subr.mxu0 0.0
        %1708 = vmatpush1.msra.mxu0 0.0
        %1709 = vmatprep.subr.mxu0 0.0
        %1710 = vmatpush1.msra.mxu0 0.0
        %1711 = vmatprep.subr.mxu0 0.0
        %1712 = vmatpush1.msra.mxu0 0.0
        %1713 = vmatprep.subr.mxu0 0.0
        %1714 = vmatpush1.msra.mxu0 0.0
        %1715 = vmatprep.subr.mxu0 0.0
        %1716 = vmatpush1.msra.mxu0 0.0
        %1717 = vmatprep.subr.mxu0 0.0
        %1718 = vmatpush1.msra.mxu0 0.0
        %1719 = vmatprep.subr.mxu0 0.0
        %1720 = vmatpush1.msra.mxu0 0.0
        %1721 = vmatprep.subr.mxu0 0.0
        %1722 = vmatpush1.msra.mxu0 0.0
        %1723 = vmatprep.subr.mxu0 0.0
        %1724 = vmatpush1.msra.mxu0 0.0
        %1725 = vmatprep.subr.mxu0 0.0
        %1726 = vmatpush1.msra.mxu0 0.0
        %1727 = vmatprep.subr.mxu0 0.0
        %1728 = vmatpush1.msra.mxu0 0.0
        %1729 = vmatprep.subr.mxu0 0.0
        %1730 = vmatpush1.msra.mxu0 0.0
        %1731 = vmatprep.subr.mxu0 0.0
        %1732 = vmatpush1.msra.mxu0 0.0
        %1733 = vmatprep.subr.mxu0 0.0
        %1734 = vmatpush1.msra.mxu0 0.0
        %1735 = vmatprep.subr.mxu0 0.0
        %1736 = vmatpush1.msra.mxu0 0.0
        %1737 = vmatprep.subr.mxu0 0.0
        %1738 = vmatpush1.msra.mxu0 0.0
        %1739 = vmatprep.subr.mxu0 0.0
        %1740 = vmatpush1.msra.mxu0 0.0
        %1741 = vmatprep.subr.mxu0 0.0
        %1742 = vmatpush1.msra.mxu0 0.0
        %1743 = vmatprep.subr.mxu0 0.0
        %1744 = vmatpush1.msra.mxu0 0.0
        %1745 = vmatprep.subr.mxu0 0.0
        %1746 = vmatpush1.msra.mxu0 0.0
        %1747 = vmatprep.subr.mxu0 0.0
        %1748 = vmatpush1.msra.mxu0 0.0
        %1749 = vmatprep.subr.mxu0 0.0
        %1750 = vmatpush1.msra.mxu0 0.0
        %1751 = vmatprep.subr.mxu0 0.0
        %1752 = vmatpush1.msra.mxu0 0.0
        %1753 = vmatprep.subr.mxu0 0.0
        %1754 = vmatpush1.msra.mxu0 0.0
        %1755 = vmatprep.subr.mxu0 0.0
        %1756 = vmatpush1.msra.mxu0 0.0
        %1757 = vmatprep.subr.mxu0 0.0
        %1758 = vmatpush1.msra.mxu0 0.0
        %1759 = vmatprep.mubr.f32.mxu0 0.0
        %1760 = vmatmul.mubr.f32.gmra.mrb[0].mxu0 %v1693
        %v1761 = vpop.f32.mrb[0].mxu0
        %v1762 = vadd.f32 0.0, %v1761
        %v1763 = vpop.f32.mrb[0].mxu0
        %1764 = vdwg.mxu0
        %v1765 = vld [vmem:[%s904] sm:$0xff]
        %v1766 = vld [vmem:[%s904 + $0x8] sm:$0xff]
        %v1768 = vsel %vm1167, %v1762, 0
        %1770 = vmatprep.subr.mxu0 0.0
        %1771 = vmatpush1.msra.mxu0 %v1765
        %1772 = vmatprep.subr.mxu0 0.0
        %1773 = vmatpush1.msra.mxu0 %v1766
        %1774 = vmatprep.subr.mxu0 0.0
        %1775 = vmatpush1.msra.mxu0 0.0
        %1776 = vmatprep.subr.mxu0 0.0
        %1777 = vmatpush1.msra.mxu0 0.0
        %1778 = vmatprep.subr.mxu0 0.0
        %1779 = vmatpush1.msra.mxu0 0.0
        %1780 = vmatprep.subr.mxu0 0.0
        %1781 = vmatpush1.msra.mxu0 0.0
        %1782 = vmatprep.subr.mxu0 0.0
        %1783 = vmatpush1.msra.mxu0 0.0
        %1784 = vmatprep.subr.mxu0 0.0
        %1785 = vmatpush1.msra.mxu0 0.0
        %1786 = vmatprep.subr.mxu0 0.0
        %1787 = vmatpush1.msra.mxu0 0.0
        %1788 = vmatprep.subr.mxu0 0.0
        %1789 = vmatpush1.msra.mxu0 0.0
        %1790 = vmatprep.subr.mxu0 0.0
        %1791 = vmatpush1.msra.mxu0 0.0
        %1792 = vmatprep.subr.mxu0 0.0
        %1793 = vmatpush1.msra.mxu0 0.0
        %1794 = vmatprep.subr.mxu0 0.0
        %1795 = vmatpush1.msra.mxu0 0.0
        %1796 = vmatprep.subr.mxu0 0.0
        %1797 = vmatpush1.msra.mxu0 0.0
        %1798 = vmatprep.subr.mxu0 0.0
        %1799 = vmatpush1.msra.mxu0 0.0
        %1800 = vmatprep.subr.mxu0 0.0
        %1801 = vmatpush1.msra.mxu0 0.0
        %1802 = vmatprep.subr.mxu0 0.0
        %1803 = vmatpush1.msra.mxu0 0.0
        %1804 = vmatprep.subr.mxu0 0.0
        %1805 = vmatpush1.msra.mxu0 0.0
        %1806 = vmatprep.subr.mxu0 0.0
        %1807 = vmatpush1.msra.mxu0 0.0
        %1808 = vmatprep.subr.mxu0 0.0
        %1809 = vmatpush1.msra.mxu0 0.0
        %1810 = vmatprep.subr.mxu0 0.0
        %1811 = vmatpush1.msra.mxu0 0.0
        %1812 = vmatprep.subr.mxu0 0.0
        %1813 = vmatpush1.msra.mxu0 0.0
        %1814 = vmatprep.subr.mxu0 0.0
        %1815 = vmatpush1.msra.mxu0 0.0
        %1816 = vmatprep.subr.mxu0 0.0
        %1817 = vmatpush1.msra.mxu0 0.0
        %1818 = vmatprep.subr.mxu0 0.0
        %1819 = vmatpush1.msra.mxu0 0.0
        %1820 = vmatprep.subr.mxu0 0.0
        %1821 = vmatpush1.msra.mxu0 0.0
        %1822 = vmatprep.subr.mxu0 0.0
        %1823 = vmatpush1.msra.mxu0 0.0
        %1824 = vmatprep.subr.mxu0 0.0
        %1825 = vmatpush1.msra.mxu0 0.0
        %1826 = vmatprep.subr.mxu0 0.0
        %1827 = vmatpush1.msra.mxu0 0.0
        %1828 = vmatprep.subr.mxu0 0.0
        %1829 = vmatpush1.msra.mxu0 0.0
        %1830 = vmatprep.subr.mxu0 0.0
        %1831 = vmatpush1.msra.mxu0 0.0
        %1832 = vmatprep.subr.mxu0 0.0
        %1833 = vmatpush1.msra.mxu0 0.0
        %1834 = vmatprep.mubr.f32.mxu0 0.0
        %1835 = vmatmul.mubr.f32.gmra.mrb[0].mxu0 %v1768
        %v1836 = vpop.f32.mrb[0].mxu0
        %v1837 = vadd.f32 %v1687, %v1836
        %v1838 = vpop.f32.mrb[0].mxu0
        %1839 = vdwg.mxu0
        %1840 = vmax.xlane.f32.xlu0 %v1837
        %v1841 = vpop.xlane.xlu0 %1840
        %v1842 = vsub.f32 %v1837, %v1841
        %v1843 = vmul.f32 %v1842, 1.442695
        %v1844 = vpow.pop %v1843
        %1845 = vadd.xlane.f32.xlu0 %v1844
        %v1846 = vpop.xlane.xlu0 %1845
        %v1847 = vrcp.pop %v1846
        %v1848 = vmul.f32 %v1844, %v1847
        %v1849 = vld [vmem:[%s913] sm:$0xff]
        %v1850 = vld [vmem:[%s913 + $0x8] sm:$0xff]
        %v1851 = vld [vmem:[%s913 + $0x10] sm:$0xff]
        %v1852 = vld [vmem:[%s913 + $0x18] sm:$0xff]
        %v1853 = vld [vmem:[%s913 + $0x20] sm:$0xff]
        %v1854 = vld [vmem:[%s913 + $0x28] sm:$0xff]
        %v1855 = vld [vmem:[%s913 + $0x30] sm:$0xff]
        %v1856 = vld [vmem:[%s913 + $0x38] sm:$0xff]
        %v1857 = vld [vmem:[%s913 + $0x40] sm:$0xff]
        %v1858 = vld [vmem:[%s913 + $0x48] sm:$0xff]
        %v1859 = vld [vmem:[%s913 + $0x50] sm:$0xff]
        %v1860 = vld [vmem:[%s913 + $0x58] sm:$0xff]
        %v1861 = vld [vmem:[%s913 + $0x60] sm:$0xff]
        %v1862 = vld [vmem:[%s913 + $0x68] sm:$0xff]
        %v1863 = vld [vmem:[%s913 + $0x70] sm:$0xff]
        %v1864 = vld [vmem:[%s913 + $0x78] sm:$0xff]
        %1865 = vmatprep.subr.mxu0 0.0
        %1866 = vmatpush1.msra.mxu0 %v1849
        %1867 = vmatprep.subr.mxu0 0.0
        %1868 = vmatpush1.msra.mxu0 %v1850
        %1869 = vmatprep.subr.mxu0 0.0
        %1870 = vmatpush1.msra.mxu0 %v1851
        %1871 = vmatprep.subr.mxu0 0.0
        %1872 = vmatpush1.msra.mxu0 %v1852
        %1873 = vmatprep.subr.mxu0 0.0
        %1874 = vmatpush1.msra.mxu0 %v1853
        %1875 = vmatprep.subr.mxu0 0.0
        %1876 = vmatpush1.msra.mxu0 %v1854
        %1877 = vmatprep.subr.mxu0 0.0
        %1878 = vmatpush1.msra.mxu0 %v1855
        %1879 = vmatprep.subr.mxu0 0.0
        %1880 = vmatpush1.msra.mxu0 %v1856
        %1881 = vmatprep.subr.mxu0 0.0
        %1882 = vmatpush1.msra.mxu0 %v1857
        %1883 = vmatprep.subr.mxu0 0.0
        %1884 = vmatpush1.msra.mxu0 %v1858
        %1885 = vmatprep.subr.mxu0 0.0
        %1886 = vmatpush1.msra.mxu0 %v1859
        %1887 = vmatprep.subr.mxu0 0.0
        %1888 = vmatpush1.msra.mxu0 %v1860
        %1889 = vmatprep.subr.mxu0 0.0
        %1890 = vmatpush1.msra.mxu0 %v1861
        %1891 = vmatprep.subr.mxu0 0.0
        %1892 = vmatpush1.msra.mxu0 %v1862
        %1893 = vmatprep.subr.mxu0 0.0
        %1894 = vmatpush1.msra.mxu0 %v1863
        %1895 = vmatprep.subr.mxu0 0.0
        %1896 = vmatpush1.msra.mxu0 %v1864
        %1897 = vmatprep.subr.mxu0 0.0
        %1898 = vmatpush1.msra.mxu0 0.0
        %1899 = vmatprep.subr.mxu0 0.0
        %1900 = vmatpush1.msra.mxu0 0.0
        %1901 = vmatprep.subr.mxu0 0.0
        %1902 = vmatpush1.msra.mxu0 0.0
        %1903 = vmatprep.subr.mxu0 0.0
        %1904 = vmatpush1.msra.mxu0 0.0
        %1905 = vmatprep.subr.mxu0 0.0
        %1906 = vmatpush1.msra.mxu0 0.0
        %1907 = vmatprep.subr.mxu0 0.0
        %1908 = vmatpush1.msra.mxu0 0.0
        %1909 = vmatprep.subr.mxu0 0.0
        %1910 = vmatpush1.msra.mxu0 0.0
        %1911 = vmatprep.subr.mxu0 0.0
        %1912 = vmatpush1.msra.mxu0 0.0
        %1913 = vmatprep.subr.mxu0 0.0
        %1914 = vmatpush1.msra.mxu0 0.0
        %1915 = vmatprep.subr.mxu0 0.0
        %1916 = vmatpush1.msra.mxu0 0.0
        %1917 = vmatprep.subr.mxu0 0.0
        %1918 = vmatpush1.msra.mxu0 0.0
        %1919 = vmatprep.subr.mxu0 0.0
        %1920 = vmatpush1.msra.mxu0 0.0
        %1921 = vmatprep.subr.mxu0 0.0
        %1922 = vmatpush1.msra.mxu0 0.0
        %1923 = vmatprep.subr.mxu0 0.0
        %1924 = vmatpush1.msra.mxu0 0.0
        %1925 = vmatprep.subr.mxu0 0.0
        %1926 = vmatpush1.msra.mxu0 0.0
        %1927 = vmatprep.subr.mxu0 0.0
        %1928 = vmatpush1.msra.mxu0 0.0
        %1929 = vmatprep.mubr.f32.mxu0 0.0
        %1930 = vmatmul.mubr.f32.gmra.mrb[0].mxu0 %v1848
        %v1931 = vpop.f32.mrb[0].mxu0
        %v1932 = vadd.f32 0.0, %v1931
        %v1933 = vpop.f32.mrb[0].mxu0
        %1934 = vdwg.mxu0
        %s1935 = scalar_lea.vmem [#allocation22], 32
        %v1936 = vld [vmem:[%s1935] sm:$0xff]
        %v1937 = vld [vmem:[%s1935 + $0x8] sm:$0xff]
        %v1938 = vld [vmem:[%s1935 + $0x10] sm:$0xff]
        %v1939 = vld [vmem:[%s1935 + $0x18] sm:$0xff]
        %1940 = vmatprep.subr.mxu0 0.0
        %1941 = vmatpush1.msra.mxu0 %v1936
        %1942 = vmatprep.subr.mxu0 0.0
        %1943 = vmatpush1.msra.mxu0 %v1937
        %1944 = vmatprep.subr.mxu0 0.0
        %1945 = vmatpush1.msra.mxu0 %v1938
        %1946 = vmatprep.subr.mxu0 0.0
        %1947 = vmatpush1.msra.mxu0 %v1939
        %1948 = vmatprep.subr.mxu0 0.0
        %1949 = vmatpush1.msra.mxu0 0.0
        %1950 = vmatprep.subr.mxu0 0.0
        %1951 = vmatpush1.msra.mxu0 0.0
        %1952 = vmatprep.subr.mxu0 0.0
        %1953 = vmatpush1.msra.mxu0 0.0
        %1954 = vmatprep.subr.mxu0 0.0
        %1955 = vmatpush1.msra.mxu0 0.0
        %1956 = vmatprep.subr.mxu0 0.0
        %1957 = vmatpush1.msra.mxu0 0.0
        %1958 = vmatprep.subr.mxu0 0.0
        %1959 = vmatpush1.msra.mxu0 0.0
        %1960 = vmatprep.subr.mxu0 0.0
        %1961 = vmatpush1.msra.mxu0 0.0
        %1962 = vmatprep.subr.mxu0 0.0
        %1963 = vmatpush1.msra.mxu0 0.0
        %1964 = vmatprep.subr.mxu0 0.0
        %1965 = vmatpush1.msra.mxu0 0.0
        %1966 = vmatprep.subr.mxu0 0.0
        %1967 = vmatpush1.msra.mxu0 0.0
        %1968 = vmatprep.subr.mxu0 0.0
        %1969 = vmatpush1.msra.mxu0 0.0
        %1970 = vmatprep.subr.mxu0 0.0
        %1971 = vmatpush1.msra.mxu0 0.0
        %1972 = vmatprep.subr.mxu0 0.0
        %1973 = vmatpush1.msra.mxu0 0.0
        %1974 = vmatprep.subr.mxu0 0.0
        %1975 = vmatpush1.msra.mxu0 0.0
        %1976 = vmatprep.subr.mxu0 0.0
        %1977 = vmatpush1.msra.mxu0 0.0
        %1978 = vmatprep.subr.mxu0 0.0
        %1979 = vmatpush1.msra.mxu0 0.0
        %1980 = vmatprep.subr.mxu0 0.0
        %1981 = vmatpush1.msra.mxu0 0.0
        %1982 = vmatprep.subr.mxu0 0.0
        %1983 = vmatpush1.msra.mxu0 0.0
        %1984 = vmatprep.subr.mxu0 0.0
        %1985 = vmatpush1.msra.mxu0 0.0
        %1986 = vmatprep.subr.mxu0 0.0
        %1987 = vmatpush1.msra.mxu0 0.0
        %1988 = vmatprep.subr.mxu0 0.0
        %1989 = vmatpush1.msra.mxu0 0.0
        %1990 = vmatprep.subr.mxu0 0.0
        %1991 = vmatpush1.msra.mxu0 0.0
        %1992 = vmatprep.subr.mxu0 0.0
        %1993 = vmatpush1.msra.mxu0 0.0
        %1994 = vmatprep.subr.mxu0 0.0
        %1995 = vmatpush1.msra.mxu0 0.0
        %1996 = vmatprep.subr.mxu0 0.0
        %1997 = vmatpush1.msra.mxu0 0.0
        %1998 = vmatprep.subr.mxu0 0.0
        %1999 = vmatpush1.msra.mxu0 0.0
        %2000 = vmatprep.subr.mxu0 0.0
        %2001 = vmatpush1.msra.mxu0 0.0
        %2002 = vmatprep.subr.mxu0 0.0
        %2003 = vmatpush1.msra.mxu0 0.0
        %2004 = vmatprep.mubr.f32.mxu0 0.0
        %2005 = vmatmul.mubr.f32.gmra.mrb[0].mxu0 %v1693
        %v2006 = vpop.f32.mrb[0].mxu0
        %v2007 = vadd.f32 0.0, %v2006
        %v2008 = vpop.f32.mrb[0].mxu0
        %2009 = vdwg.mxu0
        %s2010 = scalar_lea.vmem %s904, 16 [#allocation8]
        %v2011 = vld [vmem:[%s2010] sm:$0xff]
        %v2012 = vld [vmem:[%s2010 + $0x8] sm:$0xff]
        %v2014 = vsel %vm1167, %v2007, 0
        %2016 = vmatprep.subr.mxu0 0.0
        %2017 = vmatpush1.msra.mxu0 %v2011
        %2018 = vmatprep.subr.mxu0 0.0
        %2019 = vmatpush1.msra.mxu0 %v2012
        %2020 = vmatprep.subr.mxu0 0.0
        %2021 = vmatpush1.msra.mxu0 0.0
        %2022 = vmatprep.subr.mxu0 0.0
        %2023 = vmatpush1.msra.mxu0 0.0
        %2024 = vmatprep.subr.mxu0 0.0
        %2025 = vmatpush1.msra.mxu0 0.0
        %2026 = vmatprep.subr.mxu0 0.0
        %2027 = vmatpush1.msra.mxu0 0.0
        %2028 = vmatprep.subr.mxu0 0.0
        %2029 = vmatpush1.msra.mxu0 0.0
        %2030 = vmatprep.subr.mxu0 0.0
        %2031 = vmatpush1.msra.mxu0 0.0
        %2032 = vmatprep.subr.mxu0 0.0
        %2033 = vmatpush1.msra.mxu0 0.0
        %2034 = vmatprep.subr.mxu0 0.0
        %2035 = vmatpush1.msra.mxu0 0.0
        %2036 = vmatprep.subr.mxu0 0.0
        %2037 = vmatpush1.msra.mxu0 0.0
        %2038 = vmatprep.subr.mxu0 0.0
        %2039 = vmatpush1.msra.mxu0 0.0
        %2040 = vmatprep.subr.mxu0 0.0
        %2041 = vmatpush1.msra.mxu0 0.0
        %2042 = vmatprep.subr.mxu0 0.0
        %2043 = vmatpush1.msra.mxu0 0.0
        %2044 = vmatprep.subr.mxu0 0.0
        %2045 = vmatpush1.msra.mxu0 0.0
        %2046 = vmatprep.subr.mxu0 0.0
        %2047 = vmatpush1.msra.mxu0 0.0
        %2048 = vmatprep.subr.mxu0 0.0
        %2049 = vmatpush1.msra.mxu0 0.0
        %2050 = vmatprep.subr.mxu0 0.0
        %2051 = vmatpush1.msra.mxu0 0.0
        %2052 = vmatprep.subr.mxu0 0.0
        %2053 = vmatpush1.msra.mxu0 0.0
        %2054 = vmatprep.subr.mxu0 0.0
        %2055 = vmatpush1.msra.mxu0 0.0
        %2056 = vmatprep.subr.mxu0 0.0
        %2057 = vmatpush1.msra.mxu0 0.0
        %2058 = vmatprep.subr.mxu0 0.0
        %2059 = vmatpush1.msra.mxu0 0.0
        %2060 = vmatprep.subr.mxu0 0.0
        %2061 = vmatpush1.msra.mxu0 0.0
        %2062 = vmatprep.subr.mxu0 0.0
        %2063 = vmatpush1.msra.mxu0 0.0
        %2064 = vmatprep.subr.mxu0 0.0
        %2065 = vmatpush1.msra.mxu0 0.0
        %2066 = vmatprep.subr.mxu0 0.0
        %2067 = vmatpush1.msra.mxu0 0.0
        %2068 = vmatprep.subr.mxu0 0.0
        %2069 = vmatpush1.msra.mxu0 0.0
        %2070 = vmatprep.subr.mxu0 0.0
        %2071 = vmatpush1.msra.mxu0 0.0
        %2072 = vmatprep.subr.mxu0 0.0
        %2073 = vmatpush1.msra.mxu0 0.0
        %2074 = vmatprep.subr.mxu0 0.0
        %2075 = vmatpush1.msra.mxu0 0.0
        %2076 = vmatprep.subr.mxu0 0.0
        %2077 = vmatpush1.msra.mxu0 0.0
        %2078 = vmatprep.subr.mxu0 0.0
        %2079 = vmatpush1.msra.mxu0 0.0
        %2080 = vmatprep.mubr.f32.mxu0 0.0
        %2081 = vmatmul.mubr.f32.gmra.mrb[0].mxu0 %v2014
        %v2082 = vpop.f32.mrb[0].mxu0
        %v2083 = vadd.f32 %v1687, %v2082
        %v2084 = vpop.f32.mrb[0].mxu0
        %2085 = vdwg.mxu0
        %2086 = vmax.xlane.f32.xlu0 %v2083
        %v2087 = vpop.xlane.xlu0 %2086
        %v2088 = vsub.f32 %v2083, %v2087
        %v2089 = vmul.f32 %v2088, 1.442695
        %v2090 = vpow.pop %v2089
        %2091 = vadd.xlane.f32.xlu0 %v2090
        %v2092 = vpop.xlane.xlu0 %2091
        %v2093 = vrcp.pop %v2092
        %v2094 = vmul.f32 %v2090, %v2093
        %s2095 = scalar_lea.vmem %s913, 128 [#allocation10]
        %v2096 = vld [vmem:[%s2095] sm:$0xff]
        %v2097 = vld [vmem:[%s2095 + $0x8] sm:$0xff]
        %v2098 = vld [vmem:[%s2095 + $0x10] sm:$0xff]
        %v2099 = vld [vmem:[%s2095 + $0x18] sm:$0xff]
        %v2100 = vld [vmem:[%s2095 + $0x20] sm:$0xff]
        %v2101 = vld [vmem:[%s2095 + $0x28] sm:$0xff]
        %v2102 = vld [vmem:[%s2095 + $0x30] sm:$0xff]
        %v2103 = vld [vmem:[%s2095 + $0x38] sm:$0xff]
        %v2104 = vld [vmem:[%s2095 + $0x40] sm:$0xff]
        %v2105 = vld [vmem:[%s2095 + $0x48] sm:$0xff]
        %v2106 = vld [vmem:[%s2095 + $0x50] sm:$0xff]
        %v2107 = vld [vmem:[%s2095 + $0x58] sm:$0xff]
        %v2108 = vld [vmem:[%s2095 + $0x60] sm:$0xff]
        %v2109 = vld [vmem:[%s2095 + $0x68] sm:$0xff]
        %v2110 = vld [vmem:[%s2095 + $0x70] sm:$0xff]
        %v2111 = vld [vmem:[%s2095 + $0x78] sm:$0xff]
        %2112 = vmatprep.subr.mxu0 0.0
        %2113 = vmatpush1.msra.mxu0 %v2096
        %2114 = vmatprep.subr.mxu0 0.0
        %2115 = vmatpush1.msra.mxu0 %v2097
        %2116 = vmatprep.subr.mxu0 0.0
        %2117 = vmatpush1.msra.mxu0 %v2098
        %2118 = vmatprep.subr.mxu0 0.0
        %2119 = vmatpush1.msra.mxu0 %v2099
        %2120 = vmatprep.subr.mxu0 0.0
        %2121 = vmatpush1.msra.mxu0 %v2100
        %2122 = vmatprep.subr.mxu0 0.0
        %2123 = vmatpush1.msra.mxu0 %v2101
        %2124 = vmatprep.subr.mxu0 0.0
        %2125 = vmatpush1.msra.mxu0 %v2102
        %2126 = vmatprep.subr.mxu0 0.0
        %2127 = vmatpush1.msra.mxu0 %v2103
        %2128 = vmatprep.subr.mxu0 0.0
        %2129 = vmatpush1.msra.mxu0 %v2104
        %2130 = vmatprep.subr.mxu0 0.0
        %2131 = vmatpush1.msra.mxu0 %v2105
        %2132 = vmatprep.subr.mxu0 0.0
        %2133 = vmatpush1.msra.mxu0 %v2106
        %2134 = vmatprep.subr.mxu0 0.0
        %2135 = vmatpush1.msra.mxu0 %v2107
        %2136 = vmatprep.subr.mxu0 0.0
        %2137 = vmatpush1.msra.mxu0 %v2108
        %2138 = vmatprep.subr.mxu0 0.0
        %2139 = vmatpush1.msra.mxu0 %v2109
        %2140 = vmatprep.subr.mxu0 0.0
        %2141 = vmatpush1.msra.mxu0 %v2110
        %2142 = vmatprep.subr.mxu0 0.0
        %2143 = vmatpush1.msra.mxu0 %v2111
        %2144 = vmatprep.subr.mxu0 0.0
        %2145 = vmatpush1.msra.mxu0 0.0
        %2146 = vmatprep.subr.mxu0 0.0
        %2147 = vmatpush1.msra.mxu0 0.0
        %2148 = vmatprep.subr.mxu0 0.0
        %2149 = vmatpush1.msra.mxu0 0.0
        %2150 = vmatprep.subr.mxu0 0.0
        %2151 = vmatpush1.msra.mxu0 0.0
        %2152 = vmatprep.subr.mxu0 0.0
        %2153 = vmatpush1.msra.mxu0 0.0
        %2154 = vmatprep.subr.mxu0 0.0
        %2155 = vmatpush1.msra.mxu0 0.0
        %2156 = vmatprep.subr.mxu0 0.0
        %2157 = vmatpush1.msra.mxu0 0.0
        %2158 = vmatprep.subr.mxu0 0.0
        %2159 = vmatpush1.msra.mxu0 0.0
        %2160 = vmatprep.subr.mxu0 0.0
        %2161 = vmatpush1.msra.mxu0 0.0
        %2162 = vmatprep.subr.mxu0 0.0
        %2163 = vmatpush1.msra.mxu0 0.0
        %2164 = vmatprep.subr.mxu0 0.0
        %2165 = vmatpush1.msra.mxu0 0.0
        %2166 = vmatprep.subr.mxu0 0.0
        %2167 = vmatpush1.msra.mxu0 0.0
        %2168 = vmatprep.subr.mxu0 0.0
        %2169 = vmatpush1.msra.mxu0 0.0
        %2170 = vmatprep.subr.mxu0 0.0
        %2171 = vmatpush1.msra.mxu0 0.0
        %2172 = vmatprep.subr.mxu0 0.0
        %2173 = vmatpush1.msra.mxu0 0.0
        %2174 = vmatprep.subr.mxu0 0.0
        %2175 = vmatpush1.msra.mxu0 0.0
        %2176 = vmatprep.mubr.f32.mxu0 0.0
        %2177 = vmatmul.mubr.f32.gmra.mrb[0].mxu0 %v2094
        %v2178 = vpop.f32.mrb[0].mxu0
        %v2179 = vadd.f32 0.0, %v2178
        %v2180 = vpop.f32.mrb[0].mxu0
        %2181 = vdwg.mxu0
        %2183 = vrot.lane.b32.xlu0 %v2179, 16
        %v2184 = vpop.permute.xlu0 %2183
        %v2186 = vsel %vm1167, %v1932, %v2184
        %v2187 = vld [vmem:[#allocation23] sm:$0xff]
        %v2188 = vld [vmem:[#allocation23 + $0x8] sm:$0xff]
        %v2189 = vld [vmem:[#allocation23 + $0x10] sm:$0xff]
        %v2190 = vld [vmem:[#allocation23 + $0x18] sm:$0xff]
        %v2191 = vld [vmem:[#allocation25] sm:$0x1]
        %v2193 = vlaneseq
        %v2194 = vshrl.u32 %v2193, 7
        %v2195 = vsub.s32 0, %v2194
        %v2196 = vrot.slane %v2191, %v2195
        %v2199 = vsel %vm1057, %v2186, 0
        %2201 = vmatprep.subr.mxu0 0.0
        %2202 = vmatpush1.msra.mxu0 %v2187
        %2203 = vmatprep.subr.mxu0 0.0
        %2204 = vmatpush1.msra.mxu0 %v2188
        %2205 = vmatprep.subr.mxu0 0.0
        %2206 = vmatpush1.msra.mxu0 %v2189
        %2207 = vmatprep.subr.mxu0 0.0
        %2208 = vmatpush1.msra.mxu0 %v2190
        %2209 = vmatprep.subr.mxu0 0.0
        %2210 = vmatpush1.msra.mxu0 0.0
        %2211 = vmatprep.subr.mxu0 0.0
        %2212 = vmatpush1.msra.mxu0 0.0
        %2213 = vmatprep.subr.mxu0 0.0
        %2214 = vmatpush1.msra.mxu0 0.0
        %2215 = vmatprep.subr.mxu0 0.0
        %2216 = vmatpush1.msra.mxu0 0.0
        %2217 = vmatprep.subr.mxu0 0.0
        %2218 = vmatpush1.msra.mxu0 0.0
        %2219 = vmatprep.subr.mxu0 0.0
        %2220 = vmatpush1.msra.mxu0 0.0
        %2221 = vmatprep.subr.mxu0 0.0
        %2222 = vmatpush1.msra.mxu0 0.0
        %2223 = vmatprep.subr.mxu0 0.0
        %2224 = vmatpush1.msra.mxu0 0.0
        %2225 = vmatprep.subr.mxu0 0.0
        %2226 = vmatpush1.msra.mxu0 0.0
        %2227 = vmatprep.subr.mxu0 0.0
        %2228 = vmatpush1.msra.mxu0 0.0
        %2229 = vmatprep.subr.mxu0 0.0
        %2230 = vmatpush1.msra.mxu0 0.0
        %2231 = vmatprep.subr.mxu0 0.0
        %2232 = vmatpush1.msra.mxu0 0.0
        %2233 = vmatprep.subr.mxu0 0.0
        %2234 = vmatpush1.msra.mxu0 0.0
        %2235 = vmatprep.subr.mxu0 0.0
        %2236 = vmatpush1.msra.mxu0 0.0
        %2237 = vmatprep.subr.mxu0 0.0
        %2238 = vmatpush1.msra.mxu0 0.0
        %2239 = vmatprep.subr.mxu0 0.0
        %2240 = vmatpush1.msra.mxu0 0.0
        %2241 = vmatprep.subr.mxu0 0.0
        %2242 = vmatpush1.msra.mxu0 0.0
        %2243 = vmatprep.subr.mxu0 0.0
        %2244 = vmatpush1.msra.mxu0 0.0
        %2245 = vmatprep.subr.mxu0 0.0
        %2246 = vmatpush1.msra.mxu0 0.0
        %2247 = vmatprep.subr.mxu0 0.0
        %2248 = vmatpush1.msra.mxu0 0.0
        %2249 = vmatprep.subr.mxu0 0.0
        %2250 = vmatpush1.msra.mxu0 0.0
        %2251 = vmatprep.subr.mxu0 0.0
        %2252 = vmatpush1.msra.mxu0 0.0
        %2253 = vmatprep.subr.mxu0 0.0
        %2254 = vmatpush1.msra.mxu0 0.0
        %2255 = vmatprep.subr.mxu0 0.0
        %2256 = vmatpush1.msra.mxu0 0.0
        %2257 = vmatprep.subr.mxu0 0.0
        %2258 = vmatpush1.msra.mxu0 0.0
        %2259 = vmatprep.subr.mxu0 0.0
        %2260 = vmatpush1.msra.mxu0 0.0
        %2261 = vmatprep.subr.mxu0 0.0
        %2262 = vmatpush1.msra.mxu0 0.0
        %2263 = vmatprep.subr.mxu0 0.0
        %2264 = vmatpush1.msra.mxu0 0.0
        %2265 = vmatprep.mubr.f32.mxu0 0.0
        %2266 = vmatmul.mubr.f32.gmra.mrb[0].mxu0 %v2199
        %v2267 = vpop.f32.mrb[0].mxu0
        %v2268 = vadd.f32 %v2196, %v2267
        %v2269 = vpop.f32.mrb[0].mxu0
        %2270 = vdwg.mxu0
        %v2271 = vadd.f32 %v1654, %v2268
        %v2272 = vsel %vm1057, %v2271, 0.0
        %2273 = vadd.xlane.f32.xlu0 %v2272
        %v2274 = vpop.xlane.xlu0 %2273
        %v2275 = vmul.f32 %v2274, %v1061
        %v2276 = vsub.f32 %v2271, %v2275
        %v2277 = vmul.f32 %v2276, %v2276
        %v2278 = vsel %vm1057, %v2277, 0.0
        %2279 = vadd.xlane.f32.xlu0 %v2278
        %v2280 = vpop.xlane.xlu0 %2279
        %v2281 = vmul.f32 %v2280, %v1061
        %v2282 = vadd.f32 %v2281, 1e-05
        %v2283 = vrsqrt.pop %v2282
        %v2284 = vmul.f32 %v2276, %v2283
        %v2285 = vld [vmem:[#allocation26] sm:$0x1]
        %v2287 = vlaneseq
        %v2288 = vshrl.u32 %v2287, 7
        %v2289 = vsub.s32 0, %v2288
        %v2290 = vrot.slane %v2285, %v2289
        %v2292 = vmul.f32 %v2284, %v2290
        %v2293 = vld [vmem:[#allocation28] sm:$0x1]
        %v2295 = vlaneseq
        %v2296 = vshrl.u32 %v2295, 7
        %v2297 = vsub.s32 0, %v2296
        %v2298 = vrot.slane %v2293, %v2297
        %v2300 = vadd.f32 %v2292, %v2298
        %v2301 = vld [vmem:[#allocation29] sm:$0xff]
        %v2302 = vld [vmem:[#allocation29 + $0x8] sm:$0xff]
        %v2303 = vld [vmem:[#allocation29 + $0x10] sm:$0xff]
        %v2304 = vld [vmem:[#allocation29 + $0x18] sm:$0xff]
        %v2305 = vld [vmem:[#allocation31] sm:$0x1]
        %v2307 = vlaneseq
        %v2308 = vshrl.u32 %v2307, 7
        %v2309 = vsub.s32 0, %v2308
        %v2310 = vrot.slane %v2305, %v2309
        %v2313 = vsel %vm1057, %v2300, 0
        %2315 = vmatprep.subr.mxu0 0.0
        %2316 = vmatpush1.msra.mxu0 %v2301
        %2317 = vmatprep.subr.mxu0 0.0
        %2318 = vmatpush1.msra.mxu0 %v2302
        %2319 = vmatprep.subr.mxu0 0.0
        %2320 = vmatpush1.msra.mxu0 %v2303
        %2321 = vmatprep.subr.mxu0 0.0
        %2322 = vmatpush1.msra.mxu0 %v2304
        %2323 = vmatprep.subr.mxu0 0.0
        %2324 = vmatpush1.msra.mxu0 0.0
        %2325 = vmatprep.subr.mxu0 0.0
        %2326 = vmatpush1.msra.mxu0 0.0
        %2327 = vmatprep.subr.mxu0 0.0
        %2328 = vmatpush1.msra.mxu0 0.0
        %2329 = vmatprep.subr.mxu0 0.0
        %2330 = vmatpush1.msra.mxu0 0.0
        %2331 = vmatprep.subr.mxu0 0.0
        %2332 = vmatpush1.msra.mxu0 0.0
        %2333 = vmatprep.subr.mxu0 0.0
        %2334 = vmatpush1.msra.mxu0 0.0
        %2335 = vmatprep.subr.mxu0 0.0
        %2336 = vmatpush1.msra.mxu0 0.0
        %2337 = vmatprep.subr.mxu0 0.0
        %2338 = vmatpush1.msra.mxu0 0.0
        %2339 = vmatprep.subr.mxu0 0.0
        %2340 = vmatpush1.msra.mxu0 0.0
        %2341 = vmatprep.subr.mxu0 0.0
        %2342 = vmatpush1.msra.mxu0 0.0
        %2343 = vmatprep.subr.mxu0 0.0
        %2344 = vmatpush1.msra.mxu0 0.0
        %2345 = vmatprep.subr.mxu0 0.0
        %2346 = vmatpush1.msra.mxu0 0.0
        %2347 = vmatprep.subr.mxu0 0.0
        %2348 = vmatpush1.msra.mxu0 0.0
        %2349 = vmatprep.subr.mxu0 0.0
        %2350 = vmatpush1.msra.mxu0 0.0
        %2351 = vmatprep.subr.mxu0 0.0
        %2352 = vmatpush1.msra.mxu0 0.0
        %2353 = vmatprep.subr.mxu0 0.0
        %2354 = vmatpush1.msra.mxu0 0.0
        %2355 = vmatprep.subr.mxu0 0.0
        %2356 = vmatpush1.msra.mxu0 0.0
        %2357 = vmatprep.subr.mxu0 0.0
        %2358 = vmatpush1.msra.mxu0 0.0
        %2359 = vmatprep.subr.mxu0 0.0
        %2360 = vmatpush1.msra.mxu0 0.0
        %2361 = vmatprep.subr.mxu0 0.0
        %2362 = vmatpush1.msra.mxu0 0.0
        %2363 = vmatprep.subr.mxu0 0.0
        %2364 = vmatpush1.msra.mxu0 0.0
        %2365 = vmatprep.subr.mxu0 0.0
        %2366 = vmatpush1.msra.mxu0 0.0
        %2367 = vmatprep.subr.mxu0 0.0
        %2368 = vmatpush1.msra.mxu0 0.0
        %2369 = vmatprep.subr.mxu0 0.0
        %2370 = vmatpush1.msra.mxu0 0.0
        %2371 = vmatprep.subr.mxu0 0.0
        %2372 = vmatpush1.msra.mxu0 0.0
        %2373 = vmatprep.subr.mxu0 0.0
        %2374 = vmatpush1.msra.mxu0 0.0
        %2375 = vmatprep.subr.mxu0 0.0
        %2376 = vmatpush1.msra.mxu0 0.0
        %2377 = vmatprep.subr.mxu0 0.0
        %2378 = vmatpush1.msra.mxu0 0.0
        %2379 = vmatprep.mubr.f32.mxu0 0.0
        %2380 = vmatmul.mubr.f32.gmra.mrb[0].mxu0 %v2313
        %v2381 = vpop.f32.mrb[0].mxu0
        %v2382 = vadd.f32 %v2310, %v2381
        %v2383 = vpop.f32.mrb[0].mxu0
        %2384 = vdwg.mxu0
        %v2385 = vmul.f32 %v2382, %v2382
        %v2386 = vmul.f32 %v2382, %v2385
        %v2387 = vmul.f32 %v2386, 0.044715
        %v2388 = vadd.f32 %v2382, %v2387
        %v2389 = vmul.f32 %v2388, 0.7978846
        %v2390 = vtanh.pop %v2389
        %v2391 = vadd.f32 %v2390, 1.0
        %v2392 = vmul.f32 %v2391, 0.5
        %v2393 = vmul.f32 %v2382, %v2392
        %v2394 = vld [vmem:[#allocation32] sm:$0xff]
        %v2395 = vld [vmem:[#allocation32 + $0x8] sm:$0xff]
        %v2396 = vld [vmem:[#allocation32 + $0x10] sm:$0xff]
        %v2397 = vld [vmem:[#allocation32 + $0x18] sm:$0xff]
        %v2398 = vld [vmem:[#allocation32 + $0x20] sm:$0xff]
        %v2399 = vld [vmem:[#allocation32 + $0x28] sm:$0xff]
        %v2400 = vld [vmem:[#allocation32 + $0x30] sm:$0xff]
        %v2401 = vld [vmem:[#allocation32 + $0x38] sm:$0xff]
        %v2402 = vld [vmem:[#allocation32 + $0x40] sm:$0xff]
        %v2403 = vld [vmem:[#allocation32 + $0x48] sm:$0xff]
        %v2404 = vld [vmem:[#allocation32 + $0x50] sm:$0xff]
        %v2405 = vld [vmem:[#allocation32 + $0x58] sm:$0xff]
        %v2406 = vld [vmem:[#allocation32 + $0x60] sm:$0xff]
        %v2407 = vld [vmem:[#allocation32 + $0x68] sm:$0xff]
        %v2408 = vld [vmem:[#allocation32 + $0x70] sm:$0xff]
        %v2409 = vld [vmem:[#allocation32 + $0x78] sm:$0xff]
        %2410 = vmatprep.subr.mxu0 0.0
        %2411 = vmatpush1.msra.mxu0 %v2394
        %2412 = vmatprep.subr.mxu0 0.0
        %2413 = vmatpush1.msra.mxu0 %v2395
        %2414 = vmatprep.subr.mxu0 0.0
        %2415 = vmatpush1.msra.mxu0 %v2396
        %2416 = vmatprep.subr.mxu0 0.0
        %2417 = vmatpush1.msra.mxu0 %v2397
        %2418 = vmatprep.subr.mxu0 0.0
        %2419 = vmatpush1.msra.mxu0 %v2398
        %2420 = vmatprep.subr.mxu0 0.0
        %2421 = vmatpush1.msra.mxu0 %v2399
        %2422 = vmatprep.subr.mxu0 0.0
        %2423 = vmatpush1.msra.mxu0 %v2400
        %2424 = vmatprep.subr.mxu0 0.0
        %2425 = vmatpush1.msra.mxu0 %v2401
        %2426 = vmatprep.subr.mxu0 0.0
        %2427 = vmatpush1.msra.mxu0 %v2402
        %2428 = vmatprep.subr.mxu0 0.0
        %2429 = vmatpush1.msra.mxu0 %v2403
        %2430 = vmatprep.subr.mxu0 0.0
        %2431 = vmatpush1.msra.mxu0 %v2404
        %2432 = vmatprep.subr.mxu0 0.0
        %2433 = vmatpush1.msra.mxu0 %v2405
        %2434 = vmatprep.subr.mxu0 0.0
        %2435 = vmatpush1.msra.mxu0 %v2406
        %2436 = vmatprep.subr.mxu0 0.0
        %2437 = vmatpush1.msra.mxu0 %v2407
        %2438 = vmatprep.subr.mxu0 0.0
        %2439 = vmatpush1.msra.mxu0 %v2408
        %2440 = vmatprep.subr.mxu0 0.0
        %2441 = vmatpush1.msra.mxu0 %v2409
        %2442 = vmatprep.subr.mxu0 0.0
        %2443 = vmatpush1.msra.mxu0 0.0
        %2444 = vmatprep.subr.mxu0 0.0
        %2445 = vmatpush1.msra.mxu0 0.0
        %2446 = vmatprep.subr.mxu0 0.0
        %2447 = vmatpush1.msra.mxu0 0.0
        %2448 = vmatprep.subr.mxu0 0.0
        %2449 = vmatpush1.msra.mxu0 0.0
        %2450 = vmatprep.subr.mxu0 0.0
        %2451 = vmatpush1.msra.mxu0 0.0
        %2452 = vmatprep.subr.mxu0 0.0
        %2453 = vmatpush1.msra.mxu0 0.0
        %2454 = vmatprep.subr.mxu0 0.0
        %2455 = vmatpush1.msra.mxu0 0.0
        %2456 = vmatprep.subr.mxu0 0.0
        %2457 = vmatpush1.msra.mxu0 0.0
        %2458 = vmatprep.subr.mxu0 0.0
        %2459 = vmatpush1.msra.mxu0 0.0
        %2460 = vmatprep.subr.mxu0 0.0
        %2461 = vmatpush1.msra.mxu0 0.0
        %2462 = vmatprep.subr.mxu0 0.0
        %2463 = vmatpush1.msra.mxu0 0.0
        %2464 = vmatprep.subr.mxu0 0.0
        %2465 = vmatpush1.msra.mxu0 0.0
        %2466 = vmatprep.subr.mxu0 0.0
        %2467 = vmatpush1.msra.mxu0 0.0
        %2468 = vmatprep.subr.mxu0 0.0
        %2469 = vmatpush1.msra.mxu0 0.0
        %2470 = vmatprep.subr.mxu0 0.0
        %2471 = vmatpush1.msra.mxu0 0.0
        %2472 = vmatprep.subr.mxu0 0.0
        %2473 = vmatpush1.msra.mxu0 0.0
        %2474 = vmatprep.mubr.f32.mxu0 0.0
        %2475 = vmatmul.mubr.f32.gmra.mrb[0].mxu0 %v2393
        %v2476 = vpop.f32.mrb[0].mxu0
        %v2477 = vadd.f32 0.0, %v2476
        %v2478 = vpop.f32.mrb[0].mxu0
        %2479 = vdwg.mxu0
        %v2480 = vadd.f32 %v2271, %v2477
        %v2481 = vld [vmem:[#allocation34] sm:$0x1]
        %v2483 = vlaneseq
        %v2484 = vshrl.u32 %v2483, 7
        %v2485 = vsub.s32 0, %v2484
        %v2486 = vrot.slane %v2481, %v2485
        %v2488 = vadd.f32 %v2480, %v2486
        %2489 = vst.msk [vmem:[%s1055] sm:$0xff] %vm1057, %v2488
        %s2490 = sand.u32 %s542, 1
        %s2491 = scalar_lea.sflag [#allocation4], %s2490
        %s2492 = sand.u32 %s542, 1
        %s2493 = smul.addr %s2492, 8
        %s2494 = scalar_lea.vmem [#allocation35], %s2493
        // Predicated region
        $region189: #{tpu_custom_call.1} parent=103 // pred_check
          %p2495 = pneg %p552
        $region190: #{tpu_custom_call.1} parent=103 // pred_check_branch
          %2497 = sbr.rel (%p2495) target = $region192
        $region191: #{tpu_custom_call.1} parent=103 // pred_region
          %s2499 = ssub.s32 128, 128
          %2500 = vsyncadd %s2491, %s2499
          %s2501 = smul.addr %s56, 2
          %s2502 = sadd.s32 %s57, %s2501
          %s2503 = smul.addr %s2502, 128
          %s2504 = scalar_lea.hbm %s21, %s2503
          %s2506 = sshll.u32 %s2494, 4
          %s2507 = int_to_ptr.vmem [resolvable:$true] %s2506
          %2509 = dma.vmem_to_hbm [thread:$0]  %s2507, 128, %s2504, %s2491
        $region192: #{tpu_custom_call.1} parent=103 // pred_fallthru
          _
      $region104: #{tpu_custom_call.1} parent=5 // pred_fallthru
        _
      %p2510 = scmp.le.s32.totalorder 2, %s47
      // Predicated region
      $region193: #{tpu_custom_call.1} parent=5 // pred_check
        %p2511 = pneg %p2510
      $region194: #{tpu_custom_call.1} parent=5 // pred_check_branch
        %2513 = sbr.rel (%p2511) target = $region196
      $region195: #{tpu_custom_call.1} parent=5 // pred_region
        %s2514 = ssub.s32 %s47, 2
        // Predicated region
        $region197: #{tpu_custom_call.1} parent=195 // pred_check
          %p2515 = pneg %p558
        $region198: #{tpu_custom_call.1} parent=195 // pred_check_branch
          %2517 = sbr.rel (%p2515) target = $region200
        $region199: #{tpu_custom_call.1} parent=195 // pred_region
          %s2518 = sand.u32 %s543, 1
          %s2519 = scalar_lea.sflag [#allocation4], %s2518
          %s2520 = sand.u32 %s543, 1
          %s2521 = smul.addr %s2520, 8
          %s2522 = scalar_lea.vmem [#allocation35], %s2521
          %2523 = dma.done %s2519, 128
        $region200: #{tpu_custom_call.1} parent=195 // pred_fallthru
          _
      $region196: #{tpu_custom_call.1} parent=5 // pred_fallthru
        _
    $region6: #{tpu_custom_call.1} parent=1 // loop_footer
      %s51 = sadd.s32 1, %s47
    $region7: #{tpu_custom_call.1} parent=1 // loop_footer_branch
      %46 = sbr.rel target = $region3
    $region8: #{tpu_custom_call.1} parent=1 // loop_exit
      _
    %2524 = vsyncpa [#allocation3], 1
    %s2525 = scalar_lea.sflag [#allocation3], 1
    %2526 = vsyncpa %s2525, 1
    %2527 = vsyncpa [#allocation6], 1
    %s2528 = scalar_lea.sflag [#allocation6], 1
    %2529 = vsyncpa %s2528, 1
    %2530 = vsyncpa [#allocation9], 1
    %s2531 = scalar_lea.sflag [#allocation9], 1
    %2532 = vsyncpa %s2531, 1
    %2533 = vsyncpa [#allocation12], 1
    %2534 = vsyncpa [#allocation15], 1
    %2535 = vsyncpa [#allocation18], 1
    %2536 = vsyncpa [#allocation21], 1
    %2537 = vsyncpa [#allocation24], 1
    %2538 = vsyncpa [#allocation27], 1
    %2539 = vsyncpa [#allocation30], 1
    %2540 = vsyncpa [#allocation33], 1
    %2541 = vsyncpa [#allocation4], 1
    %s2542 = scalar_lea.sflag [#allocation4], 1
    %2543 = vsyncpa %s2542, 1

// kernel: tpu_custom_call.1
$region0: #{tpu_custom_call.1}
  #allocation0 [shape = 'u32[]', space=smem, size = 0x4, offset = 0x4, fixed_abs, tag = 'smem constant byte address 0x4 - core index']
  #allocation1 [shape = 'u32[144,128]{1,0:T(1,128)}', space=vmem, size = 0x12000, scoped, tag = 'internal scratch']
  %s0 = inlined_call_operand.hbm [shape: f32[2,16,32], index: 0, kind: input, shape index: {}]
  %s1 = inlined_call_operand.hbm [shape: f32[2,2,16,16], index: 1, kind: input, shape index: {}]
  %s2 = inlined_call_operand.hbm [shape: f32[2,2,16,16], index: 2, kind: input, shape index: {}]
  %s3 = inlined_call_operand.hbm [shape: f32[2,2,16,128], index: 3, kind: input, shape index: {}]
  %s4 = inlined_call_operand.hbm [shape: f32[2,2,128,16], index: 4, kind: input, shape index: {}]
  %s5 = inlined_call_operand.hbm [shape: f32[1,32], index: 5, kind: input, shape index: {}]
  %s6 = inlined_call_operand.hbm [shape: f32[1,32], index: 6, kind: input, shape index: {}]
  %s7 = inlined_call_operand.hbm [shape: f32[2,32,16], index: 7, kind: input, shape index: {}]
  %s8 = inlined_call_operand.hbm [shape: f32[32,32], index: 8, kind: input, shape index: {}]
  %s9 = inlined_call_operand.hbm [shape: f32[1,32], index: 9, kind: input, shape index: {}]
  %s10 = inlined_call_operand.hbm [shape: f32[1,32], index: 10, kind: input, shape index: {}]
  %s11 = inlined_call_operand.hbm [shape: f32[1,32], index: 11, kind: input, shape index: {}]
  %s12 = inlined_call_operand.hbm [shape: f32[2,32,16], index: 12, kind: input, shape index: {}]
  %s13 = inlined_call_operand.hbm [shape: f32[32,32], index: 13, kind: input, shape index: {}]
  %s14 = inlined_call_operand.hbm [shape: f32[1,32], index: 14, kind: input, shape index: {}]
  %s15 = inlined_call_operand.hbm [shape: f32[1,32], index: 15, kind: input, shape index: {}]
  %s16 = inlined_call_operand.hbm [shape: f32[1,32], index: 16, kind: input, shape index: {}]
  %s17 = inlined_call_operand.hbm [shape: f32[32,128], index: 17, kind: input, shape index: {}]
  %s18 = inlined_call_operand.hbm [shape: f32[1,128], index: 18, kind: input, shape index: {}]
  %s19 = inlined_call_operand.hbm [shape: f32[128,32], index: 19, kind: input, shape index: {}]
  %s20 = inlined_call_operand.hbm [shape: f32[1,32], index: 20, kind: input, shape index: {}]
  %s21 = inlined_call_operand.hbm [shape: f32[2,16,32], index: 21, kind: output, shape index: {}]
  %s22 = sld [smem:[#allocation0]]
  $region201: #{tpu_custom_call.1} parent=0
    _
  %s24 = ssub.s32 1, %s22
  %s25 = scalar_select 0, %s24, %s22
  $region1: #{tpu_custom_call.1} parent=0
    #allocation2 [shape = 'u8[8192]{0}', space=vmem, size = 0x2000, scoped, tag = 'input window, operand 0']
    #allocation3 [shape = 's32[2]{0}', space=sflag, size = 0x8, scoped, tag = 'scoped memory for tpu_custom_call.1']
    #allocation4 [shape = 's32[2]{0}', space=sflag, size = 0x8, scoped, tag = 'scoped memory for tpu_custom_call.1']
    #allocation5 [shape = 'u8[32768]{0}', space=vmem, size = 0x8000, scoped, tag = 'input window, operand 1']
    #allocation6 [shape = 's32[2]{0}', space=sflag, size = 0x8, scoped, tag = 'scoped memory for tpu_custom_call.1']
    #allocation7 [shape = 'u8[32768]{0}', space=vmem, size = 0x8000, scoped, tag = 'input window, operand 2']
    #allocation8 [shape = 'u8[32768]{0}', space=vmem, size = 0x8000, scoped, tag = 'input window, operand 3']
    #allocation9 [shape = 's32[2]{0}', space=sflag, size = 0x8, scoped, tag = 'scoped memory for tpu_custom_call.1']
    #allocation10 [shape = 'u8[262144]{0}', space=vmem, size = 0x40000, scoped, tag = 'input window, operand 4']
    #allocation11 [shape = 'u8[512]{0}', space=vmem, size = 0x400, scoped, tag = 'input window, operand 5, single buffered']
    #allocation12 [shape = 's32[1]{0}', space=sflag, size = 0x4, scoped, tag = 'scoped memory for tpu_custom_call.1']
    #allocation13 [shape = 'u8[512]{0}', space=vmem, size = 0x400, scoped, tag = 'input window, operand 6, single buffered']
    #allocation14 [shape = 'u8[32768]{0}', space=vmem, size = 0x8000, scoped, tag = 'input window, operand 7, single buffered']
    #allocation15 [shape = 's32[1]{0}', space=sflag, size = 0x4, scoped, tag = 'scoped memory for tpu_custom_call.1']
    #allocation16 [shape = 'u8[16384]{0}', space=vmem, size = 0x4000, scoped, tag = 'input window, operand 8, single buffered']
    #allocation17 [shape = 'u8[512]{0}', space=vmem, size = 0x400, scoped, tag = 'input window, operand 9, single buffered']
    #allocation18 [shape = 's32[1]{0}', space=sflag, size = 0x4, scoped, tag = 'scoped memory for tpu_custom_call.1']
    #allocation19 [shape = 'u8[512]{0}', space=vmem, size = 0x400, scoped, tag = 'input window, operand 10, single buffered']
    #allocation20 [shape = 'u8[512]{0}', space=vmem, size = 0x400, scoped, tag = 'input window, operand 11, single buffered']
    #allocation21 [shape = 's32[1]{0}', space=sflag, size = 0x4, scoped, tag = 'scoped memory for tpu_custom_call.1']
    #allocation22 [shape = 'u8[32768]{0}', space=vmem, size = 0x8000, scoped, tag = 'input window, operand 12, single buffered']
    #allocation23 [shape = 'u8[16384]{0}', space=vmem, size = 0x4000, scoped, tag = 'input window, operand 13, single buffered']
    #allocation24 [shape = 's32[1]{0}', space=sflag, size = 0x4, scoped, tag = 'scoped memory for tpu_custom_call.1']
    #allocation25 [shape = 'u8[512]{0}', space=vmem, size = 0x400, scoped, tag = 'input window, operand 14, single buffered']
    #allocation26 [shape = 'u8[512]{0}', space=vmem, size = 0x400, scoped, tag = 'input window, operand 15, single buffered']
    #allocation27 [shape = 's32[1]{0}', space=sflag, size = 0x4, scoped, tag = 'scoped memory for tpu_custom_call.1']
    #allocation28 [shape = 'u8[512]{0}', space=vmem, size = 0x400, scoped, tag = 'input window, operand 16, single buffered']
    #allocation29 [shape = 'u8[16384]{0}', space=vmem, size = 0x4000, scoped, tag = 'input window, operand 17, single buffered']
    #allocation30 [shape = 's32[1]{0}', space=sflag, size = 0x4, scoped, tag = 'scoped memory for tpu_custom_call.1']
    #allocation31 [shape = 'u8[512]{0}', space=vmem, size = 0x400, scoped, tag = 'input window, operand 18, single buffered']
    #allocation32 [shape = 'u8[65536]{0}', space=vmem, size = 0x10000, scoped, tag = 'input window, operand 19, single buffered']
    #allocation33 [shape = 's32[1]{0}', space=sflag, size = 0x4, scoped, tag = 'scoped memory for tpu_custom_call.1']
    #allocation34 [shape = 'u8[512]{0}', space=vmem, size = 0x400, scoped, tag = 'input window, operand 20, single buffered']
    #allocation35 [shape = 'u8[8192]{0}', space=vmem, size = 0x2000, scoped, tag = 'output window, operand 0']
    %26 = vsyncpa [#allocation3], 0
    %s27 = scalar_lea.sflag [#allocation3], 1
    %28 = vsyncpa %s27, 0
    %29 = vsyncpa [#allocation6], 0
    %s30 = scalar_lea.sflag [#allocation6], 1
    %31 = vsyncpa %s30, 0
    %32 = vsyncpa [#allocation9], 0
    %s33 = scalar_lea.sflag [#allocation9], 1
    %34 = vsyncpa %s33, 0
    %35 = vsyncpa [#allocation12], 0
    %36 = vsyncpa [#allocation15], 0
    %37 = vsyncpa [#allocation18], 0
    %38 = vsyncpa [#allocation21], 0
    %39 = vsyncpa [#allocation24], 0
    %40 = vsyncpa [#allocation27], 0
    %41 = vsyncpa [#allocation30], 0
    %42 = vsyncpa [#allocation33], 0
    %43 = vsyncpa [#allocation4], 0
    %s44 = scalar_lea.sflag [#allocation4], 1
    %45 = vsyncpa %s44, 0
    loop: start=0, step=1, limit=6
    $region2: #{tpu_custom_call.1} parent=1 // loop_pre_header
      _
    $region3: #{tpu_custom_call.1} parent=1 // loop_header
      %s47 = sphi 0, %s51
      %p48 = scmp.ge.s32.totalorder %s47, 6
      %s54 = sphi 0, %s66
      %s55 = sphi 0, %s62
      %s56 = sphi 0, %s54
      %s57 = sphi 0, %s55
      %s58 = sphi 0, %s56
      %s59 = sphi 0, %s57
      %s71 = sphi 0, %s73
      %s74 = sphi 0, %s71
      %s75 = sphi 0, %s74
      %s91 = sphi 0, %s75
      %s97 = sphi 0, %s99
      %s100 = sphi 0, %s97
      %s101 = sphi 0, %s100
      %s117 = sphi 0, %s101
      %s123 = sphi 0, %s125
      %s126 = sphi 0, %s123
      %s127 = sphi 0, %s126
      %s143 = sphi 0, %s127
      %s149 = sphi 0, %s151
      %s152 = sphi 0, %s149
      %s153 = sphi 0, %s152
      %s169 = sphi 0, %s153
      %s175 = sphi 0, %s177
      %s178 = sphi 0, %s175
      %s179 = sphi 0, %s178
      %s195 = sphi 0, %s179
      %s199 = sphi 0, %s199
      %s201 = sphi 0, %s199
      %s202 = sphi 0, %s201
      %s216 = sphi 0, %s202
      %s220 = sphi 0, %s220
      %s222 = sphi 0, %s220
      %s223 = sphi 0, %s222
      %s237 = sphi 0, %s223
      %s241 = sphi 0, %s241
      %s243 = sphi 0, %s241
      %s244 = sphi 0, %s243
      %s258 = sphi 0, %s244
      %s262 = sphi 0, %s262
      %s264 = sphi 0, %s262
      %s265 = sphi 0, %s264
      %s279 = sphi 0, %s265
      %s283 = sphi 0, %s283
      %s285 = sphi 0, %s283
      %s286 = sphi 0, %s285
      %s300 = sphi 0, %s286
      %s304 = sphi 0, %s304
      %s306 = sphi 0, %s304
      %s307 = sphi 0, %s306
      %s321 = sphi 0, %s307
      %s325 = sphi 0, %s325
      %s327 = sphi 0, %s325
      %s328 = sphi 0, %s327
      %s342 = sphi 0, %s328
      %s346 = sphi 0, %s346
      %s348 = sphi 0, %s346
      %s349 = sphi 0, %s348
      %s363 = sphi 0, %s349
      %s367 = sphi 0, %s367
      %s369 = sphi 0, %s367
      %s370 = sphi 0, %s369
      %s384 = sphi 0, %s370
      %s388 = sphi 0, %s388
      %s390 = sphi 0, %s388
      %s391 = sphi 0, %s390
      %s405 = sphi 0, %s391
      %s409 = sphi 0, %s409
      %s411 = sphi 0, %s409
      %s412 = sphi 0, %s411
      %s426 = sphi 0, %s412
      %s430 = sphi 0, %s430
      %s432 = sphi 0, %s430
      %s433 = sphi 0, %s432
      %s447 = sphi 0, %s433
      %s451 = sphi 0, %s451
      %s453 = sphi 0, %s451
      %s454 = sphi 0, %s453
      %s468 = sphi 0, %s454
      %s472 = sphi 0, %s472
      %s474 = sphi 0, %s472
      %s475 = sphi 0, %s474
      %s489 = sphi 0, %s475
      %s493 = sphi 0, %s493
      %s495 = sphi 0, %s493
      %s496 = sphi 0, %s495
      %s510 = sphi 0, %s496
      %s514 = sphi 0, %s514
      %s516 = sphi 0, %s514
      %s517 = sphi 0, %s516
      %s531 = sphi 0, %s517
      %s539 = sphi 0, %s541
      %s542 = sphi 0, %s539
      %s543 = sphi 0, %s542
      %s559 = sphi 0, %s543
    $region4: #{tpu_custom_call.1} parent=1 // loop_header_branch
      %50 = sbr.rel (%p48) target = $region8
    $region5: #{tpu_custom_call.1} parent=1 // loop_body
      %s52 = ssub.s32 %s47, 1
      %s53 = ssub.s32 %s47, 2
      %s60 = sadd.s32 1, %s55
      %p61 = scmp.ge.s32.totalorder %s60, 2
      %s62 = scalar_select %p61, 0, %s60
      %s63 = sadd.s32 1, %s54
      %s64 = scalar_select %p61, %s63, %s54
      %p65 = scmp.ge.s32.totalorder %s64, 2
      %s66 = scalar_select %p65, 0, %s64
      %s67 = ssub.s32 %s54, %s66
      %s68 = ssub.s32 %s55, %s62
      %s69 = sor.u32 %s67, %s68
      %p70 = scmp.eq.s32.totalorder %s69, 0
      %s72 = sadd.s32 %s71, 1
      %s73 = scalar_select %p70, %s71, %s72
      %p76 = pneg %p70
      %p77 = scmp.eq.s32.totalorder %s47, 3
      %p78 = por %p76, %p77
      %p79 = scmp.ne.s32.totalorder %s71, %s74
      %p80 = scmp.eq.s32.totalorder %s47, 0
      %p81 = por %p79, %p80
      %p82 = scmp.ne.s32.totalorder %s71, %s74
      %p83 = scmp.eq.s32.totalorder %s52, 3
      %p84 = por %p82, %p83
      %p85 = scmp.ne.s32.totalorder %s74, %s75
      %p86 = scmp.eq.s32.totalorder %s52, 0
      %p87 = por %p85, %p86
      %p88 = scmp.ne.s32.totalorder %s74, %s75
      %p89 = scmp.eq.s32.totalorder %s53, 3
      %p90 = por %p88, %p89
      %p92 = scmp.ne.s32.totalorder %s75, %s91
      %p93 = scmp.eq.s32.totalorder %s53, 0
      %p94 = por %p92, %p93
      %s95 = ssub.s32 %s54, %s66
      %p96 = scmp.eq.s32.totalorder %s95, 0
      %s98 = sadd.s32 %s97, 1
      %s99 = scalar_select %p96, %s97, %s98
      %p102 = pneg %p96
      %p103 = scmp.eq.s32.totalorder %s47, 3
      %p104 = por %p102, %p103
      %p105 = scmp.ne.s32.totalorder %s97, %s100
      %p106 = scmp.eq.s32.totalorder %s47, 0
      %p107 = por %p105, %p106
      %p108 = scmp.ne.s32.totalorder %s97, %s100
      %p109 = scmp.eq.s32.totalorder %s52, 3
      %p110 = por %p108, %p109
      %p111 = scmp.ne.s32.totalorder %s100, %s101
      %p112 = scmp.eq.s32.totalorder %s52, 0
      %p113 = por %p111, %p112
      %p114 = scmp.ne.s32.totalorder %s100, %s101
      %p115 = scmp.eq.s32.totalorder %s53, 3
      %p116 = por %p114, %p115
      %p118 = scmp.ne.s32.totalorder %s101, %s117
      %p119 = scmp.eq.s32.totalorder %s53, 0
      %p120 = por %p118, %p119
      %s121 = ssub.s32 %s54, %s66
      %p122 = scmp.eq.s32.totalorder %s121, 0
      %s124 = sadd.s32 %s123, 1
      %s125 = scalar_select %p122, %s123, %s124
      %p128 = pneg %p122
      %p129 = scmp.eq.s32.totalorder %s47, 3
      %p130 = por %p128, %p129
      %p131 = scmp.ne.s32.totalorder %s123, %s126
      %p132 = scmp.eq.s32.totalorder %s47, 0
      %p133 = por %p131, %p132
      %p134 = scmp.ne.s32.totalorder %s123, %s126
      %p135 = scmp.eq.s32.totalorder %s52, 3
      %p136 = por %p134, %p135
      %p137 = scmp.ne.s32.totalorder %s126, %s127
      %p138 = scmp.eq.s32.totalorder %s52, 0
      %p139 = por %p137, %p138
      %p140 = scmp.ne.s32.totalorder %s126, %s127
      %p141 = scmp.eq.s32.totalorder %s53, 3
      %p142 = por %p140, %p141
      %p144 = scmp.ne.s32.totalorder %s127, %s143
      %p145 = scmp.eq.s32.totalorder %s53, 0
      %p146 = por %p144, %p145
      %s147 = ssub.s32 %s54, %s66
      %p148 = scmp.eq.s32.totalorder %s147, 0
      %s150 = sadd.s32 %s149, 1
      %s151 = scalar_select %p148, %s149, %s150
      %p154 = pneg %p148
      %p155 = scmp.eq.s32.totalorder %s47, 3
      %p156 = por %p154, %p155
      %p157 = scmp.ne.s32.totalorder %s149, %s152
      %p158 = scmp.eq.s32.totalorder %s47, 0
      %p159 = por %p157, %p158
      %p160 = scmp.ne.s32.totalorder %s149, %s152
      %p161 = scmp.eq.s32.totalorder %s52, 3
      %p162 = por %p160, %p161
      %p163 = scmp.ne.s32.totalorder %s152, %s153
      %p164 = scmp.eq.s32.totalorder %s52, 0
      %p165 = por %p163, %p164
      %p166 = scmp.ne.s32.totalorder %s152, %s153
      %p167 = scmp.eq.s32.totalorder %s53, 3
      %p168 = por %p166, %p167
      %p170 = scmp.ne.s32.totalorder %s153, %s169
      %p171 = scmp.eq.s32.totalorder %s53, 0
      %p172 = por %p170, %p171
      %s173 = ssub.s32 %s54, %s66
      %p174 = scmp.eq.s32.totalorder %s173, 0
      %s176 = sadd.s32 %s175, 1
      %s177 = scalar_select %p174, %s175, %s176
      %p180 = pneg %p174
      %p181 = scmp.eq.s32.totalorder %s47, 3
      %p182 = por %p180, %p181
      %p183 = scmp.ne.s32.totalorder %s175, %s178
      %p184 = scmp.eq.s32.totalorder %s47, 0
      %p185 = por %p183, %p184
      %p186 = scmp.ne.s32.totalorder %s175, %s178
      %p187 = scmp.eq.s32.totalorder %s52, 3
      %p188 = por %p186, %p187
      %p189 = scmp.ne.s32.totalorder %s178, %s179
      %p190 = scmp.eq.s32.totalorder %s52, 0
      %p191 = por %p189, %p190
      %p192 = scmp.ne.s32.totalorder %s178, %s179
      %p193 = scmp.eq.s32.totalorder %s53, 3
      %p194 = por %p192, %p193
      %p196 = scmp.ne.s32.totalorder %s179, %s195
      %p197 = scmp.eq.s32.totalorder %s53, 0
      %p198 = por %p196, %p197
      %s200 = sadd.s32 %s199, 1
      %p203 = scmp.eq.s32.totalorder %s47, 3
      %p204 = scmp.ne.s32.totalorder %s199, %s201
      %p205 = scmp.eq.s32.totalorder %s47, 0
      %p206 = por %p204, %p205
      %p207 = scmp.ne.s32.totalorder %s199, %s201
      %p208 = scmp.eq.s32.totalorder %s52, 3
      %p209 = por %p207, %p208
      %p210 = scmp.ne.s32.totalorder %s201, %s202
      %p211 = scmp.eq.s32.totalorder %s52, 0
      %p212 = por %p210, %p211
      %p213 = scmp.ne.s32.totalorder %s201, %s202
      %p214 = scmp.eq.s32.totalorder %s53, 3
      %p215 = por %p213, %p214
      %p217 = scmp.ne.s32.totalorder %s202, %s216
      %p218 = scmp.eq.s32.totalorder %s53, 0
      %p219 = por %p217, %p218
      %s221 = sadd.s32 %s220, 1
      %p224 = scmp.eq.s32.totalorder %s47, 3
      %p225 = scmp.ne.s32.totalorder %s220, %s222
      %p226 = scmp.eq.s32.totalorder %s47, 0
      %p227 = por %p225, %p226
      %p228 = scmp.ne.s32.totalorder %s220, %s222
      %p229 = scmp.eq.s32.totalorder %s52, 3
      %p230 = por %p228, %p229
      %p231 = scmp.ne.s32.totalorder %s222, %s223
      %p232 = scmp.eq.s32.totalorder %s52, 0
      %p233 = por %p231, %p232
      %p234 = scmp.ne.s32.totalorder %s222, %s223
      %p235 = scmp.eq.s32.totalorder %s53, 3
      %p236 = por %p234, %p235
      %p238 = scmp.ne.s32.totalorder %s223, %s237
      %p239 = scmp.eq.s32.totalorder %s53, 0
      %p240 = por %p238, %p239
      %s242 = sadd.s32 %s241, 1
      %p245 = scmp.eq.s32.totalorder %s47, 3
      %p246 = scmp.ne.s32.totalorder %s241, %s243
      %p247 = scmp.eq.s32.totalorder %s47, 0
      %p248 = por %p246, %p247
      %p249 = scmp.ne.s32.totalorder %s241, %s243
      %p250 = scmp.eq.s32.totalorder %s52, 3
      %p251 = por %p249, %p250
      %p252 = scmp.ne.s32.totalorder %s243, %s244
      %p253 = scmp.eq.s32.totalorder %s52, 0
      %p254 = por %p252, %p253
      %p255 = scmp.ne.s32.totalorder %s243, %s244
      %p256 = scmp.eq.s32.totalorder %s53, 3
      %p257 = por %p255, %p256
      %p259 = scmp.ne.s32.totalorder %s244, %s258
      %p260 = scmp.eq.s32.totalorder %s53, 0
      %p261 = por %p259, %p260
      %s263 = sadd.s32 %s262, 1
      %p266 = scmp.eq.s32.totalorder %s47, 3
      %p267 = scmp.ne.s32.totalorder %s262, %s264
      %p268 = scmp.eq.s32.totalorder %s47, 0
      %p269 = por %p267, %p268
      %p270 = scmp.ne.s32.totalorder %s262, %s264
      %p271 = scmp.eq.s32.totalorder %s52, 3
      %p272 = por %p270, %p271
      %p273 = scmp.ne.s32.totalorder %s264, %s265
      %p274 = scmp.eq.s32.totalorder %s52, 0
      %p275 = por %p273, %p274
      %p276 = scmp.ne.s32.totalorder %s264, %s265
      %p277 = scmp.eq.s32.totalorder %s53, 3
      %p278 = por %p276, %p277
      %p280 = scmp.ne.s32.totalorder %s265, %s279
      %p281 = scmp.eq.s32.totalorder %s53, 0
      %p282 = por %p280, %p281
      %s284 = sadd.s32 %s283, 1
      %p287 = scmp.eq.s32.totalorder %s47, 3
      %p288 = scmp.ne.s32.totalorder %s283, %s285
      %p289 = scmp.eq.s32.totalorder %s47, 0
      %p290 = por %p288, %p289
      %p291 = scmp.ne.s32.totalorder %s283, %s285
      %p292 = scmp.eq.s32.totalorder %s52, 3
      %p293 = por %p291, %p292
      %p294 = scmp.ne.s32.totalorder %s285, %s286
      %p295 = scmp.eq.s32.totalorder %s52, 0
      %p296 = por %p294, %p295
      %p297 = scmp.ne.s32.totalorder %s285, %s286
      %p298 = scmp.eq.s32.totalorder %s53, 3
      %p299 = por %p297, %p298
      %p301 = scmp.ne.s32.totalorder %s286, %s300
      %p302 = scmp.eq.s32.totalorder %s53, 0
      %p303 = por %p301, %p302
      %s305 = sadd.s32 %s304, 1
      %p308 = scmp.eq.s32.totalorder %s47, 3
      %p309 = scmp.ne.s32.totalorder %s304, %s306
      %p310 = scmp.eq.s32.totalorder %s47, 0
      %p311 = por %p309, %p310
      %p312 = scmp.ne.s32.totalorder %s304, %s306
      %p313 = scmp.eq.s32.totalorder %s52, 3
      %p314 = por %p312, %p313
      %p315 = scmp.ne.s32.totalorder %s306, %s307
      %p316 = scmp.eq.s32.totalorder %s52, 0
      %p317 = por %p315, %p316
      %p318 = scmp.ne.s32.totalorder %s306, %s307
      %p319 = scmp.eq.s32.totalorder %s53, 3
      %p320 = por %p318, %p319
      %p322 = scmp.ne.s32.totalorder %s307, %s321
      %p323 = scmp.eq.s32.totalorder %s53, 0
      %p324 = por %p322, %p323
      %s326 = sadd.s32 %s325, 1
      %p329 = scmp.eq.s32.totalorder %s47, 3
      %p330 = scmp.ne.s32.totalorder %s325, %s327
      %p331 = scmp.eq.s32.totalorder %s47, 0
      %p332 = por %p330, %p331
      %p333 = scmp.ne.s32.totalorder %s325, %s327
      %p334 = scmp.eq.s32.totalorder %s52, 3
      %p335 = por %p333, %p334
      %p336 = scmp.ne.s32.totalorder %s327, %s328
      %p337 = scmp.eq.s32.totalorder %s52, 0
      %p338 = por %p336, %p337
      %p339 = scmp.ne.s32.totalorder %s327, %s328
      %p340 = scmp.eq.s32.totalorder %s53, 3
      %p341 = por %p339, %p340
      %p343 = scmp.ne.s32.totalorder %s328, %s342
      %p344 = scmp.eq.s32.totalorder %s53, 0
      %p345 = por %p343, %p344
      %s347 = sadd.s32 %s346, 1
      %p350 = scmp.eq.s32.totalorder %s47, 3
      %p351 = scmp.ne.s32.totalorder %s346, %s348
      %p352 = scmp.eq.s32.totalorder %s47, 0
      %p353 = por %p351, %p352
      %p354 = scmp.ne.s32.totalorder %s346, %s348
      %p355 = scmp.eq.s32.totalorder %s52, 3
      %p356 = por %p354, %p355
      %p357 = scmp.ne.s32.totalorder %s348, %s349
      %p358 = scmp.eq.s32.totalorder %s52, 0
      %p359 = por %p357, %p358
      %p360 = scmp.ne.s32.totalorder %s348, %s349
      %p361 = scmp.eq.s32.totalorder %s53, 3
      %p362 = por %p360, %p361
      %p364 = scmp.ne.s32.totalorder %s349, %s363
      %p365 = scmp.eq.s32.totalorder %s53, 0
      %p366 = por %p364, %p365
      %s368 = sadd.s32 %s367, 1
      %p371 = scmp.eq.s32.totalorder %s47, 3
      %p372 = scmp.ne.s32.totalorder %s367, %s369
      %p373 = scmp.eq.s32.totalorder %s47, 0
      %p374 = por %p372, %p373
      %p375 = scmp.ne.s32.totalorder %s367, %s369
      %p376 = scmp.eq.s32.totalorder %s52, 3
      %p377 = por %p375, %p376
      %p378 = scmp.ne.s32.totalorder %s369, %s370
      %p379 = scmp.eq.s32.totalorder %s52, 0
      %p380 = por %p378, %p379
      %p381 = scmp.ne.s32.totalorder %s369, %s370
      %p382 = scmp.eq.s32.totalorder %s53, 3
      %p383 = por %p381, %p382
      %p385 = scmp.ne.s32.totalorder %s370, %s384
      %p386 = scmp.eq.s32.totalorder %s53, 0
      %p387 = por %p385, %p386
      %s389 = sadd.s32 %s388, 1
      %p392 = scmp.eq.s32.totalorder %s47, 3
      %p393 = scmp.ne.s32.totalorder %s388, %s390
      %p394 = scmp.eq.s32.totalorder %s47, 0
      %p395 = por %p393, %p394
      %p396 = scmp.ne.s32.totalorder %s388, %s390
      %p397 = scmp.eq.s32.totalorder %s52, 3
      %p398 = por %p396, %p397
      %p399 = scmp.ne.s32.totalorder %s390, %s391
      %p400 = scmp.eq.s32.totalorder %s52, 0
      %p401 = por %p399, %p400
      %p402 = scmp.ne.s32.totalorder %s390, %s391
      %p403 = scmp.eq.s32.totalorder %s53, 3
      %p404 = por %p402, %p403
      %p406 = scmp.ne.s32.totalorder %s391, %s405
      %p407 = scmp.eq.s32.totalorder %s53, 0
      %p408 = por %p406, %p407
      %s410 = sadd.s32 %s409, 1
      %p413 = scmp.eq.s32.totalorder %s47, 3
      %p414 = scmp.ne.s32.totalorder %s409, %s411
      %p415 = scmp.eq.s32.totalorder %s47, 0
      %p416 = por %p414, %p415
      %p417 = scmp.ne.s32.totalorder %s409, %s411
      %p418 = scmp.eq.s32.totalorder %s52, 3
      %p419 = por %p417, %p418
      %p420 = scmp.ne.s32.totalorder %s411, %s412
      %p421 = scmp.eq.s32.totalorder %s52, 0
      %p422 = por %p420, %p421
      %p423 = scmp.ne.s32.totalorder %s411, %s412
      %p424 = scmp.eq.s32.totalorder %s53, 3
      %p425 = por %p423, %p424
      %p427 = scmp.ne.s32.totalorder %s412, %s426
      %p428 = scmp.eq.s32.totalorder %s53, 0
      %p429 = por %p427, %p428
      %s431 = sadd.s32 %s430, 1
      %p434 = scmp.eq.s32.totalorder %s47, 3
      %p435 = scmp.ne.s32.totalorder %s430, %s432
      %p436 = scmp.eq.s32.totalorder %s47, 0
      %p437 = por %p435, %p436
      %p438 = scmp.ne.s32.totalorder %s430, %s432
      %p439 = scmp.eq.s32.totalorder %s52, 3
      %p440 = por %p438, %p439
      %p441 = scmp.ne.s32.totalorder %s432, %s433
      %p442 = scmp.eq.s32.totalorder %s52, 0
      %p443 = por %p441, %p442
      %p444 = scmp.ne.s32.totalorder %s432, %s433
      %p445 = scmp.eq.s32.totalorder %s53, 3
      %p446 = por %p444, %p445
      %p448 = scmp.ne.s32.totalorder %s433, %s447
      %p449 = scmp.eq.s32.totalorder %s53, 0
      %p450 = por %p448, %p449
      %s452 = sadd.s32 %s451, 1
      %p455 = scmp.eq.s32.totalorder %s47, 3
      %p456 = scmp.ne.s32.totalorder %s451, %s453
      %p457 = scmp.eq.s32.totalorder %s47, 0
      %p458 = por %p456, %p457
      %p459 = scmp.ne.s32.totalorder %s451, %s453
      %p460 = scmp.eq.s32.totalorder %s52, 3
      %p461 = por %p459, %p460
      %p462 = scmp.ne.s32.totalorder %s453, %s454
      %p463 = scmp.eq.s32.totalorder %s52, 0
      %p464 = por %p462, %p463
      %p465 = scmp.ne.s32.totalorder %s453, %s454
      %p466 = scmp.eq.s32.totalorder %s53, 3
      %p467 = por %p465, %p466
      %p469 = scmp.ne.s32.totalorder %s454, %s468
      %p470 = scmp.eq.s32.totalorder %s53, 0
      %p471 = por %p469, %p470
      %s473 = sadd.s32 %s472, 1
      %p476 = scmp.eq.s32.totalorder %s47, 3
      %p477 = scmp.ne.s32.totalorder %s472, %s474
      %p478 = scmp.eq.s32.totalorder %s47, 0
      %p479 = por %p477, %p478
      %p480 = scmp.ne.s32.totalorder %s472, %s474
      %p481 = scmp.eq.s32.totalorder %s52, 3
      %p482 = por %p480, %p481
      %p483 = scmp.ne.s32.totalorder %s474, %s475
      %p484 = scmp.eq.s32.totalorder %s52, 0
      %p485 = por %p483, %p484
      %p486 = scmp.ne.s32.totalorder %s474, %s475
      %p487 = scmp.eq.s32.totalorder %s53, 3
      %p488 = por %p486, %p487
      %p490 = scmp.ne.s32.totalorder %s475, %s489
      %p491 = scmp.eq.s32.totalorder %s53, 0
      %p492 = por %p490, %p491
      %s494 = sadd.s32 %s493, 1
      %p497 = scmp.eq.s32.totalorder %s47, 3
      %p498 = scmp.ne.s32.totalorder %s493, %s495
      %p499 = scmp.eq.s32.totalorder %s47, 0
      %p500 = por %p498, %p499
      %p501 = scmp.ne.s32.totalorder %s493, %s495
      %p502 = scmp.eq.s32.totalorder %s52, 3
      %p503 = por %p501, %p502
      %p504 = scmp.ne.s32.totalorder %s495, %s496
      %p505 = scmp.eq.s32.totalorder %s52, 0
      %p506 = por %p504, %p505
      %p507 = scmp.ne.s32.totalorder %s495, %s496
      %p508 = scmp.eq.s32.totalorder %s53, 3
      %p509 = por %p507, %p508
      %p511 = scmp.ne.s32.totalorder %s496, %s510
      %p512 = scmp.eq.s32.totalorder %s53, 0
      %p513 = por %p511, %p512
      %s515 = sadd.s32 %s514, 1
      %p518 = scmp.eq.s32.totalorder %s47, 3
      %p519 = scmp.ne.s32.totalorder %s514, %s516
      %p520 = scmp.eq.s32.totalorder %s47, 0
      %p521 = por %p519, %p520
      %p522 = scmp.ne.s32.totalorder %s514, %s516
      %p523 = scmp.eq.s32.totalorder %s52, 3
      %p524 = por %p522, %p523
      %p525 = scmp.ne.s32.totalorder %s516, %s517
      %p526 = scmp.eq.s32.totalorder %s52, 0
      %p527 = por %p525, %p526
      %p528 = scmp.ne.s32.totalorder %s516, %s517
      %p529 = scmp.eq.s32.totalorder %s53, 3
      %p530 = por %p528, %p529
      %p532 = scmp.ne.s32.totalorder %s517, %s531
      %p533 = scmp.eq.s32.totalorder %s53, 0
      %p534 = por %p532, %p533
      %s535 = ssub.s32 %s54, %s66
      %s536 = ssub.s32 %s55, %s62
      %s537 = sor.u32 %s535, %s536
      %p538 = scmp.eq.s32.totalorder %s537, 0
      %s540 = sadd.s32 %s539, 1
      %s541 = scalar_select %p538, %s539, %s540
      %p544 = pneg %p538
      %p545 = scmp.eq.s32.totalorder %s47, 3
      %p546 = por %p544, %p545
      %p547 = scmp.ne.s32.totalorder %s539, %s542
      %p548 = scmp.eq.s32.totalorder %s47, 0
      %p549 = por %p547, %p548
      %p550 = scmp.ne.s32.totalorder %s539, %s542
      %p551 = scmp.eq.s32.totalorder %s52, 3
      %p552 = por %p550, %p551
      %p553 = scmp.ne.s32.totalorder %s542, %s543
      %p554 = scmp.eq.s32.totalorder %s52, 0
      %p555 = por %p553, %p554
      %p556 = scmp.ne.s32.totalorder %s542, %s543
      %p557 = scmp.eq.s32.totalorder %s53, 3
      %p558 = por %p556, %p557
      %p560 = scmp.ne.s32.totalorder %s543, %s559
      %p561 = scmp.eq.s32.totalorder %s53, 0
      %p562 = por %p560, %p561
      %p563 = scmp.le.s32.totalorder 1, %s47
      %p564 = scmp.lt.s32.totalorder %s47, 5
      %p565 = pnand %p563, %p564
      %p566 = pneg %p565
      // Predicated region
      $region9: #{tpu_custom_call.1} parent=5 // pred_check
        _
      $region10: #{tpu_custom_call.1} parent=5 // pred_check_branch
        %568 = sbr.rel (%p565) target = $region12
      $region11: #{tpu_custom_call.1} parent=5 // pred_region
        %s569 = ssub.s32 %s47, 1
        // Predicated region
        $region13: #{tpu_custom_call.1} parent=11 // pred_check
          %p570 = pneg %p212
        $region14: #{tpu_custom_call.1} parent=11 // pred_check_branch
          %572 = sbr.rel (%p570) target = $region16
        $region15: #{tpu_custom_call.1} parent=11 // pred_region
          %s574 = ssub.s32 16, 16
          %575 = vsyncadd [#allocation12], %s574
          %s577 = sshll.u32 [#allocation11], 4
          %s578 = int_to_ptr.vmem [resolvable:$true] %s577
          %580 = dma.hbm_to_vmem [thread:$0]  %s5, 16, %s578, [#allocation12]
        $region16: #{tpu_custom_call.1} parent=11 // pred_fallthru
          _
        // Predicated region
        $region17: #{tpu_custom_call.1} parent=11 // pred_check
          %p581 = pneg %p233
        $region18: #{tpu_custom_call.1} parent=11 // pred_check_branch
          %583 = sbr.rel (%p581) target = $region20
        $region19: #{tpu_custom_call.1} parent=11 // pred_region
          %s585 = ssub.s32 16, 16
          %586 = vsyncadd [#allocation12], %s585
          %s588 = sshll.u32 [#allocation13], 4
          %s589 = int_to_ptr.vmem [resolvable:$true] %s588
          %591 = dma.hbm_to_vmem [thread:$0]  %s6, 16, %s589, [#allocation12]
        $region20: #{tpu_custom_call.1} parent=11 // pred_fallthru
          _
        // Predicated region
        $region21: #{tpu_custom_call.1} parent=11 // pred_check
          %p592 = pneg %p254
        $region22: #{tpu_custom_call.1} parent=11 // pred_check_branch
          %594 = sbr.rel (%p592) target = $region24
        $region23: #{tpu_custom_call.1} parent=11 // pred_region
          %s596 = ssub.s32 1024, 1024
          %597 = vsyncadd [#allocation15], %s596
          %s598 = sshll.u32 [#allocation14], 4
          %s599 = int_to_ptr.vmem [resolvable:$true] %s598
          %604 = dma.hbm_to_vmem [thread:$0]  %s7, 1024, %s599, [#allocation15], 128, 128, 8
        $region24: #{tpu_custom_call.1} parent=11 // pred_fallthru
          _
        // Predicated region
        $region25: #{tpu_custom_call.1} parent=11 // pred_check
          %p605 = pneg %p275
        $region26: #{tpu_custom_call.1} parent=11 // pred_check_branch
          %607 = sbr.rel (%p605) target = $region28
        $region27: #{tpu_custom_call.1} parent=11 // pred_region
          %s609 = ssub.s32 512, 512
          %610 = vsyncadd [#allocation15], %s609
          %s611 = sshll.u32 [#allocation16], 4
          %s612 = int_to_ptr.vmem [resolvable:$true] %s611
          %617 = dma.hbm_to_vmem [thread:$0]  %s8, 512, %s612, [#allocation15], 128, 128, 8
        $region28: #{tpu_custom_call.1} parent=11 // pred_fallthru
          _
        // Predicated region
        $region29: #{tpu_custom_call.1} parent=11 // pred_check
          %p618 = pneg %p296
        $region30: #{tpu_custom_call.1} parent=11 // pred_check_branch
          %620 = sbr.rel (%p618) target = $region32
        $region31: #{tpu_custom_call.1} parent=11 // pred_region
          %s622 = ssub.s32 16, 16
          %623 = vsyncadd [#allocation18], %s622
          %s625 = sshll.u32 [#allocation17], 4
          %s626 = int_to_ptr.vmem [resolvable:$true] %s625
          %628 = dma.hbm_to_vmem [thread:$0]  %s9, 16, %s626, [#allocation18]
        $region32: #{tpu_custom_call.1} parent=11 // pred_fallthru
          _
        // Predicated region
        $region33: #{tpu_custom_call.1} parent=11 // pred_check
          %p629 = pneg %p317
        $region34: #{tpu_custom_call.1} parent=11 // pred_check_branch
          %631 = sbr.rel (%p629) target = $region36
        $region35: #{tpu_custom_call.1} parent=11 // pred_region
          %s633 = ssub.s32 16, 16
          %634 = vsyncadd [#allocation18], %s633
          %s636 = sshll.u32 [#allocation19], 4
          %s637 = int_to_ptr.vmem [resolvable:$true] %s636
          %639 = dma.hbm_to_vmem [thread:$0]  %s10, 16, %s637, [#allocation18]
        $region36: #{tpu_custom_call.1} parent=11 // pred_fallthru
          _
        // Predicated region
        $region37: #{tpu_custom_call.1} parent=11 // pred_check
          %p640 = pneg %p338
        $region38: #{tpu_custom_call.1} parent=11 // pred_check_branch
          %642 = sbr.rel (%p640) target = $region40
        $region39: #{tpu_custom_call.1} parent=11 // pred_region
          %s644 = ssub.s32 16, 16
          %645 = vsyncadd [#allocation21], %s644
          %s647 = sshll.u32 [#allocation20], 4
          %s648 = int_to_ptr.vmem [resolvable:$true] %s647
          %650 = dma.hbm_to_vmem [thread:$0]  %s11, 16, %s648, [#allocation21]
        $region40: #{tpu_custom_call.1} parent=11 // pred_fallthru
          _
        // Predicated region
        $region41: #{tpu_custom_call.1} parent=11 // pred_check
          %p651 = pneg %p359
        $region42: #{tpu_custom_call.1} parent=11 // pred_check_branch
          %653 = sbr.rel (%p651) target = $region44
        $region43: #{tpu_custom_call.1} parent=11 // pred_region
          %s655 = ssub.s32 1024, 1024
          %656 = vsyncadd [#allocation21], %s655
          %s657 = sshll.u32 [#allocation22], 4
          %s658 = int_to_ptr.vmem [resolvable:$true] %s657
          %663 = dma.hbm_to_vmem [thread:$0]  %s12, 1024, %s658, [#allocation21], 128, 128, 8
        $region44: #{tpu_custom_call.1} parent=11 // pred_fallthru
          _
        // Predicated region
        $region45: #{tpu_custom_call.1} parent=11 // pred_check
          %p664 = pneg %p380
        $region46: #{tpu_custom_call.1} parent=11 // pred_check_branch
          %666 = sbr.rel (%p664) target = $region48
        $region47: #{tpu_custom_call.1} parent=11 // pred_region
          %s668 = ssub.s32 512, 512
          %669 = vsyncadd [#allocation24], %s668
          %s670 = sshll.u32 [#allocation23], 4
          %s671 = int_to_ptr.vmem [resolvable:$true] %s670
          %676 = dma.hbm_to_vmem [thread:$0]  %s13, 512, %s671, [#allocation24], 128, 128, 8
        $region48: #{tpu_custom_call.1} parent=11 // pred_fallthru
          _
        // Predicated region
        $region49: #{tpu_custom_call.1} parent=11 // pred_check
          %p677 = pneg %p401
        $region50: #{tpu_custom_call.1} parent=11 // pred_check_branch
          %679 = sbr.rel (%p677) target = $region52
        $region51: #{tpu_custom_call.1} parent=11 // pred_region
          %s681 = ssub.s32 16, 16
          %682 = vsyncadd [#allocation24], %s681
          %s684 = sshll.u32 [#allocation25], 4
          %s685 = int_to_ptr.vmem [resolvable:$true] %s684
          %687 = dma.hbm_to_vmem [thread:$0]  %s14, 16, %s685, [#allocation24]
        $region52: #{tpu_custom_call.1} parent=11 // pred_fallthru
          _
        // Predicated region
        $region53: #{tpu_custom_call.1} parent=11 // pred_check
          %p688 = pneg %p422
        $region54: #{tpu_custom_call.1} parent=11 // pred_check_branch
          %690 = sbr.rel (%p688) target = $region56
        $region55: #{tpu_custom_call.1} parent=11 // pred_region
          %s692 = ssub.s32 16, 16
          %693 = vsyncadd [#allocation27], %s692
          %s695 = sshll.u32 [#allocation26], 4
          %s696 = int_to_ptr.vmem [resolvable:$true] %s695
          %698 = dma.hbm_to_vmem [thread:$0]  %s15, 16, %s696, [#allocation27]
        $region56: #{tpu_custom_call.1} parent=11 // pred_fallthru
          _
        // Predicated region
        $region57: #{tpu_custom_call.1} parent=11 // pred_check
          %p699 = pneg %p443
        $region58: #{tpu_custom_call.1} parent=11 // pred_check_branch
          %701 = sbr.rel (%p699) target = $region60
        $region59: #{tpu_custom_call.1} parent=11 // pred_region
          %s703 = ssub.s32 16, 16
          %704 = vsyncadd [#allocation27], %s703
          %s706 = sshll.u32 [#allocation28], 4
          %s707 = int_to_ptr.vmem [resolvable:$true] %s706
          %709 = dma.hbm_to_vmem [thread:$0]  %s16, 16, %s707, [#allocation27]
        $region60: #{tpu_custom_call.1} parent=11 // pred_fallthru
          _
        // Predicated region
        $region61: #{tpu_custom_call.1} parent=11 // pred_check
          %p710 = pneg %p464
        $region62: #{tpu_custom_call.1} parent=11 // pred_check_branch
          %712 = sbr.rel (%p710) target = $region64
        $region63: #{tpu_custom_call.1} parent=11 // pred_region
          %s714 = ssub.s32 512, 512
          %715 = vsyncadd [#allocation30], %s714
          %s716 = sshll.u32 [#allocation29], 4
          %s717 = int_to_ptr.vmem [resolvable:$true] %s716
          %722 = dma.hbm_to_vmem [thread:$0]  %s17, 512, %s717, [#allocation30], 128, 128, 8
        $region64: #{tpu_custom_call.1} parent=11 // pred_fallthru
          _
        // Predicated region
        $region65: #{tpu_custom_call.1} parent=11 // pred_check
          %p723 = pneg %p485
        $region66: #{tpu_custom_call.1} parent=11 // pred_check_branch
          %725 = sbr.rel (%p723) target = $region68
        $region67: #{tpu_custom_call.1} parent=11 // pred_region
          %s727 = ssub.s32 16, 16
          %728 = vsyncadd [#allocation30], %s727
          %s730 = sshll.u32 [#allocation31], 4
          %s731 = int_to_ptr.vmem [resolvable:$true] %s730
          %733 = dma.hbm_to_vmem [thread:$0]  %s18, 16, %s731, [#allocation30]
        $region68: #{tpu_custom_call.1} parent=11 // pred_fallthru
          _
        // Predicated region
        $region69: #{tpu_custom_call.1} parent=11 // pred_check
          %p734 = pneg %p506
        $region70: #{tpu_custom_call.1} parent=11 // pred_check_branch
          %736 = sbr.rel (%p734) target = $region72
        $region71: #{tpu_custom_call.1} parent=11 // pred_region
          %s738 = ssub.s32 2048, 2048
          %739 = vsyncadd [#allocation33], %s738
          %s740 = sshll.u32 [#allocation32], 4
          %s741 = int_to_ptr.vmem [resolvable:$true] %s740
          %746 = dma.hbm_to_vmem [thread:$0]  %s19, 2048, %s741, [#allocation33], 128, 128, 8
        $region72: #{tpu_custom_call.1} parent=11 // pred_fallthru
          _
        // Predicated region
        $region73: #{tpu_custom_call.1} parent=11 // pred_check
          %p747 = pneg %p527
        $region74: #{tpu_custom_call.1} parent=11 // pred_check_branch
          %749 = sbr.rel (%p747) target = $region76
        $region75: #{tpu_custom_call.1} parent=11 // pred_region
          %s751 = ssub.s32 16, 16
          %752 = vsyncadd [#allocation33], %s751
          %s754 = sshll.u32 [#allocation34], 4
          %s755 = int_to_ptr.vmem [resolvable:$true] %s754
          %757 = dma.hbm_to_vmem [thread:$0]  %s20, 16, %s755, [#allocation33]
        $region76: #{tpu_custom_call.1} parent=11 // pred_fallthru
          _
      $region12: #{tpu_custom_call.1} parent=5 // pred_fallthru
        _
      %p758 = scmp.lt.s32.totalorder %s47, 4
      // Predicated region
      $region77: #{tpu_custom_call.1} parent=5 // pred_check
        %p759 = pneg %p758
      $region78: #{tpu_custom_call.1} parent=5 // pred_check_branch
        %761 = sbr.rel (%p759) target = $region80
      $region79: #{tpu_custom_call.1} parent=5 // pred_region
        // Predicated region
        $region81: #{tpu_custom_call.1} parent=79 // pred_check
          %p762 = pneg %p81
        $region82: #{tpu_custom_call.1} parent=79 // pred_check_branch
          %764 = sbr.rel (%p762) target = $region84
        $region83: #{tpu_custom_call.1} parent=79 // pred_region
          %s765 = sand.u32 %s71, 1
          %s766 = scalar_lea.sflag [#allocation3], %s765
          %s767 = sand.u32 %s71, 1
          %s768 = smul.addr %s767, 8
          %s769 = scalar_lea.vmem [#allocation2], %s768
          %s771 = ssub.s32 128, 128
          %772 = vsyncadd %s766, %s771
          %s773 = smul.addr %s54, 2
          %s774 = sadd.s32 %s55, %s773
          %s775 = smul.addr %s774, 128
          %s776 = scalar_lea.hbm %s0, %s775
          %s778 = sshll.u32 %s769, 4
          %s779 = int_to_ptr.vmem [resolvable:$true] %s778
          %781 = dma.hbm_to_vmem [thread:$0]  %s776, 128, %s779, %s766
        $region84: #{tpu_custom_call.1} parent=79 // pred_fallthru
          _
        // Predicated region
        $region85: #{tpu_custom_call.1} parent=79 // pred_check
          %p782 = pneg %p107
        $region86: #{tpu_custom_call.1} parent=79 // pred_check_branch
          %784 = sbr.rel (%p782) target = $region88
        $region87: #{tpu_custom_call.1} parent=79 // pred_region
          %s785 = sand.u32 %s47, 1
          %s786 = scalar_lea.sflag [#allocation6], %s785
          %s787 = sand.u32 %s97, 1
          %s788 = smul.addr %s787, 32
          %s789 = scalar_lea.vmem [#allocation5], %s788
          %s791 = ssub.s32 512, 512
          %792 = vsyncadd %s786, %s791
          %s793 = smul.addr %s54, 4
          %s794 = smul.addr %s793, 128
          %s795 = scalar_lea.hbm %s1, %s794
          %s796 = sshll.u32 %s789, 4
          %s797 = int_to_ptr.vmem [resolvable:$true] %s796
          %802 = dma.hbm_to_vmem [thread:$0]  %s795, 512, %s797, %s786, 128, 128, 8
        $region88: #{tpu_custom_call.1} parent=79 // pred_fallthru
          _
        // Predicated region
        $region89: #{tpu_custom_call.1} parent=79 // pred_check
          %p803 = pneg %p133
        $region90: #{tpu_custom_call.1} parent=79 // pred_check_branch
          %805 = sbr.rel (%p803) target = $region92
        $region91: #{tpu_custom_call.1} parent=79 // pred_region
          %s806 = sand.u32 %s47, 1
          %s807 = scalar_lea.sflag [#allocation6], %s806
          %s808 = sand.u32 %s123, 1
          %s809 = smul.addr %s808, 32
          %s810 = scalar_lea.vmem [#allocation7], %s809
          %s812 = ssub.s32 512, 512
          %813 = vsyncadd %s807, %s812
          %s814 = smul.addr %s54, 4
          %s815 = smul.addr %s814, 128
          %s816 = scalar_lea.hbm %s2, %s815
          %s817 = sshll.u32 %s810, 4
          %s818 = int_to_ptr.vmem [resolvable:$true] %s817
          %823 = dma.hbm_to_vmem [thread:$0]  %s816, 512, %s818, %s807, 128, 128, 8
        $region92: #{tpu_custom_call.1} parent=79 // pred_fallthru
          _
        // Predicated region
        $region93: #{tpu_custom_call.1} parent=79 // pred_check
          %p824 = pneg %p159
        $region94: #{tpu_custom_call.1} parent=79 // pred_check_branch
          %826 = sbr.rel (%p824) target = $region96
        $region95: #{tpu_custom_call.1} parent=79 // pred_region
          %s827 = sand.u32 %s47, 1
          %s828 = scalar_lea.sflag [#allocation9], %s827
          %s829 = sand.u32 %s149, 1
          %s830 = smul.addr %s829, 32
          %s831 = scalar_lea.vmem [#allocation8], %s830
          %s833 = ssub.s32 512, 512
          %834 = vsyncadd %s828, %s833
          %s835 = smul.addr %s54, 4
          %s836 = smul.addr %s835, 128
          %s837 = scalar_lea.hbm %s3, %s836
          %s838 = sshll.u32 %s831, 4
          %s839 = int_to_ptr.vmem [resolvable:$true] %s838
          %844 = dma.hbm_to_vmem [thread:$0]  %s837, 512, %s839, %s828, 128, 128, 8
        $region96: #{tpu_custom_call.1} parent=79 // pred_fallthru
          _
        // Predicated region
        $region97: #{tpu_custom_call.1} parent=79 // pred_check
          %p845 = pneg %p185
        $region98: #{tpu_custom_call.1} parent=79 // pred_check_branch
          %847 = sbr.rel (%p845) target = $region100
        $region99: #{tpu_custom_call.1} parent=79 // pred_region
          %s848 = sand.u32 %s47, 1
          %s849 = scalar_lea.sflag [#allocation9], %s848
          %s850 = sand.u32 %s175, 1
          %s851 = smul.addr %s850, 256
          %s852 = scalar_lea.vmem [#allocation10], %s851
          %s854 = ssub.s32 4096, 4096
          %855 = vsyncadd %s849, %s854
          %s856 = smul.addr %s54, 32
          %s857 = smul.addr %s856, 128
          %s858 = scalar_lea.hbm %s4, %s857
          %s859 = sshll.u32 %s852, 4
          %s860 = int_to_ptr.vmem [resolvable:$true] %s859
          %865 = dma.hbm_to_vmem [thread:$0]  %s858, 4096, %s860, %s849, 128, 128, 8
        $region100: #{tpu_custom_call.1} parent=79 // pred_fallthru
          _
      $region80: #{tpu_custom_call.1} parent=5 // pred_fallthru
        _
      %p866 = scmp.le.s32.totalorder 1, %s47
      %p867 = scmp.lt.s32.totalorder %s47, 5
      %p868 = pnand %p866, %p867
      %p869 = pneg %p868
      // Predicated region
      $region101: #{tpu_custom_call.1} parent=5 // pred_check
        _
      $region102: #{tpu_custom_call.1} parent=5 // pred_check_branch
        %871 = sbr.rel (%p868) target = $region104
      $region103: #{tpu_custom_call.1} parent=5 // pred_region
        %s872 = ssub.s32 %s47, 1
        %s873 = sand.u32 %s74, 1
        %s874 = scalar_lea.sflag [#allocation3], %s873
        %s875 = sand.u32 %s74, 1
        %s876 = smul.addr %s875, 8
        %s877 = scalar_lea.vmem [#allocation2], %s876
        // Predicated region
        $region105: #{tpu_custom_call.1} parent=103 // pred_check
          %p878 = pneg %p87
        $region106: #{tpu_custom_call.1} parent=103 // pred_check_branch
          %880 = sbr.rel (%p878) target = $region108
        $region107: #{tpu_custom_call.1} parent=103 // pred_region
          %881 = dma.done %s874, 128
        $region108: #{tpu_custom_call.1} parent=103 // pred_fallthru
          _
        %s882 = sand.u32 %s52, 1
        %s883 = scalar_lea.sflag [#allocation6], %s882
        %s884 = sand.u32 %s100, 1
        %s885 = smul.addr %s884, 32
        %s886 = scalar_lea.vmem [#allocation5], %s885
        // Predicated region
        $region109: #{tpu_custom_call.1} parent=103 // pred_check
          %p887 = pneg %p113
        $region110: #{tpu_custom_call.1} parent=103 // pred_check_branch
          %889 = sbr.rel (%p887) target = $region112
        $region111: #{tpu_custom_call.1} parent=103 // pred_region
          %890 = dma.done %s883, 512
        $region112: #{tpu_custom_call.1} parent=103 // pred_fallthru
          _
        %s891 = sand.u32 %s52, 1
        %s892 = scalar_lea.sflag [#allocation6], %s891
        %s893 = sand.u32 %s126, 1
        %s894 = smul.addr %s893, 32
        %s895 = scalar_lea.vmem [#allocation7], %s894
        // Predicated region
        $region113: #{tpu_custom_call.1} parent=103 // pred_check
          %p896 = pneg %p139
        $region114: #{tpu_custom_call.1} parent=103 // pred_check_branch
          %898 = sbr.rel (%p896) target = $region116
        $region115: #{tpu_custom_call.1} parent=103 // pred_region
          %899 = dma.done %s892, 512
        $region116: #{tpu_custom_call.1} parent=103 // pred_fallthru
          _
        %s900 = sand.u32 %s52, 1
        %s901 = scalar_lea.sflag [#allocation9], %s900
        %s902 = sand.u32 %s152, 1
        %s903 = smul.addr %s902, 32
        %s904 = scalar_lea.vmem [#allocation8], %s903
        // Predicated region
        $region117: #{tpu_custom_call.1} parent=103 // pred_check
          %p905 = pneg %p165
        $region118: #{tpu_custom_call.1} parent=103 // pred_check_branch
          %907 = sbr.rel (%p905) target = $region120
        $region119: #{tpu_custom_call.1} parent=103 // pred_region
          %908 = dma.done %s901, 512
        $region120: #{tpu_custom_call.1} parent=103 // pred_fallthru
          _
        %s909 = sand.u32 %s52, 1
        %s910 = scalar_lea.sflag [#allocation9], %s909
        %s911 = sand.u32 %s178, 1
        %s912 = smul.addr %s911, 256
        %s913 = scalar_lea.vmem [#allocation10], %s912
        // Predicated region
        $region121: #{tpu_custom_call.1} parent=103 // pred_check
          %p914 = pneg %p191
        $region122: #{tpu_custom_call.1} parent=103 // pred_check_branch
          %916 = sbr.rel (%p914) target = $region124
        $region123: #{tpu_custom_call.1} parent=103 // pred_region
          %917 = dma.done %s910, 4096
        $region124: #{tpu_custom_call.1} parent=103 // pred_fallthru
          _
        // Predicated region
        $region125: #{tpu_custom_call.1} parent=103 // pred_check
          %p918 = pneg %p212
        $region126: #{tpu_custom_call.1} parent=103 // pred_check_branch
          %920 = sbr.rel (%p918) target = $region128
        $region127: #{tpu_custom_call.1} parent=103 // pred_region
          %921 = dma.done [#allocation12], 16
        $region128: #{tpu_custom_call.1} parent=103 // pred_fallthru
          _
        // Predicated region
        $region129: #{tpu_custom_call.1} parent=103 // pred_check
          %p922 = pneg %p233
        $region130: #{tpu_custom_call.1} parent=103 // pred_check_branch
          %924 = sbr.rel (%p922) target = $region132
        $region131: #{tpu_custom_call.1} parent=103 // pred_region
          %925 = dma.done [#allocation12], 16
        $region132: #{tpu_custom_call.1} parent=103 // pred_fallthru
          _
        // Predicated region
        $region133: #{tpu_custom_call.1} parent=103 // pred_check
          %p926 = pneg %p254
        $region134: #{tpu_custom_call.1} parent=103 // pred_check_branch
          %928 = sbr.rel (%p926) target = $region136
        $region135: #{tpu_custom_call.1} parent=103 // pred_region
          %929 = dma.done [#allocation15], 1024
        $region136: #{tpu_custom_call.1} parent=103 // pred_fallthru
          _
        // Predicated region
        $region137: #{tpu_custom_call.1} parent=103 // pred_check
          %p930 = pneg %p275
        $region138: #{tpu_custom_call.1} parent=103 // pred_check_branch
          %932 = sbr.rel (%p930) target = $region140
        $region139: #{tpu_custom_call.1} parent=103 // pred_region
          %933 = dma.done [#allocation15], 512
        $region140: #{tpu_custom_call.1} parent=103 // pred_fallthru
          _
        // Predicated region
        $region141: #{tpu_custom_call.1} parent=103 // pred_check
          %p934 = pneg %p296
        $region142: #{tpu_custom_call.1} parent=103 // pred_check_branch
          %936 = sbr.rel (%p934) target = $region144
        $region143: #{tpu_custom_call.1} parent=103 // pred_region
          %937 = dma.done [#allocation18], 16
        $region144: #{tpu_custom_call.1} parent=103 // pred_fallthru
          _
        // Predicated region
        $region145: #{tpu_custom_call.1} parent=103 // pred_check
          %p938 = pneg %p317
        $region146: #{tpu_custom_call.1} parent=103 // pred_check_branch
          %940 = sbr.rel (%p938) target = $region148
        $region147: #{tpu_custom_call.1} parent=103 // pred_region
          %941 = dma.done [#allocation18], 16
        $region148: #{tpu_custom_call.1} parent=103 // pred_fallthru
          _
        // Predicated region
        $region149: #{tpu_custom_call.1} parent=103 // pred_check
          %p942 = pneg %p338
        $region150: #{tpu_custom_call.1} parent=103 // pred_check_branch
          %944 = sbr.rel (%p942) target = $region152
        $region151: #{tpu_custom_call.1} parent=103 // pred_region
          %945 = dma.done [#allocation21], 16
        $region152: #{tpu_custom_call.1} parent=103 // pred_fallthru
          _
        // Predicated region
        $region153: #{tpu_custom_call.1} parent=103 // pred_check
          %p946 = pneg %p359
        $region154: #{tpu_custom_call.1} parent=103 // pred_check_branch
          %948 = sbr.rel (%p946) target = $region156
        $region155: #{tpu_custom_call.1} parent=103 // pred_region
          %949 = dma.done [#allocation21], 1024
        $region156: #{tpu_custom_call.1} parent=103 // pred_fallthru
          _
        // Predicated region
        $region157: #{tpu_custom_call.1} parent=103 // pred_check
          %p950 = pneg %p380
        $region158: #{tpu_custom_call.1} parent=103 // pred_check_branch
          %952 = sbr.rel (%p950) target = $region160
        $region159: #{tpu_custom_call.1} parent=103 // pred_region
          %953 = dma.done [#allocation24], 512
        $region160: #{tpu_custom_call.1} parent=103 // pred_fallthru
          _
        // Predicated region
        $region161: #{tpu_custom_call.1} parent=103 // pred_check
          %p954 = pneg %p401
        $region162: #{tpu_custom_call.1} parent=103 // pred_check_branch
          %956 = sbr.rel (%p954) target = $region164
        $region163: #{tpu_custom_call.1} parent=103 // pred_region
          %957 = dma.done [#allocation24], 16
        $region164: #{tpu_custom_call.1} parent=103 // pred_fallthru
          _
        // Predicated region
        $region165: #{tpu_custom_call.1} parent=103 // pred_check
          %p958 = pneg %p422
        $region166: #{tpu_custom_call.1} parent=103 // pred_check_branch
          %960 = sbr.rel (%p958) target = $region168
        $region167: #{tpu_custom_call.1} parent=103 // pred_region
          %961 = dma.done [#allocation27], 16
        $region168: #{tpu_custom_call.1} parent=103 // pred_fallthru
          _
        // Predicated region
        $region169: #{tpu_custom_call.1} parent=103 // pred_check
          %p962 = pneg %p443
        $region170: #{tpu_custom_call.1} parent=103 // pred_check_branch
          %964 = sbr.rel (%p962) target = $region172
        $region171: #{tpu_custom_call.1} parent=103 // pred_region
          %965 = dma.done [#allocation27], 16
        $region172: #{tpu_custom_call.1} parent=103 // pred_fallthru
          _
        // Predicated region
        $region173: #{tpu_custom_call.1} parent=103 // pred_check
          %p966 = pneg %p464
        $region174: #{tpu_custom_call.1} parent=103 // pred_check_branch
          %968 = sbr.rel (%p966) target = $region176
        $region175: #{tpu_custom_call.1} parent=103 // pred_region
          %969 = dma.done [#allocation30], 512
        $region176: #{tpu_custom_call.1} parent=103 // pred_fallthru
          _
        // Predicated region
        $region177: #{tpu_custom_call.1} parent=103 // pred_check
          %p970 = pneg %p485
        $region178: #{tpu_custom_call.1} parent=103 // pred_check_branch
          %972 = sbr.rel (%p970) target = $region180
        $region179: #{tpu_custom_call.1} parent=103 // pred_region
          %973 = dma.done [#allocation30], 16
        $region180: #{tpu_custom_call.1} parent=103 // pred_fallthru
          _
        // Predicated region
        $region181: #{tpu_custom_call.1} parent=103 // pred_check
          %p974 = pneg %p506
        $region182: #{tpu_custom_call.1} parent=103 // pred_check_branch
          %976 = sbr.rel (%p974) target = $region184
        $region183: #{tpu_custom_call.1} parent=103 // pred_region
          %977 = dma.done [#allocation33], 2048
        $region184: #{tpu_custom_call.1} parent=103 // pred_fallthru
          _
        // Predicated region
        $region185: #{tpu_custom_call.1} parent=103 // pred_check
          %p978 = pneg %p527
        $region186: #{tpu_custom_call.1} parent=103 // pred_check_branch
          %980 = sbr.rel (%p978) target = $region188
        $region187: #{tpu_custom_call.1} parent=103 // pred_region
          %981 = dma.done [#allocation33], 16
        $region188: #{tpu_custom_call.1} parent=103 // pred_fallthru
          _
        %s982 = sand.u32 %s74, 1
        %s983 = scalar_lea.sflag [#allocation3], %s982
        %s984 = sand.u32 %s74, 1
        %s985 = smul.addr %s984, 8
        %s986 = scalar_lea.vmem [#allocation2], %s985
        %p987 = pneg %p87
        %p988 = pneg %p84
        %s989 = sand.u32 %s52, 1
        %s990 = scalar_lea.sflag [#allocation6], %s989
        %s991 = sand.u32 %s100, 1
        %s992 = smul.addr %s991, 32
        %s993 = scalar_lea.vmem [#allocation5], %s992
        %p994 = pneg %p113
        %p995 = pneg %p110
        %s996 = sand.u32 %s52, 1
        %s997 = scalar_lea.sflag [#allocation6], %s996
        %s998 = sand.u32 %s126, 1
        %s999 = smul.addr %s998, 32
        %s1000 = scalar_lea.vmem [#allocation7], %s999
        %p1001 = pneg %p139
        %p1002 = pneg %p136
        %s1003 = sand.u32 %s52, 1
        %s1004 = scalar_lea.sflag [#allocation9], %s1003
        %s1005 = sand.u32 %s152, 1
        %s1006 = smul.addr %s1005, 32
        %s1007 = scalar_lea.vmem [#allocation8], %s1006
        %p1008 = pneg %p165
        %p1009 = pneg %p162
        %s1010 = sand.u32 %s52, 1
        %s1011 = scalar_lea.sflag [#allocation9], %s1010
        %s1012 = sand.u32 %s178, 1
        %s1013 = smul.addr %s1012, 256
        %s1014 = scalar_lea.vmem [#allocation10], %s1013
        %p1015 = pneg %p191
        %p1016 = pneg %p188
        %p1017 = pneg %p212
        %p1018 = pneg %p209
        %p1019 = pneg %p233
        %p1020 = pneg %p230
        %p1021 = pneg %p254
        %p1022 = pneg %p251
        %p1023 = pneg %p275
        %p1024 = pneg %p272
        %p1025 = pneg %p296
        %p1026 = pneg %p293
        %p1027 = pneg %p317
        %p1028 = pneg %p314
        %p1029 = pneg %p338
        %p1030 = pneg %p335
        %p1031 = pneg %p359
        %p1032 = pneg %p356
        %p1033 = pneg %p380
        %p1034 = pneg %p377
        %p1035 = pneg %p401
        %p1036 = pneg %p398
        %p1037 = pneg %p422
        %p1038 = pneg %p419
        %p1039 = pneg %p443
        %p1040 = pneg %p440
        %p1041 = pneg %p464
        %p1042 = pneg %p461
        %p1043 = pneg %p485
        %p1044 = pneg %p482
        %p1045 = pneg %p506
        %p1046 = pneg %p503
        %p1047 = pneg %p527
        %p1048 = pneg %p524
        %p1049 = pneg %p555
        %p1050 = pneg %p552
        %s1051 = sand.u32 %s542, 1
        %s1052 = scalar_lea.sflag [#allocation4], %s1051
        %s1053 = sand.u32 %s542, 1
        %s1054 = smul.addr %s1053, 8
        %s1055 = scalar_lea.vmem [#allocation35], %s1054
        %v1056 = vld [vmem:[%s877] sm:$0xff]
        %vm1057 = vcmask 261120
        %v1058 = vsel %vm1057, %v1056, 0.0
        %1059 = vadd.xlane.f32.xlu0 %v1058
        %v1060 = vpop.xlane.xlu0 %1059
        %v1061 = vrcp.pop 32.0
        %v1062 = vmul.f32 %v1060, %v1061
        %v1063 = vsub.f32 %v1056, %v1062
        %v1064 = vmul.f32 %v1063, %v1063
        %v1065 = vsel %vm1057, %v1064, 0.0
        %1066 = vadd.xlane.f32.xlu0 %v1065
        %v1067 = vpop.xlane.xlu0 %1066
        %v1068 = vmul.f32 %v1067, %v1061
        %v1069 = vadd.f32 %v1068, 1e-05
        %v1070 = vrsqrt.pop %v1069
        %v1071 = vmul.f32 %v1063, %v1070
        %v1072 = vld [vmem:[#allocation11] sm:$0x1]
        %v1074 = vlaneseq
        %v1075 = vshrl.u32 %v1074, 7
        %v1076 = vsub.s32 0, %v1075
        %v1077 = vrot.slane %v1072, %v1076
        %v1079 = vmul.f32 %v1071, %v1077
        %v1080 = vld [vmem:[#allocation13] sm:$0x1]
        %v1082 = vlaneseq
        %v1083 = vshrl.u32 %v1082, 7
        %v1084 = vsub.s32 0, %v1083
        %v1085 = vrot.slane %v1080, %v1084
        %v1087 = vadd.f32 %v1079, %v1085
        %v1088 = vld [vmem:[#allocation14] sm:$0xff]
        %v1089 = vld [vmem:[#allocation14 + $0x8] sm:$0xff]
        %v1090 = vld [vmem:[#allocation14 + $0x10] sm:$0xff]
        %v1091 = vld [vmem:[#allocation14 + $0x18] sm:$0xff]
        %v1093 = vsel %vm1057, %v1087, 0
        %1095 = vmatprep.subr.mxu0 0.0
        %1096 = vmatpush1.msra.mxu0 %v1088
        %1097 = vmatprep.subr.mxu0 0.0
        %1098 = vmatpush1.msra.mxu0 %v1089
        %1099 = vmatprep.subr.mxu0 0.0
        %1100 = vmatpush1.msra.mxu0 %v1090
        %1101 = vmatprep.subr.mxu0 0.0
        %1102 = vmatpush1.msra.mxu0 %v1091
        %1103 = vmatprep.subr.mxu0 0.0
        %1104 = vmatpush1.msra.mxu0 0.0
        %1105 = vmatprep.subr.mxu0 0.0
        %1106 = vmatpush1.msra.mxu0 0.0
        %1107 = vmatprep.subr.mxu0 0.0
        %1108 = vmatpush1.msra.mxu0 0.0
        %1109 = vmatprep.subr.mxu0 0.0
        %1110 = vmatpush1.msra.mxu0 0.0
        %1111 = vmatprep.subr.mxu0 0.0
        %1112 = vmatpush1.msra.mxu0 0.0
        %1113 = vmatprep.subr.mxu0 0.0
        %1114 = vmatpush1.msra.mxu0 0.0
        %1115 = vmatprep.subr.mxu0 0.0
        %1116 = vmatpush1.msra.mxu0 0.0
        %1117 = vmatprep.subr.mxu0 0.0
        %1118 = vmatpush1.msra.mxu0 0.0
        %1119 = vmatprep.subr.mxu0 0.0
        %1120 = vmatpush1.msra.mxu0 0.0
        %1121 = vmatprep.subr.mxu0 0.0
        %1122 = vmatpush1.msra.mxu0 0.0
        %1123 = vmatprep.subr.mxu0 0.0
        %1124 = vmatpush1.msra.mxu0 0.0
        %1125 = vmatprep.subr.mxu0 0.0
        %1126 = vmatpush1.msra.mxu0 0.0
        %1127 = vmatprep.subr.mxu0 0.0
        %1128 = vmatpush1.msra.mxu0 0.0
        %1129 = vmatprep.subr.mxu0 0.0
        %1130 = vmatpush1.msra.mxu0 0.0
        %1131 = vmatprep.subr.mxu0 0.0
        %1132 = vmatpush1.msra.mxu0 0.0
        %1133 = vmatprep.subr.mxu0 0.0
        %1134 = vmatpush1.msra.mxu0 0.0
        %1135 = vmatprep.subr.mxu0 0.0
        %1136 = vmatpush1.msra.mxu0 0.0
        %1137 = vmatprep.subr.mxu0 0.0
        %1138 = vmatpush1.msra.mxu0 0.0
        %1139 = vmatprep.subr.mxu0 0.0
        %1140 = vmatpush1.msra.mxu0 0.0
        %1141 = vmatprep.subr.mxu0 0.0
        %1142 = vmatpush1.msra.mxu0 0.0
        %1143 = vmatprep.subr.mxu0 0.0
        %1144 = vmatpush1.msra.mxu0 0.0
        %1145 = vmatprep.subr.mxu0 0.0
        %1146 = vmatpush1.msra.mxu0 0.0
        %1147 = vmatprep.subr.mxu0 0.0
        %1148 = vmatpush1.msra.mxu0 0.0
        %1149 = vmatprep.subr.mxu0 0.0
        %1150 = vmatpush1.msra.mxu0 0.0
        %1151 = vmatprep.subr.mxu0 0.0
        %1152 = vmatpush1.msra.mxu0 0.0
        %1153 = vmatprep.subr.mxu0 0.0
        %1154 = vmatpush1.msra.mxu0 0.0
        %1155 = vmatprep.subr.mxu0 0.0
        %1156 = vmatpush1.msra.mxu0 0.0
        %1157 = vmatprep.subr.mxu0 0.0
        %1158 = vmatpush1.msra.mxu0 0.0
        %1159 = vmatprep.mubr.f32.mxu0 0.0
        %1160 = vmatmul.mubr.f32.gmra.mrb[0].mxu0 %v1093
        %v1161 = vpop.f32.mrb[0].mxu0
        %v1162 = vadd.f32 0.0, %v1161
        %v1163 = vpop.f32.mrb[0].mxu0
        %1164 = vdwg.mxu0
        %v1165 = vld [vmem:[%s886] sm:$0xff]
        %v1166 = vld [vmem:[%s886 + $0x8] sm:$0xff]
        %vm1167 = vcmask 130048
        %v1169 = vsel %vm1167, %v1162, 0
        %1171 = vmatprep.subr.mxu0 0.0
        %1172 = vmatpush1.msra.mxu0 %v1165
        %1173 = vmatprep.subr.mxu0 0.0
        %1174 = vmatpush1.msra.mxu0 %v1166
        %1175 = vmatprep.subr.mxu0 0.0
        %1176 = vmatpush1.msra.mxu0 0.0
        %1177 = vmatprep.subr.mxu0 0.0
        %1178 = vmatpush1.msra.mxu0 0.0
        %1179 = vmatprep.subr.mxu0 0.0
        %1180 = vmatpush1.msra.mxu0 0.0
        %1181 = vmatprep.subr.mxu0 0.0
        %1182 = vmatpush1.msra.mxu0 0.0
        %1183 = vmatprep.subr.mxu0 0.0
        %1184 = vmatpush1.msra.mxu0 0.0
        %1185 = vmatprep.subr.mxu0 0.0
        %1186 = vmatpush1.msra.mxu0 0.0
        %1187 = vmatprep.subr.mxu0 0.0
        %1188 = vmatpush1.msra.mxu0 0.0
        %1189 = vmatprep.subr.mxu0 0.0
        %1190 = vmatpush1.msra.mxu0 0.0
        %1191 = vmatprep.subr.mxu0 0.0
        %1192 = vmatpush1.msra.mxu0 0.0
        %1193 = vmatprep.subr.mxu0 0.0
        %1194 = vmatpush1.msra.mxu0 0.0
        %1195 = vmatprep.subr.mxu0 0.0
        %1196 = vmatpush1.msra.mxu0 0.0
        %1197 = vmatprep.subr.mxu0 0.0
        %1198 = vmatpush1.msra.mxu0 0.0
        %1199 = vmatprep.subr.mxu0 0.0
        %1200 = vmatpush1.msra.mxu0 0.0
        %1201 = vmatprep.subr.mxu0 0.0
        %1202 = vmatpush1.msra.mxu0 0.0
        %1203 = vmatprep.subr.mxu0 0.0
        %1204 = vmatpush1.msra.mxu0 0.0
        %1205 = vmatprep.subr.mxu0 0.0
        %1206 = vmatpush1.msra.mxu0 0.0
        %1207 = vmatprep.subr.mxu0 0.0
        %1208 = vmatpush1.msra.mxu0 0.0
        %1209 = vmatprep.subr.mxu0 0.0
        %1210 = vmatpush1.msra.mxu0 0.0
        %1211 = vmatprep.subr.mxu0 0.0
        %1212 = vmatpush1.msra.mxu0 0.0
        %1213 = vmatprep.subr.mxu0 0.0
        %1214 = vmatpush1.msra.mxu0 0.0
        %1215 = vmatprep.subr.mxu0 0.0
        %1216 = vmatpush1.msra.mxu0 0.0
        %1217 = vmatprep.subr.mxu0 0.0
        %1218 = vmatpush1.msra.mxu0 0.0
        %1219 = vmatprep.subr.mxu0 0.0
        %1220 = vmatpush1.msra.mxu0 0.0
        %1221 = vmatprep.subr.mxu0 0.0
        %1222 = vmatpush1.msra.mxu0 0.0
        %1223 = vmatprep.subr.mxu0 0.0
        %1224 = vmatpush1.msra.mxu0 0.0
        %1225 = vmatprep.subr.mxu0 0.0
        %1226 = vmatpush1.msra.mxu0 0.0
        %1227 = vmatprep.subr.mxu0 0.0
        %1228 = vmatpush1.msra.mxu0 0.0
        %1229 = vmatprep.subr.mxu0 0.0
        %1230 = vmatpush1.msra.mxu0 0.0
        %1231 = vmatprep.subr.mxu0 0.0
        %1232 = vmatpush1.msra.mxu0 0.0
        %1233 = vmatprep.subr.mxu0 0.0
        %1234 = vmatpush1.msra.mxu0 0.0
        %1235 = vmatprep.mubr.f32.mxu0 0.0
        %1236 = vmatmul.mubr.f32.gmra.mrb[0].mxu0 %v1169
        %v1237 = vpop.f32.mrb[0].mxu0
        %v1238 = vadd.f32 0.0, %v1237
        %v1239 = vpop.f32.mrb[0].mxu0
        %1240 = vdwg.mxu0
        %v1241 = vsel %vm1167, %v1238, -inf
        %1242 = vmax.xlane.f32.xlu0 %v1241
        %v1243 = vpop.xlane.xlu0 %1242
        %v1244 = vsub.f32 %v1238, %v1243
        %v1245 = vmul.f32 %v1244, 1.442695
        %v1246 = vpow.pop %v1245
        %v1247 = vsel %vm1167, %v1246, 0.0
        %1248 = vadd.xlane.f32.xlu0 %v1247
        %v1249 = vpop.xlane.xlu0 %1248
        %v1250 = vrcp.pop %v1249
        %v1251 = vmul.f32 %v1246, %v1250
        %v1252 = vld [vmem:[%s895] sm:$0xff]
        %v1253 = vld [vmem:[%s895 + $0x8] sm:$0xff]
        %v1255 = vsel %vm1167, %v1251, 0
        %1257 = vmatprep.subr.mxu0 0.0
        %1258 = vmatpush1.msra.mxu0 %v1252
        %1259 = vmatprep.subr.mxu0 0.0
        %1260 = vmatpush1.msra.mxu0 %v1253
        %1261 = vmatprep.subr.mxu0 0.0
        %1262 = vmatpush1.msra.mxu0 0.0
        %1263 = vmatprep.subr.mxu0 0.0
        %1264 = vmatpush1.msra.mxu0 0.0
        %1265 = vmatprep.subr.mxu0 0.0
        %1266 = vmatpush1.msra.mxu0 0.0
        %1267 = vmatprep.subr.mxu0 0.0
        %1268 = vmatpush1.msra.mxu0 0.0
        %1269 = vmatprep.subr.mxu0 0.0
        %1270 = vmatpush1.msra.mxu0 0.0
        %1271 = vmatprep.subr.mxu0 0.0
        %1272 = vmatpush1.msra.mxu0 0.0
        %1273 = vmatprep.subr.mxu0 0.0
        %1274 = vmatpush1.msra.mxu0 0.0
        %1275 = vmatprep.subr.mxu0 0.0
        %1276 = vmatpush1.msra.mxu0 0.0
        %1277 = vmatprep.subr.mxu0 0.0
        %1278 = vmatpush1.msra.mxu0 0.0
        %1279 = vmatprep.subr.mxu0 0.0
        %1280 = vmatpush1.msra.mxu0 0.0
        %1281 = vmatprep.subr.mxu0 0.0
        %1282 = vmatpush1.msra.mxu0 0.0
        %1283 = vmatprep.subr.mxu0 0.0
        %1284 = vmatpush1.msra.mxu0 0.0
        %1285 = vmatprep.subr.mxu0 0.0
        %1286 = vmatpush1.msra.mxu0 0.0
        %1287 = vmatprep.subr.mxu0 0.0
        %1288 = vmatpush1.msra.mxu0 0.0
        %1289 = vmatprep.subr.mxu0 0.0
        %1290 = vmatpush1.msra.mxu0 0.0
        %1291 = vmatprep.subr.mxu0 0.0
        %1292 = vmatpush1.msra.mxu0 0.0
        %1293 = vmatprep.subr.mxu0 0.0
        %1294 = vmatpush1.msra.mxu0 0.0
        %1295 = vmatprep.subr.mxu0 0.0
        %1296 = vmatpush1.msra.mxu0 0.0
        %1297 = vmatprep.subr.mxu0 0.0
        %1298 = vmatpush1.msra.mxu0 0.0
        %1299 = vmatprep.subr.mxu0 0.0
        %1300 = vmatpush1.msra.mxu0 0.0
        %1301 = vmatprep.subr.mxu0 0.0
        %1302 = vmatpush1.msra.mxu0 0.0
        %1303 = vmatprep.subr.mxu0 0.0
        %1304 = vmatpush1.msra.mxu0 0.0
        %1305 = vmatprep.subr.mxu0 0.0
        %1306 = vmatpush1.msra.mxu0 0.0
        %1307 = vmatprep.subr.mxu0 0.0
        %1308 = vmatpush1.msra.mxu0 0.0
        %1309 = vmatprep.subr.mxu0 0.0
        %1310 = vmatpush1.msra.mxu0 0.0
        %1311 = vmatprep.subr.mxu0 0.0
        %1312 = vmatpush1.msra.mxu0 0.0
        %1313 = vmatprep.subr.mxu0 0.0
        %1314 = vmatpush1.msra.mxu0 0.0
        %1315 = vmatprep.subr.mxu0 0.0
        %1316 = vmatpush1.msra.mxu0 0.0
        %1317 = vmatprep.subr.mxu0 0.0
        %1318 = vmatpush1.msra.mxu0 0.0
        %1319 = vmatprep.subr.mxu0 0.0
        %1320 = vmatpush1.msra.mxu0 0.0
        %1321 = vmatprep.mubr.f32.mxu0 0.0
        %1322 = vmatmul.mubr.f32.gmra.mrb[0].mxu0 %v1255
        %v1323 = vpop.f32.mrb[0].mxu0
        %v1324 = vadd.f32 0.0, %v1323
        %v1325 = vpop.f32.mrb[0].mxu0
        %1326 = vdwg.mxu0
        %s1327 = scalar_lea.vmem [#allocation14], 32
        %v1328 = vld [vmem:[%s1327] sm:$0xff]
        %v1329 = vld [vmem:[%s1327 + $0x8] sm:$0xff]
        %v1330 = vld [vmem:[%s1327 + $0x10] sm:$0xff]
        %v1331 = vld [vmem:[%s1327 + $0x18] sm:$0xff]
        %1332 = vmatprep.subr.mxu0 0.0
        %1333 = vmatpush1.msra.mxu0 %v1328
        %1334 = vmatprep.subr.mxu0 0.0
        %1335 = vmatpush1.msra.mxu0 %v1329
        %1336 = vmatprep.subr.mxu0 0.0
        %1337 = vmatpush1.msra.mxu0 %v1330
        %1338 = vmatprep.subr.mxu0 0.0
        %1339 = vmatpush1.msra.mxu0 %v1331
        %1340 = vmatprep.subr.mxu0 0.0
        %1341 = vmatpush1.msra.mxu0 0.0
        %1342 = vmatprep.subr.mxu0 0.0
        %1343 = vmatpush1.msra.mxu0 0.0
        %1344 = vmatprep.subr.mxu0 0.0
        %1345 = vmatpush1.msra.mxu0 0.0
        %1346 = vmatprep.subr.mxu0 0.0
        %1347 = vmatpush1.msra.mxu0 0.0
        %1348 = vmatprep.subr.mxu0 0.0
        %1349 = vmatpush1.msra.mxu0 0.0
        %1350 = vmatprep.subr.mxu0 0.0
        %1351 = vmatpush1.msra.mxu0 0.0
        %1352 = vmatprep.subr.mxu0 0.0
        %1353 = vmatpush1.msra.mxu0 0.0
        %1354 = vmatprep.subr.mxu0 0.0
        %1355 = vmatpush1.msra.mxu0 0.0
        %1356 = vmatprep.subr.mxu0 0.0
        %1357 = vmatpush1.msra.mxu0 0.0
        %1358 = vmatprep.subr.mxu0 0.0
        %1359 = vmatpush1.msra.mxu0 0.0
        %1360 = vmatprep.subr.mxu0 0.0
        %1361 = vmatpush1.msra.mxu0 0.0
        %1362 = vmatprep.subr.mxu0 0.0
        %1363 = vmatpush1.msra.mxu0 0.0
        %1364 = vmatprep.subr.mxu0 0.0
        %1365 = vmatpush1.msra.mxu0 0.0
        %1366 = vmatprep.subr.mxu0 0.0
        %1367 = vmatpush1.msra.mxu0 0.0
        %1368 = vmatprep.subr.mxu0 0.0
        %1369 = vmatpush1.msra.mxu0 0.0
        %1370 = vmatprep.subr.mxu0 0.0
        %1371 = vmatpush1.msra.mxu0 0.0
        %1372 = vmatprep.subr.mxu0 0.0
        %1373 = vmatpush1.msra.mxu0 0.0
        %1374 = vmatprep.subr.mxu0 0.0
        %1375 = vmatpush1.msra.mxu0 0.0
        %1376 = vmatprep.subr.mxu0 0.0
        %1377 = vmatpush1.msra.mxu0 0.0
        %1378 = vmatprep.subr.mxu0 0.0
        %1379 = vmatpush1.msra.mxu0 0.0
        %1380 = vmatprep.subr.mxu0 0.0
        %1381 = vmatpush1.msra.mxu0 0.0
        %1382 = vmatprep.subr.mxu0 0.0
        %1383 = vmatpush1.msra.mxu0 0.0
        %1384 = vmatprep.subr.mxu0 0.0
        %1385 = vmatpush1.msra.mxu0 0.0
        %1386 = vmatprep.subr.mxu0 0.0
        %1387 = vmatpush1.msra.mxu0 0.0
        %1388 = vmatprep.subr.mxu0 0.0
        %1389 = vmatpush1.msra.mxu0 0.0
        %1390 = vmatprep.subr.mxu0 0.0
        %1391 = vmatpush1.msra.mxu0 0.0
        %1392 = vmatprep.subr.mxu0 0.0
        %1393 = vmatpush1.msra.mxu0 0.0
        %1394 = vmatprep.subr.mxu0 0.0
        %1395 = vmatpush1.msra.mxu0 0.0
        %1396 = vmatprep.mubr.f32.mxu0 0.0
        %1397 = vmatmul.mubr.f32.gmra.mrb[0].mxu0 %v1093
        %v1398 = vpop.f32.mrb[0].mxu0
        %v1399 = vadd.f32 0.0, %v1398
        %v1400 = vpop.f32.mrb[0].mxu0
        %1401 = vdwg.mxu0
        %s1402 = scalar_lea.vmem %s886, 16 [#allocation5]
        %v1403 = vld [vmem:[%s1402] sm:$0xff]
        %v1404 = vld [vmem:[%s1402 + $0x8] sm:$0xff]
        %v1406 = vsel %vm1167, %v1399, 0
        %1408 = vmatprep.subr.mxu0 0.0
        %1409 = vmatpush1.msra.mxu0 %v1403
        %1410 = vmatprep.subr.mxu0 0.0
        %1411 = vmatpush1.msra.mxu0 %v1404
        %1412 = vmatprep.subr.mxu0 0.0
        %1413 = vmatpush1.msra.mxu0 0.0
        %1414 = vmatprep.subr.mxu0 0.0
        %1415 = vmatpush1.msra.mxu0 0.0
        %1416 = vmatprep.subr.mxu0 0.0
        %1417 = vmatpush1.msra.mxu0 0.0
        %1418 = vmatprep.subr.mxu0 0.0
        %1419 = vmatpush1.msra.mxu0 0.0
        %1420 = vmatprep.subr.mxu0 0.0
        %1421 = vmatpush1.msra.mxu0 0.0
        %1422 = vmatprep.subr.mxu0 0.0
        %1423 = vmatpush1.msra.mxu0 0.0
        %1424 = vmatprep.subr.mxu0 0.0
        %1425 = vmatpush1.msra.mxu0 0.0
        %1426 = vmatprep.subr.mxu0 0.0
        %1427 = vmatpush1.msra.mxu0 0.0
        %1428 = vmatprep.subr.mxu0 0.0
        %1429 = vmatpush1.msra.mxu0 0.0
        %1430 = vmatprep.subr.mxu0 0.0
        %1431 = vmatpush1.msra.mxu0 0.0
        %1432 = vmatprep.subr.mxu0 0.0
        %1433 = vmatpush1.msra.mxu0 0.0
        %1434 = vmatprep.subr.mxu0 0.0
        %1435 = vmatpush1.msra.mxu0 0.0
        %1436 = vmatprep.subr.mxu0 0.0
        %1437 = vmatpush1.msra.mxu0 0.0
        %1438 = vmatprep.subr.mxu0 0.0
        %1439 = vmatpush1.msra.mxu0 0.0
        %1440 = vmatprep.subr.mxu0 0.0
        %1441 = vmatpush1.msra.mxu0 0.0
        %1442 = vmatprep.subr.mxu0 0.0
        %1443 = vmatpush1.msra.mxu0 0.0
        %1444 = vmatprep.subr.mxu0 0.0
        %1445 = vmatpush1.msra.mxu0 0.0
        %1446 = vmatprep.subr.mxu0 0.0
        %1447 = vmatpush1.msra.mxu0 0.0
        %1448 = vmatprep.subr.mxu0 0.0
        %1449 = vmatpush1.msra.mxu0 0.0
        %1450 = vmatprep.subr.mxu0 0.0
        %1451 = vmatpush1.msra.mxu0 0.0
        %1452 = vmatprep.subr.mxu0 0.0
        %1453 = vmatpush1.msra.mxu0 0.0
        %1454 = vmatprep.subr.mxu0 0.0
        %1455 = vmatpush1.msra.mxu0 0.0
        %1456 = vmatprep.subr.mxu0 0.0
        %1457 = vmatpush1.msra.mxu0 0.0
        %1458 = vmatprep.subr.mxu0 0.0
        %1459 = vmatpush1.msra.mxu0 0.0
        %1460 = vmatprep.subr.mxu0 0.0
        %1461 = vmatpush1.msra.mxu0 0.0
        %1462 = vmatprep.subr.mxu0 0.0
        %1463 = vmatpush1.msra.mxu0 0.0
        %1464 = vmatprep.subr.mxu0 0.0
        %1465 = vmatpush1.msra.mxu0 0.0
        %1466 = vmatprep.subr.mxu0 0.0
        %1467 = vmatpush1.msra.mxu0 0.0
        %1468 = vmatprep.subr.mxu0 0.0
        %1469 = vmatpush1.msra.mxu0 0.0
        %1470 = vmatprep.subr.mxu0 0.0
        %1471 = vmatpush1.msra.mxu0 0.0
        %1472 = vmatprep.mubr.f32.mxu0 0.0
        %1473 = vmatmul.mubr.f32.gmra.mrb[0].mxu0 %v1406
        %v1474 = vpop.f32.mrb[0].mxu0
        %v1475 = vadd.f32 0.0, %v1474
        %v1476 = vpop.f32.mrb[0].mxu0
        %1477 = vdwg.mxu0
        %v1478 = vsel %vm1167, %v1475, -inf
        %1479 = vmax.xlane.f32.xlu0 %v1478
        %v1480 = vpop.xlane.xlu0 %1479
        %v1481 = vsub.f32 %v1475, %v1480
        %v1482 = vmul.f32 %v1481, 1.442695
        %v1483 = vpow.pop %v1482
        %v1484 = vsel %vm1167, %v1483, 0.0
        %1485 = vadd.xlane.f32.xlu0 %v1484
        %v1486 = vpop.xlane.xlu0 %1485
        %v1487 = vrcp.pop %v1486
        %v1488 = vmul.f32 %v1483, %v1487
        %s1489 = scalar_lea.vmem %s895, 16 [#allocation7]
        %v1490 = vld [vmem:[%s1489] sm:$0xff]
        %v1491 = vld [vmem:[%s1489 + $0x8] sm:$0xff]
        %v1493 = vsel %vm1167, %v1488, 0
        %1495 = vmatprep.subr.mxu0 0.0
        %1496 = vmatpush1.msra.mxu0 %v1490
        %1497 = vmatprep.subr.mxu0 0.0
        %1498 = vmatpush1.msra.mxu0 %v1491
        %1499 = vmatprep.subr.mxu0 0.0
        %1500 = vmatpush1.msra.mxu0 0.0
        %1501 = vmatprep.subr.mxu0 0.0
        %1502 = vmatpush1.msra.mxu0 0.0
        %1503 = vmatprep.subr.mxu0 0.0
        %1504 = vmatpush1.msra.mxu0 0.0
        %1505 = vmatprep.subr.mxu0 0.0
        %1506 = vmatpush1.msra.mxu0 0.0
        %1507 = vmatprep.subr.mxu0 0.0
        %1508 = vmatpush1.msra.mxu0 0.0
        %1509 = vmatprep.subr.mxu0 0.0
        %1510 = vmatpush1.msra.mxu0 0.0
        %1511 = vmatprep.subr.mxu0 0.0
        %1512 = vmatpush1.msra.mxu0 0.0
        %1513 = vmatprep.subr.mxu0 0.0
        %1514 = vmatpush1.msra.mxu0 0.0
        %1515 = vmatprep.subr.mxu0 0.0
        %1516 = vmatpush1.msra.mxu0 0.0
        %1517 = vmatprep.subr.mxu0 0.0
        %1518 = vmatpush1.msra.mxu0 0.0
        %1519 = vmatprep.subr.mxu0 0.0
        %1520 = vmatpush1.msra.mxu0 0.0
        %1521 = vmatprep.subr.mxu0 0.0
        %1522 = vmatpush1.msra.mxu0 0.0
        %1523 = vmatprep.subr.mxu0 0.0
        %1524 = vmatpush1.msra.mxu0 0.0
        %1525 = vmatprep.subr.mxu0 0.0
        %1526 = vmatpush1.msra.mxu0 0.0
        %1527 = vmatprep.subr.mxu0 0.0
        %1528 = vmatpush1.msra.mxu0 0.0
        %1529 = vmatprep.subr.mxu0 0.0
        %1530 = vmatpush1.msra.mxu0 0.0
        %1531 = vmatprep.subr.mxu0 0.0
        %1532 = vmatpush1.msra.mxu0 0.0
        %1533 = vmatprep.subr.mxu0 0.0
        %1534 = vmatpush1.msra.mxu0 0.0
        %1535 = vmatprep.subr.mxu0 0.0
        %1536 = vmatpush1.msra.mxu0 0.0
        %1537 = vmatprep.subr.mxu0 0.0
        %1538 = vmatpush1.msra.mxu0 0.0
        %1539 = vmatprep.subr.mxu0 0.0
        %1540 = vmatpush1.msra.mxu0 0.0
        %1541 = vmatprep.subr.mxu0 0.0
        %1542 = vmatpush1.msra.mxu0 0.0
        %1543 = vmatprep.subr.mxu0 0.0
        %1544 = vmatpush1.msra.mxu0 0.0
        %1545 = vmatprep.subr.mxu0 0.0
        %1546 = vmatpush1.msra.mxu0 0.0
        %1547 = vmatprep.subr.mxu0 0.0
        %1548 = vmatpush1.msra.mxu0 0.0
        %1549 = vmatprep.subr.mxu0 0.0
        %1550 = vmatpush1.msra.mxu0 0.0
        %1551 = vmatprep.subr.mxu0 0.0
        %1552 = vmatpush1.msra.mxu0 0.0
        %1553 = vmatprep.subr.mxu0 0.0
        %1554 = vmatpush1.msra.mxu0 0.0
        %1555 = vmatprep.subr.mxu0 0.0
        %1556 = vmatpush1.msra.mxu0 0.0
        %1557 = vmatprep.subr.mxu0 0.0
        %1558 = vmatpush1.msra.mxu0 0.0
        %1559 = vmatprep.mubr.f32.mxu0 0.0
        %1560 = vmatmul.mubr.f32.gmra.mrb[0].mxu0 %v1493
        %v1561 = vpop.f32.mrb[0].mxu0
        %v1562 = vadd.f32 0.0, %v1561
        %v1563 = vpop.f32.mrb[0].mxu0
        %1564 = vdwg.mxu0
        %1566 = vrot.lane.b32.xlu0 %v1562, 16
        %v1567 = vpop.permute.xlu0 %1566
        %v1569 = vsel %vm1167, %v1324, %v1567
        %v1570 = vld [vmem:[#allocation16] sm:$0xff]
        %v1571 = vld [vmem:[#allocation16 + $0x8] sm:$0xff]
        %v1572 = vld [vmem:[#allocation16 + $0x10] sm:$0xff]
        %v1573 = vld [vmem:[#allocation16 + $0x18] sm:$0xff]
        %v1574 = vld [vmem:[#allocation17] sm:$0x1]
        %v1576 = vlaneseq
        %v1577 = vshrl.u32 %v1576, 7
        %v1578 = vsub.s32 0, %v1577
        %v1579 = vrot.slane %v1574, %v1578
        %v1582 = vsel %vm1057, %v1569, 0
        %1584 = vmatprep.subr.mxu0 0.0
        %1585 = vmatpush1.msra.mxu0 %v1570
        %1586 = vmatprep.subr.mxu0 0.0
        %1587 = vmatpush1.msra.mxu0 %v1571
        %1588 = vmatprep.subr.mxu0 0.0
        %1589 = vmatpush1.msra.mxu0 %v1572
        %1590 = vmatprep.subr.mxu0 0.0
        %1591 = vmatpush1.msra.mxu0 %v1573
        %1592 = vmatprep.subr.mxu0 0.0
        %1593 = vmatpush1.msra.mxu0 0.0
        %1594 = vmatprep.subr.mxu0 0.0
        %1595 = vmatpush1.msra.mxu0 0.0
        %1596 = vmatprep.subr.mxu0 0.0
        %1597 = vmatpush1.msra.mxu0 0.0
        %1598 = vmatprep.subr.mxu0 0.0
        %1599 = vmatpush1.msra.mxu0 0.0
        %1600 = vmatprep.subr.mxu0 0.0
        %1601 = vmatpush1.msra.mxu0 0.0
        %1602 = vmatprep.subr.mxu0 0.0
        %1603 = vmatpush1.msra.mxu0 0.0
        %1604 = vmatprep.subr.mxu0 0.0
        %1605 = vmatpush1.msra.mxu0 0.0
        %1606 = vmatprep.subr.mxu0 0.0
        %1607 = vmatpush1.msra.mxu0 0.0
        %1608 = vmatprep.subr.mxu0 0.0
        %1609 = vmatpush1.msra.mxu0 0.0
        %1610 = vmatprep.subr.mxu0 0.0
        %1611 = vmatpush1.msra.mxu0 0.0
        %1612 = vmatprep.subr.mxu0 0.0
        %1613 = vmatpush1.msra.mxu0 0.0
        %1614 = vmatprep.subr.mxu0 0.0
        %1615 = vmatpush1.msra.mxu0 0.0
        %1616 = vmatprep.subr.mxu0 0.0
        %1617 = vmatpush1.msra.mxu0 0.0
        %1618 = vmatprep.subr.mxu0 0.0
        %1619 = vmatpush1.msra.mxu0 0.0
        %1620 = vmatprep.subr.mxu0 0.0
        %1621 = vmatpush1.msra.mxu0 0.0
        %1622 = vmatprep.subr.mxu0 0.0
        %1623 = vmatpush1.msra.mxu0 0.0
        %1624 = vmatprep.subr.mxu0 0.0
        %1625 = vmatpush1.msra.mxu0 0.0
        %1626 = vmatprep.subr.mxu0 0.0
        %1627 = vmatpush1.msra.mxu0 0.0
        %1628 = vmatprep.subr.mxu0 0.0
        %1629 = vmatpush1.msra.mxu0 0.0
        %1630 = vmatprep.subr.mxu0 0.0
        %1631 = vmatpush1.msra.mxu0 0.0
        %1632 = vmatprep.subr.mxu0 0.0
        %1633 = vmatpush1.msra.mxu0 0.0
        %1634 = vmatprep.subr.mxu0 0.0
        %1635 = vmatpush1.msra.mxu0 0.0
        %1636 = vmatprep.subr.mxu0 0.0
        %1637 = vmatpush1.msra.mxu0 0.0
        %1638 = vmatprep.subr.mxu0 0.0
        %1639 = vmatpush1.msra.mxu0 0.0
        %1640 = vmatprep.subr.mxu0 0.0
        %1641 = vmatpush1.msra.mxu0 0.0
        %1642 = vmatprep.subr.mxu0 0.0
        %1643 = vmatpush1.msra.mxu0 0.0
        %1644 = vmatprep.subr.mxu0 0.0
        %1645 = vmatpush1.msra.mxu0 0.0
        %1646 = vmatprep.subr.mxu0 0.0
        %1647 = vmatpush1.msra.mxu0 0.0
        %1648 = vmatprep.mubr.f32.mxu0 0.0
        %1649 = vmatmul.mubr.f32.gmra.mrb[0].mxu0 %v1582
        %v1650 = vpop.f32.mrb[0].mxu0
        %v1651 = vadd.f32 %v1579, %v1650
        %v1652 = vpop.f32.mrb[0].mxu0
        %1653 = vdwg.mxu0
        %v1654 = vadd.f32 %v1056, %v1651
        %v1655 = vsel %vm1057, %v1654, 0.0
        %1656 = vadd.xlane.f32.xlu0 %v1655
        %v1657 = vpop.xlane.xlu0 %1656
        %v1658 = vmul.f32 %v1657, %v1061
        %v1659 = vsub.f32 %v1654, %v1658
        %v1660 = vmul.f32 %v1659, %v1659
        %v1661 = vsel %vm1057, %v1660, 0.0
        %1662 = vadd.xlane.f32.xlu0 %v1661
        %v1663 = vpop.xlane.xlu0 %1662
        %v1664 = vmul.f32 %v1663, %v1061
        %v1665 = vadd.f32 %v1664, 1e-05
        %v1666 = vrsqrt.pop %v1665
        %v1667 = vmul.f32 %v1659, %v1666
        %v1668 = vld [vmem:[#allocation19] sm:$0x1]
        %v1670 = vlaneseq
        %v1671 = vshrl.u32 %v1670, 7
        %v1672 = vsub.s32 0, %v1671
        %v1673 = vrot.slane %v1668, %v1672
        %v1675 = vmul.f32 %v1667, %v1673
        %v1676 = vld [vmem:[#allocation20] sm:$0x1]
        %v1678 = vlaneseq
        %v1679 = vshrl.u32 %v1678, 7
        %v1680 = vsub.s32 0, %v1679
        %v1681 = vrot.slane %v1676, %v1680
        %v1683 = vadd.f32 %v1675, %v1681
        %v1684 = vlaneseq
        %v1685 = vand.u32 %v1684, 127
        %vm1686 = vcmp.lt.s32.totalorder %v1685, 8
        %v1687 = vsel %vm1686, 0.0, -1e+30
        %v1688 = vld [vmem:[#allocation22] sm:$0xff]
        %v1689 = vld [vmem:[#allocation22 + $0x8] sm:$0xff]
        %v1690 = vld [vmem:[#allocation22 + $0x10] sm:$0xff]
        %v1691 = vld [vmem:[#allocation22 + $0x18] sm:$0xff]
        %v1693 = vsel %vm1057, %v1683, 0
        %1695 = vmatprep.subr.mxu0 0.0
        %1696 = vmatpush1.msra.mxu0 %v1688
        %1697 = vmatprep.subr.mxu0 0.0
        %1698 = vmatpush1.msra.mxu0 %v1689
        %1699 = vmatprep.subr.mxu0 0.0
        %1700 = vmatpush1.msra.mxu0 %v1690
        %1701 = vmatprep.subr.mxu0 0.0
        %1702 = vmatpush1.msra.mxu0 %v1691
        %1703 = vmatprep.subr.mxu0 0.0
        %1704 = vmatpush1.msra.mxu0 0.0
        %1705 = vmatprep.subr.mxu0 0.0
        %1706 = vmatpush1.msra.mxu0 0.0
        %1707 = vmatprep.subr.mxu0 0.0
        %1708 = vmatpush1.msra.mxu0 0.0
        %1709 = vmatprep.subr.mxu0 0.0
        %1710 = vmatpush1.msra.mxu0 0.0
        %1711 = vmatprep.subr.mxu0 0.0
        %1712 = vmatpush1.msra.mxu0 0.0
        %1713 = vmatprep.subr.mxu0 0.0
        %1714 = vmatpush1.msra.mxu0 0.0
        %1715 = vmatprep.subr.mxu0 0.0
        %1716 = vmatpush1.msra.mxu0 0.0
        %1717 = vmatprep.subr.mxu0 0.0
        %1718 = vmatpush1.msra.mxu0 0.0
        %1719 = vmatprep.subr.mxu0 0.0
        %1720 = vmatpush1.msra.mxu0 0.0
        %1721 = vmatprep.subr.mxu0 0.0
        %1722 = vmatpush1.msra.mxu0 0.0
        %1723 = vmatprep.subr.mxu0 0.0
        %1724 = vmatpush1.msra.mxu0 0.0
        %1725 = vmatprep.subr.mxu0 0.0
        %1726 = vmatpush1.msra.mxu0 0.0
        %1727 = vmatprep.subr.mxu0 0.0
        %1728 = vmatpush1.msra.mxu0 0.0
        %1729 = vmatprep.subr.mxu0 0.0
        %1730 = vmatpush1.msra.mxu0 0.0
        %1731 = vmatprep.subr.mxu0 0.0
        %1732 = vmatpush1.msra.mxu0 0.0
        %1733 = vmatprep.subr.mxu0 0.0
        %1734 = vmatpush1.msra.mxu0 0.0
        %1735 = vmatprep.subr.mxu0 0.0
        %1736 = vmatpush1.msra.mxu0 0.0
        %1737 = vmatprep.subr.mxu0 0.0
        %1738 = vmatpush1.msra.mxu0 0.0
        %1739 = vmatprep.subr.mxu0 0.0
        %1740 = vmatpush1.msra.mxu0 0.0
        %1741 = vmatprep.subr.mxu0 0.0
        %1742 = vmatpush1.msra.mxu0 0.0
        %1743 = vmatprep.subr.mxu0 0.0
        %1744 = vmatpush1.msra.mxu0 0.0
        %1745 = vmatprep.subr.mxu0 0.0
        %1746 = vmatpush1.msra.mxu0 0.0
        %1747 = vmatprep.subr.mxu0 0.0
        %1748 = vmatpush1.msra.mxu0 0.0
        %1749 = vmatprep.subr.mxu0 0.0
        %1750 = vmatpush1.msra.mxu0 0.0
        %1751 = vmatprep.subr.mxu0 0.0
        %1752 = vmatpush1.msra.mxu0 0.0
        %1753 = vmatprep.subr.mxu0 0.0
        %1754 = vmatpush1.msra.mxu0 0.0
        %1755 = vmatprep.subr.mxu0 0.0
        %1756 = vmatpush1.msra.mxu0 0.0
        %1757 = vmatprep.subr.mxu0 0.0
        %1758 = vmatpush1.msra.mxu0 0.0
        %1759 = vmatprep.mubr.f32.mxu0 0.0
        %1760 = vmatmul.mubr.f32.gmra.mrb[0].mxu0 %v1693
        %v1761 = vpop.f32.mrb[0].mxu0
        %v1762 = vadd.f32 0.0, %v1761
        %v1763 = vpop.f32.mrb[0].mxu0
        %1764 = vdwg.mxu0
        %v1765 = vld [vmem:[%s904] sm:$0xff]
        %v1766 = vld [vmem:[%s904 + $0x8] sm:$0xff]
        %v1768 = vsel %vm1167, %v1762, 0
        %1770 = vmatprep.subr.mxu0 0.0
        %1771 = vmatpush1.msra.mxu0 %v1765
        %1772 = vmatprep.subr.mxu0 0.0
        %1773 = vmatpush1.msra.mxu0 %v1766
        %1774 = vmatprep.subr.mxu0 0.0
        %1775 = vmatpush1.msra.mxu0 0.0
        %1776 = vmatprep.subr.mxu0 0.0
        %1777 = vmatpush1.msra.mxu0 0.0
        %1778 = vmatprep.subr.mxu0 0.0
        %1779 = vmatpush1.msra.mxu0 0.0
        %1780 = vmatprep.subr.mxu0 0.0
        %1781 = vmatpush1.msra.mxu0 0.0
        %1782 = vmatprep.subr.mxu0 0.0
        %1783 = vmatpush1.msra.mxu0 0.0
        %1784 = vmatprep.subr.mxu0 0.0
        %1785 = vmatpush1.msra.mxu0 0.0
        %1786 = vmatprep.subr.mxu0 0.0
        %1787 = vmatpush1.msra.mxu0 0.0
        %1788 = vmatprep.subr.mxu0 0.0
        %1789 = vmatpush1.msra.mxu0 0.0
        %1790 = vmatprep.subr.mxu0 0.0
        %1791 = vmatpush1.msra.mxu0 0.0
        %1792 = vmatprep.subr.mxu0 0.0
        %1793 = vmatpush1.msra.mxu0 0.0
        %1794 = vmatprep.subr.mxu0 0.0
        %1795 = vmatpush1.msra.mxu0 0.0
        %1796 = vmatprep.subr.mxu0 0.0
        %1797 = vmatpush1.msra.mxu0 0.0
        %1798 = vmatprep.subr.mxu0 0.0
        %1799 = vmatpush1.msra.mxu0 0.0
        %1800 = vmatprep.subr.mxu0 0.0
        %1801 = vmatpush1.msra.mxu0 0.0
        %1802 = vmatprep.subr.mxu0 0.0
        %1803 = vmatpush1.msra.mxu0 0.0
        %1804 = vmatprep.subr.mxu0 0.0
        %1805 = vmatpush1.msra.mxu0 0.0
        %1806 = vmatprep.subr.mxu0 0.0
        %1807 = vmatpush1.msra.mxu0 0.0
        %1808 = vmatprep.subr.mxu0 0.0
        %1809 = vmatpush1.msra.mxu0 0.0
        %1810 = vmatprep.subr.mxu0 0.0
        %1811 = vmatpush1.msra.mxu0 0.0
        %1812 = vmatprep.subr.mxu0 0.0
        %1813 = vmatpush1.msra.mxu0 0.0
        %1814 = vmatprep.subr.mxu0 0.0
        %1815 = vmatpush1.msra.mxu0 0.0
        %1816 = vmatprep.subr.mxu0 0.0
        %1817 = vmatpush1.msra.mxu0 0.0
        %1818 = vmatprep.subr.mxu0 0.0
        %1819 = vmatpush1.msra.mxu0 0.0
        %1820 = vmatprep.subr.mxu0 0.0
        %1821 = vmatpush1.msra.mxu0 0.0
        %1822 = vmatprep.subr.mxu0 0.0
        %1823 = vmatpush1.msra.mxu0 0.0
        %1824 = vmatprep.subr.mxu0 0.0
        %1825 = vmatpush1.msra.mxu0 0.0
        %1826 = vmatprep.subr.mxu0 0.0
        %1827 = vmatpush1.msra.mxu0 0.0
        %1828 = vmatprep.subr.mxu0 0.0
        %1829 = vmatpush1.msra.mxu0 0.0
        %1830 = vmatprep.subr.mxu0 0.0
        %1831 = vmatpush1.msra.mxu0 0.0
        %1832 = vmatprep.subr.mxu0 0.0
        %1833 = vmatpush1.msra.mxu0 0.0
        %1834 = vmatprep.mubr.f32.mxu0 0.0
        %1835 = vmatmul.mubr.f32.gmra.mrb[0].mxu0 %v1768
        %v1836 = vpop.f32.mrb[0].mxu0
        %v1837 = vadd.f32 %v1687, %v1836
        %v1838 = vpop.f32.mrb[0].mxu0
        %1839 = vdwg.mxu0
        %1840 = vmax.xlane.f32.xlu0 %v1837
        %v1841 = vpop.xlane.xlu0 %1840
        %v1842 = vsub.f32 %v1837, %v1841
        %v1843 = vmul.f32 %v1842, 1.442695
        %v1844 = vpow.pop %v1843
        %1845 = vadd.xlane.f32.xlu0 %v1844
        %v1846 = vpop.xlane.xlu0 %1845
        %v1847 = vrcp.pop %v1846
        %v1848 = vmul.f32 %v1844, %v1847
        %v1849 = vld [vmem:[%s913] sm:$0xff]
        %v1850 = vld [vmem:[%s913 + $0x8] sm:$0xff]
        %v1851 = vld [vmem:[%s913 + $0x10] sm:$0xff]
        %v1852 = vld [vmem:[%s913 + $0x18] sm:$0xff]
        %v1853 = vld [vmem:[%s913 + $0x20] sm:$0xff]
        %v1854 = vld [vmem:[%s913 + $0x28] sm:$0xff]
        %v1855 = vld [vmem:[%s913 + $0x30] sm:$0xff]
        %v1856 = vld [vmem:[%s913 + $0x38] sm:$0xff]
        %v1857 = vld [vmem:[%s913 + $0x40] sm:$0xff]
        %v1858 = vld [vmem:[%s913 + $0x48] sm:$0xff]
        %v1859 = vld [vmem:[%s913 + $0x50] sm:$0xff]
        %v1860 = vld [vmem:[%s913 + $0x58] sm:$0xff]
        %v1861 = vld [vmem:[%s913 + $0x60] sm:$0xff]
        %v1862 = vld [vmem:[%s913 + $0x68] sm:$0xff]
        %v1863 = vld [vmem:[%s913 + $0x70] sm:$0xff]
        %v1864 = vld [vmem:[%s913 + $0x78] sm:$0xff]
        %1865 = vmatprep.subr.mxu0 0.0
        %1866 = vmatpush1.msra.mxu0 %v1849
        %1867 = vmatprep.subr.mxu0 0.0
        %1868 = vmatpush1.msra.mxu0 %v1850
        %1869 = vmatprep.subr.mxu0 0.0
        %1870 = vmatpush1.msra.mxu0 %v1851
        %1871 = vmatprep.subr.mxu0 0.0
        %1872 = vmatpush1.msra.mxu0 %v1852
        %1873 = vmatprep.subr.mxu0 0.0
        %1874 = vmatpush1.msra.mxu0 %v1853
        %1875 = vmatprep.subr.mxu0 0.0
        %1876 = vmatpush1.msra.mxu0 %v1854
        %1877 = vmatprep.subr.mxu0 0.0
        %1878 = vmatpush1.msra.mxu0 %v1855
        %1879 = vmatprep.subr.mxu0 0.0
        %1880 = vmatpush1.msra.mxu0 %v1856
        %1881 = vmatprep.subr.mxu0 0.0
        %1882 = vmatpush1.msra.mxu0 %v1857
        %1883 = vmatprep.subr.mxu0 0.0
        %1884 = vmatpush1.msra.mxu0 %v1858
        %1885 = vmatprep.subr.mxu0 0.0
        %1886 = vmatpush1.msra.mxu0 %v1859
        %1887 = vmatprep.subr.mxu0 0.0
        %1888 = vmatpush1.msra.mxu0 %v1860
        %1889 = vmatprep.subr.mxu0 0.0
        %1890 = vmatpush1.msra.mxu0 %v1861
        %1891 = vmatprep.subr.mxu0 0.0
        %1892 = vmatpush1.msra.mxu0 %v1862
        %1893 = vmatprep.subr.mxu0 0.0
        %1894 = vmatpush1.msra.mxu0 %v1863
        %1895 = vmatprep.subr.mxu0 0.0
        %1896 = vmatpush1.msra.mxu0 %v1864
        %1897 = vmatprep.subr.mxu0 0.0
        %1898 = vmatpush1.msra.mxu0 0.0
        %1899 = vmatprep.subr.mxu0 0.0
        %1900 = vmatpush1.msra.mxu0 0.0
        %1901 = vmatprep.subr.mxu0 0.0
        %1902 = vmatpush1.msra.mxu0 0.0
        %1903 = vmatprep.subr.mxu0 0.0
        %1904 = vmatpush1.msra.mxu0 0.0
        %1905 = vmatprep.subr.mxu0 0.0
        %1906 = vmatpush1.msra.mxu0 0.0
        %1907 = vmatprep.subr.mxu0 0.0
        %1908 = vmatpush1.msra.mxu0 0.0
        %1909 = vmatprep.subr.mxu0 0.0
        %1910 = vmatpush1.msra.mxu0 0.0
        %1911 = vmatprep.subr.mxu0 0.0
        %1912 = vmatpush1.msra.mxu0 0.0
        %1913 = vmatprep.subr.mxu0 0.0
        %1914 = vmatpush1.msra.mxu0 0.0
        %1915 = vmatprep.subr.mxu0 0.0
        %1916 = vmatpush1.msra.mxu0 0.0
        %1917 = vmatprep.subr.mxu0 0.0
        %1918 = vmatpush1.msra.mxu0 0.0
        %1919 = vmatprep.subr.mxu0 0.0
        %1920 = vmatpush1.msra.mxu0 0.0
        %1921 = vmatprep.subr.mxu0 0.0
        %1922 = vmatpush1.msra.mxu0 0.0
        %1923 = vmatprep.subr.mxu0 0.0
        %1924 = vmatpush1.msra.mxu0 0.0
        %1925 = vmatprep.subr.mxu0 0.0
        %1926 = vmatpush1.msra.mxu0 0.0
        %1927 = vmatprep.subr.mxu0 0.0
        %1928 = vmatpush1.msra.mxu0 0.0
        %1929 = vmatprep.mubr.f32.mxu0 0.0
        %1930 = vmatmul.mubr.f32.gmra.mrb[0].mxu0 %v1848
        %v1931 = vpop.f32.mrb[0].mxu0
        %v1932 = vadd.f32 0.0, %v1931
        %v1933 = vpop.f32.mrb[0].mxu0
        %1934 = vdwg.mxu0
        %s1935 = scalar_lea.vmem [#allocation22], 32
        %v1936 = vld [vmem:[%s1935] sm:$0xff]
        %v1937 = vld [vmem:[%s1935 + $0x8] sm:$0xff]
        %v1938 = vld [vmem:[%s1935 + $0x10] sm:$0xff]
        %v1939 = vld [vmem:[%s1935 + $0x18] sm:$0xff]
        %1940 = vmatprep.subr.mxu0 0.0
        %1941 = vmatpush1.msra.mxu0 %v1936
        %1942 = vmatprep.subr.mxu0 0.0
        %1943 = vmatpush1.msra.mxu0 %v1937
        %1944 = vmatprep.subr.mxu0 0.0
        %1945 = vmatpush1.msra.mxu0 %v1938
        %1946 = vmatprep.subr.mxu0 0.0
        %1947 = vmatpush1.msra.mxu0 %v1939
        %1948 = vmatprep.subr.mxu0 0.0
        %1949 = vmatpush1.msra.mxu0 0.0
        %1950 = vmatprep.subr.mxu0 0.0
        %1951 = vmatpush1.msra.mxu0 0.0
        %1952 = vmatprep.subr.mxu0 0.0
        %1953 = vmatpush1.msra.mxu0 0.0
        %1954 = vmatprep.subr.mxu0 0.0
        %1955 = vmatpush1.msra.mxu0 0.0
        %1956 = vmatprep.subr.mxu0 0.0
        %1957 = vmatpush1.msra.mxu0 0.0
        %1958 = vmatprep.subr.mxu0 0.0
        %1959 = vmatpush1.msra.mxu0 0.0
        %1960 = vmatprep.subr.mxu0 0.0
        %1961 = vmatpush1.msra.mxu0 0.0
        %1962 = vmatprep.subr.mxu0 0.0
        %1963 = vmatpush1.msra.mxu0 0.0
        %1964 = vmatprep.subr.mxu0 0.0
        %1965 = vmatpush1.msra.mxu0 0.0
        %1966 = vmatprep.subr.mxu0 0.0
        %1967 = vmatpush1.msra.mxu0 0.0
        %1968 = vmatprep.subr.mxu0 0.0
        %1969 = vmatpush1.msra.mxu0 0.0
        %1970 = vmatprep.subr.mxu0 0.0
        %1971 = vmatpush1.msra.mxu0 0.0
        %1972 = vmatprep.subr.mxu0 0.0
        %1973 = vmatpush1.msra.mxu0 0.0
        %1974 = vmatprep.subr.mxu0 0.0
        %1975 = vmatpush1.msra.mxu0 0.0
        %1976 = vmatprep.subr.mxu0 0.0
        %1977 = vmatpush1.msra.mxu0 0.0
        %1978 = vmatprep.subr.mxu0 0.0
        %1979 = vmatpush1.msra.mxu0 0.0
        %1980 = vmatprep.subr.mxu0 0.0
        %1981 = vmatpush1.msra.mxu0 0.0
        %1982 = vmatprep.subr.mxu0 0.0
        %1983 = vmatpush1.msra.mxu0 0.0
        %1984 = vmatprep.subr.mxu0 0.0
        %1985 = vmatpush1.msra.mxu0 0.0
        %1986 = vmatprep.subr.mxu0 0.0
        %1987 = vmatpush1.msra.mxu0 0.0
        %1988 = vmatprep.subr.mxu0 0.0
        %1989 = vmatpush1.msra.mxu0 0.0
        %1990 = vmatprep.subr.mxu0 0.0
        %1991 = vmatpush1.msra.mxu0 0.0
        %1992 = vmatprep.subr.mxu0 0.0
        %1993 = vmatpush1.msra.mxu0 0.0
        %1994 = vmatprep.subr.mxu0 0.0
        %1995 = vmatpush1.msra.mxu0 0.0
        %1996 = vmatprep.subr.mxu0 0.0
        %1997 = vmatpush1.msra.mxu0 0.0
        %1998 = vmatprep.subr.mxu0 0.0
        %1999 = vmatpush1.msra.mxu0 0.0
        %2000 = vmatprep.subr.mxu0 0.0
        %2001 = vmatpush1.msra.mxu0 0.0
        %2002 = vmatprep.subr.mxu0 0.0
        %2003 = vmatpush1.msra.mxu0 0.0
        %2004 = vmatprep.mubr.f32.mxu0 0.0
        %2005 = vmatmul.mubr.f32.gmra.mrb[0].mxu0 %v1693
        %v2006 = vpop.f32.mrb[0].mxu0
        %v2007 = vadd.f32 0.0, %v2006
        %v2008 = vpop.f32.mrb[0].mxu0
        %2009 = vdwg.mxu0
        %s2010 = scalar_lea.vmem %s904, 16 [#allocation8]
        %v2011 = vld [vmem:[%s2010] sm:$0xff]
        %v2012 = vld [vmem:[%s2010 + $0x8] sm:$0xff]
        %v2014 = vsel %vm1167, %v2007, 0
        %2016 = vmatprep.subr.mxu0 0.0
        %2017 = vmatpush1.msra.mxu0 %v2011
        %2018 = vmatprep.subr.mxu0 0.0
        %2019 = vmatpush1.msra.mxu0 %v2012
        %2020 = vmatprep.subr.mxu0 0.0
        %2021 = vmatpush1.msra.mxu0 0.0
        %2022 = vmatprep.subr.mxu0 0.0
        %2023 = vmatpush1.msra.mxu0 0.0
        %2024 = vmatprep.subr.mxu0 0.0
        %2025 = vmatpush1.msra.mxu0 0.0
        %2026 = vmatprep.subr.mxu0 0.0
        %2027 = vmatpush1.msra.mxu0 0.0
        %2028 = vmatprep.subr.mxu0 0.0
        %2029 = vmatpush1.msra.mxu0 0.0
        %2030 = vmatprep.subr.mxu0 0.0
        %2031 = vmatpush1.msra.mxu0 0.0
        %2032 = vmatprep.subr.mxu0 0.0
        %2033 = vmatpush1.msra.mxu0 0.0
        %2034 = vmatprep.subr.mxu0 0.0
        %2035 = vmatpush1.msra.mxu0 0.0
        %2036 = vmatprep.subr.mxu0 0.0
        %2037 = vmatpush1.msra.mxu0 0.0
        %2038 = vmatprep.subr.mxu0 0.0
        %2039 = vmatpush1.msra.mxu0 0.0
        %2040 = vmatprep.subr.mxu0 0.0
        %2041 = vmatpush1.msra.mxu0 0.0
        %2042 = vmatprep.subr.mxu0 0.0
        %2043 = vmatpush1.msra.mxu0 0.0
        %2044 = vmatprep.subr.mxu0 0.0
        %2045 = vmatpush1.msra.mxu0 0.0
        %2046 = vmatprep.subr.mxu0 0.0
        %2047 = vmatpush1.msra.mxu0 0.0
        %2048 = vmatprep.subr.mxu0 0.0
        %2049 = vmatpush1.msra.mxu0 0.0
        %2050 = vmatprep.subr.mxu0 0.0
        %2051 = vmatpush1.msra.mxu0 0.0
        %2052 = vmatprep.subr.mxu0 0.0
        %2053 = vmatpush1.msra.mxu0 0.0
        %2054 = vmatprep.subr.mxu0 0.0
        %2055 = vmatpush1.msra.mxu0 0.0
        %2056 = vmatprep.subr.mxu0 0.0
        %2057 = vmatpush1.msra.mxu0 0.0
        %2058 = vmatprep.subr.mxu0 0.0
        %2059 = vmatpush1.msra.mxu0 0.0
        %2060 = vmatprep.subr.mxu0 0.0
        %2061 = vmatpush1.msra.mxu0 0.0
        %2062 = vmatprep.subr.mxu0 0.0
        %2063 = vmatpush1.msra.mxu0 0.0
        %2064 = vmatprep.subr.mxu0 0.0
        %2065 = vmatpush1.msra.mxu0 0.0
        %2066 = vmatprep.subr.mxu0 0.0
        %2067 = vmatpush1.msra.mxu0 0.0
        %2068 = vmatprep.subr.mxu0 0.0
        %2069 = vmatpush1.msra.mxu0 0.0
        %2070 = vmatprep.subr.mxu0 0.0
        %2071 = vmatpush1.msra.mxu0 0.0
        %2072 = vmatprep.subr.mxu0 0.0
        %2073 = vmatpush1.msra.mxu0 0.0
        %2074 = vmatprep.subr.mxu0 0.0
        %2075 = vmatpush1.msra.mxu0 0.0
        %2076 = vmatprep.subr.mxu0 0.0
        %2077 = vmatpush1.msra.mxu0 0.0
        %2078 = vmatprep.subr.mxu0 0.0
        %2079 = vmatpush1.msra.mxu0 0.0
        %2080 = vmatprep.mubr.f32.mxu0 0.0
        %2081 = vmatmul.mubr.f32.gmra.mrb[0].mxu0 %v2014
        %v2082 = vpop.f32.mrb[0].mxu0
        %v2083 = vadd.f32 %v1687, %v2082
        %v2084 = vpop.f32.mrb[0].mxu0
        %2085 = vdwg.mxu0
        %2086 = vmax.xlane.f32.xlu0 %v2083
        %v2087 = vpop.xlane.xlu0 %2086
        %v2088 = vsub.f32 %v2083, %v2087
        %v2089 = vmul.f32 %v2088, 1.442695
        %v2090 = vpow.pop %v2089
        %2091 = vadd.xlane.f32.xlu0 %v2090
        %v2092 = vpop.xlane.xlu0 %2091
        %v2093 = vrcp.pop %v2092
        %v2094 = vmul.f32 %v2090, %v2093
        %s2095 = scalar_lea.vmem %s913, 128 [#allocation10]
        %v2096 = vld [vmem:[%s2095] sm:$0xff]
        %v2097 = vld [vmem:[%s2095 + $0x8] sm:$0xff]
        %v2098 = vld [vmem:[%s2095 + $0x10] sm:$0xff]
        %v2099 = vld [vmem:[%s2095 + $0x18] sm:$0xff]
        %v2100 = vld [vmem:[%s2095 + $0x20] sm:$0xff]
        %v2101 = vld [vmem:[%s2095 + $0x28] sm:$0xff]
        %v2102 = vld [vmem:[%s2095 + $0x30] sm:$0xff]
        %v2103 = vld [vmem:[%s2095 + $0x38] sm:$0xff]
        %v2104 = vld [vmem:[%s2095 + $0x40] sm:$0xff]
        %v2105 = vld [vmem:[%s2095 + $0x48] sm:$0xff]
        %v2106 = vld [vmem:[%s2095 + $0x50] sm:$0xff]
        %v2107 = vld [vmem:[%s2095 + $0x58] sm:$0xff]
        %v2108 = vld [vmem:[%s2095 + $0x60] sm:$0xff]
        %v2109 = vld [vmem:[%s2095 + $0x68] sm:$0xff]
        %v2110 = vld [vmem:[%s2095 + $0x70] sm:$0xff]
        %v2111 = vld [vmem:[%s2095 + $0x78] sm:$0xff]
        %2112 = vmatprep.subr.mxu0 0.0
        %2113 = vmatpush1.msra.mxu0 %v2096
        %2114 = vmatprep.subr.mxu0 0.0
        %2115 = vmatpush1.msra.mxu0 %v2097
        %2116 = vmatprep.subr.mxu0 0.0
        %2117 = vmatpush1.msra.mxu0 %v2098
        %2118 = vmatprep.subr.mxu0 0.0
        %2119 = vmatpush1.msra.mxu0 %v2099
        %2120 = vmatprep.subr.mxu0 0.0
        %2121 = vmatpush1.msra.mxu0 %v2100
        %2122 = vmatprep.subr.mxu0 0.0
        %2123 = vmatpush1.msra.mxu0 %v2101
        %2124 = vmatprep.subr.mxu0 0.0
        %2125 = vmatpush1.msra.mxu0 %v2102
        %2126 = vmatprep.subr.mxu0 0.0
        %2127 = vmatpush1.msra.mxu0 %v2103
        %2128 = vmatprep.subr.mxu0 0.0
        %2129 = vmatpush1.msra.mxu0 %v2104
        %2130 = vmatprep.subr.mxu0 0.0
        %2131 = vmatpush1.msra.mxu0 %v2105
        %2132 = vmatprep.subr.mxu0 0.0
        %2133 = vmatpush1.msra.mxu0 %v2106
        %2134 = vmatprep.subr.mxu0 0.0
        %2135 = vmatpush1.msra.mxu0 %v2107
        %2136 = vmatprep.subr.mxu0 0.0
        %2137 = vmatpush1.msra.mxu0 %v2108
        %2138 = vmatprep.subr.mxu0 0.0
        %2139 = vmatpush1.msra.mxu0 %v2109
        %2140 = vmatprep.subr.mxu0 0.0
        %2141 = vmatpush1.msra.mxu0 %v2110
        %2142 = vmatprep.subr.mxu0 0.0
        %2143 = vmatpush1.msra.mxu0 %v2111
        %2144 = vmatprep.subr.mxu0 0.0
        %2145 = vmatpush1.msra.mxu0 0.0
        %2146 = vmatprep.subr.mxu0 0.0
        %2147 = vmatpush1.msra.mxu0 0.0
        %2148 = vmatprep.subr.mxu0 0.0
        %2149 = vmatpush1.msra.mxu0 0.0
        %2150 = vmatprep.subr.mxu0 0.0
        %2151 = vmatpush1.msra.mxu0 0.0
        %2152 = vmatprep.subr.mxu0 0.0
        %2153 = vmatpush1.msra.mxu0 0.0
        %2154 = vmatprep.subr.mxu0 0.0
        %2155 = vmatpush1.msra.mxu0 0.0
        %2156 = vmatprep.subr.mxu0 0.0
        %2157 = vmatpush1.msra.mxu0 0.0
        %2158 = vmatprep.subr.mxu0 0.0
        %2159 = vmatpush1.msra.mxu0 0.0
        %2160 = vmatprep.subr.mxu0 0.0
        %2161 = vmatpush1.msra.mxu0 0.0
        %2162 = vmatprep.subr.mxu0 0.0
        %2163 = vmatpush1.msra.mxu0 0.0
        %2164 = vmatprep.subr.mxu0 0.0
        %2165 = vmatpush1.msra.mxu0 0.0
        %2166 = vmatprep.subr.mxu0 0.0
        %2167 = vmatpush1.msra.mxu0 0.0
        %2168 = vmatprep.subr.mxu0 0.0
        %2169 = vmatpush1.msra.mxu0 0.0
        %2170 = vmatprep.subr.mxu0 0.0
        %2171 = vmatpush1.msra.mxu0 0.0
        %2172 = vmatprep.subr.mxu0 0.0
        %2173 = vmatpush1.msra.mxu0 0.0
        %2174 = vmatprep.subr.mxu0 0.0
        %2175 = vmatpush1.msra.mxu0 0.0
        %2176 = vmatprep.mubr.f32.mxu0 0.0
        %2177 = vmatmul.mubr.f32.gmra.mrb[0].mxu0 %v2094
        %v2178 = vpop.f32.mrb[0].mxu0
        %v2179 = vadd.f32 0.0, %v2178
        %v2180 = vpop.f32.mrb[0].mxu0
        %2181 = vdwg.mxu0
        %2183 = vrot.lane.b32.xlu0 %v2179, 16
        %v2184 = vpop.permute.xlu0 %2183
        %v2186 = vsel %vm1167, %v1932, %v2184
        %v2187 = vld [vmem:[#allocation23] sm:$0xff]
        %v2188 = vld [vmem:[#allocation23 + $0x8] sm:$0xff]
        %v2189 = vld [vmem:[#allocation23 + $0x10] sm:$0xff]
        %v2190 = vld [vmem:[#allocation23 + $0x18] sm:$0xff]
        %v2191 = vld [vmem:[#allocation25] sm:$0x1]
        %v2193 = vlaneseq
        %v2194 = vshrl.u32 %v2193, 7
        %v2195 = vsub.s32 0, %v2194
        %v2196 = vrot.slane %v2191, %v2195
        %v2199 = vsel %vm1057, %v2186, 0
        %2201 = vmatprep.subr.mxu0 0.0
        %2202 = vmatpush1.msra.mxu0 %v2187
        %2203 = vmatprep.subr.mxu0 0.0
        %2204 = vmatpush1.msra.mxu0 %v2188
        %2205 = vmatprep.subr.mxu0 0.0
        %2206 = vmatpush1.msra.mxu0 %v2189
        %2207 = vmatprep.subr.mxu0 0.0
        %2208 = vmatpush1.msra.mxu0 %v2190
        %2209 = vmatprep.subr.mxu0 0.0
        %2210 = vmatpush1.msra.mxu0 0.0
        %2211 = vmatprep.subr.mxu0 0.0
        %2212 = vmatpush1.msra.mxu0 0.0
        %2213 = vmatprep.subr.mxu0 0.0
        %2214 = vmatpush1.msra.mxu0 0.0
        %2215 = vmatprep.subr.mxu0 0.0
        %2216 = vmatpush1.msra.mxu0 0.0
        %2217 = vmatprep.subr.mxu0 0.0
        %2218 = vmatpush1.msra.mxu0 0.0
        %2219 = vmatprep.subr.mxu0 0.0
        %2220 = vmatpush1.msra.mxu0 0.0
        %2221 = vmatprep.subr.mxu0 0.0
        %2222 = vmatpush1.msra.mxu0 0.0
        %2223 = vmatprep.subr.mxu0 0.0
        %2224 = vmatpush1.msra.mxu0 0.0
        %2225 = vmatprep.subr.mxu0 0.0
        %2226 = vmatpush1.msra.mxu0 0.0
        %2227 = vmatprep.subr.mxu0 0.0
        %2228 = vmatpush1.msra.mxu0 0.0
        %2229 = vmatprep.subr.mxu0 0.0
        %2230 = vmatpush1.msra.mxu0 0.0
        %2231 = vmatprep.subr.mxu0 0.0
        %2232 = vmatpush1.msra.mxu0 0.0
        %2233 = vmatprep.subr.mxu0 0.0
        %2234 = vmatpush1.msra.mxu0 0.0
        %2235 = vmatprep.subr.mxu0 0.0
        %2236 = vmatpush1.msra.mxu0 0.0
        %2237 = vmatprep.subr.mxu0 0.0
        %2238 = vmatpush1.msra.mxu0 0.0
        %2239 = vmatprep.subr.mxu0 0.0
        %2240 = vmatpush1.msra.mxu0 0.0
        %2241 = vmatprep.subr.mxu0 0.0
        %2242 = vmatpush1.msra.mxu0 0.0
        %2243 = vmatprep.subr.mxu0 0.0
        %2244 = vmatpush1.msra.mxu0 0.0
        %2245 = vmatprep.subr.mxu0 0.0
        %2246 = vmatpush1.msra.mxu0 0.0
        %2247 = vmatprep.subr.mxu0 0.0
        %2248 = vmatpush1.msra.mxu0 0.0
        %2249 = vmatprep.subr.mxu0 0.0
        %2250 = vmatpush1.msra.mxu0 0.0
        %2251 = vmatprep.subr.mxu0 0.0
        %2252 = vmatpush1.msra.mxu0 0.0
        %2253 = vmatprep.subr.mxu0 0.0
        %2254 = vmatpush1.msra.mxu0 0.0
        %2255 = vmatprep.subr.mxu0 0.0
        %2256 = vmatpush1.msra.mxu0 0.0
        %2257 = vmatprep.subr.mxu0 0.0
        %2258 = vmatpush1.msra.mxu0 0.0
        %2259 = vmatprep.subr.mxu0 0.0
        %2260 = vmatpush1.msra.mxu0 0.0
        %2261 = vmatprep.subr.mxu0 0.0
        %2262 = vmatpush1.msra.mxu0 0.0
        %2263 = vmatprep.subr.mxu0 0.0
        %2264 = vmatpush1.msra.mxu0 0.0
        %2265 = vmatprep.mubr.f32.mxu0 0.0
        %2266 = vmatmul.mubr.f32.gmra.mrb[0].mxu0 %v2199
        %v2267 = vpop.f32.mrb[0].mxu0
        %v2268 = vadd.f32 %v2196, %v2267
        %v2269 = vpop.f32.mrb[0].mxu0
        %2270 = vdwg.mxu0
        %v2271 = vadd.f32 %v1654, %v2268
        %v2272 = vsel %vm1057, %v2271, 0.0
        %2273 = vadd.xlane.f32.xlu0 %v2272
        %v2274 = vpop.xlane.xlu0 %2273
        %v2275 = vmul.f32 %v2274, %v1061
        %v2276 = vsub.f32 %v2271, %v2275
        %v2277 = vmul.f32 %v2276, %v2276
        %v2278 = vsel %vm1057, %v2277, 0.0
        %2279 = vadd.xlane.f32.xlu0 %v2278
        %v2280 = vpop.xlane.xlu0 %2279
        %v2281 = vmul.f32 %v2280, %v1061
        %v2282 = vadd.f32 %v2281, 1e-05
        %v2283 = vrsqrt.pop %v2282
        %v2284 = vmul.f32 %v2276, %v2283
        %v2285 = vld [vmem:[#allocation26] sm:$0x1]
        %v2287 = vlaneseq
        %v2288 = vshrl.u32 %v2287, 7
        %v2289 = vsub.s32 0, %v2288
        %v2290 = vrot.slane %v2285, %v2289
        %v2292 = vmul.f32 %v2284, %v2290
        %v2293 = vld [vmem:[#allocation28] sm:$0x1]
        %v2295 = vlaneseq
        %v2296 = vshrl.u32 %v2295, 7
        %v2297 = vsub.s32 0, %v2296
        %v2298 = vrot.slane %v2293, %v2297
        %v2300 = vadd.f32 %v2292, %v2298
        %v2301 = vld [vmem:[#allocation29] sm:$0xff]
        %v2302 = vld [vmem:[#allocation29 + $0x8] sm:$0xff]
        %v2303 = vld [vmem:[#allocation29 + $0x10] sm:$0xff]
        %v2304 = vld [vmem:[#allocation29 + $0x18] sm:$0xff]
        %v2305 = vld [vmem:[#allocation31] sm:$0x1]
        %v2307 = vlaneseq
        %v2308 = vshrl.u32 %v2307, 7
        %v2309 = vsub.s32 0, %v2308
        %v2310 = vrot.slane %v2305, %v2309
        %v2313 = vsel %vm1057, %v2300, 0
        %2315 = vmatprep.subr.mxu0 0.0
        %2316 = vmatpush1.msra.mxu0 %v2301
        %2317 = vmatprep.subr.mxu0 0.0
        %2318 = vmatpush1.msra.mxu0 %v2302
        %2319 = vmatprep.subr.mxu0 0.0
        %2320 = vmatpush1.msra.mxu0 %v2303
        %2321 = vmatprep.subr.mxu0 0.0
        %2322 = vmatpush1.msra.mxu0 %v2304
        %2323 = vmatprep.subr.mxu0 0.0
        %2324 = vmatpush1.msra.mxu0 0.0
        %2325 = vmatprep.subr.mxu0 0.0
        %2326 = vmatpush1.msra.mxu0 0.0
        %2327 = vmatprep.subr.mxu0 0.0
        %2328 = vmatpush1.msra.mxu0 0.0
        %2329 = vmatprep.subr.mxu0 0.0
        %2330 = vmatpush1.msra.mxu0 0.0
        %2331 = vmatprep.subr.mxu0 0.0
        %2332 = vmatpush1.msra.mxu0 0.0
        %2333 = vmatprep.subr.mxu0 0.0
        %2334 = vmatpush1.msra.mxu0 0.0
        %2335 = vmatprep.subr.mxu0 0.0
        %2336 = vmatpush1.msra.mxu0 0.0
        %2337 = vmatprep.subr.mxu0 0.0
        %2338 = vmatpush1.msra.mxu0 0.0
        %2339 = vmatprep.subr.mxu0 0.0
        %2340 = vmatpush1.msra.mxu0 0.0
        %2341 = vmatprep.subr.mxu0 0.0
        %2342 = vmatpush1.msra.mxu0 0.0
        %2343 = vmatprep.subr.mxu0 0.0
        %2344 = vmatpush1.msra.mxu0 0.0
        %2345 = vmatprep.subr.mxu0 0.0
        %2346 = vmatpush1.msra.mxu0 0.0
        %2347 = vmatprep.subr.mxu0 0.0
        %2348 = vmatpush1.msra.mxu0 0.0
        %2349 = vmatprep.subr.mxu0 0.0
        %2350 = vmatpush1.msra.mxu0 0.0
        %2351 = vmatprep.subr.mxu0 0.0
        %2352 = vmatpush1.msra.mxu0 0.0
        %2353 = vmatprep.subr.mxu0 0.0
        %2354 = vmatpush1.msra.mxu0 0.0
        %2355 = vmatprep.subr.mxu0 0.0
        %2356 = vmatpush1.msra.mxu0 0.0
        %2357 = vmatprep.subr.mxu0 0.0
        %2358 = vmatpush1.msra.mxu0 0.0
        %2359 = vmatprep.subr.mxu0 0.0
        %2360 = vmatpush1.msra.mxu0 0.0
        %2361 = vmatprep.subr.mxu0 0.0
        %2362 = vmatpush1.msra.mxu0 0.0
        %2363 = vmatprep.subr.mxu0 0.0
        %2364 = vmatpush1.msra.mxu0 0.0
        %2365 = vmatprep.subr.mxu0 0.0
        %2366 = vmatpush1.msra.mxu0 0.0
        %2367 = vmatprep.subr.mxu0 0.0
        %2368 = vmatpush1.msra.mxu0 0.0
        %2369 = vmatprep.subr.mxu0 0.0
        %2370 = vmatpush1.msra.mxu0 0.0
        %2371 = vmatprep.subr.mxu0 0.0
        %2372 = vmatpush1.msra.mxu0 0.0
        %2373 = vmatprep.subr.mxu0 0.0
        %2374 = vmatpush1.msra.mxu0 0.0
        %2375 = vmatprep.subr.mxu0 0.0
        %2376 = vmatpush1.msra.mxu0 0.0
        %2377 = vmatprep.subr.mxu0 0.0
        %2378 = vmatpush1.msra.mxu0 0.0
        %2379 = vmatprep.mubr.f32.mxu0 0.0
        %2380 = vmatmul.mubr.f32.gmra.mrb[0].mxu0 %v2313
        %v2381 = vpop.f32.mrb[0].mxu0
        %v2382 = vadd.f32 %v2310, %v2381
        %v2383 = vpop.f32.mrb[0].mxu0
        %2384 = vdwg.mxu0
        %v2385 = vmul.f32 %v2382, %v2382
        %v2386 = vmul.f32 %v2382, %v2385
        %v2387 = vmul.f32 %v2386, 0.044715
        %v2388 = vadd.f32 %v2382, %v2387
        %v2389 = vmul.f32 %v2388, 0.7978846
        %v2390 = vtanh.pop %v2389
        %v2391 = vadd.f32 %v2390, 1.0
        %v2392 = vmul.f32 %v2391, 0.5
        %v2393 = vmul.f32 %v2382, %v2392
        %v2394 = vld [vmem:[#allocation32] sm:$0xff]
        %v2395 = vld [vmem:[#allocation32 + $0x8] sm:$0xff]
        %v2396 = vld [vmem:[#allocation32 + $0x10] sm:$0xff]
        %v2397 = vld [vmem:[#allocation32 + $0x18] sm:$0xff]
        %v2398 = vld [vmem:[#allocation32 + $0x20] sm:$0xff]
        %v2399 = vld [vmem:[#allocation32 + $0x28] sm:$0xff]
        %v2400 = vld [vmem:[#allocation32 + $0x30] sm:$0xff]
        %v2401 = vld [vmem:[#allocation32 + $0x38] sm:$0xff]
        %v2402 = vld [vmem:[#allocation32 + $0x40] sm:$0xff]
        %v2403 = vld [vmem:[#allocation32 + $0x48] sm:$0xff]
        %v2404 = vld [vmem:[#allocation32 + $0x50] sm:$0xff]
        %v2405 = vld [vmem:[#allocation32 + $0x58] sm:$0xff]
        %v2406 = vld [vmem:[#allocation32 + $0x60] sm:$0xff]
        %v2407 = vld [vmem:[#allocation32 + $0x68] sm:$0xff]
        %v2408 = vld [vmem:[#allocation32 + $0x70] sm:$0xff]
        %v2409 = vld [vmem:[#allocation32 + $0x78] sm:$0xff]
        %2410 = vmatprep.subr.mxu0 0.0
        %2411 = vmatpush1.msra.mxu0 %v2394
        %2412 = vmatprep.subr.mxu0 0.0
        %2413 = vmatpush1.msra.mxu0 %v2395
        %2414 = vmatprep.subr.mxu0 0.0
        %2415 = vmatpush1.msra.mxu0 %v2396
        %2416 = vmatprep.subr.mxu0 0.0
        %2417 = vmatpush1.msra.mxu0 %v2397
        %2418 = vmatprep.subr.mxu0 0.0
        %2419 = vmatpush1.msra.mxu0 %v2398
        %2420 = vmatprep.subr.mxu0 0.0
        %2421 = vmatpush1.msra.mxu0 %v2399
        %2422 = vmatprep.subr.mxu0 0.0
        %2423 = vmatpush1.msra.mxu0 %v2400
        %2424 = vmatprep.subr.mxu0 0.0
        %2425 = vmatpush1.msra.mxu0 %v2401
        %2426 = vmatprep.subr.mxu0 0.0
        %2427 = vmatpush1.msra.mxu0 %v2402
        %2428 = vmatprep.subr.mxu0 0.0
        %2429 = vmatpush1.msra.mxu0 %v2403
        %2430 = vmatprep.subr.mxu0 0.0
        %2431 = vmatpush1.msra.mxu0 %v2404
        %2432 = vmatprep.subr.mxu0 0.0
        %2433 = vmatpush1.msra.mxu0 %v2405
        %2434 = vmatprep.subr.mxu0 0.0
        %2435 = vmatpush1.msra.mxu0 %v2406
        %2436 = vmatprep.subr.mxu0 0.0
        %2437 = vmatpush1.msra.mxu0 %v2407
        %2438 = vmatprep.subr.mxu0 0.0
        %2439 = vmatpush1.msra.mxu0 %v2408
        %2440 = vmatprep.subr.mxu0 0.0
        %2441 = vmatpush1.msra.mxu0 %v2409
        %2442 = vmatprep.subr.mxu0 0.0
        %2443 = vmatpush1.msra.mxu0 0.0
        %2444 = vmatprep.subr.mxu0 0.0
        %2445 = vmatpush1.msra.mxu0 0.0
        %2446 = vmatprep.subr.mxu0 0.0
        %2447 = vmatpush1.msra.mxu0 0.0
        %2448 = vmatprep.subr.mxu0 0.0
        %2449 = vmatpush1.msra.mxu0 0.0
        %2450 = vmatprep.subr.mxu0 0.0
        %2451 = vmatpush1.msra.mxu0 0.0
        %2452 = vmatprep.subr.mxu0 0.0
        %2453 = vmatpush1.msra.mxu0 0.0
        %2454 = vmatprep.subr.mxu0 0.0
        %2455 = vmatpush1.msra.mxu0 0.0
        %2456 = vmatprep.subr.mxu0 0.0
        %2457 = vmatpush1.msra.mxu0 0.0
        %2458 = vmatprep.subr.mxu0 0.0
        %2459 = vmatpush1.msra.mxu0 0.0
        %2460 = vmatprep.subr.mxu0 0.0
        %2461 = vmatpush1.msra.mxu0 0.0
        %2462 = vmatprep.subr.mxu0 0.0
        %2463 = vmatpush1.msra.mxu0 0.0
        %2464 = vmatprep.subr.mxu0 0.0
        %2465 = vmatpush1.msra.mxu0 0.0
        %2466 = vmatprep.subr.mxu0 0.0
        %2467 = vmatpush1.msra.mxu0 0.0
        %2468 = vmatprep.subr.mxu0 0.0
        %2469 = vmatpush1.msra.mxu0 0.0
        %2470 = vmatprep.subr.mxu0 0.0
        %2471 = vmatpush1.msra.mxu0 0.0
        %2472 = vmatprep.subr.mxu0 0.0
        %2473 = vmatpush1.msra.mxu0 0.0
        %2474 = vmatprep.mubr.f32.mxu0 0.0
        %2475 = vmatmul.mubr.f32.gmra.mrb[0].mxu0 %v2393
        %v2476 = vpop.f32.mrb[0].mxu0
        %v2477 = vadd.f32 0.0, %v2476
        %v2478 = vpop.f32.mrb[0].mxu0
        %2479 = vdwg.mxu0
        %v2480 = vadd.f32 %v2271, %v2477
        %v2481 = vld [vmem:[#allocation34] sm:$0x1]
        %v2483 = vlaneseq
        %v2484 = vshrl.u32 %v2483, 7
        %v2485 = vsub.s32 0, %v2484
        %v2486 = vrot.slane %v2481, %v2485
        %v2488 = vadd.f32 %v2480, %v2486
        %2489 = vst.msk [vmem:[%s1055] sm:$0xff] %vm1057, %v2488
        %s2490 = sand.u32 %s542, 1
        %s2491 = scalar_lea.sflag [#allocation4], %s2490
        %s2492 = sand.u32 %s542, 1
        %s2493 = smul.addr %s2492, 8
        %s2494 = scalar_lea.vmem [#allocation35], %s2493
        // Predicated region
        $region189: #{tpu_custom_call.1} parent=103 // pred_check
          %p2495 = pneg %p552
        $region190: #{tpu_custom_call.1} parent=103 // pred_check_branch
          %2497 = sbr.rel (%p2495) target = $region192
        $region191: #{tpu_custom_call.1} parent=103 // pred_region
          %s2499 = ssub.s32 128, 128
          %2500 = vsyncadd %s2491, %s2499
          %s2501 = smul.addr %s56, 2
          %s2502 = sadd.s32 %s57, %s2501
          %s2503 = smul.addr %s2502, 128
          %s2504 = scalar_lea.hbm %s21, %s2503
          %s2506 = sshll.u32 %s2494, 4
          %s2507 = int_to_ptr.vmem [resolvable:$true] %s2506
          %2509 = dma.vmem_to_hbm [thread:$0]  %s2507, 128, %s2504, %s2491
        $region192: #{tpu_custom_call.1} parent=103 // pred_fallthru
          _
      $region104: #{tpu_custom_call.1} parent=5 // pred_fallthru
        _
      %p2510 = scmp.le.s32.totalorder 2, %s47
      // Predicated region
      $region193: #{tpu_custom_call.1} parent=5 // pred_check
        %p2511 = pneg %p2510
      $region194: #{tpu_custom_call.1} parent=5 // pred_check_branch
        %2513 = sbr.rel (%p2511) target = $region196
      $region195: #{tpu_custom_call.1} parent=5 // pred_region
        %s2514 = ssub.s32 %s47, 2
        // Predicated region
        $region197: #{tpu_custom_call.1} parent=195 // pred_check
          %p2515 = pneg %p558
        $region198: #{tpu_custom_call.1} parent=195 // pred_check_branch
          %2517 = sbr.rel (%p2515) target = $region200
        $region199: #{tpu_custom_call.1} parent=195 // pred_region
          %s2518 = sand.u32 %s543, 1
          %s2519 = scalar_lea.sflag [#allocation4], %s2518
          %s2520 = sand.u32 %s543, 1
          %s2521 = smul.addr %s2520, 8
          %s2522 = scalar_lea.vmem [#allocation35], %s2521
          %2523 = dma.done %s2519, 128
        $region200: #{tpu_custom_call.1} parent=195 // pred_fallthru
          _
      $region196: #{tpu_custom_call.1} parent=5 // pred_fallthru
        _
    $region6: #{tpu_custom_call.1} parent=1 // loop_footer
      %s51 = sadd.s32 1, %s47
    $region7: #{tpu_custom_call.1} parent=1 // loop_footer_branch
      %46 = sbr.rel target = $region3
    $region8: #{tpu_custom_call.1} parent=1 // loop_exit
      _
    %2524 = vsyncpa [#allocation3], 1
    %s2525 = scalar_lea.sflag [#allocation3], 1
    %2526 = vsyncpa %s2525, 1
    %2527 = vsyncpa [#allocation6], 1
    %s2528 = scalar_lea.sflag [#allocation6], 1
    %2529 = vsyncpa %s2528, 1
    %2530 = vsyncpa [#allocation9], 1
    %s2531 = scalar_lea.sflag [#allocation9], 1
    %2532 = vsyncpa %s2531, 1
    %2533 = vsyncpa [#allocation12], 1
    %2534 = vsyncpa [#allocation15], 1
    %2535 = vsyncpa [#allocation18], 1
    %2536 = vsyncpa [#allocation21], 1
    %2537 = vsyncpa [#allocation24], 1
    %2538 = vsyncpa [#allocation27], 1
    %2539 = vsyncpa [#allocation30], 1
    %2540 = vsyncpa [#allocation33], 1
    %2541 = vsyncpa [#allocation4], 1
    %s2542 = scalar_lea.sflag [#allocation4], 1
    %2543 = vsyncpa %s2542, 1

</llo_original>
